<compile_context>
chip_gen: v6e
topology: v6e:2x2x1
jax: 0.10.0
libtpu: 0.0.40
codegen_flags: <defaults>
</compile_context>

<pallas_src>
import functools
import math

import numpy as np
import jax
import jax.numpy as jnp
from jax.experimental import pallas as pl
from jax.experimental.pallas import tpu as pltpu


_DT = jnp.bfloat16          # internal activation / MXU-operand dtype
_LANE_TILE = 512            # lane (N) tile for every GEMM-style kernel
# NOTE: at these small shapes all blocks are far below VMEM limits; for large
# images add K/N tiling (v7x has only 64 MiB VMEM and 2 TensorCores).


def _round_up(x, m):
    return ((x + m - 1) // m) * m


# -----------------------------------------------------------------------------
# Pallas kernels
# -----------------------------------------------------------------------------
def _gemm_kernel(*refs, act, res_mode):
    """out = epilogue(A @ B + bias).

    A:[R,K]   resident weights (or small activation matrix), bf16
    B:[K,TN]  lane tile of the big operand, bf16
    bias:[R,1] f32, broadcast over lanes
    residual:[R,TN] (optional) fused add / add+relu
    """
    if res_mode is None:
        a_ref, b_ref, bias_ref, o_ref = refs
        res = None
    else:
        a_ref, b_ref, bias_ref, r_ref, o_ref = refs
        res = r_ref[...].astype(jnp.float32)
    acc = jnp.dot(a_ref[...], b_ref[...], preferred_element_type=jnp.float32)
    acc = acc + bias_ref[...]                      # f32 epilogue (v5e-safe)
    if res_mode == "add":
        acc = acc + res
    elif res_mode == "add_relu":
        acc = jnp.maximum(acc + res, 0.0)
    if act == "relu":
        acc = jnp.maximum(acc, 0.0)
    o_ref[...] = acc.astype(o_ref.dtype)


def _gate_kernel(p_ref, g_ref, o_ref):
    """MCEDM gating: out = p * sigmoid(g) + p (g broadcast over channel rows)."""
    p = p_ref[...].astype(jnp.float32)
    g = g_ref[...].astype(jnp.float32)
    o_ref[...] = (p * jax.nn.sigmoid(g) + p).astype(o_ref.dtype)


# -----------------------------------------------------------------------------
# GEMM wrapper (lane-dense, fused epilogue)
# -----------------------------------------------------------------------------
def pallas_gemm(a, b, bias, *, act="none", residual=None, res_mode=None,
                out_dtype=_DT, lane_tile=_LANE_TILE):
    """out[R, M] = epilogue(a[R, K] @ b[K, M] + bias); M on lanes."""
    Rp, Kp = a.shape
    Kb, M = b.shape
    assert Kb == Kp, (Kb, Kp)
    TN = min(lane_tile, _round_up(M, 128))
    Mp = _round_up(M, TN)
    if Mp != M:
        b = jnp.pad(b, ((0, 0), (0, Mp - M)))

    args = [a, b, bias]
    in_specs = [
        pl.BlockSpec((Rp, Kp), lambda j: (0, 0)),    # weights: VMEM-resident
        pl.BlockSpec((Kp, TN), lambda j: (0, j)),    # activations: lane tile
        pl.BlockSpec((Rp, 1), lambda j: (0, 0)),     # bias (f32)
    ]
    use_res = residual is not None
    if use_res:
        assert res_mode in ("add", "add_relu")
        r = residual.astype(_DT)
        if r.shape[0] != Rp:
            r = jnp.pad(r, ((0, Rp - r.shape[0]), (0, 0)))
        if r.shape[1] != Mp:
            r = jnp.pad(r, ((0, 0), (0, Mp - r.shape[1])))
        args.append(r)
        in_specs.append(pl.BlockSpec((Rp, TN), lambda j: (0, j)))

    out = pl.pallas_call(
        functools.partial(_gemm_kernel, act=act,
                          res_mode=res_mode if use_res else None),
        out_shape=jax.ShapeDtypeStruct((Rp, Mp), out_dtype),
        grid=(Mp // TN,),
        in_specs=in_specs,
        out_specs=pl.BlockSpec((Rp, TN), lambda j: (0, j)),
        compiler_params=pltpu.CompilerParams(
            dimension_semantics=("parallel",)),
    )(*args)
    return out[:, :M]


# -----------------------------------------------------------------------------
# conv2d on channels-first [C, B, H, W] maps
# -----------------------------------------------------------------------------
def conv2d_cf(x_cf, p, *, stride=1, pad=0, act="none",
              residual=None, res_mode=None, out_dtype=_DT):
    kh, kw, cin, cout = p["kh"], p["kw"], p["cin"], p["cout"]
    C, B, H, W = x_cf.shape
    assert C == cin
    Ho = (H + 2 * pad - kh) // stride + 1
    Wo = (W + 2 * pad - kw) // stride + 1
    if kh == 1 and kw == 1 and stride == 1 and pad == 0:
        cols = x_cf.reshape(C, B * H * W)            # no im2col for 1x1 convs
    else:
        xp = jnp.pad(x_cf, ((0, 0), (0, 0), (pad, pad), (pad, pad)))
        taps = []
        for i in range(kh):
            for j in range(kw):
                taps.append(xp[:, :, i:i + (Ho - 1) * stride + 1:stride,
                               j:j + (Wo - 1) * stride + 1:stride])
        cols = jnp.stack(taps, axis=0).reshape(kh * kw * C, B * Ho * Wo)
    Kp = p["A"].shape[1]
    if cols.shape[0] != Kp:
        cols = jnp.pad(cols, ((0, Kp - cols.shape[0]), (0, 0)))
    out = pallas_gemm(p["A"], cols.astype(_DT), p["b"], act=act,
                      residual=residual, res_mode=res_mode, out_dtype=out_dtype)
    return out[:cout].reshape(cout, B, Ho, Wo)


# -----------------------------------------------------------------------------
# bilinear resize (align_corners=False) as a single lane-dense GEMM
# -----------------------------------------------------------------------------
def _bilinear_matrix_np(out_size, in_size):
    if in_size == 1:
        return np.ones((out_size, 1), np.float32)
    scale = in_size / out_size
    i = np.arange(out_size)
    src = np.clip((i + 0.5) * scale - 0.5, 0.0, in_size - 1)
    lo = np.floor(src).astype(np.int64)
    hi = np.minimum(lo + 1, in_size - 1)
    w_hi = (src - lo).astype(np.float32)
    w_lo = 1.0 - w_hi
    mat = np.zeros((out_size, in_size), np.float32)
    mat[np.arange(out_size), lo] += w_lo
    mat[np.arange(out_size), hi] += w_hi
    return mat


@functools.lru_cache(maxsize=None)
def _resize_matrix(Ho, Wo, h, w):
    """[h*w (padded to x16), Ho*Wo] separable bilinear matrix (kron of 1-D mats)."""
    r2t = np.kron(_bilinear_matrix_np(Ho, h), _bilinear_matrix_np(Wo, w)).T
    K = h * w
    Kp = _round_up(K, 16)
    if Kp != K:
        r2t = np.pad(r2t, ((0, Kp - K), (0, 0)))
    return jnp.asarray(r2t, dtype=_DT)


def bilinear_resize_cf(x_cf, Ho, Wo, *, residual=None, res_mode=None,
                       act="none", out_dtype=_DT):
    """[C,B,h,w] -> [C,B,Ho,Wo] as one GEMM: [C*B, h*w] @ [h*w, Ho*Wo]."""
    C, B, h, w = x_cf.shape
    if (h, w) == (Ho, Wo) and residual is None and act == "none":
        return x_cf.astype(out_dtype)
    r2t = _resize_matrix(Ho, Wo, h, w)
    Kp = r2t.shape[0]
    a = x_cf.reshape(C * B, h * w).astype(_DT)
    rows = C * B
    Rp = _round_up(rows, 16)
    if Kp != h * w:
        a = jnp.pad(a, ((0, 0), (0, Kp - h * w)))
    if Rp != rows:
        a = jnp.pad(a, ((0, Rp - rows), (0, 0)))
    bias = jnp.zeros((Rp, 1), jnp.float32)
    out = pallas_gemm(a, r2t, bias, act=act, residual=residual,
                      res_mode=res_mode, out_dtype=out_dtype)
    return out[:rows].reshape(C, B, Ho, Wo)


# -----------------------------------------------------------------------------
# MCEDM gate (lane-dense elementwise kernel)
# -----------------------------------------------------------------------------
def mcedm_gate(p_cf, prior_cf, lane_tile=_LANE_TILE):
    C, B, h, w = p_cf.shape
    M = B * h * w
    TN = min(lane_tile, _round_up(M, 128))
    Mp = _round_up(M, TN)
    p2 = p_cf.reshape(C, M).astype(_DT)
    g2 = prior_cf.reshape(1, M).astype(_DT)
    if Mp != M:
        p2 = jnp.pad(p2, ((0, 0), (0, Mp - M)))
        g2 = jnp.pad(g2, ((0, 0), (0, Mp - M)))
    out = pl.pallas_call(
        _gate_kernel,
        out_shape=jax.ShapeDtypeStruct((C, Mp), _DT),
        grid=(Mp // TN,),
        in_specs=[pl.BlockSpec((C, TN), lambda j: (0, j)),
                  pl.BlockSpec((1, TN), lambda j: (0, j))],
        out_specs=pl.BlockSpec((C, TN), lambda j: (0, j)),
        compiler_params=pltpu.CompilerParams(
            dimension_semantics=("parallel",)),
    )(p2, g2)
    return out[:, :M].reshape(C, B, h, w)


# -----------------------------------------------------------------------------
# parameters (deterministic, mirrors EDNet._init_weights: N(0, sqrt(2/fan_out)))
# weights are packed ONCE: transposed, zero-padded, bf16
# -----------------------------------------------------------------------------
def _pack_conv(key, kh, kw, cin, cout):
    std = math.sqrt(2.0 / (kh * kw * cout))
    w = std * jax.random.normal(key, (kh, kw, cin, cout), jnp.float32)
    K = kh * kw * cin
    a = w.reshape(K, cout).T                                   # [cout, K]
    Rp, Kp = _round_up(cout, 16), _round_up(K, 16)
    a = jnp.pad(a, ((0, Rp - cout), (0, Kp - K))).astype(_DT)
    bias = jnp.zeros((Rp, 1), jnp.float32)
    return {"A": a, "b": bias, "kh": kh, "kw": kw, "cin": cin, "cout": cout}


def init_params(key, channels=16):
    keys = iter(jax.random.split(key, 32))
    p = {}
    enc_ch = [(3, 8), (8, 16), (16, 32), (32, 64), (64, 64)]   # strides 2..32
    p["enc"] = [_pack_conv(next(keys), 3, 3, ci, co) for ci, co in enc_ch]
    p["lat"] = [_pack_conv(next(keys), 1, 1, c, channels) for c in (16, 32, 64, 64)]
    p["smooth"] = [_pack_conv(next(keys), 3, 3, channels, channels) for _ in range(3)]
    p["mffl_red"] = [_pack_conv(next(keys), 1, 1, c, channels) for c in (32, 64, 64)]
    p["mffl_fuse"] = _pack_conv(next(keys), 3, 3, 3 * channels, channels)
    p["mffl_head"] = _pack_conv(next(keys), 1, 1, channels, 1)
    p["mced_conv"] = [_pack_conv(next(keys), 3, 3, channels, channels) for _ in range(3)]
    p["mced_head"] = [_pack_conv(next(keys), 1, 1, channels, 1) for _ in range(3)]
    return p


# -----------------------------------------------------------------------------
# EDNet forward
# -----------------------------------------------------------------------------
def ednet_forward(params, x_nchw):
    B, _, H, W = x_nchw.shape
    x = jnp.transpose(x_nchw, (1, 0, 2, 3)).astype(_DT)        # [C, B, H, W]

    # ---- shared_encoder (synthetic resnet-style strided conv stack) ----
    feats = []
    h = x
    for pconv in params["enc"]:
        h = conv2d_cf(h, pconv, stride=2, pad=1, act="relu")
        feats.append(h)
    x0, x1, x2, x3, x4 = feats

    # ---- FPN: laterals + top-down merge (add+relu fused into resize GEMM) ----
    f1 = conv2d_cf(x1, params["lat"][0])
    f2 = conv2d_cf(x2, params["lat"][1])
    f3 = conv2d_cf(x3, params["lat"][2])
    f4 = conv2d_cf(x4, params["lat"][3])

    def merge(top, lateral, smooth_p):
        C, Bb, Ho, Wo = lateral.shape
        res2d = lateral.reshape(C * Bb, Ho * Wo)
        m = bilinear_resize_cf(top, Ho, Wo, residual=res2d, res_mode="add_relu")
        return conv2d_cf(m, smooth_p, stride=1, pad=1, act="relu")

    p3 = merge(f4, f3, params["smooth"][2])
    p2 = merge(p3, f2, params["smooth"][1])
    p1 = merge(p2, f1, params["smooth"][0])

    # ---- MFFL: multi-scale fusion -> prior_cam (1 channel, x2 resolution) ----
    h2, w2 = x2.shape[2], x2.shape[3]
    r2 = conv2d_cf(x2, params["mffl_red"][0], act="relu")
    r3 = bilinear_resize_cf(conv2d_cf(x3, params["mffl_red"][1], act="relu"), h2, w2)
    r4 = bilinear_resize_cf(conv2d_cf(x4, params["mffl_red"][2], act="relu"), h2, w2)
    fused = conv2d_cf(jnp.concatenate([r2, r3, r4], axis=0),
                      params["mffl_fuse"], stride=1, pad=1, act="relu")
    prior_cam = conv2d_cf(fused, params["mffl_head"])          # [1, B, h2, w2]

    pred_cam = bilinear_resize_cf(prior_cam, H, W, out_dtype=jnp.float32)

    # ---- MCEDM: per-scale refinement of [p1, p2, p3] guided by prior_cam ----
    outs = []
    for idx, pf in enumerate([p1, p2, p3]):
        _, Bb, hh, ww = pf.shape
        prior_i = bilinear_resize_cf(prior_cam, hh, ww)        # [1, B, hh, ww]
        feat = mcedm_gate(pf, prior_i)                         # p*sigmoid(prior)+p
        feat = conv2d_cf(feat, params["mced_conv"][idx], stride=1, pad=1, act="relu")
        res2d = prior_i.reshape(1, Bb * hh * ww)
        out_map = conv2d_cf(feat, params["mced_head"][idx],
                            residual=res2d, res_mode="add")    # res + prior_i fused
        outs.append(bilinear_resize_cf(out_map, H, W, out_dtype=jnp.float32))
    out1, out2, out3 = outs

    to_nchw = lambda t: jnp.transpose(t, (1, 0, 2, 3))         # [1,B,H,W] -> [B,1,H,W]
    return to_nchw(pred_cam), to_nchw(out1), to_nchw(out2), to_nchw(out3)


# -----------------------------------------------------------------------------
# main
# -----------------------------------------------------------------------------
if __name__ == "__main__":
    key = jax.random.PRNGKey(0)
    k_param, k_input = jax.random.split(key)
    params = init_params(k_param, channels=16)
    x = jax.random.normal(k_input, (2, 3, 64, 64), jnp.float32)  # NCHW like PyTorch

    fwd = jax.jit(lambda inp: ednet_forward(params, inp))
    pred_cam, out1, out2, out3 = fwd(x)
    jax.block_until_ready((pred_cam, out1, out2, out3))

    assert pred_cam.shape == (2, 1, 64, 64)
    assert out1.shape == (2, 1, 64, 64)
    assert out2.shape == (2, 1, 64, 64)
    assert out3.shape == (2, 1, 64, 64)
    for t in (pred_cam, out1, out2, out3):
        assert bool(jnp.isfinite(t).all())
    print("KERNEL_OK")
</pallas_src>

<mosaic_0001>
module attributes {stable_mosaic.version = 11 : i64} {
  func.func @_gemm_kernel(%arg0: i32, %arg1: memref<16x32xbf16, #tpu.memory_space<vmem>>, %arg2: memref<32x512xbf16, #tpu.memory_space<vmem>>, %arg3: memref<16x1xf32, #tpu.memory_space<vmem>>, %arg4: memref<16x512xbf16, #tpu.memory_space<vmem>>) attributes {dimension_semantics = [#tpu.dimension_semantics<parallel>], iteration_bounds = array<i64: 4>, scalar_prefetch = 0 : i64, scratch_operands = 0 : i64, tpu.core_type = #tpu.core_type<tc>, window_params = [{pipeline_mode = #tpu.pipeline_mode<synchronous>, transform_indices = @transform_0, window_bounds = array<i64: 16, 32>}, {transform_indices = @transform_1, window_bounds = array<i64: 32, 512>}, {pipeline_mode = #tpu.pipeline_mode<synchronous>, transform_indices = @transform_2, window_bounds = array<i64: 16, 1>}, {transform_indices = @transform_3, window_bounds = array<i64: 16, 512>}]} {
    %c0 = arith.constant 0 : index
    %c0_0 = arith.constant 0 : index
    %0 = vector.load %arg1[%c0, %c0_0] : memref<16x32xbf16, #tpu.memory_space<vmem>>, vector<16x32xbf16>
    %c0_1 = arith.constant 0 : index
    %c0_2 = arith.constant 0 : index
    %1 = vector.load %arg2[%c0_1, %c0_2] : memref<32x512xbf16, #tpu.memory_space<vmem>>, vector<32x512xbf16>
    %cst = arith.constant dense<0.000000e+00> : vector<16x512xf32>
    %2 = tpu.matmul %0, %1, %cst {dimension_numbers = #tpu.dot_dimension_numbers<[1], [0], [0], [1], [0, 0, 1, 1], [], []>} : vector<16x32xbf16>, vector<32x512xbf16>, vector<16x512xf32> -> vector<16x512xf32>
    %c0_3 = arith.constant 0 : index
    %c0_4 = arith.constant 0 : index
    %3 = vector.load %arg3[%c0_3, %c0_4] : memref<16x1xf32, #tpu.memory_space<vmem>>, vector<16x1xf32>
    %4 = vector.broadcast %3 : vector<16x1xf32> to vector<16x512xf32>
    %5 = arith.addf %2, %4 : vector<16x512xf32>
    %cst_5 = arith.constant 0.000000e+00 : f32
    %6 = vector.broadcast %cst_5 : f32 to vector<16x512xf32>
    %7 = arith.maximumf %5, %6 : vector<16x512xf32>
    %8 = arith.truncf %7 : vector<16x512xf32> to vector<16x512xbf16>
    %c0_6 = arith.constant 0 : index
    %c0_7 = arith.constant 0 : index
    %9 = vector.load %arg4[%c0_6, %c0_7] : memref<16x512xbf16, #tpu.memory_space<vmem>>, vector<16x512xbf16>
    tpu.vector_store %arg4[%c0_6, %c0_7], %8 {strides = array<i32>} : memref<16x512xbf16, #tpu.memory_space<vmem>>, vector<16x512xbf16>,
    return
  }
  func.func @transform_0(%arg0: i32) -> (i32, i32) {
    %c0_i32 = arith.constant 0 : i32
    %c0_i32_0 = arith.constant 0 : i32
    %c0_i32_1 = arith.constant 0 : i32
    return %c0_i32, %c0_i32_0 : i32, i32
  }
  func.func @transform_1(%arg0: i32) -> (i32, i32) {
    %c0_i32 = arith.constant 0 : i32
    %c0_i32_0 = arith.constant 0 : i32
    return %c0_i32, %arg0 : i32, i32
  }
  func.func @transform_2(%arg0: i32) -> (i32, i32) {
    %c0_i32 = arith.constant 0 : i32
    %c0_i32_0 = arith.constant 0 : i32
    %c0_i32_1 = arith.constant 0 : i32
    return %c0_i32, %c0_i32_0 : i32, i32
  }
  func.func @transform_3(%arg0: i32) -> (i32, i32) {
    %c0_i32 = arith.constant 0 : i32
    %c0_i32_0 = arith.constant 0 : i32
    return %c0_i32, %arg0 : i32, i32
  }
}

module attributes {stable_mosaic.version = 11 : i64} {
  func.func @_gemm_kernel(%arg0: i32, %arg1: memref<16x80xbf16, #tpu.memory_space<vmem>>, %arg2: memref<80x512xbf16, #tpu.memory_space<vmem>>, %arg3: memref<16x1xf32, #tpu.memory_space<vmem>>, %arg4: memref<16x512xbf16, #tpu.memory_space<vmem>>) attributes {dimension_semantics = [#tpu.dimension_semantics<parallel>], iteration_bounds = array<i64: 1>, scalar_prefetch = 0 : i64, scratch_operands = 0 : i64, tpu.core_type = #tpu.core_type<tc>, window_params = [{pipeline_mode = #tpu.pipeline_mode<synchronous>, transform_indices = @transform_0, window_bounds = array<i64: 16, 80>}, {transform_indices = @transform_1, window_bounds = array<i64: 80, 512>}, {pipeline_mode = #tpu.pipeline_mode<synchronous>, transform_indices = @transform_2, window_bounds = array<i64: 16, 1>}, {transform_indices = @transform_3, window_bounds = array<i64: 16, 512>}]} {
    %c0 = arith.constant 0 : index
    %c0_0 = arith.constant 0 : index
    %0 = vector.load %arg1[%c0, %c0_0] : memref<16x80xbf16, #tpu.memory_space<vmem>>, vector<16x80xbf16>
    %c0_1 = arith.constant 0 : index
    %c0_2 = arith.constant 0 : index
    %1 = vector.load %arg2[%c0_1, %c0_2] : memref<80x512xbf16, #tpu.memory_space<vmem>>, vector<80x512xbf16>
    %cst = arith.constant dense<0.000000e+00> : vector<16x512xf32>
    %2 = tpu.matmul %0, %1, %cst {dimension_numbers = #tpu.dot_dimension_numbers<[1], [0], [0], [1], [0, 0, 1, 1], [], []>} : vector<16x80xbf16>, vector<80x512xbf16>, vector<16x512xf32> -> vector<16x512xf32>
    %c0_3 = arith.constant 0 : index
    %c0_4 = arith.constant 0 : index
    %3 = vector.load %arg3[%c0_3, %c0_4] : memref<16x1xf32, #tpu.memory_space<vmem>>, vector<16x1xf32>
    %4 = vector.broadcast %3 : vector<16x1xf32> to vector<16x512xf32>
    %5 = arith.addf %2, %4 : vector<16x512xf32>
    %cst_5 = arith.constant 0.000000e+00 : f32
    %6 = vector.broadcast %cst_5 : f32 to vector<16x512xf32>
    %7 = arith.maximumf %5, %6 : vector<16x512xf32>
    %8 = arith.truncf %7 : vector<16x512xf32> to vector<16x512xbf16>
    %c0_6 = arith.constant 0 : index
    %c0_7 = arith.constant 0 : index
    %9 = vector.load %arg4[%c0_6, %c0_7] : memref<16x512xbf16, #tpu.memory_space<vmem>>, vector<16x512xbf16>
    tpu.vector_store %arg4[%c0_6, %c0_7], %8 {strides = array<i32>} : memref<16x512xbf16, #tpu.memory_space<vmem>>, vector<16x512xbf16>,
    return
  }
  func.func @transform_0(%arg0: i32) -> (i32, i32) {
    %c0_i32 = arith.constant 0 : i32
    %c0_i32_0 = arith.constant 0 : i32
    %c0_i32_1 = arith.constant 0 : i32
    return %c0_i32, %c0_i32_0 : i32, i32
  }
  func.func @transform_1(%arg0: i32) -> (i32, i32) {
    %c0_i32 = arith.constant 0 : i32
    %c0_i32_0 = arith.constant 0 : i32
    return %c0_i32, %arg0 : i32, i32
  }
  func.func @transform_2(%arg0: i32) -> (i32, i32) {
    %c0_i32 = arith.constant 0 : i32
    %c0_i32_0 = arith.constant 0 : i32
    %c0_i32_1 = arith.constant 0 : i32
    return %c0_i32, %c0_i32_0 : i32, i32
  }
  func.func @transform_3(%arg0: i32) -> (i32, i32) {
    %c0_i32 = arith.constant 0 : i32
    %c0_i32_0 = arith.constant 0 : i32
    return %c0_i32, %arg0 : i32, i32
  }
}

module attributes {stable_mosaic.version = 11 : i64} {
  func.func @_gemm_kernel(%arg0: i32, %arg1: memref<32x144xbf16, #tpu.memory_space<vmem>>, %arg2: memref<144x128xbf16, #tpu.memory_space<vmem>>, %arg3: memref<32x1xf32, #tpu.memory_space<vmem>>, %arg4: memref<32x128xbf16, #tpu.memory_space<vmem>>) attributes {dimension_semantics = [#tpu.dimension_semantics<parallel>], iteration_bounds = array<i64: 1>, scalar_prefetch = 0 : i64, scratch_operands = 0 : i64, tpu.core_type = #tpu.core_type<tc>, window_params = [{pipeline_mode = #tpu.pipeline_mode<synchronous>, transform_indices = @transform_0, window_bounds = array<i64: 32, 144>}, {transform_indices = @transform_1, window_bounds = array<i64: 144, 128>}, {pipeline_mode = #tpu.pipeline_mode<synchronous>, transform_indices = @transform_2, window_bounds = array<i64: 32, 1>}, {transform_indices = @transform_3, window_bounds = array<i64: 32, 128>}]} {
    %c0 = arith.constant 0 : index
    %c0_0 = arith.constant 0 : index
    %0 = vector.load %arg1[%c0, %c0_0] : memref<32x144xbf16, #tpu.memory_space<vmem>>, vector<32x144xbf16>
    %c0_1 = arith.constant 0 : index
    %c0_2 = arith.constant 0 : index
    %1 = vector.load %arg2[%c0_1, %c0_2] : memref<144x128xbf16, #tpu.memory_space<vmem>>, vector<144x128xbf16>
    %cst = arith.constant dense<0.000000e+00> : vector<32x128xf32>
    %2 = tpu.matmul %0, %1, %cst {dimension_numbers = #tpu.dot_dimension_numbers<[1], [0], [0], [1], [0, 0, 1, 1], [], []>} : vector<32x144xbf16>, vector<144x128xbf16>, vector<32x128xf32> -> vector<32x128xf32>
    %c0_3 = arith.constant 0 : index
    %c0_4 = arith.constant 0 : index
    %3 = vector.load %arg3[%c0_3, %c0_4] : memref<32x1xf32, #tpu.memory_space<vmem>>, vector<32x1xf32>
    %4 = vector.broadcast %3 : vector<32x1xf32> to vector<32x128xf32>
    %5 = arith.addf %2, %4 : vector<32x128xf32>
    %cst_5 = arith.constant 0.000000e+00 : f32
    %6 = vector.broadcast %cst_5 : f32 to vector<32x128xf32>
    %7 = arith.maximumf %5, %6 : vector<32x128xf32>
    %8 = arith.truncf %7 : vector<32x128xf32> to vector<32x128xbf16>
    %c0_6 = arith.constant 0 : index
    %c0_7 = arith.constant 0 : index
    %9 = vector.load %arg4[%c0_6, %c0_7] : memref<32x128xbf16, #tpu.memory_space<vmem>>, vector<32x128xbf16>
    tpu.vector_store %arg4[%c0_6, %c0_7], %8 {strides = array<i32>} : memref<32x128xbf16, #tpu.memory_space<vmem>>, vector<32x128xbf16>,
    return
  }
  func.func @transform_0(%arg0: i32) -> (i32, i32) {
    %c0_i32 = arith.constant 0 : i32
    %c0_i32_0 = arith.constant 0 : i32
    %c0_i32_1 = arith.constant 0 : i32
    return %c0_i32, %c0_i32_0 : i32, i32
  }
  func.func @transform_1(%arg0: i32) -> (i32, i32) {
    %c0_i32 = arith.constant 0 : i32
    %c0_i32_0 = arith.constant 0 : i32
    return %c0_i32, %arg0 : i32, i32
  }
  func.func @transform_2(%arg0: i32) -> (i32, i32) {
    %c0_i32 = arith.constant 0 : i32
    %c0_i32_0 = arith.constant 0 : i32
    %c0_i32_1 = arith.constant 0 : i32
    return %c0_i32, %c0_i32_0 : i32, i32
  }
  func.func @transform_3(%arg0: i32) -> (i32, i32) {
    %c0_i32 = arith.constant 0 : i32
    %c0_i32_0 = arith.constant 0 : i32
    return %c0_i32, %arg0 : i32, i32
  }
}

module attributes {stable_mosaic.version = 11 : i64} {
  func.func @_gemm_kernel(%arg0: i32, %arg1: memref<64x288xbf16, #tpu.memory_space<vmem>>, %arg2: memref<288x128xbf16, #tpu.memory_space<vmem>>, %arg3: memref<64x1xf32, #tpu.memory_space<vmem>>, %arg4: memref<64x128xbf16, #tpu.memory_space<vmem>>) attributes {dimension_semantics = [#tpu.dimension_semantics<parallel>], iteration_bounds = array<i64: 1>, scalar_prefetch = 0 : i64, scratch_operands = 0 : i64, tpu.core_type = #tpu.core_type<tc>, window_params = [{pipeline_mode = #tpu.pipeline_mode<synchronous>, transform_indices = @transform_0, window_bounds = array<i64: 64, 288>}, {transform_indices = @transform_1, window_bounds = array<i64: 288, 128>}, {pipeline_mode = #tpu.pipeline_mode<synchronous>, transform_indices = @transform_2, window_bounds = array<i64: 64, 1>}, {transform_indices = @transform_3, window_bounds = array<i64: 64, 128>}]} {
    %c0 = arith.constant 0 : index
    %c0_0 = arith.constant 0 : index
    %0 = vector.load %arg1[%c0, %c0_0] : memref<64x288xbf16, #tpu.memory_space<vmem>>, vector<64x288xbf16>
    %c0_1 = arith.constant 0 : index
    %c0_2 = arith.constant 0 : index
    %1 = vector.load %arg2[%c0_1, %c0_2] : memref<288x128xbf16, #tpu.memory_space<vmem>>, vector<288x128xbf16>
    %cst = arith.constant dense<0.000000e+00> : vector<64x128xf32>
    %2 = tpu.matmul %0, %1, %cst {dimension_numbers = #tpu.dot_dimension_numbers<[1], [0], [0], [1], [0, 0, 1, 1], [], []>} : vector<64x288xbf16>, vector<288x128xbf16>, vector<64x128xf32> -> vector<64x128xf32>
    %c0_3 = arith.constant 0 : index
    %c0_4 = arith.constant 0 : index
    %3 = vector.load %arg3[%c0_3, %c0_4] : memref<64x1xf32, #tpu.memory_space<vmem>>, vector<64x1xf32>
    %4 = vector.broadcast %3 : vector<64x1xf32> to vector<64x128xf32>
    %5 = arith.addf %2, %4 : vector<64x128xf32>
    %cst_5 = arith.constant 0.000000e+00 : f32
    %6 = vector.broadcast %cst_5 : f32 to vector<64x128xf32>
    %7 = arith.maximumf %5, %6 : vector<64x128xf32>
    %8 = arith.truncf %7 : vector<64x128xf32> to vector<64x128xbf16>
    %c0_6 = arith.constant 0 : index
    %c0_7 = arith.constant 0 : index
    %9 = vector.load %arg4[%c0_6, %c0_7] : memref<64x128xbf16, #tpu.memory_space<vmem>>, vector<64x128xbf16>
    tpu.vector_store %arg4[%c0_6, %c0_7], %8 {strides = array<i32>} : memref<64x128xbf16, #tpu.memory_space<vmem>>, vector<64x128xbf16>,
    return
  }
  func.func @transform_0(%arg0: i32) -> (i32, i32) {
    %c0_i32 = arith.constant 0 : i32
    %c0_i32_0 = arith.constant 0 : i32
    %c0_i32_1 = arith.constant 0 : i32
    return %c0_i32, %c0_i32_0 : i32, i32
  }
  func.func @transform_1(%arg0: i32) -> (i32, i32) {
    %c0_i32 = arith.constant 0 : i32
    %c0_i32_0 = arith.constant 0 : i32
    return %c0_i32, %arg0 : i32, i32
  }
  func.func @transform_2(%arg0: i32) -> (i32, i32) {
    %c0_i32 = arith.constant 0 : i32
    %c0_i32_0 = arith.constant 0 : i32
    %c0_i32_1 = arith.constant 0 : i32
    return %c0_i32, %c0_i32_0 : i32, i32
  }
  func.func @transform_3(%arg0: i32) -> (i32, i32) {
    %c0_i32 = arith.constant 0 : i32
    %c0_i32_0 = arith.constant 0 : i32
    return %c0_i32, %arg0 : i32, i32
  }
}

module attributes {stable_mosaic.version = 11 : i64} {
  func.func @_gemm_kernel(%arg0: i32, %arg1: memref<64x576xbf16, #tpu.memory_space<vmem>>, %arg2: memref<576x128xbf16, #tpu.memory_space<vmem>>, %arg3: memref<64x1xf32, #tpu.memory_space<vmem>>, %arg4: memref<64x128xbf16, #tpu.memory_space<vmem>>) attributes {dimension_semantics = [#tpu.dimension_semantics<parallel>], iteration_bounds = array<i64: 1>, scalar_prefetch = 0 : i64, scratch_operands = 0 : i64, tpu.core_type = #tpu.core_type<tc>, window_params = [{pipeline_mode = #tpu.pipeline_mode<synchronous>, transform_indices = @transform_0, window_bounds = array<i64: 64, 576>}, {transform_indices = @transform_1, window_bounds = array<i64: 576, 128>}, {pipeline_mode = #tpu.pipeline_mode<synchronous>, transform_indices = @transform_2, window_bounds = array<i64: 64, 1>}, {transform_indices = @transform_3, window_bounds = array<i64: 64, 128>}]} {
    %c0 = arith.constant 0 : index
    %c0_0 = arith.constant 0 : index
    %0 = vector.load %arg1[%c0, %c0_0] : memref<64x576xbf16, #tpu.memory_space<vmem>>, vector<64x576xbf16>
    %c0_1 = arith.constant 0 : index
    %c0_2 = arith.constant 0 : index
    %1 = vector.load %arg2[%c0_1, %c0_2] : memref<576x128xbf16, #tpu.memory_space<vmem>>, vector<576x128xbf16>
    %cst = arith.constant dense<0.000000e+00> : vector<64x128xf32>
    %2 = tpu.matmul %0, %1, %cst {dimension_numbers = #tpu.dot_dimension_numbers<[1], [0], [0], [1], [0, 0, 1, 1], [], []>} : vector<64x576xbf16>, vector<576x128xbf16>, vector<64x128xf32> -> vector<64x128xf32>
    %c0_3 = arith.constant 0 : index
    %c0_4 = arith.constant 0 : index
    %3 = vector.load %arg3[%c0_3, %c0_4] : memref<64x1xf32, #tpu.memory_space<vmem>>, vector<64x1xf32>
    %4 = vector.broadcast %3 : vector<64x1xf32> to vector<64x128xf32>
    %5 = arith.addf %2, %4 : vector<64x128xf32>
    %cst_5 = arith.constant 0.000000e+00 : f32
    %6 = vector.broadcast %cst_5 : f32 to vector<64x128xf32>
    %7 = arith.maximumf %5, %6 : vector<64x128xf32>
    %8 = arith.truncf %7 : vector<64x128xf32> to vector<64x128xbf16>
    %c0_6 = arith.constant 0 : index
    %c0_7 = arith.constant 0 : index
    %9 = vector.load %arg4[%c0_6, %c0_7] : memref<64x128xbf16, #tpu.memory_space<vmem>>, vector<64x128xbf16>
    tpu.vector_store %arg4[%c0_6, %c0_7], %8 {strides = array<i32>} : memref<64x128xbf16, #tpu.memory_space<vmem>>, vector<64x128xbf16>,
    return
  }
  func.func @transform_0(%arg0: i32) -> (i32, i32) {
    %c0_i32 = arith.constant 0 : i32
    %c0_i32_0 = arith.constant 0 : i32
    %c0_i32_1 = arith.constant 0 : i32
    return %c0_i32, %c0_i32_0 : i32, i32
  }
  func.func @transform_1(%arg0: i32) -> (i32, i32) {
    %c0_i32 = arith.constant 0 : i32
    %c0_i32_0 = arith.constant 0 : i32
    return %c0_i32, %arg0 : i32, i32
  }
  func.func @transform_2(%arg0: i32) -> (i32, i32) {
    %c0_i32 = arith.constant 0 : i32
    %c0_i32_0 = arith.constant 0 : i32
    %c0_i32_1 = arith.constant 0 : i32
    return %c0_i32, %c0_i32_0 : i32, i32
  }
  func.func @transform_3(%arg0: i32) -> (i32, i32) {
    %c0_i32 = arith.constant 0 : i32
    %c0_i32_0 = arith.constant 0 : i32
    return %c0_i32, %arg0 : i32, i32
  }
}

module attributes {stable_mosaic.version = 11 : i64} {
  func.func @_gemm_kernel(%arg0: i32, %arg1: memref<16x64xbf16, #tpu.memory_space<vmem>>, %arg2: memref<64x128xbf16, #tpu.memory_space<vmem>>, %arg3: memref<16x1xf32, #tpu.memory_space<vmem>>, %arg4: memref<16x128xbf16, #tpu.memory_space<vmem>>) attributes {dimension_semantics = [#tpu.dimension_semantics<parallel>], iteration_bounds = array<i64: 1>, scalar_prefetch = 0 : i64, scratch_operands = 0 : i64, tpu.core_type = #tpu.core_type<tc>, window_params = [{pipeline_mode = #tpu.pipeline_mode<synchronous>, transform_indices = @transform_0, window_bounds = array<i64: 16, 64>}, {transform_indices = @transform_1, window_bounds = array<i64: 64, 128>}, {pipeline_mode = #tpu.pipeline_mode<synchronous>, transform_indices = @transform_2, window_bounds = array<i64: 16, 1>}, {transform_indices = @transform_3, window_bounds = array<i64: 16, 128>}]} {
    %c0 = arith.constant 0 : index
    %c0_0 = arith.constant 0 : index
    %0 = vector.load %arg1[%c0, %c0_0] : memref<16x64xbf16, #tpu.memory_space<vmem>>, vector<16x64xbf16>
    %c0_1 = arith.constant 0 : index
    %c0_2 = arith.constant 0 : index
    %1 = vector.load %arg2[%c0_1, %c0_2] : memref<64x128xbf16, #tpu.memory_space<vmem>>, vector<64x128xbf16>
    %cst = arith.constant dense<0.000000e+00> : vector<16x128xf32>
    %2 = tpu.matmul %0, %1, %cst {dimension_numbers = #tpu.dot_dimension_numbers<[1], [0], [0], [1], [0, 0, 1, 1], [], []>} : vector<16x64xbf16>, vector<64x128xbf16>, vector<16x128xf32> -> vector<16x128xf32>
    %c0_3 = arith.constant 0 : index
    %c0_4 = arith.constant 0 : index
    %3 = vector.load %arg3[%c0_3, %c0_4] : memref<16x1xf32, #tpu.memory_space<vmem>>, vector<16x1xf32>
    %4 = vector.broadcast %3 : vector<16x1xf32> to vector<16x128xf32>
    %5 = arith.addf %2, %4 : vector<16x128xf32>
    %cst_5 = arith.constant 0.000000e+00 : f32
    %6 = vector.broadcast %cst_5 : f32 to vector<16x128xf32>
    %7 = arith.maximumf %5, %6 : vector<16x128xf32>
    %8 = arith.truncf %7 : vector<16x128xf32> to vector<16x128xbf16>
    %c0_6 = arith.constant 0 : index
    %c0_7 = arith.constant 0 : index
    %9 = vector.load %arg4[%c0_6, %c0_7] : memref<16x128xbf16, #tpu.memory_space<vmem>>, vector<16x128xbf16>
    tpu.vector_store %arg4[%c0_6, %c0_7], %8 {strides = array<i32>} : memref<16x128xbf16, #tpu.memory_space<vmem>>, vector<16x128xbf16>,
    return
  }
  func.func @transform_0(%arg0: i32) -> (i32, i32) {
    %c0_i32 = arith.constant 0 : i32
    %c0_i32_0 = arith.constant 0 : i32
    %c0_i32_1 = arith.constant 0 : i32
    return %c0_i32, %c0_i32_0 : i32, i32
  }
  func.func @transform_1(%arg0: i32) -> (i32, i32) {
    %c0_i32 = arith.constant 0 : i32
    %c0_i32_0 = arith.constant 0 : i32
    return %c0_i32, %arg0 : i32, i32
  }
  func.func @transform_2(%arg0: i32) -> (i32, i32) {
    %c0_i32 = arith.constant 0 : i32
    %c0_i32_0 = arith.constant 0 : i32
    %c0_i32_1 = arith.constant 0 : i32
    return %c0_i32, %c0_i32_0 : i32, i32
  }
  func.func @transform_3(%arg0: i32) -> (i32, i32) {
    %c0_i32 = arith.constant 0 : i32
    %c0_i32_0 = arith.constant 0 : i32
    return %c0_i32, %arg0 : i32, i32
  }
}

module attributes {stable_mosaic.version = 11 : i64} {
  func.func @_gemm_kernel(%arg0: i32, %arg1: memref<32x16xbf16, #tpu.memory_space<vmem>>, %arg2: memref<16x128xbf16, #tpu.memory_space<vmem>>, %arg3: memref<32x1xf32, #tpu.memory_space<vmem>>, %arg4: memref<32x128xbf16, #tpu.memory_space<vmem>>) attributes {dimension_semantics = [#tpu.dimension_semantics<parallel>], iteration_bounds = array<i64: 1>, scalar_prefetch = 0 : i64, scratch_operands = 0 : i64, tpu.core_type = #tpu.core_type<tc>, window_params = [{pipeline_mode = #tpu.pipeline_mode<synchronous>, transform_indices = @transform_0, window_bounds = array<i64: 32, 16>}, {transform_indices = @transform_1, window_bounds = array<i64: 16, 128>}, {pipeline_mode = #tpu.pipeline_mode<synchronous>, transform_indices = @transform_2, window_bounds = array<i64: 32, 1>}, {transform_indices = @transform_3, window_bounds = array<i64: 32, 128>}]} {
    %c0 = arith.constant 0 : index
    %c0_0 = arith.constant 0 : index
    %0 = vector.load %arg1[%c0, %c0_0] : memref<32x16xbf16, #tpu.memory_space<vmem>>, vector<32x16xbf16>
    %c0_1 = arith.constant 0 : index
    %c0_2 = arith.constant 0 : index
    %1 = vector.load %arg2[%c0_1, %c0_2] : memref<16x128xbf16, #tpu.memory_space<vmem>>, vector<16x128xbf16>
    %cst = arith.constant dense<0.000000e+00> : vector<32x128xf32>
    %2 = tpu.matmul %0, %1, %cst {dimension_numbers = #tpu.dot_dimension_numbers<[1], [0], [0], [1], [0, 0, 1, 1], [], []>} : vector<32x16xbf16>, vector<16x128xbf16>, vector<32x128xf32> -> vector<32x128xf32>
    %c0_3 = arith.constant 0 : index
    %c0_4 = arith.constant 0 : index
    %3 = vector.load %arg3[%c0_3, %c0_4] : memref<32x1xf32, #tpu.memory_space<vmem>>, vector<32x1xf32>
    %4 = vector.broadcast %3 : vector<32x1xf32> to vector<32x128xf32>
    %5 = arith.addf %2, %4 : vector<32x128xf32>
    %6 = arith.truncf %5 : vector<32x128xf32> to vector<32x128xbf16>
    %c0_5 = arith.constant 0 : index
    %c0_6 = arith.constant 0 : index
    %7 = vector.load %arg4[%c0_5, %c0_6] : memref<32x128xbf16, #tpu.memory_space<vmem>>, vector<32x128xbf16>
    tpu.vector_store %arg4[%c0_5, %c0_6], %6 {strides = array<i32>} : memref<32x128xbf16, #tpu.memory_space<vmem>>, vector<32x128xbf16>,
    return
  }
  func.func @transform_0(%arg0: i32) -> (i32, i32) {
    %c0_i32 = arith.constant 0 : i32
    %c0_i32_0 = arith.constant 0 : i32
    %c0_i32_1 = arith.constant 0 : i32
    return %c0_i32, %c0_i32_0 : i32, i32
  }
  func.func @transform_1(%arg0: i32) -> (i32, i32) {
    %c0_i32 = arith.constant 0 : i32
    %c0_i32_0 = arith.constant 0 : i32
    return %c0_i32, %arg0 : i32, i32
  }
  func.func @transform_2(%arg0: i32) -> (i32, i32) {
    %c0_i32 = arith.constant 0 : i32
    %c0_i32_0 = arith.constant 0 : i32
    %c0_i32_1 = arith.constant 0 : i32
    return %c0_i32, %c0_i32_0 : i32, i32
  }
  func.func @transform_3(%arg0: i32) -> (i32, i32) {
    %c0_i32 = arith.constant 0 : i32
    %c0_i32_0 = arith.constant 0 : i32
    return %c0_i32, %arg0 : i32, i32
  }
}

module attributes {stable_mosaic.version = 11 : i64} {
  func.func @_gemm_kernel(%arg0: i32, %arg1: memref<16x32xbf16, #tpu.memory_space<vmem>>, %arg2: memref<32x128xbf16, #tpu.memory_space<vmem>>, %arg3: memref<16x1xf32, #tpu.memory_space<vmem>>, %arg4: memref<16x128xbf16, #tpu.memory_space<vmem>>) attributes {dimension_semantics = [#tpu.dimension_semantics<parallel>], iteration_bounds = array<i64: 1>, scalar_prefetch = 0 : i64, scratch_operands = 0 : i64, tpu.core_type = #tpu.core_type<tc>, window_params = [{pipeline_mode = #tpu.pipeline_mode<synchronous>, transform_indices = @transform_0, window_bounds = array<i64: 16, 32>}, {transform_indices = @transform_1, window_bounds = array<i64: 32, 128>}, {pipeline_mode = #tpu.pipeline_mode<synchronous>, transform_indices = @transform_2, window_bounds = array<i64: 16, 1>}, {transform_indices = @transform_3, window_bounds = array<i64: 16, 128>}]} {
    %c0 = arith.constant 0 : index
    %c0_0 = arith.constant 0 : index
    %0 = vector.load %arg1[%c0, %c0_0] : memref<16x32xbf16, #tpu.memory_space<vmem>>, vector<16x32xbf16>
    %c0_1 = arith.constant 0 : index
    %c0_2 = arith.constant 0 : index
    %1 = vector.load %arg2[%c0_1, %c0_2] : memref<32x128xbf16, #tpu.memory_space<vmem>>, vector<32x128xbf16>
    %cst = arith.constant dense<0.000000e+00> : vector<16x128xf32>
    %2 = tpu.matmul %0, %1, %cst {dimension_numbers = #tpu.dot_dimension_numbers<[1], [0], [0], [1], [0, 0, 1, 1], [], []>} : vector<16x32xbf16>, vector<32x128xbf16>, vector<16x128xf32> -> vector<16x128xf32>
    %c0_3 = arith.constant 0 : index
    %c0_4 = arith.constant 0 : index
    %3 = vector.load %arg3[%c0_3, %c0_4] : memref<16x1xf32, #tpu.memory_space<vmem>>, vector<16x1xf32>
    %4 = vector.broadcast %3 : vector<16x1xf32> to vector<16x128xf32>
    %5 = arith.addf %2, %4 : vector<16x128xf32>
    %cst_5 = arith.constant 0.000000e+00 : f32
    %6 = vector.broadcast %cst_5 : f32 to vector<16x128xf32>
    %7 = arith.maximumf %5, %6 : vector<16x128xf32>
    %8 = arith.truncf %7 : vector<16x128xf32> to vector<16x128xbf16>
    %c0_6 = arith.constant 0 : index
    %c0_7 = arith.constant 0 : index
    %9 = vector.load %arg4[%c0_6, %c0_7] : memref<16x128xbf16, #tpu.memory_space<vmem>>, vector<16x128xbf16>
    tpu.vector_store %arg4[%c0_6, %c0_7], %8 {strides = array<i32>} : memref<16x128xbf16, #tpu.memory_space<vmem>>, vector<16x128xbf16>,
    return
  }
  func.func @transform_0(%arg0: i32) -> (i32, i32) {
    %c0_i32 = arith.constant 0 : i32
    %c0_i32_0 = arith.constant 0 : i32
    %c0_i32_1 = arith.constant 0 : i32
    return %c0_i32, %c0_i32_0 : i32, i32
  }
  func.func @transform_1(%arg0: i32) -> (i32, i32) {
    %c0_i32 = arith.constant 0 : i32
    %c0_i32_0 = arith.constant 0 : i32
    return %c0_i32, %arg0 : i32, i32
  }
  func.func @transform_2(%arg0: i32) -> (i32, i32) {
    %c0_i32 = arith.constant 0 : i32
    %c0_i32_0 = arith.constant 0 : i32
    %c0_i32_1 = arith.constant 0 : i32
    return %c0_i32, %c0_i32_0 : i32, i32
  }
  func.func @transform_3(%arg0: i32) -> (i32, i32) {
    %c0_i32 = arith.constant 0 : i32
    %c0_i32_0 = arith.constant 0 : i32
    return %c0_i32, %arg0 : i32, i32
  }
}

module attributes {stable_mosaic.version = 11 : i64} {
  func.func @_gemm_kernel(%arg0: i32, %arg1: memref<16x432xbf16, #tpu.memory_space<vmem>>, %arg2: memref<432x128xbf16, #tpu.memory_space<vmem>>, %arg3: memref<16x1xf32, #tpu.memory_space<vmem>>, %arg4: memref<16x128xbf16, #tpu.memory_space<vmem>>) attributes {dimension_semantics = [#tpu.dimension_semantics<parallel>], iteration_bounds = array<i64: 1>, scalar_prefetch = 0 : i64, scratch_operands = 0 : i64, tpu.core_type = #tpu.core_type<tc>, window_params = [{pipeline_mode = #tpu.pipeline_mode<synchronous>, transform_indices = @transform_0, window_bounds = array<i64: 16, 432>}, {transform_indices = @transform_1, window_bounds = array<i64: 432, 128>}, {pipeline_mode = #tpu.pipeline_mode<synchronous>, transform_indices = @transform_2, window_bounds = array<i64: 16, 1>}, {transform_indices = @transform_3, window_bounds = array<i64: 16, 128>}]} {
    %c0 = arith.constant 0 : index
    %c0_0 = arith.constant 0 : index
    %0 = vector.load %arg1[%c0, %c0_0] : memref<16x432xbf16, #tpu.memory_space<vmem>>, vector<16x432xbf16>
    %c0_1 = arith.constant 0 : index
    %c0_2 = arith.constant 0 : index
    %1 = vector.load %arg2[%c0_1, %c0_2] : memref<432x128xbf16, #tpu.memory_space<vmem>>, vector<432x128xbf16>
    %cst = arith.constant dense<0.000000e+00> : vector<16x128xf32>
    %2 = tpu.matmul %0, %1, %cst {dimension_numbers = #tpu.dot_dimension_numbers<[1], [0], [0], [1], [0, 0, 1, 1], [], []>} : vector<16x432xbf16>, vector<432x128xbf16>, vector<16x128xf32> -> vector<16x128xf32>
    %c0_3 = arith.constant 0 : index
    %c0_4 = arith.constant 0 : index
    %3 = vector.load %arg3[%c0_3, %c0_4] : memref<16x1xf32, #tpu.memory_space<vmem>>, vector<16x1xf32>
    %4 = vector.broadcast %3 : vector<16x1xf32> to vector<16x128xf32>
    %5 = arith.addf %2, %4 : vector<16x128xf32>
    %cst_5 = arith.constant 0.000000e+00 : f32
    %6 = vector.broadcast %cst_5 : f32 to vector<16x128xf32>
    %7 = arith.maximumf %5, %6 : vector<16x128xf32>
    %8 = arith.truncf %7 : vector<16x128xf32> to vector<16x128xbf16>
    %c0_6 = arith.constant 0 : index
    %c0_7 = arith.constant 0 : index
    %9 = vector.load %arg4[%c0_6, %c0_7] : memref<16x128xbf16, #tpu.memory_space<vmem>>, vector<16x128xbf16>
    tpu.vector_store %arg4[%c0_6, %c0_7], %8 {strides = array<i32>} : memref<16x128xbf16, #tpu.memory_space<vmem>>, vector<16x128xbf16>,
    return
  }
  func.func @transform_0(%arg0: i32) -> (i32, i32) {
    %c0_i32 = arith.constant 0 : i32
    %c0_i32_0 = arith.constant 0 : i32
    %c0_i32_1 = arith.constant 0 : i32
    return %c0_i32, %c0_i32_0 : i32, i32
  }
  func.func @transform_1(%arg0: i32) -> (i32, i32) {
    %c0_i32 = arith.constant 0 : i32
    %c0_i32_0 = arith.constant 0 : i32
    return %c0_i32, %arg0 : i32, i32
  }
  func.func @transform_2(%arg0: i32) -> (i32, i32) {
    %c0_i32 = arith.constant 0 : i32
    %c0_i32_0 = arith.constant 0 : i32
    %c0_i32_1 = arith.constant 0 : i32
    return %c0_i32, %c0_i32_0 : i32, i32
  }
  func.func @transform_3(%arg0: i32) -> (i32, i32) {
    %c0_i32 = arith.constant 0 : i32
    %c0_i32_0 = arith.constant 0 : i32
    return %c0_i32, %arg0 : i32, i32
  }
}

module attributes {stable_mosaic.version = 11 : i64} {
  func.func @_gemm_kernel(%arg0: i32, %arg1: memref<16x16xbf16, #tpu.memory_space<vmem>>, %arg2: memref<16x128xbf16, #tpu.memory_space<vmem>>, %arg3: memref<16x1xf32, #tpu.memory_space<vmem>>, %arg4: memref<16x128xbf16, #tpu.memory_space<vmem>>) attributes {dimension_semantics = [#tpu.dimension_semantics<parallel>], iteration_bounds = array<i64: 1>, scalar_prefetch = 0 : i64, scratch_operands = 0 : i64, tpu.core_type = #tpu.core_type<tc>, window_params = [{pipeline_mode = #tpu.pipeline_mode<synchronous>, transform_indices = @transform_0, window_bounds = array<i64: 16, 16>}, {transform_indices = @transform_1, window_bounds = array<i64: 16, 128>}, {pipeline_mode = #tpu.pipeline_mode<synchronous>, transform_indices = @transform_2, window_bounds = array<i64: 16, 1>}, {transform_indices = @transform_3, window_bounds = array<i64: 16, 128>}]} {
    %c0 = arith.constant 0 : index
    %c0_0 = arith.constant 0 : index
    %0 = vector.load %arg1[%c0, %c0_0] : memref<16x16xbf16, #tpu.memory_space<vmem>>, vector<16x16xbf16>
    %c0_1 = arith.constant 0 : index
    %c0_2 = arith.constant 0 : index
    %1 = vector.load %arg2[%c0_1, %c0_2] : memref<16x128xbf16, #tpu.memory_space<vmem>>, vector<16x128xbf16>
    %cst = arith.constant dense<0.000000e+00> : vector<16x128xf32>
    %2 = tpu.matmul %0, %1, %cst {dimension_numbers = #tpu.dot_dimension_numbers<[1], [0], [0], [1], [0, 0, 1, 1], [], []>} : vector<16x16xbf16>, vector<16x128xbf16>, vector<16x128xf32> -> vector<16x128xf32>
    %c0_3 = arith.constant 0 : index
    %c0_4 = arith.constant 0 : index
    %3 = vector.load %arg3[%c0_3, %c0_4] : memref<16x1xf32, #tpu.memory_space<vmem>>, vector<16x1xf32>
    %4 = vector.broadcast %3 : vector<16x1xf32> to vector<16x128xf32>
    %5 = arith.addf %2, %4 : vector<16x128xf32>
    %6 = arith.truncf %5 : vector<16x128xf32> to vector<16x128xbf16>
    %c0_5 = arith.constant 0 : index
    %c0_6 = arith.constant 0 : index
    %7 = vector.load %arg4[%c0_5, %c0_6] : memref<16x128xbf16, #tpu.memory_space<vmem>>, vector<16x128xbf16>
    tpu.vector_store %arg4[%c0_5, %c0_6], %6 {strides = array<i32>} : memref<16x128xbf16, #tpu.memory_space<vmem>>, vector<16x128xbf16>,
    return
  }
  func.func @transform_0(%arg0: i32) -> (i32, i32) {
    %c0_i32 = arith.constant 0 : i32
    %c0_i32_0 = arith.constant 0 : i32
    %c0_i32_1 = arith.constant 0 : i32
    return %c0_i32, %c0_i32_0 : i32, i32
  }
  func.func @transform_1(%arg0: i32) -> (i32, i32) {
    %c0_i32 = arith.constant 0 : i32
    %c0_i32_0 = arith.constant 0 : i32
    return %c0_i32, %arg0 : i32, i32
  }
  func.func @transform_2(%arg0: i32) -> (i32, i32) {
    %c0_i32 = arith.constant 0 : i32
    %c0_i32_0 = arith.constant 0 : i32
    %c0_i32_1 = arith.constant 0 : i32
    return %c0_i32, %c0_i32_0 : i32, i32
  }
  func.func @transform_3(%arg0: i32) -> (i32, i32) {
    %c0_i32 = arith.constant 0 : i32
    %c0_i32_0 = arith.constant 0 : i32
    return %c0_i32, %arg0 : i32, i32
  }
}

module attributes {stable_mosaic.version = 11 : i64} {
  func.func @_gemm_kernel(%arg0: i32, %arg1: memref<16x64xbf16, #tpu.memory_space<vmem>>, %arg2: memref<64x512xbf16, #tpu.memory_space<vmem>>, %arg3: memref<16x1xf32, #tpu.memory_space<vmem>>, %arg4: memref<16x512xf32, #tpu.memory_space<vmem>>) attributes {dimension_semantics = [#tpu.dimension_semantics<parallel>], iteration_bounds = array<i64: 8>, scalar_prefetch = 0 : i64, scratch_operands = 0 : i64, tpu.core_type = #tpu.core_type<tc>, window_params = [{pipeline_mode = #tpu.pipeline_mode<synchronous>, transform_indices = @transform_0, window_bounds = array<i64: 16, 64>}, {transform_indices = @transform_1, window_bounds = array<i64: 64, 512>}, {pipeline_mode = #tpu.pipeline_mode<synchronous>, transform_indices = @transform_2, window_bounds = array<i64: 16, 1>}, {transform_indices = @transform_3, window_bounds = array<i64: 16, 512>}]} {
    %c0 = arith.constant 0 : index
    %c0_0 = arith.constant 0 : index
    %0 = vector.load %arg1[%c0, %c0_0] : memref<16x64xbf16, #tpu.memory_space<vmem>>, vector<16x64xbf16>
    %c0_1 = arith.constant 0 : index
    %c0_2 = arith.constant 0 : index
    %1 = vector.load %arg2[%c0_1, %c0_2] : memref<64x512xbf16, #tpu.memory_space<vmem>>, vector<64x512xbf16>
    %cst = arith.constant dense<0.000000e+00> : vector<16x512xf32>
    %2 = tpu.matmul %0, %1, %cst {dimension_numbers = #tpu.dot_dimension_numbers<[1], [0], [0], [1], [0, 0, 1, 1], [], []>} : vector<16x64xbf16>, vector<64x512xbf16>, vector<16x512xf32> -> vector<16x512xf32>
    %c0_3 = arith.constant 0 : index
    %c0_4 = arith.constant 0 : index
    %3 = vector.load %arg3[%c0_3, %c0_4] : memref<16x1xf32, #tpu.memory_space<vmem>>, vector<16x1xf32>
    %4 = vector.broadcast %3 : vector<16x1xf32> to vector<16x512xf32>
    %5 = arith.addf %2, %4 : vector<16x512xf32>
    %c0_5 = arith.constant 0 : index
    %c0_6 = arith.constant 0 : index
    %6 = vector.load %arg4[%c0_5, %c0_6] : memref<16x512xf32, #tpu.memory_space<vmem>>, vector<16x512xf32>
    tpu.vector_store %arg4[%c0_5, %c0_6], %5 {strides = array<i32>} : memref<16x512xf32, #tpu.memory_space<vmem>>, vector<16x512xf32>,
    return
  }
  func.func @transform_0(%arg0: i32) -> (i32, i32) {
    %c0_i32 = arith.constant 0 : i32
    %c0_i32_0 = arith.constant 0 : i32
    %c0_i32_1 = arith.constant 0 : i32
    return %c0_i32, %c0_i32_0 : i32, i32
  }
  func.func @transform_1(%arg0: i32) -> (i32, i32) {
    %c0_i32 = arith.constant 0 : i32
    %c0_i32_0 = arith.constant 0 : i32
    return %c0_i32, %arg0 : i32, i32
  }
  func.func @transform_2(%arg0: i32) -> (i32, i32) {
    %c0_i32 = arith.constant 0 : i32
    %c0_i32_0 = arith.constant 0 : i32
    %c0_i32_1 = arith.constant 0 : i32
    return %c0_i32, %c0_i32_0 : i32, i32
  }
  func.func @transform_3(%arg0: i32) -> (i32, i32) {
    %c0_i32 = arith.constant 0 : i32
    %c0_i32_0 = arith.constant 0 : i32
    return %c0_i32, %arg0 : i32, i32
  }
}

module attributes {stable_mosaic.version = 11 : i64} {
  func.func @_gemm_kernel(%arg0: i32, %arg1: memref<16x64xbf16, #tpu.memory_space<vmem>>, %arg2: memref<64x128xbf16, #tpu.memory_space<vmem>>, %arg3: memref<16x1xf32, #tpu.memory_space<vmem>>, %arg4: memref<16x128xbf16, #tpu.memory_space<vmem>>) attributes {dimension_semantics = [#tpu.dimension_semantics<parallel>], iteration_bounds = array<i64: 1>, scalar_prefetch = 0 : i64, scratch_operands = 0 : i64, tpu.core_type = #tpu.core_type<tc>, window_params = [{pipeline_mode = #tpu.pipeline_mode<synchronous>, transform_indices = @transform_0, window_bounds = array<i64: 16, 64>}, {transform_indices = @transform_1, window_bounds = array<i64: 64, 128>}, {pipeline_mode = #tpu.pipeline_mode<synchronous>, transform_indices = @transform_2, window_bounds = array<i64: 16, 1>}, {transform_indices = @transform_3, window_bounds = array<i64: 16, 128>}]} {
    %c0 = arith.constant 0 : index
    %c0_0 = arith.constant 0 : index
    %0 = vector.load %arg1[%c0, %c0_0] : memref<16x64xbf16, #tpu.memory_space<vmem>>, vector<16x64xbf16>
    %c0_1 = arith.constant 0 : index
    %c0_2 = arith.constant 0 : index
    %1 = vector.load %arg2[%c0_1, %c0_2] : memref<64x128xbf16, #tpu.memory_space<vmem>>, vector<64x128xbf16>
    %cst = arith.constant dense<0.000000e+00> : vector<16x128xf32>
    %2 = tpu.matmul %0, %1, %cst {dimension_numbers = #tpu.dot_dimension_numbers<[1], [0], [0], [1], [0, 0, 1, 1], [], []>} : vector<16x64xbf16>, vector<64x128xbf16>, vector<16x128xf32> -> vector<16x128xf32>
    %c0_3 = arith.constant 0 : index
    %c0_4 = arith.constant 0 : index
    %3 = vector.load %arg3[%c0_3, %c0_4] : memref<16x1xf32, #tpu.memory_space<vmem>>, vector<16x1xf32>
    %4 = vector.broadcast %3 : vector<16x1xf32> to vector<16x128xf32>
    %5 = arith.addf %2, %4 : vector<16x128xf32>
    %6 = arith.truncf %5 : vector<16x128xf32> to vector<16x128xbf16>
    %c0_5 = arith.constant 0 : index
    %c0_6 = arith.constant 0 : index
    %7 = vector.load %arg4[%c0_5, %c0_6] : memref<16x128xbf16, #tpu.memory_space<vmem>>, vector<16x128xbf16>
    tpu.vector_store %arg4[%c0_5, %c0_6], %6 {strides = array<i32>} : memref<16x128xbf16, #tpu.memory_space<vmem>>, vector<16x128xbf16>,
    return
  }
  func.func @transform_0(%arg0: i32) -> (i32, i32) {
    %c0_i32 = arith.constant 0 : i32
    %c0_i32_0 = arith.constant 0 : i32
    %c0_i32_1 = arith.constant 0 : i32
    return %c0_i32, %c0_i32_0 : i32, i32
  }
  func.func @transform_1(%arg0: i32) -> (i32, i32) {
    %c0_i32 = arith.constant 0 : i32
    %c0_i32_0 = arith.constant 0 : i32
    return %c0_i32, %arg0 : i32, i32
  }
  func.func @transform_2(%arg0: i32) -> (i32, i32) {
    %c0_i32 = arith.constant 0 : i32
    %c0_i32_0 = arith.constant 0 : i32
    %c0_i32_1 = arith.constant 0 : i32
    return %c0_i32, %c0_i32_0 : i32, i32
  }
  func.func @transform_3(%arg0: i32) -> (i32, i32) {
    %c0_i32 = arith.constant 0 : i32
    %c0_i32_0 = arith.constant 0 : i32
    return %c0_i32, %arg0 : i32, i32
  }
}

module attributes {stable_mosaic.version = 11 : i64} {
  func.func @_gemm_kernel(%arg0: i32, %arg1: memref<32x16xbf16, #tpu.memory_space<vmem>>, %arg2: memref<16x128xbf16, #tpu.memory_space<vmem>>, %arg3: memref<32x1xf32, #tpu.memory_space<vmem>>, %arg4: memref<32x128xbf16, #tpu.memory_space<vmem>>, %arg5: memref<32x128xbf16, #tpu.memory_space<vmem>>) attributes {dimension_semantics = [#tpu.dimension_semantics<parallel>], iteration_bounds = array<i64: 1>, scalar_prefetch = 0 : i64, scratch_operands = 0 : i64, tpu.core_type = #tpu.core_type<tc>, window_params = [{pipeline_mode = #tpu.pipeline_mode<synchronous>, transform_indices = @transform_0, window_bounds = array<i64: 32, 16>}, {transform_indices = @transform_1, window_bounds = array<i64: 16, 128>}, {pipeline_mode = #tpu.pipeline_mode<synchronous>, transform_indices = @transform_2, window_bounds = array<i64: 32, 1>}, {transform_indices = @transform_3, window_bounds = array<i64: 32, 128>}, {transform_indices = @transform_4, window_bounds = array<i64: 32, 128>}]} {
    %c0 = arith.constant 0 : index
    %c0_0 = arith.constant 0 : index
    %0 = vector.load %arg4[%c0, %c0_0] : memref<32x128xbf16, #tpu.memory_space<vmem>>, vector<32x128xbf16>
    %1 = arith.extf %0 : vector<32x128xbf16> to vector<32x128xf32>
    %c0_1 = arith.constant 0 : index
    %c0_2 = arith.constant 0 : index
    %2 = vector.load %arg1[%c0_1, %c0_2] : memref<32x16xbf16, #tpu.memory_space<vmem>>, vector<32x16xbf16>
    %c0_3 = arith.constant 0 : index
    %c0_4 = arith.constant 0 : index
    %3 = vector.load %arg2[%c0_3, %c0_4] : memref<16x128xbf16, #tpu.memory_space<vmem>>, vector<16x128xbf16>
    %cst = arith.constant dense<0.000000e+00> : vector<32x128xf32>
    %4 = tpu.matmul %2, %3, %cst {dimension_numbers = #tpu.dot_dimension_numbers<[1], [0], [0], [1], [0, 0, 1, 1], [], []>} : vector<32x16xbf16>, vector<16x128xbf16>, vector<32x128xf32> -> vector<32x128xf32>
    %c0_5 = arith.constant 0 : index
    %c0_6 = arith.constant 0 : index
    %5 = vector.load %arg3[%c0_5, %c0_6] : memref<32x1xf32, #tpu.memory_space<vmem>>, vector<32x1xf32>
    %6 = vector.broadcast %5 : vector<32x1xf32> to vector<32x128xf32>
    %7 = arith.addf %4, %6 : vector<32x128xf32>
    %8 = arith.addf %7, %1 : vector<32x128xf32>
    %cst_7 = arith.constant 0.000000e+00 : f32
    %9 = vector.broadcast %cst_7 : f32 to vector<32x128xf32>
    %10 = arith.maximumf %8, %9 : vector<32x128xf32>
    %11 = arith.truncf %10 : vector<32x128xf32> to vector<32x128xbf16>
    %c0_8 = arith.constant 0 : index
    %c0_9 = arith.constant 0 : index
    %12 = vector.load %arg5[%c0_8, %c0_9] : memref<32x128xbf16, #tpu.memory_space<vmem>>, vector<32x128xbf16>
    tpu.vector_store %arg5[%c0_8, %c0_9], %11 {strides = array<i32>} : memref<32x128xbf16, #tpu.memory_space<vmem>>, vector<32x128xbf16>,
    return
  }
  func.func @transform_0(%arg0: i32) -> (i32, i32) {
    %c0_i32 = arith.constant 0 : i32
    %c0_i32_0 = arith.constant 0 : i32
    %c0_i32_1 = arith.constant 0 : i32
    return %c0_i32, %c0_i32_0 : i32, i32
  }
  func.func @transform_1(%arg0: i32) -> (i32, i32) {
    %c0_i32 = arith.constant 0 : i32
    %c0_i32_0 = arith.constant 0 : i32
    return %c0_i32, %arg0 : i32, i32
  }
  func.func @transform_2(%arg0: i32) -> (i32, i32) {
    %c0_i32 = arith.constant 0 : i32
    %c0_i32_0 = arith.constant 0 : i32
    %c0_i32_1 = arith.constant 0 : i32
    return %c0_i32, %c0_i32_0 : i32, i32
  }
  func.func @transform_3(%arg0: i32) -> (i32, i32) {
    %c0_i32 = arith.constant 0 : i32
    %c0_i32_0 = arith.constant 0 : i32
    return %c0_i32, %arg0 : i32, i32
  }
  func.func @transform_4(%arg0: i32) -> (i32, i32) {
    %c0_i32 = arith.constant 0 : i32
    %c0_i32_0 = arith.constant 0 : i32
    return %c0_i32, %arg0 : i32, i32
  }
}

module attributes {stable_mosaic.version = 11 : i64} {
  func.func @_gemm_kernel(%arg0: i32, %arg1: memref<16x144xbf16, #tpu.memory_space<vmem>>, %arg2: memref<144x128xbf16, #tpu.memory_space<vmem>>, %arg3: memref<16x1xf32, #tpu.memory_space<vmem>>, %arg4: memref<16x128xbf16, #tpu.memory_space<vmem>>) attributes {dimension_semantics = [#tpu.dimension_semantics<parallel>], iteration_bounds = array<i64: 1>, scalar_prefetch = 0 : i64, scratch_operands = 0 : i64, tpu.core_type = #tpu.core_type<tc>, window_params = [{pipeline_mode = #tpu.pipeline_mode<synchronous>, transform_indices = @transform_0, window_bounds = array<i64: 16, 144>}, {transform_indices = @transform_1, window_bounds = array<i64: 144, 128>}, {pipeline_mode = #tpu.pipeline_mode<synchronous>, transform_indices = @transform_2, window_bounds = array<i64: 16, 1>}, {transform_indices = @transform_3, window_bounds = array<i64: 16, 128>}]} {
    %c0 = arith.constant 0 : index
    %c0_0 = arith.constant 0 : index
    %0 = vector.load %arg1[%c0, %c0_0] : memref<16x144xbf16, #tpu.memory_space<vmem>>, vector<16x144xbf16>
    %c0_1 = arith.constant 0 : index
    %c0_2 = arith.constant 0 : index
    %1 = vector.load %arg2[%c0_1, %c0_2] : memref<144x128xbf16, #tpu.memory_space<vmem>>, vector<144x128xbf16>
    %cst = arith.constant dense<0.000000e+00> : vector<16x128xf32>
    %2 = tpu.matmul %0, %1, %cst {dimension_numbers = #tpu.dot_dimension_numbers<[1], [0], [0], [1], [0, 0, 1, 1], [], []>} : vector<16x144xbf16>, vector<144x128xbf16>, vector<16x128xf32> -> vector<16x128xf32>
    %c0_3 = arith.constant 0 : index
    %c0_4 = arith.constant 0 : index
    %3 = vector.load %arg3[%c0_3, %c0_4] : memref<16x1xf32, #tpu.memory_space<vmem>>, vector<16x1xf32>
    %4 = vector.broadcast %3 : vector<16x1xf32> to vector<16x128xf32>
    %5 = arith.addf %2, %4 : vector<16x128xf32>
    %cst_5 = arith.constant 0.000000e+00 : f32
    %6 = vector.broadcast %cst_5 : f32 to vector<16x128xf32>
    %7 = arith.maximumf %5, %6 : vector<16x128xf32>
    %8 = arith.truncf %7 : vector<16x128xf32> to vector<16x128xbf16>
    %c0_6 = arith.constant 0 : index
    %c0_7 = arith.constant 0 : index
    %9 = vector.load %arg4[%c0_6, %c0_7] : memref<16x128xbf16, #tpu.memory_space<vmem>>, vector<16x128xbf16>
    tpu.vector_store %arg4[%c0_6, %c0_7], %8 {strides = array<i32>} : memref<16x128xbf16, #tpu.memory_space<vmem>>, vector<16x128xbf16>,
    return
  }
  func.func @transform_0(%arg0: i32) -> (i32, i32) {
    %c0_i32 = arith.constant 0 : i32
    %c0_i32_0 = arith.constant 0 : i32
    %c0_i32_1 = arith.constant 0 : i32
    return %c0_i32, %c0_i32_0 : i32, i32
  }
  func.func @transform_1(%arg0: i32) -> (i32, i32) {
    %c0_i32 = arith.constant 0 : i32
    %c0_i32_0 = arith.constant 0 : i32
    return %c0_i32, %arg0 : i32, i32
  }
  func.func @transform_2(%arg0: i32) -> (i32, i32) {
    %c0_i32 = arith.constant 0 : i32
    %c0_i32_0 = arith.constant 0 : i32
    %c0_i32_1 = arith.constant 0 : i32
    return %c0_i32, %c0_i32_0 : i32, i32
  }
  func.func @transform_3(%arg0: i32) -> (i32, i32) {
    %c0_i32 = arith.constant 0 : i32
    %c0_i32_0 = arith.constant 0 : i32
    return %c0_i32, %arg0 : i32, i32
  }
}

module attributes {stable_mosaic.version = 11 : i64} {
  func.func @_gemm_kernel(%arg0: i32, %arg1: memref<16x32xbf16, #tpu.memory_space<vmem>>, %arg2: memref<32x128xbf16, #tpu.memory_space<vmem>>, %arg3: memref<16x1xf32, #tpu.memory_space<vmem>>, %arg4: memref<16x128xbf16, #tpu.memory_space<vmem>>) attributes {dimension_semantics = [#tpu.dimension_semantics<parallel>], iteration_bounds = array<i64: 1>, scalar_prefetch = 0 : i64, scratch_operands = 0 : i64, tpu.core_type = #tpu.core_type<tc>, window_params = [{pipeline_mode = #tpu.pipeline_mode<synchronous>, transform_indices = @transform_0, window_bounds = array<i64: 16, 32>}, {transform_indices = @transform_1, window_bounds = array<i64: 32, 128>}, {pipeline_mode = #tpu.pipeline_mode<synchronous>, transform_indices = @transform_2, window_bounds = array<i64: 16, 1>}, {transform_indices = @transform_3, window_bounds = array<i64: 16, 128>}]} {
    %c0 = arith.constant 0 : index
    %c0_0 = arith.constant 0 : index
    %0 = vector.load %arg1[%c0, %c0_0] : memref<16x32xbf16, #tpu.memory_space<vmem>>, vector<16x32xbf16>
    %c0_1 = arith.constant 0 : index
    %c0_2 = arith.constant 0 : index
    %1 = vector.load %arg2[%c0_1, %c0_2] : memref<32x128xbf16, #tpu.memory_space<vmem>>, vector<32x128xbf16>
    %cst = arith.constant dense<0.000000e+00> : vector<16x128xf32>
    %2 = tpu.matmul %0, %1, %cst {dimension_numbers = #tpu.dot_dimension_numbers<[1], [0], [0], [1], [0, 0, 1, 1], [], []>} : vector<16x32xbf16>, vector<32x128xbf16>, vector<16x128xf32> -> vector<16x128xf32>
    %c0_3 = arith.constant 0 : index
    %c0_4 = arith.constant 0 : index
    %3 = vector.load %arg3[%c0_3, %c0_4] : memref<16x1xf32, #tpu.memory_space<vmem>>, vector<16x1xf32>
    %4 = vector.broadcast %3 : vector<16x1xf32> to vector<16x128xf32>
    %5 = arith.addf %2, %4 : vector<16x128xf32>
    %6 = arith.truncf %5 : vector<16x128xf32> to vector<16x128xbf16>
    %c0_5 = arith.constant 0 : index
    %c0_6 = arith.constant 0 : index
    %7 = vector.load %arg4[%c0_5, %c0_6] : memref<16x128xbf16, #tpu.memory_space<vmem>>, vector<16x128xbf16>
    tpu.vector_store %arg4[%c0_5, %c0_6], %6 {strides = array<i32>} : memref<16x128xbf16, #tpu.memory_space<vmem>>, vector<16x128xbf16>,
    return
  }
  func.func @transform_0(%arg0: i32) -> (i32, i32) {
    %c0_i32 = arith.constant 0 : i32
    %c0_i32_0 = arith.constant 0 : i32
    %c0_i32_1 = arith.constant 0 : i32
    return %c0_i32, %c0_i32_0 : i32, i32
  }
  func.func @transform_1(%arg0: i32) -> (i32, i32) {
    %c0_i32 = arith.constant 0 : i32
    %c0_i32_0 = arith.constant 0 : i32
    return %c0_i32, %arg0 : i32, i32
  }
  func.func @transform_2(%arg0: i32) -> (i32, i32) {
    %c0_i32 = arith.constant 0 : i32
    %c0_i32_0 = arith.constant 0 : i32
    %c0_i32_1 = arith.constant 0 : i32
    return %c0_i32, %c0_i32_0 : i32, i32
  }
  func.func @transform_3(%arg0: i32) -> (i32, i32) {
    %c0_i32 = arith.constant 0 : i32
    %c0_i32_0 = arith.constant 0 : i32
    return %c0_i32, %arg0 : i32, i32
  }
}

module attributes {stable_mosaic.version = 11 : i64} {
  func.func @_gemm_kernel(%arg0: i32, %arg1: memref<16x16xbf16, #tpu.memory_space<vmem>>, %arg2: memref<16x512xbf16, #tpu.memory_space<vmem>>, %arg3: memref<16x1xf32, #tpu.memory_space<vmem>>, %arg4: memref<16x512xbf16, #tpu.memory_space<vmem>>) attributes {dimension_semantics = [#tpu.dimension_semantics<parallel>], iteration_bounds = array<i64: 1>, scalar_prefetch = 0 : i64, scratch_operands = 0 : i64, tpu.core_type = #tpu.core_type<tc>, window_params = [{pipeline_mode = #tpu.pipeline_mode<synchronous>, transform_indices = @transform_0, window_bounds = array<i64: 16, 16>}, {transform_indices = @transform_1, window_bounds = array<i64: 16, 512>}, {pipeline_mode = #tpu.pipeline_mode<synchronous>, transform_indices = @transform_2, window_bounds = array<i64: 16, 1>}, {transform_indices = @transform_3, window_bounds = array<i64: 16, 512>}]} {
    %c0 = arith.constant 0 : index
    %c0_0 = arith.constant 0 : index
    %0 = vector.load %arg1[%c0, %c0_0] : memref<16x16xbf16, #tpu.memory_space<vmem>>, vector<16x16xbf16>
    %c0_1 = arith.constant 0 : index
    %c0_2 = arith.constant 0 : index
    %1 = vector.load %arg2[%c0_1, %c0_2] : memref<16x512xbf16, #tpu.memory_space<vmem>>, vector<16x512xbf16>
    %cst = arith.constant dense<0.000000e+00> : vector<16x512xf32>
    %2 = tpu.matmul %0, %1, %cst {dimension_numbers = #tpu.dot_dimension_numbers<[1], [0], [0], [1], [0, 0, 1, 1], [], []>} : vector<16x16xbf16>, vector<16x512xbf16>, vector<16x512xf32> -> vector<16x512xf32>
    %c0_3 = arith.constant 0 : index
    %c0_4 = arith.constant 0 : index
    %3 = vector.load %arg3[%c0_3, %c0_4] : memref<16x1xf32, #tpu.memory_space<vmem>>, vector<16x1xf32>
    %4 = vector.broadcast %3 : vector<16x1xf32> to vector<16x512xf32>
    %5 = arith.addf %2, %4 : vector<16x512xf32>
    %6 = arith.truncf %5 : vector<16x512xf32> to vector<16x512xbf16>
    %c0_5 = arith.constant 0 : index
    %c0_6 = arith.constant 0 : index
    %7 = vector.load %arg4[%c0_5, %c0_6] : memref<16x512xbf16, #tpu.memory_space<vmem>>, vector<16x512xbf16>
    tpu.vector_store %arg4[%c0_5, %c0_6], %6 {strides = array<i32>} : memref<16x512xbf16, #tpu.memory_space<vmem>>, vector<16x512xbf16>,
    return
  }
  func.func @transform_0(%arg0: i32) -> (i32, i32) {
    %c0_i32 = arith.constant 0 : i32
    %c0_i32_0 = arith.constant 0 : i32
    %c0_i32_1 = arith.constant 0 : i32
    return %c0_i32, %c0_i32_0 : i32, i32
  }
  func.func @transform_1(%arg0: i32) -> (i32, i32) {
    %c0_i32 = arith.constant 0 : i32
    %c0_i32_0 = arith.constant 0 : i32
    return %c0_i32, %arg0 : i32, i32
  }
  func.func @transform_2(%arg0: i32) -> (i32, i32) {
    %c0_i32 = arith.constant 0 : i32
    %c0_i32_0 = arith.constant 0 : i32
    %c0_i32_1 = arith.constant 0 : i32
    return %c0_i32, %c0_i32_0 : i32, i32
  }
  func.func @transform_3(%arg0: i32) -> (i32, i32) {
    %c0_i32 = arith.constant 0 : i32
    %c0_i32_0 = arith.constant 0 : i32
    return %c0_i32, %arg0 : i32, i32
  }
}

module attributes {stable_mosaic.version = 11 : i64} {
  func.func @_gemm_kernel(%arg0: i32, %arg1: memref<32x64xbf16, #tpu.memory_space<vmem>>, %arg2: memref<64x256xbf16, #tpu.memory_space<vmem>>, %arg3: memref<32x1xf32, #tpu.memory_space<vmem>>, %arg4: memref<32x256xbf16, #tpu.memory_space<vmem>>, %arg5: memref<32x256xbf16, #tpu.memory_space<vmem>>) attributes {dimension_semantics = [#tpu.dimension_semantics<parallel>], iteration_bounds = array<i64: 1>, scalar_prefetch = 0 : i64, scratch_operands = 0 : i64, tpu.core_type = #tpu.core_type<tc>, window_params = [{pipeline_mode = #tpu.pipeline_mode<synchronous>, transform_indices = @transform_0, window_bounds = array<i64: 32, 64>}, {transform_indices = @transform_1, window_bounds = array<i64: 64, 256>}, {pipeline_mode = #tpu.pipeline_mode<synchronous>, transform_indices = @transform_2, window_bounds = array<i64: 32, 1>}, {transform_indices = @transform_3, window_bounds = array<i64: 32, 256>}, {transform_indices = @transform_4, window_bounds = array<i64: 32, 256>}]} {
    %c0 = arith.constant 0 : index
    %c0_0 = arith.constant 0 : index
    %0 = vector.load %arg4[%c0, %c0_0] : memref<32x256xbf16, #tpu.memory_space<vmem>>, vector<32x256xbf16>
    %1 = arith.extf %0 : vector<32x256xbf16> to vector<32x256xf32>
    %c0_1 = arith.constant 0 : index
    %c0_2 = arith.constant 0 : index
    %2 = vector.load %arg1[%c0_1, %c0_2] : memref<32x64xbf16, #tpu.memory_space<vmem>>, vector<32x64xbf16>
    %c0_3 = arith.constant 0 : index
    %c0_4 = arith.constant 0 : index
    %3 = vector.load %arg2[%c0_3, %c0_4] : memref<64x256xbf16, #tpu.memory_space<vmem>>, vector<64x256xbf16>
    %cst = arith.constant dense<0.000000e+00> : vector<32x256xf32>
    %4 = tpu.matmul %2, %3, %cst {dimension_numbers = #tpu.dot_dimension_numbers<[1], [0], [0], [1], [0, 0, 1, 1], [], []>} : vector<32x64xbf16>, vector<64x256xbf16>, vector<32x256xf32> -> vector<32x256xf32>
    %c0_5 = arith.constant 0 : index
    %c0_6 = arith.constant 0 : index
    %5 = vector.load %arg3[%c0_5, %c0_6] : memref<32x1xf32, #tpu.memory_space<vmem>>, vector<32x1xf32>
    %6 = vector.broadcast %5 : vector<32x1xf32> to vector<32x256xf32>
    %7 = arith.addf %4, %6 : vector<32x256xf32>
    %8 = arith.addf %7, %1 : vector<32x256xf32>
    %cst_7 = arith.constant 0.000000e+00 : f32
    %9 = vector.broadcast %cst_7 : f32 to vector<32x256xf32>
    %10 = arith.maximumf %8, %9 : vector<32x256xf32>
    %11 = arith.truncf %10 : vector<32x256xf32> to vector<32x256xbf16>
    %c0_8 = arith.constant 0 : index
    %c0_9 = arith.constant 0 : index
    %12 = vector.load %arg5[%c0_8, %c0_9] : memref<32x256xbf16, #tpu.memory_space<vmem>>, vector<32x256xbf16>
    tpu.vector_store %arg5[%c0_8, %c0_9], %11 {strides = array<i32>} : memref<32x256xbf16, #tpu.memory_space<vmem>>, vector<32x256xbf16>,
    return
  }
  func.func @transform_0(%arg0: i32) -> (i32, i32) {
    %c0_i32 = arith.constant 0 : i32
    %c0_i32_0 = arith.constant 0 : i32
    %c0_i32_1 = arith.constant 0 : i32
    return %c0_i32, %c0_i32_0 : i32, i32
  }
  func.func @transform_1(%arg0: i32) -> (i32, i32) {
    %c0_i32 = arith.constant 0 : i32
    %c0_i32_0 = arith.constant 0 : i32
    return %c0_i32, %arg0 : i32, i32
  }
  func.func @transform_2(%arg0: i32) -> (i32, i32) {
    %c0_i32 = arith.constant 0 : i32
    %c0_i32_0 = arith.constant 0 : i32
    %c0_i32_1 = arith.constant 0 : i32
    return %c0_i32, %c0_i32_0 : i32, i32
  }
  func.func @transform_3(%arg0: i32) -> (i32, i32) {
    %c0_i32 = arith.constant 0 : i32
    %c0_i32_0 = arith.constant 0 : i32
    return %c0_i32, %arg0 : i32, i32
  }
  func.func @transform_4(%arg0: i32) -> (i32, i32) {
    %c0_i32 = arith.constant 0 : i32
    %c0_i32_0 = arith.constant 0 : i32
    return %c0_i32, %arg0 : i32, i32
  }
}

module attributes {stable_mosaic.version = 11 : i64} {
  func.func @_gate_kernel(%arg0: i32, %arg1: memref<16x512xbf16, #tpu.memory_space<vmem>>, %arg2: memref<1x512xbf16, #tpu.memory_space<vmem>>, %arg3: memref<16x512xbf16, #tpu.memory_space<vmem>>) attributes {dimension_semantics = [#tpu.dimension_semantics<parallel>], iteration_bounds = array<i64: 1>, scalar_prefetch = 0 : i64, scratch_operands = 0 : i64, tpu.core_type = #tpu.core_type<tc>, window_params = [{transform_indices = @transform_0, window_bounds = array<i64: 16, 512>}, {transform_indices = @transform_1, window_bounds = array<i64: 1, 512>}, {transform_indices = @transform_2, window_bounds = array<i64: 16, 512>}]} {
    %c0 = arith.constant 0 : index
    %c0_0 = arith.constant 0 : index
    %0 = vector.load %arg1[%c0, %c0_0] : memref<16x512xbf16, #tpu.memory_space<vmem>>, vector<16x512xbf16>
    %1 = arith.extf %0 : vector<16x512xbf16> to vector<16x512xf32>
    %c0_1 = arith.constant 0 : index
    %c0_2 = arith.constant 0 : index
    %2 = vector.load %arg2[%c0_1, %c0_2] : memref<1x512xbf16, #tpu.memory_space<vmem>>, vector<1x512xbf16>
    %3 = arith.extf %2 : vector<1x512xbf16> to vector<1x512xf32>
    %4 = arith.negf %3 : vector<1x512xf32>
    %5 = math.exp %4 : vector<1x512xf32>
    %cst = arith.constant 1.000000e+00 : f32
    %6 = vector.broadcast %cst : f32 to vector<1x512xf32>
    %7 = arith.addf %6, %5 : vector<1x512xf32>
    %8 = arith.divf %6, %7 : vector<1x512xf32>
    %9 = vector.broadcast %8 : vector<1x512xf32> to vector<16x512xf32>
    %10 = arith.mulf %1, %9 : vector<16x512xf32>
    %11 = arith.addf %10, %1 : vector<16x512xf32>
    %12 = arith.truncf %11 : vector<16x512xf32> to vector<16x512xbf16>
    %c0_3 = arith.constant 0 : index
    %c0_4 = arith.constant 0 : index
    %13 = vector.load %arg3[%c0_3, %c0_4] : memref<16x512xbf16, #tpu.memory_space<vmem>>, vector<16x512xbf16>
    tpu.vector_store %arg3[%c0_3, %c0_4], %12 {strides = array<i32>} : memref<16x512xbf16, #tpu.memory_space<vmem>>, vector<16x512xbf16>,
    return
  }
  func.func @transform_0(%arg0: i32) -> (i32, i32) {
    %c0_i32 = arith.constant 0 : i32
    %c0_i32_0 = arith.constant 0 : i32
    return %c0_i32, %arg0 : i32, i32
  }
  func.func @transform_1(%arg0: i32) -> (i32, i32) {
    %c0_i32 = arith.constant 0 : i32
    %c0_i32_0 = arith.constant 0 : i32
    return %c0_i32, %arg0 : i32, i32
  }
  func.func @transform_2(%arg0: i32) -> (i32, i32) {
    %c0_i32 = arith.constant 0 : i32
    %c0_i32_0 = arith.constant 0 : i32
    return %c0_i32, %arg0 : i32, i32
  }
}

module attributes {stable_mosaic.version = 11 : i64} {
  func.func @_gemm_kernel(%arg0: i32, %arg1: memref<16x144xbf16, #tpu.memory_space<vmem>>, %arg2: memref<144x512xbf16, #tpu.memory_space<vmem>>, %arg3: memref<16x1xf32, #tpu.memory_space<vmem>>, %arg4: memref<16x512xbf16, #tpu.memory_space<vmem>>) attributes {dimension_semantics = [#tpu.dimension_semantics<parallel>], iteration_bounds = array<i64: 1>, scalar_prefetch = 0 : i64, scratch_operands = 0 : i64, tpu.core_type = #tpu.core_type<tc>, window_params = [{pipeline_mode = #tpu.pipeline_mode<synchronous>, transform_indices = @transform_0, window_bounds = array<i64: 16, 144>}, {transform_indices = @transform_1, window_bounds = array<i64: 144, 512>}, {pipeline_mode = #tpu.pipeline_mode<synchronous>, transform_indices = @transform_2, window_bounds = array<i64: 16, 1>}, {transform_indices = @transform_3, window_bounds = array<i64: 16, 512>}]} {
    %c0 = arith.constant 0 : index
    %c0_0 = arith.constant 0 : index
    %0 = vector.load %arg1[%c0, %c0_0] : memref<16x144xbf16, #tpu.memory_space<vmem>>, vector<16x144xbf16>
    %c0_1 = arith.constant 0 : index
    %c0_2 = arith.constant 0 : index
    %1 = vector.load %arg2[%c0_1, %c0_2] : memref<144x512xbf16, #tpu.memory_space<vmem>>, vector<144x512xbf16>
    %cst = arith.constant dense<0.000000e+00> : vector<16x512xf32>
    %2 = tpu.matmul %0, %1, %cst {dimension_numbers = #tpu.dot_dimension_numbers<[1], [0], [0], [1], [0, 0, 1, 1], [], []>} : vector<16x144xbf16>, vector<144x512xbf16>, vector<16x512xf32> -> vector<16x512xf32>
    %c0_3 = arith.constant 0 : index
    %c0_4 = arith.constant 0 : index
    %3 = vector.load %arg3[%c0_3, %c0_4] : memref<16x1xf32, #tpu.memory_space<vmem>>, vector<16x1xf32>
    %4 = vector.broadcast %3 : vector<16x1xf32> to vector<16x512xf32>
    %5 = arith.addf %2, %4 : vector<16x512xf32>
    %cst_5 = arith.constant 0.000000e+00 : f32
    %6 = vector.broadcast %cst_5 : f32 to vector<16x512xf32>
    %7 = arith.maximumf %5, %6 : vector<16x512xf32>
    %8 = arith.truncf %7 : vector<16x512xf32> to vector<16x512xbf16>
    %c0_6 = arith.constant 0 : index
    %c0_7 = arith.constant 0 : index
    %9 = vector.load %arg4[%c0_6, %c0_7] : memref<16x512xbf16, #tpu.memory_space<vmem>>, vector<16x512xbf16>
    tpu.vector_store %arg4[%c0_6, %c0_7], %8 {strides = array<i32>} : memref<16x512xbf16, #tpu.memory_space<vmem>>, vector<16x512xbf16>,
    return
  }
  func.func @transform_0(%arg0: i32) -> (i32, i32) {
    %c0_i32 = arith.constant 0 : i32
    %c0_i32_0 = arith.constant 0 : i32
    %c0_i32_1 = arith.constant 0 : i32
    return %c0_i32, %c0_i32_0 : i32, i32
  }
  func.func @transform_1(%arg0: i32) -> (i32, i32) {
    %c0_i32 = arith.constant 0 : i32
    %c0_i32_0 = arith.constant 0 : i32
    return %c0_i32, %arg0 : i32, i32
  }
  func.func @transform_2(%arg0: i32) -> (i32, i32) {
    %c0_i32 = arith.constant 0 : i32
    %c0_i32_0 = arith.constant 0 : i32
    %c0_i32_1 = arith.constant 0 : i32
    return %c0_i32, %c0_i32_0 : i32, i32
  }
  func.func @transform_3(%arg0: i32) -> (i32, i32) {
    %c0_i32 = arith.constant 0 : i32
    %c0_i32_0 = arith.constant 0 : i32
    return %c0_i32, %arg0 : i32, i32
  }
}

module attributes {stable_mosaic.version = 11 : i64} {
  func.func @_gemm_kernel(%arg0: i32, %arg1: memref<16x64xbf16, #tpu.memory_space<vmem>>, %arg2: memref<64x256xbf16, #tpu.memory_space<vmem>>, %arg3: memref<16x1xf32, #tpu.memory_space<vmem>>, %arg4: memref<16x256xbf16, #tpu.memory_space<vmem>>) attributes {dimension_semantics = [#tpu.dimension_semantics<parallel>], iteration_bounds = array<i64: 1>, scalar_prefetch = 0 : i64, scratch_operands = 0 : i64, tpu.core_type = #tpu.core_type<tc>, window_params = [{pipeline_mode = #tpu.pipeline_mode<synchronous>, transform_indices = @transform_0, window_bounds = array<i64: 16, 64>}, {transform_indices = @transform_1, window_bounds = array<i64: 64, 256>}, {pipeline_mode = #tpu.pipeline_mode<synchronous>, transform_indices = @transform_2, window_bounds = array<i64: 16, 1>}, {transform_indices = @transform_3, window_bounds = array<i64: 16, 256>}]} {
    %c0 = arith.constant 0 : index
    %c0_0 = arith.constant 0 : index
    %0 = vector.load %arg1[%c0, %c0_0] : memref<16x64xbf16, #tpu.memory_space<vmem>>, vector<16x64xbf16>
    %c0_1 = arith.constant 0 : index
    %c0_2 = arith.constant 0 : index
    %1 = vector.load %arg2[%c0_1, %c0_2] : memref<64x256xbf16, #tpu.memory_space<vmem>>, vector<64x256xbf16>
    %cst = arith.constant dense<0.000000e+00> : vector<16x256xf32>
    %2 = tpu.matmul %0, %1, %cst {dimension_numbers = #tpu.dot_dimension_numbers<[1], [0], [0], [1], [0, 0, 1, 1], [], []>} : vector<16x64xbf16>, vector<64x256xbf16>, vector<16x256xf32> -> vector<16x256xf32>
    %c0_3 = arith.constant 0 : index
    %c0_4 = arith.constant 0 : index
    %3 = vector.load %arg3[%c0_3, %c0_4] : memref<16x1xf32, #tpu.memory_space<vmem>>, vector<16x1xf32>
    %4 = vector.broadcast %3 : vector<16x1xf32> to vector<16x256xf32>
    %5 = arith.addf %2, %4 : vector<16x256xf32>
    %6 = arith.truncf %5 : vector<16x256xf32> to vector<16x256xbf16>
    %c0_5 = arith.constant 0 : index
    %c0_6 = arith.constant 0 : index
    %7 = vector.load %arg4[%c0_5, %c0_6] : memref<16x256xbf16, #tpu.memory_space<vmem>>, vector<16x256xbf16>
    tpu.vector_store %arg4[%c0_5, %c0_6], %6 {strides = array<i32>} : memref<16x256xbf16, #tpu.memory_space<vmem>>, vector<16x256xbf16>,
    return
  }
  func.func @transform_0(%arg0: i32) -> (i32, i32) {
    %c0_i32 = arith.constant 0 : i32
    %c0_i32_0 = arith.constant 0 : i32
    %c0_i32_1 = arith.constant 0 : i32
    return %c0_i32, %c0_i32_0 : i32, i32
  }
  func.func @transform_1(%arg0: i32) -> (i32, i32) {
    %c0_i32 = arith.constant 0 : i32
    %c0_i32_0 = arith.constant 0 : i32
    return %c0_i32, %arg0 : i32, i32
  }
  func.func @transform_2(%arg0: i32) -> (i32, i32) {
    %c0_i32 = arith.constant 0 : i32
    %c0_i32_0 = arith.constant 0 : i32
    %c0_i32_1 = arith.constant 0 : i32
    return %c0_i32, %c0_i32_0 : i32, i32
  }
  func.func @transform_3(%arg0: i32) -> (i32, i32) {
    %c0_i32 = arith.constant 0 : i32
    %c0_i32_0 = arith.constant 0 : i32
    return %c0_i32, %arg0 : i32, i32
  }
}

module attributes {stable_mosaic.version = 11 : i64} {
  func.func @_gemm_kernel(%arg0: i32, %arg1: memref<16x16xbf16, #tpu.memory_space<vmem>>, %arg2: memref<16x512xbf16, #tpu.memory_space<vmem>>, %arg3: memref<16x1xf32, #tpu.memory_space<vmem>>, %arg4: memref<16x512xbf16, #tpu.memory_space<vmem>>, %arg5: memref<16x512xbf16, #tpu.memory_space<vmem>>) attributes {dimension_semantics = [#tpu.dimension_semantics<parallel>], iteration_bounds = array<i64: 1>, scalar_prefetch = 0 : i64, scratch_operands = 0 : i64, tpu.core_type = #tpu.core_type<tc>, window_params = [{pipeline_mode = #tpu.pipeline_mode<synchronous>, transform_indices = @transform_0, window_bounds = array<i64: 16, 16>}, {transform_indices = @transform_1, window_bounds = array<i64: 16, 512>}, {pipeline_mode = #tpu.pipeline_mode<synchronous>, transform_indices = @transform_2, window_bounds = array<i64: 16, 1>}, {transform_indices = @transform_3, window_bounds = array<i64: 16, 512>}, {transform_indices = @transform_4, window_bounds = array<i64: 16, 512>}]} {
    %c0 = arith.constant 0 : index
    %c0_0 = arith.constant 0 : index
    %0 = vector.load %arg4[%c0, %c0_0] : memref<16x512xbf16, #tpu.memory_space<vmem>>, vector<16x512xbf16>
    %1 = arith.extf %0 : vector<16x512xbf16> to vector<16x512xf32>
    %c0_1 = arith.constant 0 : index
    %c0_2 = arith.constant 0 : index
    %2 = vector.load %arg1[%c0_1, %c0_2] : memref<16x16xbf16, #tpu.memory_space<vmem>>, vector<16x16xbf16>
    %c0_3 = arith.constant 0 : index
    %c0_4 = arith.constant 0 : index
    %3 = vector.load %arg2[%c0_3, %c0_4] : memref<16x512xbf16, #tpu.memory_space<vmem>>, vector<16x512xbf16>
    %cst = arith.constant dense<0.000000e+00> : vector<16x512xf32>
    %4 = tpu.matmul %2, %3, %cst {dimension_numbers = #tpu.dot_dimension_numbers<[1], [0], [0], [1], [0, 0, 1, 1], [], []>} : vector<16x16xbf16>, vector<16x512xbf16>, vector<16x512xf32> -> vector<16x512xf32>
    %c0_5 = arith.constant 0 : index
    %c0_6 = arith.constant 0 : index
    %5 = vector.load %arg3[%c0_5, %c0_6] : memref<16x1xf32, #tpu.memory_space<vmem>>, vector<16x1xf32>
    %6 = vector.broadcast %5 : vector<16x1xf32> to vector<16x512xf32>
    %7 = arith.addf %4, %6 : vector<16x512xf32>
    %8 = arith.addf %7, %1 : vector<16x512xf32>
    %9 = arith.truncf %8 : vector<16x512xf32> to vector<16x512xbf16>
    %c0_7 = arith.constant 0 : index
    %c0_8 = arith.constant 0 : index
    %10 = vector.load %arg5[%c0_7, %c0_8] : memref<16x512xbf16, #tpu.memory_space<vmem>>, vector<16x512xbf16>
    tpu.vector_store %arg5[%c0_7, %c0_8], %9 {strides = array<i32>} : memref<16x512xbf16, #tpu.memory_space<vmem>>, vector<16x512xbf16>,
    return
  }
  func.func @transform_0(%arg0: i32) -> (i32, i32) {
    %c0_i32 = arith.constant 0 : i32
    %c0_i32_0 = arith.constant 0 : i32
    %c0_i32_1 = arith.constant 0 : i32
    return %c0_i32, %c0_i32_0 : i32, i32
  }
  func.func @transform_1(%arg0: i32) -> (i32, i32) {
    %c0_i32 = arith.constant 0 : i32
    %c0_i32_0 = arith.constant 0 : i32
    return %c0_i32, %arg0 : i32, i32
  }
  func.func @transform_2(%arg0: i32) -> (i32, i32) {
    %c0_i32 = arith.constant 0 : i32
    %c0_i32_0 = arith.constant 0 : i32
    %c0_i32_1 = arith.constant 0 : i32
    return %c0_i32, %c0_i32_0 : i32, i32
  }
  func.func @transform_3(%arg0: i32) -> (i32, i32) {
    %c0_i32 = arith.constant 0 : i32
    %c0_i32_0 = arith.constant 0 : i32
    return %c0_i32, %arg0 : i32, i32
  }
  func.func @transform_4(%arg0: i32) -> (i32, i32) {
    %c0_i32 = arith.constant 0 : i32
    %c0_i32_0 = arith.constant 0 : i32
    return %c0_i32, %arg0 : i32, i32
  }
}

module attributes {stable_mosaic.version = 11 : i64} {
  func.func @_gemm_kernel(%arg0: i32, %arg1: memref<16x256xbf16, #tpu.memory_space<vmem>>, %arg2: memref<256x512xbf16, #tpu.memory_space<vmem>>, %arg3: memref<16x1xf32, #tpu.memory_space<vmem>>, %arg4: memref<16x512xf32, #tpu.memory_space<vmem>>) attributes {dimension_semantics = [#tpu.dimension_semantics<parallel>], iteration_bounds = array<i64: 8>, scalar_prefetch = 0 : i64, scratch_operands = 0 : i64, tpu.core_type = #tpu.core_type<tc>, window_params = [{pipeline_mode = #tpu.pipeline_mode<synchronous>, transform_indices = @transform_0, window_bounds = array<i64: 16, 256>}, {transform_indices = @transform_1, window_bounds = array<i64: 256, 512>}, {pipeline_mode = #tpu.pipeline_mode<synchronous>, transform_indices = @transform_2, window_bounds = array<i64: 16, 1>}, {transform_indices = @transform_3, window_bounds = array<i64: 16, 512>}]} {
    %c0 = arith.constant 0 : index
    %c0_0 = arith.constant 0 : index
    %0 = vector.load %arg1[%c0, %c0_0] : memref<16x256xbf16, #tpu.memory_space<vmem>>, vector<16x256xbf16>
    %c0_1 = arith.constant 0 : index
    %c0_2 = arith.constant 0 : index
    %1 = vector.load %arg2[%c0_1, %c0_2] : memref<256x512xbf16, #tpu.memory_space<vmem>>, vector<256x512xbf16>
    %cst = arith.constant dense<0.000000e+00> : vector<16x512xf32>
    %2 = tpu.matmul %0, %1, %cst {dimension_numbers = #tpu.dot_dimension_numbers<[1], [0], [0], [1], [0, 0, 1, 1], [], []>} : vector<16x256xbf16>, vector<256x512xbf16>, vector<16x512xf32> -> vector<16x512xf32>
    %c0_3 = arith.constant 0 : index
    %c0_4 = arith.constant 0 : index
    %3 = vector.load %arg3[%c0_3, %c0_4] : memref<16x1xf32, #tpu.memory_space<vmem>>, vector<16x1xf32>
    %4 = vector.broadcast %3 : vector<16x1xf32> to vector<16x512xf32>
    %5 = arith.addf %2, %4 : vector<16x512xf32>
    %c0_5 = arith.constant 0 : index
    %c0_6 = arith.constant 0 : index
    %6 = vector.load %arg4[%c0_5, %c0_6] : memref<16x512xf32, #tpu.memory_space<vmem>>, vector<16x512xf32>
    tpu.vector_store %arg4[%c0_5, %c0_6], %5 {strides = array<i32>} : memref<16x512xf32, #tpu.memory_space<vmem>>, vector<16x512xf32>,
    return
  }
  func.func @transform_0(%arg0: i32) -> (i32, i32) {
    %c0_i32 = arith.constant 0 : i32
    %c0_i32_0 = arith.constant 0 : i32
    %c0_i32_1 = arith.constant 0 : i32
    return %c0_i32, %c0_i32_0 : i32, i32
  }
  func.func @transform_1(%arg0: i32) -> (i32, i32) {
    %c0_i32 = arith.constant 0 : i32
    %c0_i32_0 = arith.constant 0 : i32
    return %c0_i32, %arg0 : i32, i32
  }
  func.func @transform_2(%arg0: i32) -> (i32, i32) {
    %c0_i32 = arith.constant 0 : i32
    %c0_i32_0 = arith.constant 0 : i32
    %c0_i32_1 = arith.constant 0 : i32
    return %c0_i32, %c0_i32_0 : i32, i32
  }
  func.func @transform_3(%arg0: i32) -> (i32, i32) {
    %c0_i32 = arith.constant 0 : i32
    %c0_i32_0 = arith.constant 0 : i32
    return %c0_i32, %arg0 : i32, i32
  }
}

module attributes {stable_mosaic.version = 11 : i64} {
  func.func @_gate_kernel(%arg0: i32, %arg1: memref<16x128xbf16, #tpu.memory_space<vmem>>, %arg2: memref<1x128xbf16, #tpu.memory_space<vmem>>, %arg3: memref<16x128xbf16, #tpu.memory_space<vmem>>) attributes {dimension_semantics = [#tpu.dimension_semantics<parallel>], iteration_bounds = array<i64: 1>, scalar_prefetch = 0 : i64, scratch_operands = 0 : i64, tpu.core_type = #tpu.core_type<tc>, window_params = [{transform_indices = @transform_0, window_bounds = array<i64: 16, 128>}, {transform_indices = @transform_1, window_bounds = array<i64: 1, 128>}, {transform_indices = @transform_2, window_bounds = array<i64: 16, 128>}]} {
    %c0 = arith.constant 0 : index
    %c0_0 = arith.constant 0 : index
    %0 = vector.load %arg1[%c0, %c0_0] : memref<16x128xbf16, #tpu.memory_space<vmem>>, vector<16x128xbf16>
    %1 = arith.extf %0 : vector<16x128xbf16> to vector<16x128xf32>
    %c0_1 = arith.constant 0 : index
    %c0_2 = arith.constant 0 : index
    %2 = vector.load %arg2[%c0_1, %c0_2] : memref<1x128xbf16, #tpu.memory_space<vmem>>, vector<1x128xbf16>
    %3 = arith.extf %2 : vector<1x128xbf16> to vector<1x128xf32>
    %4 = arith.negf %3 : vector<1x128xf32>
    %5 = math.exp %4 : vector<1x128xf32>
    %cst = arith.constant 1.000000e+00 : f32
    %6 = vector.broadcast %cst : f32 to vector<1x128xf32>
    %7 = arith.addf %6, %5 : vector<1x128xf32>
    %8 = arith.divf %6, %7 : vector<1x128xf32>
    %9 = vector.broadcast %8 : vector<1x128xf32> to vector<16x128xf32>
    %10 = arith.mulf %1, %9 : vector<16x128xf32>
    %11 = arith.addf %10, %1 : vector<16x128xf32>
    %12 = arith.truncf %11 : vector<16x128xf32> to vector<16x128xbf16>
    %c0_3 = arith.constant 0 : index
    %c0_4 = arith.constant 0 : index
    %13 = vector.load %arg3[%c0_3, %c0_4] : memref<16x128xbf16, #tpu.memory_space<vmem>>, vector<16x128xbf16>
    tpu.vector_store %arg3[%c0_3, %c0_4], %12 {strides = array<i32>} : memref<16x128xbf16, #tpu.memory_space<vmem>>, vector<16x128xbf16>,
    return
  }
  func.func @transform_0(%arg0: i32) -> (i32, i32) {
    %c0_i32 = arith.constant 0 : i32
    %c0_i32_0 = arith.constant 0 : i32
    return %c0_i32, %arg0 : i32, i32
  }
  func.func @transform_1(%arg0: i32) -> (i32, i32) {
    %c0_i32 = arith.constant 0 : i32
    %c0_i32_0 = arith.constant 0 : i32
    return %c0_i32, %arg0 : i32, i32
  }
  func.func @transform_2(%arg0: i32) -> (i32, i32) {
    %c0_i32 = arith.constant 0 : i32
    %c0_i32_0 = arith.constant 0 : i32
    return %c0_i32, %arg0 : i32, i32
  }
}

module attributes {stable_mosaic.version = 11 : i64} {
  func.func @_gemm_kernel(%arg0: i32, %arg1: memref<16x16xbf16, #tpu.memory_space<vmem>>, %arg2: memref<16x128xbf16, #tpu.memory_space<vmem>>, %arg3: memref<16x1xf32, #tpu.memory_space<vmem>>, %arg4: memref<16x128xbf16, #tpu.memory_space<vmem>>, %arg5: memref<16x128xbf16, #tpu.memory_space<vmem>>) attributes {dimension_semantics = [#tpu.dimension_semantics<parallel>], iteration_bounds = array<i64: 1>, scalar_prefetch = 0 : i64, scratch_operands = 0 : i64, tpu.core_type = #tpu.core_type<tc>, window_params = [{pipeline_mode = #tpu.pipeline_mode<synchronous>, transform_indices = @transform_0, window_bounds = array<i64: 16, 16>}, {transform_indices = @transform_1, window_bounds = array<i64: 16, 128>}, {pipeline_mode = #tpu.pipeline_mode<synchronous>, transform_indices = @transform_2, window_bounds = array<i64: 16, 1>}, {transform_indices = @transform_3, window_bounds = array<i64: 16, 128>}, {transform_indices = @transform_4, window_bounds = array<i64: 16, 128>}]} {
    %c0 = arith.constant 0 : index
    %c0_0 = arith.constant 0 : index
    %0 = vector.load %arg4[%c0, %c0_0] : memref<16x128xbf16, #tpu.memory_space<vmem>>, vector<16x128xbf16>
    %1 = arith.extf %0 : vector<16x128xbf16> to vector<16x128xf32>
    %c0_1 = arith.constant 0 : index
    %c0_2 = arith.constant 0 : index
    %2 = vector.load %arg1[%c0_1, %c0_2] : memref<16x16xbf16, #tpu.memory_space<vmem>>, vector<16x16xbf16>
    %c0_3 = arith.constant 0 : index
    %c0_4 = arith.constant 0 : index
    %3 = vector.load %arg2[%c0_3, %c0_4] : memref<16x128xbf16, #tpu.memory_space<vmem>>, vector<16x128xbf16>
    %cst = arith.constant dense<0.000000e+00> : vector<16x128xf32>
    %4 = tpu.matmul %2, %3, %cst {dimension_numbers = #tpu.dot_dimension_numbers<[1], [0], [0], [1], [0, 0, 1, 1], [], []>} : vector<16x16xbf16>, vector<16x128xbf16>, vector<16x128xf32> -> vector<16x128xf32>
    %c0_5 = arith.constant 0 : index
    %c0_6 = arith.constant 0 : index
    %5 = vector.load %arg3[%c0_5, %c0_6] : memref<16x1xf32, #tpu.memory_space<vmem>>, vector<16x1xf32>
    %6 = vector.broadcast %5 : vector<16x1xf32> to vector<16x128xf32>
    %7 = arith.addf %4, %6 : vector<16x128xf32>
    %8 = arith.addf %7, %1 : vector<16x128xf32>
    %9 = arith.truncf %8 : vector<16x128xf32> to vector<16x128xbf16>
    %c0_7 = arith.constant 0 : index
    %c0_8 = arith.constant 0 : index
    %10 = vector.load %arg5[%c0_7, %c0_8] : memref<16x128xbf16, #tpu.memory_space<vmem>>, vector<16x128xbf16>
    tpu.vector_store %arg5[%c0_7, %c0_8], %9 {strides = array<i32>} : memref<16x128xbf16, #tpu.memory_space<vmem>>, vector<16x128xbf16>,
    return
  }
  func.func @transform_0(%arg0: i32) -> (i32, i32) {
    %c0_i32 = arith.constant 0 : i32
    %c0_i32_0 = arith.constant 0 : i32
    %c0_i32_1 = arith.constant 0 : i32
    return %c0_i32, %c0_i32_0 : i32, i32
  }
  func.func @transform_1(%arg0: i32) -> (i32, i32) {
    %c0_i32 = arith.constant 0 : i32
    %c0_i32_0 = arith.constant 0 : i32
    return %c0_i32, %arg0 : i32, i32
  }
  func.func @transform_2(%arg0: i32) -> (i32, i32) {
    %c0_i32 = arith.constant 0 : i32
    %c0_i32_0 = arith.constant 0 : i32
    %c0_i32_1 = arith.constant 0 : i32
    return %c0_i32, %c0_i32_0 : i32, i32
  }
  func.func @transform_3(%arg0: i32) -> (i32, i32) {
    %c0_i32 = arith.constant 0 : i32
    %c0_i32_0 = arith.constant 0 : i32
    return %c0_i32, %arg0 : i32, i32
  }
  func.func @transform_4(%arg0: i32) -> (i32, i32) {
    %c0_i32 = arith.constant 0 : i32
    %c0_i32_0 = arith.constant 0 : i32
    return %c0_i32, %arg0 : i32, i32
  }
}

module attributes {stable_mosaic.version = 11 : i64} {
  func.func @_gemm_kernel(%arg0: i32, %arg1: memref<16x16xbf16, #tpu.memory_space<vmem>>, %arg2: memref<16x512xbf16, #tpu.memory_space<vmem>>, %arg3: memref<16x1xf32, #tpu.memory_space<vmem>>, %arg4: memref<16x512xf32, #tpu.memory_space<vmem>>) attributes {dimension_semantics = [#tpu.dimension_semantics<parallel>], iteration_bounds = array<i64: 8>, scalar_prefetch = 0 : i64, scratch_operands = 0 : i64, tpu.core_type = #tpu.core_type<tc>, window_params = [{pipeline_mode = #tpu.pipeline_mode<synchronous>, transform_indices = @transform_0, window_bounds = array<i64: 16, 16>}, {transform_indices = @transform_1, window_bounds = array<i64: 16, 512>}, {pipeline_mode = #tpu.pipeline_mode<synchronous>, transform_indices = @transform_2, window_bounds = array<i64: 16, 1>}, {transform_indices = @transform_3, window_bounds = array<i64: 16, 512>}]} {
    %c0 = arith.constant 0 : index
    %c0_0 = arith.constant 0 : index
    %0 = vector.load %arg1[%c0, %c0_0] : memref<16x16xbf16, #tpu.memory_space<vmem>>, vector<16x16xbf16>
    %c0_1 = arith.constant 0 : index
    %c0_2 = arith.constant 0 : index
    %1 = vector.load %arg2[%c0_1, %c0_2] : memref<16x512xbf16, #tpu.memory_space<vmem>>, vector<16x512xbf16>
    %cst = arith.constant dense<0.000000e+00> : vector<16x512xf32>
    %2 = tpu.matmul %0, %1, %cst {dimension_numbers = #tpu.dot_dimension_numbers<[1], [0], [0], [1], [0, 0, 1, 1], [], []>} : vector<16x16xbf16>, vector<16x512xbf16>, vector<16x512xf32> -> vector<16x512xf32>
    %c0_3 = arith.constant 0 : index
    %c0_4 = arith.constant 0 : index
    %3 = vector.load %arg3[%c0_3, %c0_4] : memref<16x1xf32, #tpu.memory_space<vmem>>, vector<16x1xf32>
    %4 = vector.broadcast %3 : vector<16x1xf32> to vector<16x512xf32>
    %5 = arith.addf %2, %4 : vector<16x512xf32>
    %c0_5 = arith.constant 0 : index
    %c0_6 = arith.constant 0 : index
    %6 = vector.load %arg4[%c0_5, %c0_6] : memref<16x512xf32, #tpu.memory_space<vmem>>, vector<16x512xf32>
    tpu.vector_store %arg4[%c0_5, %c0_6], %5 {strides = array<i32>} : memref<16x512xf32, #tpu.memory_space<vmem>>, vector<16x512xf32>,
    return
  }
  func.func @transform_0(%arg0: i32) -> (i32, i32) {
    %c0_i32 = arith.constant 0 : i32
    %c0_i32_0 = arith.constant 0 : i32
    %c0_i32_1 = arith.constant 0 : i32
    return %c0_i32, %c0_i32_0 : i32, i32
  }
  func.func @transform_1(%arg0: i32) -> (i32, i32) {
    %c0_i32 = arith.constant 0 : i32
    %c0_i32_0 = arith.constant 0 : i32
    return %c0_i32, %arg0 : i32, i32
  }
  func.func @transform_2(%arg0: i32) -> (i32, i32) {
    %c0_i32 = arith.constant 0 : i32
    %c0_i32_0 = arith.constant 0 : i32
    %c0_i32_1 = arith.constant 0 : i32
    return %c0_i32, %c0_i32_0 : i32, i32
  }
  func.func @transform_3(%arg0: i32) -> (i32, i32) {
    %c0_i32 = arith.constant 0 : i32
    %c0_i32_0 = arith.constant 0 : i32
    return %c0_i32, %arg0 : i32, i32
  }
}

</mosaic_0001>

<llo_original>
// kernel: _lambda_.37
$region0: #{_lambda_.37}
  #allocation0 [shape = 'u32[]', space=smem, size = 0x4, offset = 0x4, fixed_abs, tag = 'smem constant byte address 0x4 - core index']
  #allocation1 [shape = 'u32[144,128]{1,0:T(1,128)}', space=vmem, size = 0x12000, scoped, tag = 'internal scratch']
  %s0 = inlined_call_operand.vmem [shape: bf16[16,32], index: 0, kind: input, shape index: {}]
  %s1 = inlined_call_operand.vmem [shape: bf16[32,2048], index: 1, kind: input, shape index: {}]
  %s2 = inlined_call_operand.vmem [shape: f32[16,1], index: 2, kind: input, shape index: {}]
  %s3 = inlined_call_operand.vmem [shape: bf16[16,2048], index: 3, kind: output, shape index: {}]
  %s4 = sld [smem:[#allocation0]]
  $region87: #{_lambda_.37} parent=0
    _
  %s6 = ssub.s32 1, %s4
  %s7 = scalar_select 0, %s6, %s4
  $region1: #{_lambda_.37} parent=0
    #allocation2 [shape = 'u8[65536]{0}', space=vmem, size = 0x10000, scoped, tag = 'input window, operand 1']
    #allocation3 [shape = 'u8[32768]{0}', space=vmem, size = 0x8000, scoped, tag = 'output window, operand 0']
    loop: start=0, step=1, limit=6
    $region2: #{_lambda_.37} parent=1 // loop_pre_header
      _
    $region3: #{_lambda_.37} parent=1 // loop_header
      %s9 = sphi 0, %s13
      %p10 = scmp.ge.s32.totalorder %s9, 6
      %s17 = sphi 0, %s17
      %s19 = sphi 0, %s17
      %s20 = sphi 0, %s19
      %s34 = sphi 0, %s20
      %s40 = sphi 0, %s42
      %s43 = sphi 0, %s40
      %s44 = sphi 0, %s43
      %s60 = sphi 0, %s44
      %s64 = sphi 0, %s64
      %s66 = sphi 0, %s64
      %s67 = sphi 0, %s66
      %s81 = sphi 0, %s67
      %s87 = sphi 0, %s89
      %s90 = sphi 0, %s87
      %s91 = sphi 0, %s90
      %s107 = sphi 0, %s91
    $region4: #{_lambda_.37} parent=1 // loop_header_branch
      %12 = sbr.rel (%p10) target = $region8
    $region5: #{_lambda_.37} parent=1 // loop_body
      %s14 = ssub.s32 %s9, 1
      %s15 = ssub.s32 %s9, 2
      %s16 = sadd.s32 %s9, 1
      %s18 = sadd.s32 %s17, 1
      %p21 = scmp.eq.s32.totalorder %s9, 3
      %p22 = scmp.ne.s32.totalorder %s17, %s19
      %p23 = scmp.eq.s32.totalorder %s9, 0
      %p24 = por %p22, %p23
      %p25 = scmp.ne.s32.totalorder %s17, %s19
      %p26 = scmp.eq.s32.totalorder %s14, 3
      %p27 = por %p25, %p26
      %p28 = scmp.ne.s32.totalorder %s19, %s20
      %p29 = scmp.eq.s32.totalorder %s14, 0
      %p30 = por %p28, %p29
      %p31 = scmp.ne.s32.totalorder %s19, %s20
      %p32 = scmp.eq.s32.totalorder %s15, 3
      %p33 = por %p31, %p32
      %p35 = scmp.ne.s32.totalorder %s20, %s34
      %p36 = scmp.eq.s32.totalorder %s15, 0
      %p37 = por %p35, %p36
      %s38 = ssub.s32 %s9, %s16
      %p39 = scmp.eq.s32.totalorder %s38, 0
      %s41 = sadd.s32 %s40, 1
      %s42 = scalar_select %p39, %s40, %s41
      %p45 = pneg %p39
      %p46 = scmp.eq.s32.totalorder %s9, 3
      %p47 = por %p45, %p46
      %p48 = scmp.ne.s32.totalorder %s40, %s43
      %p49 = scmp.eq.s32.totalorder %s9, 0
      %p50 = por %p48, %p49
      %p51 = scmp.ne.s32.totalorder %s40, %s43
      %p52 = scmp.eq.s32.totalorder %s14, 3
      %p53 = por %p51, %p52
      %p54 = scmp.ne.s32.totalorder %s43, %s44
      %p55 = scmp.eq.s32.totalorder %s14, 0
      %p56 = por %p54, %p55
      %p57 = scmp.ne.s32.totalorder %s43, %s44
      %p58 = scmp.eq.s32.totalorder %s15, 3
      %p59 = por %p57, %p58
      %p61 = scmp.ne.s32.totalorder %s44, %s60
      %p62 = scmp.eq.s32.totalorder %s15, 0
      %p63 = por %p61, %p62
      %s65 = sadd.s32 %s64, 1
      %p68 = scmp.eq.s32.totalorder %s9, 3
      %p69 = scmp.ne.s32.totalorder %s64, %s66
      %p70 = scmp.eq.s32.totalorder %s9, 0
      %p71 = por %p69, %p70
      %p72 = scmp.ne.s32.totalorder %s64, %s66
      %p73 = scmp.eq.s32.totalorder %s14, 3
      %p74 = por %p72, %p73
      %p75 = scmp.ne.s32.totalorder %s66, %s67
      %p76 = scmp.eq.s32.totalorder %s14, 0
      %p77 = por %p75, %p76
      %p78 = scmp.ne.s32.totalorder %s66, %s67
      %p79 = scmp.eq.s32.totalorder %s15, 3
      %p80 = por %p78, %p79
      %p82 = scmp.ne.s32.totalorder %s67, %s81
      %p83 = scmp.eq.s32.totalorder %s15, 0
      %p84 = por %p82, %p83
      %s85 = ssub.s32 %s9, %s16
      %p86 = scmp.eq.s32.totalorder %s85, 0
      %s88 = sadd.s32 %s87, 1
      %s89 = scalar_select %p86, %s87, %s88
      %p92 = pneg %p86
      %p93 = scmp.eq.s32.totalorder %s9, 3
      %p94 = por %p92, %p93
      %p95 = scmp.ne.s32.totalorder %s87, %s90
      %p96 = scmp.eq.s32.totalorder %s9, 0
      %p97 = por %p95, %p96
      %p98 = scmp.ne.s32.totalorder %s87, %s90
      %p99 = scmp.eq.s32.totalorder %s14, 3
      %p100 = por %p98, %p99
      %p101 = scmp.ne.s32.totalorder %s90, %s91
      %p102 = scmp.eq.s32.totalorder %s14, 0
      %p103 = por %p101, %p102
      %p104 = scmp.ne.s32.totalorder %s90, %s91
      %p105 = scmp.eq.s32.totalorder %s15, 3
      %p106 = por %p104, %p105
      %p108 = scmp.ne.s32.totalorder %s91, %s107
      %p109 = scmp.eq.s32.totalorder %s15, 0
      %p110 = por %p108, %p109
      %p111 = scmp.le.s32.totalorder 1, %s9
      %p112 = scmp.lt.s32.totalorder %s9, 5
      %p113 = pnand %p111, %p112
      %p114 = pneg %p113
      // Predicated region
      $region9: #{_lambda_.37} parent=5 // pred_check
        _
      $region10: #{_lambda_.37} parent=5 // pred_check_branch
        %116 = sbr.rel (%p113) target = $region12
      $region11: #{_lambda_.37} parent=5 // pred_region
        %s117 = ssub.s32 %s9, 1
        // Predicated region
        $region13: #{_lambda_.37} parent=11 // pred_check
          %p118 = pneg %p30
        $region14: #{_lambda_.37} parent=11 // pred_check_branch
          %120 = sbr.rel (%p118) target = $region16
        $region15: #{_lambda_.37} parent=11 // pred_region
          _
        $region16: #{_lambda_.37} parent=11 // pred_fallthru
          _
        // Predicated region
        $region17: #{_lambda_.37} parent=11 // pred_check
          %p121 = pneg %p77
        $region18: #{_lambda_.37} parent=11 // pred_check_branch
          %123 = sbr.rel (%p121) target = $region20
        $region19: #{_lambda_.37} parent=11 // pred_region
          _
        $region20: #{_lambda_.37} parent=11 // pred_fallthru
          _
      $region12: #{_lambda_.37} parent=5 // pred_fallthru
        _
      %p124 = scmp.lt.s32.totalorder %s9, 4
      // Predicated region
      $region21: #{_lambda_.37} parent=5 // pred_check
        %p125 = pneg %p124
      $region22: #{_lambda_.37} parent=5 // pred_check_branch
        %127 = sbr.rel (%p125) target = $region24
      $region23: #{_lambda_.37} parent=5 // pred_region
        // Predicated region
        $region25: #{_lambda_.37} parent=23 // pred_check
          %p128 = pneg %p50
        $region26: #{_lambda_.37} parent=23 // pred_check_branch
          %130 = sbr.rel (%p128) target = $region28
        $region27: #{_lambda_.37} parent=23 // pred_region
          %s131 = sand.u32 %s40, 1
          %s132 = sand.u32 %s40, 1
          %s133 = smul.addr %s132, 64
          %s134 = scalar_lea.vmem [#allocation2], %s133
          %s135 = smul.u32 4, %s9
          %s136 = smul.addr %s135, 4
          %s137 = scalar_lea.vmem %s1, %s136
          // Predicated region
          $region29: #{_lambda_.37} parent=27 // pred_check
            _
          $region30: #{_lambda_.37} parent=27 // pred_check_branch
            %139 = sbr.rel (0) target = $region32
          $region31: #{_lambda_.37} parent=27 // pred_region
            // Predicated region
            $region33: #{_lambda_.37} parent=31 // pred_check
              _
            $region34: #{_lambda_.37} parent=31 // pred_check_branch
              %141 = sbr.rel (0) target = $region36
            $region35: #{_lambda_.37} parent=31 // pred_region
              loop: start=0, step=1, limit=1
              $region37: #{_lambda_.37} parent=35 // loop_pre_header
                _
              $region38: #{_lambda_.37} parent=35 // loop_header
                %s143 = sphi 0, %s147
                %p144 = scmp.ge.s32.totalorder %s143, 1
                %s148 = sphi %s137, %s137
                %s149 = sphi %s134, %s134
              $region39: #{_lambda_.37} parent=35 // loop_header_branch
                %146 = sbr.rel (%p144) target = $region43
              $region40: #{_lambda_.37} parent=35 // loop_body
                %v150 = vld [vmem:[%s148] sm:$0xff]
                %151 = vst [vmem:[%s149] sm:$0xff] %v150
                %v152 = vld [vmem:[%s148 + $0x8] sm:$0xff]
                %153 = vst [vmem:[%s149 + $0x8] sm:$0xff] %v152
                %v154 = vld [vmem:[%s148 + $0x40] sm:$0xff]
                %155 = vst [vmem:[%s149 + $0x10] sm:$0xff] %v154
                %v156 = vld [vmem:[%s148 + $0x48] sm:$0xff]
                %157 = vst [vmem:[%s149 + $0x18] sm:$0xff] %v156
                %v158 = vld [vmem:[%s148 + $0x80] sm:$0xff]
                %159 = vst [vmem:[%s149 + $0x20] sm:$0xff] %v158
                %v160 = vld [vmem:[%s148 + $0x88] sm:$0xff]
                %161 = vst [vmem:[%s149 + $0x28] sm:$0xff] %v160
                %v162 = vld [vmem:[%s148 + $0xc0] sm:$0xff]
                %163 = vst [vmem:[%s149 + $0x30] sm:$0xff] %v162
                %v164 = vld [vmem:[%s148 + $0xc8] sm:$0xff]
                %165 = vst [vmem:[%s149 + $0x38] sm:$0xff] %v164
              $region41: #{_lambda_.37} parent=35 // loop_footer
                %s147 = sadd.s32 1, %s143
              $region42: #{_lambda_.37} parent=35 // loop_footer_branch
                %142 = sbr.rel target = $region38
              $region43: #{_lambda_.37} parent=35 // loop_exit
                _
            $region36: #{_lambda_.37} parent=31 // pred_fallthru
              _
            // Predicated region
            $region44: #{_lambda_.37} parent=31 // pred_check
              _
            $region45: #{_lambda_.37} parent=31 // pred_check_branch
              %167 = sbr.rel target = $region47
            $region46: #{_lambda_.37} parent=31 // pred_region
              _
            $region47: #{_lambda_.37} parent=31 // pred_fallthru
              _
          $region32: #{_lambda_.37} parent=27 // pred_fallthru
            _
          %168 = vnop
        $region28: #{_lambda_.37} parent=23 // pred_fallthru
          _
      $region24: #{_lambda_.37} parent=5 // pred_fallthru
        _
      %p169 = scmp.le.s32.totalorder 1, %s9
      %p170 = scmp.lt.s32.totalorder %s9, 5
      %p171 = pnand %p169, %p170
      %p172 = pneg %p171
      // Predicated region
      $region48: #{_lambda_.37} parent=5 // pred_check
        _
      $region49: #{_lambda_.37} parent=5 // pred_check_branch
        %174 = sbr.rel (%p171) target = $region51
      $region50: #{_lambda_.37} parent=5 // pred_region
        %s175 = ssub.s32 %s9, 1
        %s176 = sand.u32 %s43, 1
        %s177 = sand.u32 %s43, 1
        %s178 = smul.addr %s177, 64
        %s179 = scalar_lea.vmem [#allocation2], %s178
        // Predicated region
        $region52: #{_lambda_.37} parent=50 // pred_check
          %p180 = pneg %p56
        $region53: #{_lambda_.37} parent=50 // pred_check_branch
          %182 = sbr.rel (%p180) target = $region55
        $region54: #{_lambda_.37} parent=50 // pred_region
          _
        $region55: #{_lambda_.37} parent=50 // pred_fallthru
          _
        %p183 = pneg %p30
        %p184 = pneg %p27
        %s185 = sand.u32 %s43, 1
        %s186 = sand.u32 %s43, 1
        %s187 = smul.addr %s186, 64
        %s188 = scalar_lea.vmem [#allocation2], %s187
        %p189 = pneg %p56
        %p190 = pneg %p53
        %p191 = pneg %p77
        %p192 = pneg %p74
        %p193 = pneg %p103
        %p194 = pneg %p100
        %s195 = sand.u32 %s90, 1
        %s196 = sand.u32 %s90, 1
        %s197 = smul.addr %s196, 32
        %s198 = scalar_lea.vmem [#allocation3], %s197
        %s199 = smul.u32 4, %s14
        %s200 = smul.u32 4, %s14
        %v202 = vld [vmem:[%s0] sm:$0xf]
        %v203 = vld [vmem:[%s0 + $0x4] sm:$0xf]
        %v204 = vld [vmem:[%s179] sm:$0xff]
        %v205 = vld [vmem:[%s179 + $0x8] sm:$0xff]
        %v206 = vld [vmem:[%s179 + $0x10] sm:$0xff]
        %v207 = vld [vmem:[%s179 + $0x18] sm:$0xff]
        %v208 = vld [vmem:[%s179 + $0x20] sm:$0xff]
        %v209 = vld [vmem:[%s179 + $0x28] sm:$0xff]
        %v210 = vld [vmem:[%s179 + $0x30] sm:$0xff]
        %v211 = vld [vmem:[%s179 + $0x38] sm:$0xff]
        %v212 = vld [vmem:[%s2] sm:$0xff]
        %v213 = vld [vmem:[%s2 + $0x8] sm:$0xff]
        %215 = vset.pattern.permute.xlu0 0
        %216 = vperm.xlu0 %215, %v212
        %v217 = vpop.permute.xlu0 %216
        %220 = vset.pattern.permute.xlu0 0
        %221 = vperm.xlu0 %220, %v213
        %v222 = vpop.permute.xlu0 %221
        %v226 = vunpack.c.l.b16 %v202
        %v227 = vunpack.c.l.b16 %v203
        %v228 = vpack.c.b16 %v227, %v226
        %v237 = vunpack.c.l.b16 %v204
        %v238 = vunpack.c.h.b16 %v204
        %v239 = vunpack.c.l.b16 %v205
        %v240 = vunpack.c.h.b16 %v205
        %v241 = vunpack.c.l.b16 %v206
        %v242 = vunpack.c.h.b16 %v206
        %v243 = vunpack.c.l.b16 %v207
        %v244 = vunpack.c.h.b16 %v207
        %v245 = vunpack.c.l.b16 %v208
        %v246 = vunpack.c.h.b16 %v208
        %v247 = vunpack.c.l.b16 %v209
        %v248 = vunpack.c.h.b16 %v209
        %v249 = vunpack.c.l.b16 %v210
        %v250 = vunpack.c.h.b16 %v210
        %v251 = vunpack.c.l.b16 %v211
        %v252 = vunpack.c.h.b16 %v211
        %v253 = vpack.c.b16 %v241, %v237
        %v254 = vpack.c.b16 %v242, %v238
        %v255 = vpack.c.b16 %v243, %v239
        %v256 = vpack.c.b16 %v244, %v240
        %v257 = vpack.c.b16 %v249, %v245
        %v258 = vpack.c.b16 %v250, %v246
        %v259 = vpack.c.b16 %v251, %v247
        %v260 = vpack.c.b16 %v252, %v248
        %vm269 = vcmask 261120
        %v271 = vsel %vm269, %v228, 0
        %273 = vmatprep.subr.bf16.mxu0 0
        %274 = vmatpush1.bf16.msra.mxu0 0
        %275 = vmatprep.subr.bf16.mxu0 0
        %276 = vmatpush1.bf16.msra.mxu0 0
        %277 = vmatprep.subr.bf16.mxu0 0
        %278 = vmatpush1.bf16.msra.mxu0 0
        %279 = vmatprep.subr.bf16.mxu0 0
        %280 = vmatpush1.bf16.msra.mxu0 0
        %281 = vmatprep.subr.bf16.mxu0 0
        %282 = vmatpush1.bf16.msra.mxu0 0
        %283 = vmatprep.subr.bf16.mxu0 0
        %284 = vmatpush1.bf16.msra.mxu0 0
        %285 = vmatprep.subr.bf16.mxu0 %v258
        %286 = vmatpush1.bf16.msra.mxu0 %v257
        %287 = vmatprep.subr.bf16.mxu0 %v254
        %288 = vmatpush1.bf16.msra.mxu0 %v253
        %289 = vmatprep.subr.bf16.mxu0 0
        %290 = vmatpush2.bf16.msra.mxu0 0
        %291 = vmatprep.subr.bf16.mxu0 0
        %292 = vmatpush2.bf16.msra.mxu0 0
        %293 = vmatprep.subr.bf16.mxu0 0
        %294 = vmatpush2.bf16.msra.mxu0 0
        %295 = vmatprep.subr.bf16.mxu0 0
        %296 = vmatpush2.bf16.msra.mxu0 0
        %297 = vmatprep.subr.bf16.mxu0 0
        %298 = vmatpush2.bf16.msra.mxu0 0
        %299 = vmatprep.subr.bf16.mxu0 0
        %300 = vmatpush2.bf16.msra.mxu0 0
        %301 = vmatprep.subr.bf16.mxu0 0
        %302 = vmatpush2.bf16.msra.mxu0 0
        %303 = vmatprep.subr.bf16.mxu0 0
        %304 = vmatpush2.bf16.msra.mxu0 0
        %305 = vmatprep.mubr.bf16.mxu0 0
        %306 = vmatmul.mubr.bf16.gmra.mxu0 %v271
        %v307 = vpop.f32.mrf.mxu0
        %v308 = vadd.f32 %v217, %v307
        %v309 = vpop.f32.mrf.mxu0
        %v310 = vadd.f32 %v217, %v309
        %v311 = vpop.f32.mrf.mxu0
        %v312 = vadd.f32 %v222, %v311
        %v313 = vpop.f32.mrf.mxu0
        %v314 = vadd.f32 %v222, %v313
        %315 = vdwg.mxu0
        %316 = vmatprep.subr.bf16.mxu0 0
        %317 = vmatpush1.bf16.msra.mxu0 0
        %318 = vmatprep.subr.bf16.mxu0 0
        %319 = vmatpush1.bf16.msra.mxu0 0
        %320 = vmatprep.subr.bf16.mxu0 0
        %321 = vmatpush1.bf16.msra.mxu0 0
        %322 = vmatprep.subr.bf16.mxu0 0
        %323 = vmatpush1.bf16.msra.mxu0 0
        %324 = vmatprep.subr.bf16.mxu0 0
        %325 = vmatpush1.bf16.msra.mxu0 0
        %326 = vmatprep.subr.bf16.mxu0 0
        %327 = vmatpush1.bf16.msra.mxu0 0
        %328 = vmatprep.subr.bf16.mxu0 %v260
        %329 = vmatpush1.bf16.msra.mxu0 %v259
        %330 = vmatprep.subr.bf16.mxu0 %v256
        %331 = vmatpush1.bf16.msra.mxu0 %v255
        %332 = vmatprep.subr.bf16.mxu0 0
        %333 = vmatpush2.bf16.msra.mxu0 0
        %334 = vmatprep.subr.bf16.mxu0 0
        %335 = vmatpush2.bf16.msra.mxu0 0
        %336 = vmatprep.subr.bf16.mxu0 0
        %337 = vmatpush2.bf16.msra.mxu0 0
        %338 = vmatprep.subr.bf16.mxu0 0
        %339 = vmatpush2.bf16.msra.mxu0 0
        %340 = vmatprep.subr.bf16.mxu0 0
        %341 = vmatpush2.bf16.msra.mxu0 0
        %342 = vmatprep.subr.bf16.mxu0 0
        %343 = vmatpush2.bf16.msra.mxu0 0
        %344 = vmatprep.subr.bf16.mxu0 0
        %345 = vmatpush2.bf16.msra.mxu0 0
        %346 = vmatprep.subr.bf16.mxu0 0
        %347 = vmatpush2.bf16.msra.mxu0 0
        %348 = vmatprep.mubr.bf16.mxu0 0
        %349 = vmatmul.mubr.bf16.gmra.mxu0 %v271
        %v350 = vpop.f32.mrf.mxu0
        %v351 = vadd.f32 %v217, %v350
        %v352 = vpop.f32.mrf.mxu0
        %v353 = vadd.f32 %v217, %v352
        %v354 = vpop.f32.mrf.mxu0
        %v355 = vadd.f32 %v222, %v354
        %v356 = vpop.f32.mrf.mxu0
        %v357 = vadd.f32 %v222, %v356
        %358 = vdwg.mxu0
        %v359 = vmax.f32 %v308, 0.0
        %v360 = vmax.f32 %v310, 0.0
        %v361 = vmax.f32 %v351, 0.0
        %v362 = vmax.f32 %v353, 0.0
        %v363 = vmax.f32 %v312, 0.0
        %v364 = vmax.f32 %v314, 0.0
        %v365 = vmax.f32 %v355, 0.0
        %v366 = vmax.f32 %v357, 0.0
        %v367 = vpack.c.bf16 %v363, %v359
        %v368 = vpack.c.bf16 %v364, %v360
        %v369 = vpack.c.bf16 %v365, %v361
        %v370 = vpack.c.bf16 %v366, %v362
        %v375 = vunpack.c.l.b16 %v367
        %v376 = vunpack.c.l.b16 %v368
        %v377 = vunpack.c.l.b16 %v369
        %v378 = vunpack.c.l.b16 %v370
        %v379 = vunpack.c.h.b16 %v367
        %v380 = vunpack.c.h.b16 %v368
        %v381 = vunpack.c.h.b16 %v369
        %v382 = vunpack.c.h.b16 %v370
        %v383 = vpack.c.b16 %v376, %v375
        %v384 = vpack.c.b16 %v378, %v377
        %v385 = vpack.c.b16 %v380, %v379
        %v386 = vpack.c.b16 %v382, %v381
        %391 = vst [vmem:[%s198] sm:$0xff] %v383
        %392 = vst [vmem:[%s198 + $0x8] sm:$0xff] %v384
        %393 = vst [vmem:[%s198 + $0x10] sm:$0xff] %v385
        %394 = vst [vmem:[%s198 + $0x18] sm:$0xff] %v386
        %s395 = sand.u32 %s90, 1
        %s396 = sand.u32 %s90, 1
        %s397 = smul.addr %s396, 32
        %s398 = scalar_lea.vmem [#allocation3], %s397
        // Predicated region
        $region56: #{_lambda_.37} parent=50 // pred_check
          %p399 = pneg %p100
        $region57: #{_lambda_.37} parent=50 // pred_check_branch
          %401 = sbr.rel (%p399) target = $region59
        $region58: #{_lambda_.37} parent=50 // pred_region
          %s402 = smul.u32 4, %s14
          %s403 = smul.addr %s402, 4
          %s404 = scalar_lea.vmem %s3, %s403
          // Predicated region
          $region60: #{_lambda_.37} parent=58 // pred_check
            _
          $region61: #{_lambda_.37} parent=58 // pred_check_branch
            %406 = sbr.rel (0) target = $region63
          $region62: #{_lambda_.37} parent=58 // pred_region
            // Predicated region
            $region64: #{_lambda_.37} parent=62 // pred_check
              _
            $region65: #{_lambda_.37} parent=62 // pred_check_branch
              %408 = sbr.rel (0) target = $region67
            $region66: #{_lambda_.37} parent=62 // pred_region
              loop: start=0, step=1, limit=1
              $region68: #{_lambda_.37} parent=66 // loop_pre_header
                _
              $region69: #{_lambda_.37} parent=66 // loop_header
                %s410 = sphi 0, %s414
                %p411 = scmp.ge.s32.totalorder %s410, 1
                %s415 = sphi %s398, %s398
                %s416 = sphi %s404, %s404
              $region70: #{_lambda_.37} parent=66 // loop_header_branch
                %413 = sbr.rel (%p411) target = $region74
              $region71: #{_lambda_.37} parent=66 // loop_body
                %v417 = vld [vmem:[%s415] sm:$0xff]
                %418 = vst [vmem:[%s416] sm:$0xff] %v417
                %v419 = vld [vmem:[%s415 + $0x8] sm:$0xff]
                %420 = vst [vmem:[%s416 + $0x8] sm:$0xff] %v419
                %v421 = vld [vmem:[%s415 + $0x10] sm:$0xff]
                %422 = vst [vmem:[%s416 + $0x40] sm:$0xff] %v421
                %v423 = vld [vmem:[%s415 + $0x18] sm:$0xff]
                %424 = vst [vmem:[%s416 + $0x48] sm:$0xff] %v423
              $region72: #{_lambda_.37} parent=66 // loop_footer
                %s414 = sadd.s32 1, %s410
              $region73: #{_lambda_.37} parent=66 // loop_footer_branch
                %409 = sbr.rel target = $region69
              $region74: #{_lambda_.37} parent=66 // loop_exit
                _
            $region67: #{_lambda_.37} parent=62 // pred_fallthru
              _
            // Predicated region
            $region75: #{_lambda_.37} parent=62 // pred_check
              _
            $region76: #{_lambda_.37} parent=62 // pred_check_branch
              %426 = sbr.rel target = $region78
            $region77: #{_lambda_.37} parent=62 // pred_region
              _
            $region78: #{_lambda_.37} parent=62 // pred_fallthru
              _
          $region63: #{_lambda_.37} parent=58 // pred_fallthru
            _
          %427 = vnop
        $region59: #{_lambda_.37} parent=50 // pred_fallthru
          _
      $region51: #{_lambda_.37} parent=5 // pred_fallthru
        _
      %p428 = scmp.le.s32.totalorder 2, %s9
      // Predicated region
      $region79: #{_lambda_.37} parent=5 // pred_check
        %p429 = pneg %p428
      $region80: #{_lambda_.37} parent=5 // pred_check_branch
        %431 = sbr.rel (%p429) target = $region82
      $region81: #{_lambda_.37} parent=5 // pred_region
        %s432 = ssub.s32 %s9, 2
        // Predicated region
        $region83: #{_lambda_.37} parent=81 // pred_check
          %p433 = pneg %p106
        $region84: #{_lambda_.37} parent=81 // pred_check_branch
          %435 = sbr.rel (%p433) target = $region86
        $region85: #{_lambda_.37} parent=81 // pred_region
          %s436 = sand.u32 %s91, 1
          %s437 = sand.u32 %s91, 1
          %s438 = smul.addr %s437, 32
          %s439 = scalar_lea.vmem [#allocation3], %s438
        $region86: #{_lambda_.37} parent=81 // pred_fallthru
          _
      $region82: #{_lambda_.37} parent=5 // pred_fallthru
        _
    $region6: #{_lambda_.37} parent=1 // loop_footer
      %s13 = sadd.s32 1, %s9
    $region7: #{_lambda_.37} parent=1 // loop_footer_branch
      %8 = sbr.rel target = $region3
    $region8: #{_lambda_.37} parent=1 // loop_exit
      _

// kernel: _lambda_.38
$region0: #{_lambda_.38}
  #allocation0 [shape = 'u32[]', space=smem, size = 0x4, offset = 0x4, fixed_abs, tag = 'smem constant byte address 0x4 - core index']
  #allocation1 [shape = 'u32[144,128]{1,0:T(1,128)}', space=vmem, size = 0x12000, scoped, tag = 'internal scratch']
  %s0 = inlined_call_operand.vmem [shape: bf16[16,80], index: 0, kind: input, shape index: {}]
  %s1 = inlined_call_operand.vmem [shape: bf16[80,512], index: 1, kind: input, shape index: {}]
  %s2 = inlined_call_operand.vmem [shape: f32[16,1], index: 2, kind: input, shape index: {}]
  %s3 = inlined_call_operand.vmem [shape: bf16[16,512], index: 3, kind: output, shape index: {}]
  %s4 = sld [smem:[#allocation0]]
  $region22: #{_lambda_.38} parent=0
    _
  %s6 = ssub.s32 1, %s4
  %s7 = scalar_select 0, %s6, %s4
  // Predicated region
  $region2: #{_lambda_.38} parent=0 // pred_check
    _
  $region3: #{_lambda_.38} parent=0 // pred_check_branch
    %9 = sbr.rel (0) target = $region5
  $region4: #{_lambda_.38} parent=0 // pred_region
    _
  $region5: #{_lambda_.38} parent=0 // pred_fallthru
    _
  // Predicated region
  $region6: #{_lambda_.38} parent=0 // pred_check
    _
  $region7: #{_lambda_.38} parent=0 // pred_check_branch
    %11 = sbr.rel (0) target = $region9
  $region8: #{_lambda_.38} parent=0 // pred_region
    _
  $region9: #{_lambda_.38} parent=0 // pred_fallthru
    _
  // Predicated region
  $region10: #{_lambda_.38} parent=0 // pred_check
    _
  $region11: #{_lambda_.38} parent=0 // pred_check_branch
    %13 = sbr.rel (0) target = $region13
  $region12: #{_lambda_.38} parent=0 // pred_region
    _
  $region13: #{_lambda_.38} parent=0 // pred_fallthru
    _
  %v15 = vld [vmem:[%s0] sm:$0xf]
  %v16 = vld [vmem:[%s0 + $0x4] sm:$0xf]
  %v17 = vld [vmem:[%s1] sm:$0xff]
  %v18 = vld [vmem:[%s1 + $0x8] sm:$0xff]
  %v19 = vld [vmem:[%s1 + $0x10] sm:$0xff]
  %v20 = vld [vmem:[%s1 + $0x18] sm:$0xff]
  %v21 = vld [vmem:[%s1 + $0x20] sm:$0xff]
  %v22 = vld [vmem:[%s1 + $0x28] sm:$0xff]
  %v23 = vld [vmem:[%s1 + $0x30] sm:$0xff]
  %v24 = vld [vmem:[%s1 + $0x38] sm:$0xff]
  %v25 = vld [vmem:[%s1 + $0x40] sm:$0xff]
  %v26 = vld [vmem:[%s1 + $0x48] sm:$0xff]
  %v27 = vld [vmem:[%s1 + $0x50] sm:$0xff]
  %v28 = vld [vmem:[%s1 + $0x58] sm:$0xff]
  %v29 = vld [vmem:[%s1 + $0x60] sm:$0xff]
  %v30 = vld [vmem:[%s1 + $0x68] sm:$0xff]
  %v31 = vld [vmem:[%s1 + $0x70] sm:$0xff]
  %v32 = vld [vmem:[%s1 + $0x78] sm:$0xff]
  %v33 = vld [vmem:[%s1 + $0x80] sm:$0xff]
  %v34 = vld [vmem:[%s1 + $0x88] sm:$0xff]
  %v35 = vld [vmem:[%s1 + $0x90] sm:$0xff]
  %v36 = vld [vmem:[%s1 + $0x98] sm:$0xff]
  %v37 = vld [vmem:[%s2] sm:$0xff]
  %v38 = vld [vmem:[%s2 + $0x8] sm:$0xff]
  %40 = vset.pattern.permute.xlu0 0
  %41 = vperm.xlu0 %40, %v37
  %v42 = vpop.permute.xlu0 %41
  %45 = vset.pattern.permute.xlu0 0
  %46 = vperm.xlu0 %45, %v38
  %v47 = vpop.permute.xlu0 %46
  %v51 = vunpack.c.l.b16 %v15
  %v52 = vunpack.c.l.b16 %v16
  %v53 = vpack.c.b16 %v52, %v51
  %v74 = vunpack.c.l.b16 %v17
  %v75 = vunpack.c.h.b16 %v17
  %v76 = vunpack.c.l.b16 %v18
  %v77 = vunpack.c.h.b16 %v18
  %v78 = vunpack.c.l.b16 %v19
  %v79 = vunpack.c.h.b16 %v19
  %v80 = vunpack.c.l.b16 %v20
  %v81 = vunpack.c.h.b16 %v20
  %v82 = vunpack.c.l.b16 %v21
  %v83 = vunpack.c.h.b16 %v21
  %v84 = vunpack.c.l.b16 %v22
  %v85 = vunpack.c.h.b16 %v22
  %v86 = vunpack.c.l.b16 %v23
  %v87 = vunpack.c.h.b16 %v23
  %v88 = vunpack.c.l.b16 %v24
  %v89 = vunpack.c.h.b16 %v24
  %v90 = vunpack.c.l.b16 %v25
  %v91 = vunpack.c.h.b16 %v25
  %v92 = vunpack.c.l.b16 %v26
  %v93 = vunpack.c.h.b16 %v26
  %v94 = vunpack.c.l.b16 %v27
  %v95 = vunpack.c.h.b16 %v27
  %v96 = vunpack.c.l.b16 %v28
  %v97 = vunpack.c.h.b16 %v28
  %v98 = vunpack.c.l.b16 %v29
  %v99 = vunpack.c.h.b16 %v29
  %v100 = vunpack.c.l.b16 %v30
  %v101 = vunpack.c.h.b16 %v30
  %v102 = vunpack.c.l.b16 %v31
  %v103 = vunpack.c.h.b16 %v31
  %v104 = vunpack.c.l.b16 %v32
  %v105 = vunpack.c.h.b16 %v32
  %v106 = vunpack.c.l.b16 %v33
  %v107 = vunpack.c.h.b16 %v33
  %v108 = vunpack.c.l.b16 %v34
  %v109 = vunpack.c.h.b16 %v34
  %v110 = vunpack.c.l.b16 %v35
  %v111 = vunpack.c.h.b16 %v35
  %v112 = vunpack.c.l.b16 %v36
  %v113 = vunpack.c.h.b16 %v36
  %v114 = vpack.c.b16 %v78, %v74
  %v115 = vpack.c.b16 %v79, %v75
  %v116 = vpack.c.b16 %v80, %v76
  %v117 = vpack.c.b16 %v81, %v77
  %v118 = vpack.c.b16 %v86, %v82
  %v119 = vpack.c.b16 %v87, %v83
  %v120 = vpack.c.b16 %v88, %v84
  %v121 = vpack.c.b16 %v89, %v85
  %v122 = vpack.c.b16 %v94, %v90
  %v123 = vpack.c.b16 %v95, %v91
  %v124 = vpack.c.b16 %v96, %v92
  %v125 = vpack.c.b16 %v97, %v93
  %v126 = vpack.c.b16 %v102, %v98
  %v127 = vpack.c.b16 %v103, %v99
  %v128 = vpack.c.b16 %v104, %v100
  %v129 = vpack.c.b16 %v105, %v101
  %v130 = vpack.c.b16 %v110, %v106
  %v131 = vpack.c.b16 %v111, %v107
  %v132 = vpack.c.b16 %v112, %v108
  %v133 = vpack.c.b16 %v113, %v109
  %vm154 = vcmask 654336
  %v156 = vsel %vm154, %v53, 0
  %158 = vmatprep.subr.bf16.mxu0 0
  %159 = vmatpush1.bf16.msra.mxu0 0
  %160 = vmatprep.subr.bf16.mxu0 0
  %161 = vmatpush1.bf16.msra.mxu0 0
  %162 = vmatprep.subr.bf16.mxu0 0
  %163 = vmatpush1.bf16.msra.mxu0 0
  %164 = vmatprep.subr.bf16.mxu0 %v131
  %165 = vmatpush1.bf16.msra.mxu0 %v130
  %166 = vmatprep.subr.bf16.mxu0 %v127
  %167 = vmatpush1.bf16.msra.mxu0 %v126
  %168 = vmatprep.subr.bf16.mxu0 %v123
  %169 = vmatpush1.bf16.msra.mxu0 %v122
  %170 = vmatprep.subr.bf16.mxu0 %v119
  %171 = vmatpush1.bf16.msra.mxu0 %v118
  %172 = vmatprep.subr.bf16.mxu0 %v115
  %173 = vmatpush1.bf16.msra.mxu0 %v114
  %174 = vmatprep.subr.bf16.mxu0 0
  %175 = vmatpush2.bf16.msra.mxu0 0
  %176 = vmatprep.subr.bf16.mxu0 0
  %177 = vmatpush2.bf16.msra.mxu0 0
  %178 = vmatprep.subr.bf16.mxu0 0
  %179 = vmatpush2.bf16.msra.mxu0 0
  %180 = vmatprep.subr.bf16.mxu0 0
  %181 = vmatpush2.bf16.msra.mxu0 0
  %182 = vmatprep.subr.bf16.mxu0 0
  %183 = vmatpush2.bf16.msra.mxu0 0
  %184 = vmatprep.subr.bf16.mxu0 0
  %185 = vmatpush2.bf16.msra.mxu0 0
  %186 = vmatprep.subr.bf16.mxu0 0
  %187 = vmatpush2.bf16.msra.mxu0 0
  %188 = vmatprep.subr.bf16.mxu0 0
  %189 = vmatpush2.bf16.msra.mxu0 0
  %190 = vmatprep.mubr.bf16.mxu0 0
  %191 = vmatmul.mubr.bf16.gmra.mxu0 %v156
  %v192 = vpop.f32.mrf.mxu0
  %v193 = vadd.f32 %v42, %v192
  %v194 = vpop.f32.mrf.mxu0
  %v195 = vadd.f32 %v42, %v194
  %v196 = vpop.f32.mrf.mxu0
  %v197 = vadd.f32 %v47, %v196
  %v198 = vpop.f32.mrf.mxu0
  %v199 = vadd.f32 %v47, %v198
  %200 = vdwg.mxu0
  %201 = vmatprep.subr.bf16.mxu0 0
  %202 = vmatpush1.bf16.msra.mxu0 0
  %203 = vmatprep.subr.bf16.mxu0 0
  %204 = vmatpush1.bf16.msra.mxu0 0
  %205 = vmatprep.subr.bf16.mxu0 0
  %206 = vmatpush1.bf16.msra.mxu0 0
  %207 = vmatprep.subr.bf16.mxu0 %v133
  %208 = vmatpush1.bf16.msra.mxu0 %v132
  %209 = vmatprep.subr.bf16.mxu0 %v129
  %210 = vmatpush1.bf16.msra.mxu0 %v128
  %211 = vmatprep.subr.bf16.mxu0 %v125
  %212 = vmatpush1.bf16.msra.mxu0 %v124
  %213 = vmatprep.subr.bf16.mxu0 %v121
  %214 = vmatpush1.bf16.msra.mxu0 %v120
  %215 = vmatprep.subr.bf16.mxu0 %v117
  %216 = vmatpush1.bf16.msra.mxu0 %v116
  %217 = vmatprep.subr.bf16.mxu0 0
  %218 = vmatpush2.bf16.msra.mxu0 0
  %219 = vmatprep.subr.bf16.mxu0 0
  %220 = vmatpush2.bf16.msra.mxu0 0
  %221 = vmatprep.subr.bf16.mxu0 0
  %222 = vmatpush2.bf16.msra.mxu0 0
  %223 = vmatprep.subr.bf16.mxu0 0
  %224 = vmatpush2.bf16.msra.mxu0 0
  %225 = vmatprep.subr.bf16.mxu0 0
  %226 = vmatpush2.bf16.msra.mxu0 0
  %227 = vmatprep.subr.bf16.mxu0 0
  %228 = vmatpush2.bf16.msra.mxu0 0
  %229 = vmatprep.subr.bf16.mxu0 0
  %230 = vmatpush2.bf16.msra.mxu0 0
  %231 = vmatprep.subr.bf16.mxu0 0
  %232 = vmatpush2.bf16.msra.mxu0 0
  %233 = vmatprep.mubr.bf16.mxu0 0
  %234 = vmatmul.mubr.bf16.gmra.mxu0 %v156
  %v235 = vpop.f32.mrf.mxu0
  %v236 = vadd.f32 %v42, %v235
  %v237 = vpop.f32.mrf.mxu0
  %v238 = vadd.f32 %v42, %v237
  %v239 = vpop.f32.mrf.mxu0
  %v240 = vadd.f32 %v47, %v239
  %v241 = vpop.f32.mrf.mxu0
  %v242 = vadd.f32 %v47, %v241
  %243 = vdwg.mxu0
  %v244 = vmax.f32 %v193, 0.0
  %v245 = vmax.f32 %v195, 0.0
  %v246 = vmax.f32 %v236, 0.0
  %v247 = vmax.f32 %v238, 0.0
  %v248 = vmax.f32 %v197, 0.0
  %v249 = vmax.f32 %v199, 0.0
  %v250 = vmax.f32 %v240, 0.0
  %v251 = vmax.f32 %v242, 0.0
  %v252 = vpack.c.bf16 %v248, %v244
  %v253 = vpack.c.bf16 %v249, %v245
  %v254 = vpack.c.bf16 %v250, %v246
  %v255 = vpack.c.bf16 %v251, %v247
  %v260 = vunpack.c.l.b16 %v252
  %v261 = vunpack.c.l.b16 %v253
  %v262 = vunpack.c.l.b16 %v254
  %v263 = vunpack.c.l.b16 %v255
  %v264 = vunpack.c.h.b16 %v252
  %v265 = vunpack.c.h.b16 %v253
  %v266 = vunpack.c.h.b16 %v254
  %v267 = vunpack.c.h.b16 %v255
  %v268 = vpack.c.b16 %v261, %v260
  %v269 = vpack.c.b16 %v263, %v262
  %v270 = vpack.c.b16 %v265, %v264
  %v271 = vpack.c.b16 %v267, %v266
  %276 = vst [vmem:[%s3] sm:$0xff] %v268
  %277 = vst [vmem:[%s3 + $0x8] sm:$0xff] %v269
  %278 = vst [vmem:[%s3 + $0x10] sm:$0xff] %v270
  %279 = vst [vmem:[%s3 + $0x18] sm:$0xff] %v271
  // Predicated region
  $region14: #{_lambda_.38} parent=0 // pred_check
    _
  $region15: #{_lambda_.38} parent=0 // pred_check_branch
    %281 = sbr.rel (0) target = $region17
  $region16: #{_lambda_.38} parent=0 // pred_region
    _
  $region17: #{_lambda_.38} parent=0 // pred_fallthru
    _
  // Predicated region
  $region18: #{_lambda_.38} parent=0 // pred_check
    _
  $region19: #{_lambda_.38} parent=0 // pred_check_branch
    %283 = sbr.rel (0) target = $region21
  $region20: #{_lambda_.38} parent=0 // pred_region
    _
  $region21: #{_lambda_.38} parent=0 // pred_fallthru
    _

// kernel: _lambda_.39
$region0: #{_lambda_.39}
  #allocation0 [shape = 'u32[]', space=smem, size = 0x4, offset = 0x4, fixed_abs, tag = 'smem constant byte address 0x4 - core index']
  #allocation1 [shape = 'u32[144,128]{1,0:T(1,128)}', space=vmem, size = 0x12000, scoped, tag = 'internal scratch']
  %s0 = inlined_call_operand.vmem [shape: bf16[32,144], index: 0, kind: input, shape index: {}]
  %s1 = inlined_call_operand.vmem [shape: bf16[144,128], index: 1, kind: input, shape index: {}]
  %s2 = inlined_call_operand.vmem [shape: f32[32,1], index: 2, kind: input, shape index: {}]
  %s3 = inlined_call_operand.vmem [shape: bf16[32,128], index: 3, kind: output, shape index: {}]
  %s4 = sld [smem:[#allocation0]]
  $region22: #{_lambda_.39} parent=0
    _
  %s6 = ssub.s32 1, %s4
  %s7 = scalar_select 0, %s6, %s4
  // Predicated region
  $region2: #{_lambda_.39} parent=0 // pred_check
    _
  $region3: #{_lambda_.39} parent=0 // pred_check_branch
    %9 = sbr.rel (0) target = $region5
  $region4: #{_lambda_.39} parent=0 // pred_region
    _
  $region5: #{_lambda_.39} parent=0 // pred_fallthru
    _
  // Predicated region
  $region6: #{_lambda_.39} parent=0 // pred_check
    _
  $region7: #{_lambda_.39} parent=0 // pred_check_branch
    %11 = sbr.rel (0) target = $region9
  $region8: #{_lambda_.39} parent=0 // pred_region
    _
  $region9: #{_lambda_.39} parent=0 // pred_fallthru
    _
  // Predicated region
  $region10: #{_lambda_.39} parent=0 // pred_check
    _
  $region11: #{_lambda_.39} parent=0 // pred_check_branch
    %13 = sbr.rel (0) target = $region13
  $region12: #{_lambda_.39} parent=0 // pred_region
    _
  $region13: #{_lambda_.39} parent=0 // pred_fallthru
    _
  %v15 = vld [vmem:[%s0] sm:$0xff]
  %v16 = vld [vmem:[%s0 + $0x8] sm:$0xff]
  %v17 = vld [vmem:[%s0 + $0x10] sm:$0xff]
  %v18 = vld [vmem:[%s0 + $0x18] sm:$0xff]
  %v19 = vld [vmem:[%s1] sm:$0xf]
  %v20 = vld [vmem:[%s1 + $0x4] sm:$0xf]
  %v21 = vld [vmem:[%s1 + $0x8] sm:$0xf]
  %v22 = vld [vmem:[%s1 + $0xc] sm:$0xf]
  %v23 = vld [vmem:[%s1 + $0x10] sm:$0xf]
  %v24 = vld [vmem:[%s1 + $0x14] sm:$0xf]
  %v25 = vld [vmem:[%s1 + $0x18] sm:$0xf]
  %v26 = vld [vmem:[%s1 + $0x1c] sm:$0xf]
  %v27 = vld [vmem:[%s1 + $0x20] sm:$0xf]
  %v28 = vld [vmem:[%s1 + $0x24] sm:$0xf]
  %v29 = vld [vmem:[%s1 + $0x28] sm:$0xf]
  %v30 = vld [vmem:[%s1 + $0x2c] sm:$0xf]
  %v31 = vld [vmem:[%s1 + $0x30] sm:$0xf]
  %v32 = vld [vmem:[%s1 + $0x34] sm:$0xf]
  %v33 = vld [vmem:[%s1 + $0x38] sm:$0xf]
  %v34 = vld [vmem:[%s1 + $0x3c] sm:$0xf]
  %v35 = vld [vmem:[%s1 + $0x40] sm:$0xf]
  %v36 = vld [vmem:[%s1 + $0x44] sm:$0xf]
  %v37 = vld [vmem:[%s2] sm:$0xff]
  %v38 = vld [vmem:[%s2 + $0x8] sm:$0xff]
  %v39 = vld [vmem:[%s2 + $0x10] sm:$0xff]
  %v40 = vld [vmem:[%s2 + $0x18] sm:$0xff]
  %42 = vset.pattern.permute.xlu0 0
  %43 = vperm.xlu0 %42, %v37
  %v44 = vpop.permute.xlu0 %43
  %47 = vset.pattern.permute.xlu0 0
  %48 = vperm.xlu0 %47, %v38
  %v49 = vpop.permute.xlu0 %48
  %52 = vset.pattern.permute.xlu0 0
  %53 = vperm.xlu0 %52, %v39
  %v54 = vpop.permute.xlu0 %53
  %57 = vset.pattern.permute.xlu0 0
  %58 = vperm.xlu0 %57, %v40
  %v59 = vpop.permute.xlu0 %58
  %v65 = vunpack.c.l.b16 %v15
  %v66 = vunpack.c.h.b16 %v15
  %v67 = vunpack.c.l.b16 %v16
  %v68 = vunpack.c.h.b16 %v16
  %v69 = vunpack.c.l.b16 %v17
  %v70 = vunpack.c.h.b16 %v17
  %v71 = vunpack.c.l.b16 %v18
  %v72 = vunpack.c.h.b16 %v18
  %v73 = vpack.c.b16 %v67, %v65
  %v74 = vpack.c.b16 %v68, %v66
  %v75 = vpack.c.b16 %v71, %v69
  %v76 = vpack.c.b16 %v72, %v70
  %v97 = vunpack.c.l.b16 %v19
  %v98 = vunpack.c.l.b16 %v20
  %v99 = vunpack.c.l.b16 %v21
  %v100 = vunpack.c.l.b16 %v22
  %v101 = vunpack.c.l.b16 %v23
  %v102 = vunpack.c.l.b16 %v24
  %v103 = vunpack.c.l.b16 %v25
  %v104 = vunpack.c.l.b16 %v26
  %v105 = vunpack.c.l.b16 %v27
  %v106 = vunpack.c.l.b16 %v28
  %v107 = vunpack.c.l.b16 %v29
  %v108 = vunpack.c.l.b16 %v30
  %v109 = vunpack.c.l.b16 %v31
  %v110 = vunpack.c.l.b16 %v32
  %v111 = vunpack.c.l.b16 %v33
  %v112 = vunpack.c.l.b16 %v34
  %v113 = vunpack.c.l.b16 %v35
  %v114 = vunpack.c.l.b16 %v36
  %v115 = vpack.c.b16 %v98, %v97
  %v116 = vpack.c.b16 %v100, %v99
  %v117 = vpack.c.b16 %v102, %v101
  %v118 = vpack.c.b16 %v104, %v103
  %v119 = vpack.c.b16 %v106, %v105
  %v120 = vpack.c.b16 %v108, %v107
  %v121 = vpack.c.b16 %v110, %v109
  %v122 = vpack.c.b16 %v112, %v111
  %v123 = vpack.c.b16 %v114, %v113
  %vm133 = vcmask 130048
  %v135 = vsel %vm133, %v74, 0
  %v138 = vsel %vm133, %v76, 0
  %140 = vmatprep.subr.bf16.mxu0 0
  %141 = vmatpush1.bf16.msra.mxu0 %v122
  %142 = vmatprep.subr.bf16.mxu0 0
  %143 = vmatpush1.bf16.msra.mxu0 %v121
  %144 = vmatprep.subr.bf16.mxu0 0
  %145 = vmatpush1.bf16.msra.mxu0 %v120
  %146 = vmatprep.subr.bf16.mxu0 0
  %147 = vmatpush1.bf16.msra.mxu0 %v119
  %148 = vmatprep.subr.bf16.mxu0 0
  %149 = vmatpush1.bf16.msra.mxu0 %v118
  %150 = vmatprep.subr.bf16.mxu0 0
  %151 = vmatpush1.bf16.msra.mxu0 %v117
  %152 = vmatprep.subr.bf16.mxu0 0
  %153 = vmatpush1.bf16.msra.mxu0 %v116
  %154 = vmatprep.subr.bf16.mxu0 0
  %155 = vmatpush1.bf16.msra.mxu0 %v115
  %156 = vmatprep.subr.bf16.mxu0 0
  %157 = vmatpush2.bf16.msra.mxu0 0
  %158 = vmatprep.subr.bf16.mxu0 0
  %159 = vmatpush2.bf16.msra.mxu0 0
  %160 = vmatprep.subr.bf16.mxu0 0
  %161 = vmatpush2.bf16.msra.mxu0 0
  %162 = vmatprep.subr.bf16.mxu0 0
  %163 = vmatpush2.bf16.msra.mxu0 0
  %164 = vmatprep.subr.bf16.mxu0 0
  %165 = vmatpush2.bf16.msra.mxu0 0
  %166 = vmatprep.subr.bf16.mxu0 0
  %167 = vmatpush2.bf16.msra.mxu0 0
  %168 = vmatprep.subr.bf16.mxu0 0
  %169 = vmatpush2.bf16.msra.mxu0 0
  %170 = vmatprep.subr.bf16.mxu0 0
  %171 = vmatpush2.bf16.msra.mxu0 %v123
  %172 = vmatprep.mubr.bf16.mxu0 %v135
  %173 = vmatmul.mubr.bf16.gmra.mxu0 %v73
  %v174 = vpop.f32.mrf.mxu0
  %v175 = vadd.f32 %v44, %v174
  %v176 = vpop.f32.mrf.mxu0
  %v177 = vpop.f32.mrf.mxu0
  %v178 = vadd.f32 %v49, %v177
  %v179 = vpop.f32.mrf.mxu0
  %180 = vmatprep.mubr.bf16.mxu0 %v138
  %181 = vmatmul.mubr.bf16.gmra.mxu0 %v75
  %v182 = vpop.f32.mrf.mxu0
  %v183 = vadd.f32 %v54, %v182
  %v184 = vpop.f32.mrf.mxu0
  %v185 = vpop.f32.mrf.mxu0
  %v186 = vadd.f32 %v59, %v185
  %v187 = vpop.f32.mrf.mxu0
  %188 = vdwg.mxu0
  %v189 = vmax.f32 %v175, 0.0
  %v190 = vmax.f32 %v178, 0.0
  %v191 = vmax.f32 %v183, 0.0
  %v192 = vmax.f32 %v186, 0.0
  %v193 = vpack.c.bf16 %v190, %v189
  %v194 = vpack.c.bf16 %v192, %v191
  %v197 = vunpack.c.l.b16 %v193
  %v198 = vunpack.c.h.b16 %v193
  %v199 = vunpack.c.l.b16 %v194
  %v200 = vunpack.c.h.b16 %v194
  %v201 = vpack.c.b16 %v197, %v197
  %v202 = vpack.c.b16 %v198, %v198
  %v203 = vpack.c.b16 %v199, %v199
  %v204 = vpack.c.b16 %v200, %v200
  %209 = vst [vmem:[%s3] sm:$0xf] %v201
  %210 = vst [vmem:[%s3 + $0x4] sm:$0xf] %v202
  %211 = vst [vmem:[%s3 + $0x8] sm:$0xf] %v203
  %212 = vst [vmem:[%s3 + $0xc] sm:$0xf] %v204
  // Predicated region
  $region14: #{_lambda_.39} parent=0 // pred_check
    _
  $region15: #{_lambda_.39} parent=0 // pred_check_branch
    %214 = sbr.rel (0) target = $region17
  $region16: #{_lambda_.39} parent=0 // pred_region
    _
  $region17: #{_lambda_.39} parent=0 // pred_fallthru
    _
  // Predicated region
  $region18: #{_lambda_.39} parent=0 // pred_check
    _
  $region19: #{_lambda_.39} parent=0 // pred_check_branch
    %216 = sbr.rel (0) target = $region21
  $region20: #{_lambda_.39} parent=0 // pred_region
    _
  $region21: #{_lambda_.39} parent=0 // pred_fallthru
    _

// kernel: _lambda_.40
$region0: #{_lambda_.40}
  #allocation0 [shape = 'u32[]', space=smem, size = 0x4, offset = 0x4, fixed_abs, tag = 'smem constant byte address 0x4 - core index']
  #allocation1 [shape = 'u32[144,128]{1,0:T(1,128)}', space=vmem, size = 0x12000, scoped, tag = 'internal scratch']
  %s0 = inlined_call_operand.vmem [shape: bf16[64,288], index: 0, kind: input, shape index: {}]
  %s1 = inlined_call_operand.vmem [shape: bf16[288,128], index: 1, kind: input, shape index: {}]
  %s2 = inlined_call_operand.vmem [shape: f32[64,1], index: 2, kind: input, shape index: {}]
  %s3 = inlined_call_operand.vmem [shape: bf16[64,128], index: 3, kind: output, shape index: {}]
  %s4 = sld [smem:[#allocation0]]
  $region22: #{_lambda_.40} parent=0
    _
  %s6 = ssub.s32 1, %s4
  %s7 = scalar_select 0, %s6, %s4
  // Predicated region
  $region2: #{_lambda_.40} parent=0 // pred_check
    _
  $region3: #{_lambda_.40} parent=0 // pred_check_branch
    %9 = sbr.rel (0) target = $region5
  $region4: #{_lambda_.40} parent=0 // pred_region
    _
  $region5: #{_lambda_.40} parent=0 // pred_fallthru
    _
  // Predicated region
  $region6: #{_lambda_.40} parent=0 // pred_check
    _
  $region7: #{_lambda_.40} parent=0 // pred_check_branch
    %11 = sbr.rel (0) target = $region9
  $region8: #{_lambda_.40} parent=0 // pred_region
    _
  $region9: #{_lambda_.40} parent=0 // pred_fallthru
    _
  // Predicated region
  $region10: #{_lambda_.40} parent=0 // pred_check
    _
  $region11: #{_lambda_.40} parent=0 // pred_check_branch
    %13 = sbr.rel (0) target = $region13
  $region12: #{_lambda_.40} parent=0 // pred_region
    _
  $region13: #{_lambda_.40} parent=0 // pred_fallthru
    _
  %v15 = vld [vmem:[%s0] sm:$0xff]
  %v16 = vld [vmem:[%s0 + $0x8] sm:$0xf]
  %v17 = vld [vmem:[%s0 + $0xc] sm:$0xff]
  %v18 = vld [vmem:[%s0 + $0x14] sm:$0xf]
  %v19 = vld [vmem:[%s0 + $0x18] sm:$0xff]
  %v20 = vld [vmem:[%s0 + $0x20] sm:$0xf]
  %v21 = vld [vmem:[%s0 + $0x24] sm:$0xff]
  %v22 = vld [vmem:[%s0 + $0x2c] sm:$0xf]
  %v23 = vld [vmem:[%s0 + $0x30] sm:$0xff]
  %v24 = vld [vmem:[%s0 + $0x38] sm:$0xf]
  %v25 = vld [vmem:[%s0 + $0x3c] sm:$0xff]
  %v26 = vld [vmem:[%s0 + $0x44] sm:$0xf]
  %v27 = vld [vmem:[%s0 + $0x48] sm:$0xff]
  %v28 = vld [vmem:[%s0 + $0x50] sm:$0xf]
  %v29 = vld [vmem:[%s0 + $0x54] sm:$0xff]
  %v30 = vld [vmem:[%s0 + $0x5c] sm:$0xf]
  %v31 = vld [vmem:[%s1] sm:$0xf]
  %v32 = vld [vmem:[%s1 + $0x4] sm:$0xf]
  %v33 = vld [vmem:[%s1 + $0x8] sm:$0xf]
  %v34 = vld [vmem:[%s1 + $0xc] sm:$0xf]
  %v35 = vld [vmem:[%s1 + $0x10] sm:$0xf]
  %v36 = vld [vmem:[%s1 + $0x14] sm:$0xf]
  %v37 = vld [vmem:[%s1 + $0x18] sm:$0xf]
  %v38 = vld [vmem:[%s1 + $0x1c] sm:$0xf]
  %v39 = vld [vmem:[%s1 + $0x20] sm:$0xf]
  %v40 = vld [vmem:[%s1 + $0x24] sm:$0xf]
  %v41 = vld [vmem:[%s1 + $0x28] sm:$0xf]
  %v42 = vld [vmem:[%s1 + $0x2c] sm:$0xf]
  %v43 = vld [vmem:[%s1 + $0x30] sm:$0xf]
  %v44 = vld [vmem:[%s1 + $0x34] sm:$0xf]
  %v45 = vld [vmem:[%s1 + $0x38] sm:$0xf]
  %v46 = vld [vmem:[%s1 + $0x3c] sm:$0xf]
  %v47 = vld [vmem:[%s1 + $0x40] sm:$0xf]
  %v48 = vld [vmem:[%s1 + $0x44] sm:$0xf]
  %v49 = vld [vmem:[%s1 + $0x48] sm:$0xf]
  %v50 = vld [vmem:[%s1 + $0x4c] sm:$0xf]
  %v51 = vld [vmem:[%s1 + $0x50] sm:$0xf]
  %v52 = vld [vmem:[%s1 + $0x54] sm:$0xf]
  %v53 = vld [vmem:[%s1 + $0x58] sm:$0xf]
  %v54 = vld [vmem:[%s1 + $0x5c] sm:$0xf]
  %v55 = vld [vmem:[%s1 + $0x60] sm:$0xf]
  %v56 = vld [vmem:[%s1 + $0x64] sm:$0xf]
  %v57 = vld [vmem:[%s1 + $0x68] sm:$0xf]
  %v58 = vld [vmem:[%s1 + $0x6c] sm:$0xf]
  %v59 = vld [vmem:[%s1 + $0x70] sm:$0xf]
  %v60 = vld [vmem:[%s1 + $0x74] sm:$0xf]
  %v61 = vld [vmem:[%s1 + $0x78] sm:$0xf]
  %v62 = vld [vmem:[%s1 + $0x7c] sm:$0xf]
  %v63 = vld [vmem:[%s1 + $0x80] sm:$0xf]
  %v64 = vld [vmem:[%s1 + $0x84] sm:$0xf]
  %v65 = vld [vmem:[%s1 + $0x88] sm:$0xf]
  %v66 = vld [vmem:[%s1 + $0x8c] sm:$0xf]
  %v67 = vld [vmem:[%s2] sm:$0xff]
  %v68 = vld [vmem:[%s2 + $0x8] sm:$0xff]
  %v69 = vld [vmem:[%s2 + $0x10] sm:$0xff]
  %v70 = vld [vmem:[%s2 + $0x18] sm:$0xff]
  %v71 = vld [vmem:[%s2 + $0x20] sm:$0xff]
  %v72 = vld [vmem:[%s2 + $0x28] sm:$0xff]
  %v73 = vld [vmem:[%s2 + $0x30] sm:$0xff]
  %v74 = vld [vmem:[%s2 + $0x38] sm:$0xff]
  %76 = vset.pattern.permute.xlu0 0
  %77 = vperm.xlu0 %76, %v67
  %v78 = vpop.permute.xlu0 %77
  %81 = vset.pattern.permute.xlu0 0
  %82 = vperm.xlu0 %81, %v68
  %v83 = vpop.permute.xlu0 %82
  %86 = vset.pattern.permute.xlu0 0
  %87 = vperm.xlu0 %86, %v69
  %v88 = vpop.permute.xlu0 %87
  %91 = vset.pattern.permute.xlu0 0
  %92 = vperm.xlu0 %91, %v70
  %v93 = vpop.permute.xlu0 %92
  %96 = vset.pattern.permute.xlu0 0
  %97 = vperm.xlu0 %96, %v71
  %v98 = vpop.permute.xlu0 %97
  %101 = vset.pattern.permute.xlu0 0
  %102 = vperm.xlu0 %101, %v72
  %v103 = vpop.permute.xlu0 %102
  %106 = vset.pattern.permute.xlu0 0
  %107 = vperm.xlu0 %106, %v73
  %v108 = vpop.permute.xlu0 %107
  %111 = vset.pattern.permute.xlu0 0
  %112 = vperm.xlu0 %111, %v74
  %v113 = vpop.permute.xlu0 %112
  %v131 = vunpack.c.l.b16 %v15
  %v132 = vunpack.c.h.b16 %v15
  %v133 = vunpack.c.l.b16 %v16
  %v134 = vunpack.c.l.b16 %v17
  %v135 = vunpack.c.h.b16 %v17
  %v136 = vunpack.c.l.b16 %v18
  %v137 = vunpack.c.l.b16 %v19
  %v138 = vunpack.c.h.b16 %v19
  %v139 = vunpack.c.l.b16 %v20
  %v140 = vunpack.c.l.b16 %v21
  %v141 = vunpack.c.h.b16 %v21
  %v142 = vunpack.c.l.b16 %v22
  %v143 = vunpack.c.l.b16 %v23
  %v144 = vunpack.c.h.b16 %v23
  %v145 = vunpack.c.l.b16 %v24
  %v146 = vunpack.c.l.b16 %v25
  %v147 = vunpack.c.h.b16 %v25
  %v148 = vunpack.c.l.b16 %v26
  %v149 = vunpack.c.l.b16 %v27
  %v150 = vunpack.c.h.b16 %v27
  %v151 = vunpack.c.l.b16 %v28
  %v152 = vunpack.c.l.b16 %v29
  %v153 = vunpack.c.h.b16 %v29
  %v154 = vunpack.c.l.b16 %v30
  %v155 = vpack.c.b16 %v134, %v131
  %v156 = vpack.c.b16 %v135, %v132
  %v157 = vpack.c.b16 %v136, %v133
  %v158 = vpack.c.b16 %v140, %v137
  %v159 = vpack.c.b16 %v141, %v138
  %v160 = vpack.c.b16 %v142, %v139
  %v161 = vpack.c.b16 %v146, %v143
  %v162 = vpack.c.b16 %v147, %v144
  %v163 = vpack.c.b16 %v148, %v145
  %v164 = vpack.c.b16 %v152, %v149
  %v165 = vpack.c.b16 %v153, %v150
  %v166 = vpack.c.b16 %v154, %v151
  %v211 = vunpack.c.l.b16 %v31
  %v212 = vunpack.c.l.b16 %v32
  %v213 = vunpack.c.l.b16 %v33
  %v214 = vunpack.c.l.b16 %v34
  %v215 = vunpack.c.l.b16 %v35
  %v216 = vunpack.c.l.b16 %v36
  %v217 = vunpack.c.l.b16 %v37
  %v218 = vunpack.c.l.b16 %v38
  %v219 = vunpack.c.l.b16 %v39
  %v220 = vunpack.c.l.b16 %v40
  %v221 = vunpack.c.l.b16 %v41
  %v222 = vunpack.c.l.b16 %v42
  %v223 = vunpack.c.l.b16 %v43
  %v224 = vunpack.c.l.b16 %v44
  %v225 = vunpack.c.l.b16 %v45
  %v226 = vunpack.c.l.b16 %v46
  %v227 = vunpack.c.l.b16 %v47
  %v228 = vunpack.c.l.b16 %v48
  %v229 = vunpack.c.l.b16 %v49
  %v230 = vunpack.c.l.b16 %v50
  %v231 = vunpack.c.l.b16 %v51
  %v232 = vunpack.c.l.b16 %v52
  %v233 = vunpack.c.l.b16 %v53
  %v234 = vunpack.c.l.b16 %v54
  %v235 = vunpack.c.l.b16 %v55
  %v236 = vunpack.c.l.b16 %v56
  %v237 = vunpack.c.l.b16 %v57
  %v238 = vunpack.c.l.b16 %v58
  %v239 = vunpack.c.l.b16 %v59
  %v240 = vunpack.c.l.b16 %v60
  %v241 = vunpack.c.l.b16 %v61
  %v242 = vunpack.c.l.b16 %v62
  %v243 = vunpack.c.l.b16 %v63
  %v244 = vunpack.c.l.b16 %v64
  %v245 = vunpack.c.l.b16 %v65
  %v246 = vunpack.c.l.b16 %v66
  %v247 = vpack.c.b16 %v212, %v211
  %v248 = vpack.c.b16 %v214, %v213
  %v249 = vpack.c.b16 %v216, %v215
  %v250 = vpack.c.b16 %v218, %v217
  %v251 = vpack.c.b16 %v220, %v219
  %v252 = vpack.c.b16 %v222, %v221
  %v253 = vpack.c.b16 %v224, %v223
  %v254 = vpack.c.b16 %v226, %v225
  %v255 = vpack.c.b16 %v228, %v227
  %v256 = vpack.c.b16 %v230, %v229
  %v257 = vpack.c.b16 %v232, %v231
  %v258 = vpack.c.b16 %v234, %v233
  %v259 = vpack.c.b16 %v236, %v235
  %v260 = vpack.c.b16 %v238, %v237
  %v261 = vpack.c.b16 %v240, %v239
  %v262 = vpack.c.b16 %v242, %v241
  %v263 = vpack.c.b16 %v244, %v243
  %v264 = vpack.c.b16 %v246, %v245
  %vm283 = vcmask 261120
  %v285 = vsel %vm283, %v157, 0
  %v288 = vsel %vm283, %v160, 0
  %v291 = vsel %vm283, %v163, 0
  %v294 = vsel %vm283, %v166, 0
  %296 = vmatprep.subr.bf16.mxu0 0
  %297 = vmatpush1.bf16.msra.mxu0 %v254
  %298 = vmatprep.subr.bf16.mxu0 0
  %299 = vmatpush1.bf16.msra.mxu0 %v253
  %300 = vmatprep.subr.bf16.mxu0 0
  %301 = vmatpush1.bf16.msra.mxu0 %v252
  %302 = vmatprep.subr.bf16.mxu0 0
  %303 = vmatpush1.bf16.msra.mxu0 %v251
  %304 = vmatprep.subr.bf16.mxu0 0
  %305 = vmatpush1.bf16.msra.mxu0 %v250
  %306 = vmatprep.subr.bf16.mxu0 0
  %307 = vmatpush1.bf16.msra.mxu0 %v249
  %308 = vmatprep.subr.bf16.mxu0 0
  %309 = vmatpush1.bf16.msra.mxu0 %v248
  %310 = vmatprep.subr.bf16.mxu0 0
  %311 = vmatpush1.bf16.msra.mxu0 %v247
  %312 = vmatprep.subr.bf16.mxu0 0
  %313 = vmatpush2.bf16.msra.mxu0 %v262
  %314 = vmatprep.subr.bf16.mxu0 0
  %315 = vmatpush2.bf16.msra.mxu0 %v261
  %316 = vmatprep.subr.bf16.mxu0 0
  %317 = vmatpush2.bf16.msra.mxu0 %v260
  %318 = vmatprep.subr.bf16.mxu0 0
  %319 = vmatpush2.bf16.msra.mxu0 %v259
  %320 = vmatprep.subr.bf16.mxu0 0
  %321 = vmatpush2.bf16.msra.mxu0 %v258
  %322 = vmatprep.subr.bf16.mxu0 0
  %323 = vmatpush2.bf16.msra.mxu0 %v257
  %324 = vmatprep.subr.bf16.mxu0 0
  %325 = vmatpush2.bf16.msra.mxu0 %v256
  %326 = vmatprep.subr.bf16.mxu0 0
  %327 = vmatpush2.bf16.msra.mxu0 %v255
  %328 = vmatprep.mubr.bf16.mxu0 %v156
  %329 = vmatmul.mubr.bf16.gmra.mxu0 %v155
  %v330 = vpop.f32.mrf.mxu0
  %v331 = vadd.f32 %v78, %v330
  %v332 = vpop.f32.mrf.mxu0
  %v333 = vpop.f32.mrf.mxu0
  %v334 = vadd.f32 %v83, %v333
  %v335 = vpop.f32.mrf.mxu0
  %336 = vmatprep.mubr.bf16.mxu0 %v159
  %337 = vmatmul.mubr.bf16.gmra.mxu0 %v158
  %v338 = vpop.f32.mrf.mxu0
  %v339 = vadd.f32 %v88, %v338
  %v340 = vpop.f32.mrf.mxu0
  %v341 = vpop.f32.mrf.mxu0
  %v342 = vadd.f32 %v93, %v341
  %v343 = vpop.f32.mrf.mxu0
  %344 = vmatprep.mubr.bf16.mxu0 %v162
  %345 = vmatmul.mubr.bf16.gmra.mxu0 %v161
  %v346 = vpop.f32.mrf.mxu0
  %v347 = vadd.f32 %v98, %v346
  %v348 = vpop.f32.mrf.mxu0
  %v349 = vpop.f32.mrf.mxu0
  %v350 = vadd.f32 %v103, %v349
  %v351 = vpop.f32.mrf.mxu0
  %352 = vmatprep.mubr.bf16.mxu0 %v165
  %353 = vmatmul.mubr.bf16.gmra.mxu0 %v164
  %v354 = vpop.f32.mrf.mxu0
  %v355 = vadd.f32 %v108, %v354
  %v356 = vpop.f32.mrf.mxu0
  %v357 = vpop.f32.mrf.mxu0
  %v358 = vadd.f32 %v113, %v357
  %v359 = vpop.f32.mrf.mxu0
  %360 = vdwg.mxu0
  %361 = vmatprep.subr.bf16.mxu0 0
  %362 = vmatpush1.bf16.msra.mxu0 0
  %363 = vmatprep.subr.bf16.mxu0 0
  %364 = vmatpush1.bf16.msra.mxu0 0
  %365 = vmatprep.subr.bf16.mxu0 0
  %366 = vmatpush1.bf16.msra.mxu0 0
  %367 = vmatprep.subr.bf16.mxu0 0
  %368 = vmatpush1.bf16.msra.mxu0 0
  %369 = vmatprep.subr.bf16.mxu0 0
  %370 = vmatpush1.bf16.msra.mxu0 0
  %371 = vmatprep.subr.bf16.mxu0 0
  %372 = vmatpush1.bf16.msra.mxu0 0
  %373 = vmatprep.subr.bf16.mxu0 0
  %374 = vmatpush1.bf16.msra.mxu0 %v264
  %375 = vmatprep.subr.bf16.mxu0 0
  %376 = vmatpush1.bf16.msra.mxu0 %v263
  %377 = vmatprep.subr.bf16.mxu0 0
  %378 = vmatpush2.bf16.msra.mxu0 0
  %379 = vmatprep.subr.bf16.mxu0 0
  %380 = vmatpush2.bf16.msra.mxu0 0
  %381 = vmatprep.subr.bf16.mxu0 0
  %382 = vmatpush2.bf16.msra.mxu0 0
  %383 = vmatprep.subr.bf16.mxu0 0
  %384 = vmatpush2.bf16.msra.mxu0 0
  %385 = vmatprep.subr.bf16.mxu0 0
  %386 = vmatpush2.bf16.msra.mxu0 0
  %387 = vmatprep.subr.bf16.mxu0 0
  %388 = vmatpush2.bf16.msra.mxu0 0
  %389 = vmatprep.subr.bf16.mxu0 0
  %390 = vmatpush2.bf16.msra.mxu0 0
  %391 = vmatprep.subr.bf16.mxu0 0
  %392 = vmatpush2.bf16.msra.mxu0 0
  %393 = vmatprep.mubr.bf16.mxu0 0
  %394 = vmatmul.mubr.bf16.gmra.mxu0 %v285
  %v395 = vpop.f32.mrf.mxu0
  %v396 = vadd.f32 %v331, %v395
  %v397 = vpop.f32.mrf.mxu0
  %v398 = vpop.f32.mrf.mxu0
  %v399 = vadd.f32 %v334, %v398
  %v400 = vpop.f32.mrf.mxu0
  %401 = vmatprep.mubr.bf16.mxu0 0
  %402 = vmatmul.mubr.bf16.gmra.mxu0 %v288
  %v403 = vpop.f32.mrf.mxu0
  %v404 = vadd.f32 %v339, %v403
  %v405 = vpop.f32.mrf.mxu0
  %v406 = vpop.f32.mrf.mxu0
  %v407 = vadd.f32 %v342, %v406
  %v408 = vpop.f32.mrf.mxu0
  %409 = vmatprep.mubr.bf16.mxu0 0
  %410 = vmatmul.mubr.bf16.gmra.mxu0 %v291
  %v411 = vpop.f32.mrf.mxu0
  %v412 = vadd.f32 %v347, %v411
  %v413 = vpop.f32.mrf.mxu0
  %v414 = vpop.f32.mrf.mxu0
  %v415 = vadd.f32 %v350, %v414
  %v416 = vpop.f32.mrf.mxu0
  %417 = vmatprep.mubr.bf16.mxu0 0
  %418 = vmatmul.mubr.bf16.gmra.mxu0 %v294
  %v419 = vpop.f32.mrf.mxu0
  %v420 = vadd.f32 %v355, %v419
  %v421 = vpop.f32.mrf.mxu0
  %v422 = vpop.f32.mrf.mxu0
  %v423 = vadd.f32 %v358, %v422
  %v424 = vpop.f32.mrf.mxu0
  %425 = vdwg.mxu0
  %v426 = vmax.f32 %v396, 0.0
  %v427 = vmax.f32 %v399, 0.0
  %v428 = vmax.f32 %v404, 0.0
  %v429 = vmax.f32 %v407, 0.0
  %v430 = vmax.f32 %v412, 0.0
  %v431 = vmax.f32 %v415, 0.0
  %v432 = vmax.f32 %v420, 0.0
  %v433 = vmax.f32 %v423, 0.0
  %v434 = vpack.c.bf16 %v427, %v426
  %v435 = vpack.c.bf16 %v429, %v428
  %v436 = vpack.c.bf16 %v431, %v430
  %v437 = vpack.c.bf16 %v433, %v432
  %v442 = vunpack.c.l.b16 %v434
  %v443 = vunpack.c.h.b16 %v434
  %v444 = vunpack.c.l.b16 %v435
  %v445 = vunpack.c.h.b16 %v435
  %v446 = vunpack.c.l.b16 %v436
  %v447 = vunpack.c.h.b16 %v436
  %v448 = vunpack.c.l.b16 %v437
  %v449 = vunpack.c.h.b16 %v437
  %v450 = vpack.c.b16 %v442, %v442
  %v451 = vpack.c.b16 %v443, %v443
  %v452 = vpack.c.b16 %v444, %v444
  %v453 = vpack.c.b16 %v445, %v445
  %v454 = vpack.c.b16 %v446, %v446
  %v455 = vpack.c.b16 %v447, %v447
  %v456 = vpack.c.b16 %v448, %v448
  %v457 = vpack.c.b16 %v449, %v449
  %466 = vst [vmem:[%s3] sm:$0xf] %v450
  %467 = vst [vmem:[%s3 + $0x4] sm:$0xf] %v451
  %468 = vst [vmem:[%s3 + $0x8] sm:$0xf] %v452
  %469 = vst [vmem:[%s3 + $0xc] sm:$0xf] %v453
  %470 = vst [vmem:[%s3 + $0x10] sm:$0xf] %v454
  %471 = vst [vmem:[%s3 + $0x14] sm:$0xf] %v455
  %472 = vst [vmem:[%s3 + $0x18] sm:$0xf] %v456
  %473 = vst [vmem:[%s3 + $0x1c] sm:$0xf] %v457
  // Predicated region
  $region14: #{_lambda_.40} parent=0 // pred_check
    _
  $region15: #{_lambda_.40} parent=0 // pred_check_branch
    %475 = sbr.rel (0) target = $region17
  $region16: #{_lambda_.40} parent=0 // pred_region
    _
  $region17: #{_lambda_.40} parent=0 // pred_fallthru
    _
  // Predicated region
  $region18: #{_lambda_.40} parent=0 // pred_check
    _
  $region19: #{_lambda_.40} parent=0 // pred_check_branch
    %477 = sbr.rel (0) target = $region21
  $region20: #{_lambda_.40} parent=0 // pred_region
    _
  $region21: #{_lambda_.40} parent=0 // pred_fallthru
    _

// kernel: _lambda_.55
$region0: #{_lambda_.55}
  #allocation0 [shape = 'u32[]', space=smem, size = 0x4, offset = 0x4, fixed_abs, tag = 'smem constant byte address 0x4 - core index']
  #allocation1 [shape = 'u32[144,128]{1,0:T(1,128)}', space=vmem, size = 0x12000, scoped, tag = 'internal scratch']
  %s0 = inlined_call_operand.vmem [shape: bf16[16,64], index: 0, kind: input, shape index: {}]
  %s1 = inlined_call_operand.vmem [shape: bf16[64,128], index: 1, kind: input, shape index: {}]
  %s2 = inlined_call_operand.vmem [shape: f32[16,1], index: 2, kind: input, shape index: {}]
  %s3 = inlined_call_operand.vmem [shape: bf16[16,128], index: 3, kind: output, shape index: {}]
  %s4 = sld [smem:[#allocation0]]
  $region22: #{_lambda_.55} parent=0
    _
  %s6 = ssub.s32 1, %s4
  %s7 = scalar_select 0, %s6, %s4
  // Predicated region
  $region2: #{_lambda_.55} parent=0 // pred_check
    _
  $region3: #{_lambda_.55} parent=0 // pred_check_branch
    %9 = sbr.rel (0) target = $region5
  $region4: #{_lambda_.55} parent=0 // pred_region
    _
  $region5: #{_lambda_.55} parent=0 // pred_fallthru
    _
  // Predicated region
  $region6: #{_lambda_.55} parent=0 // pred_check
    _
  $region7: #{_lambda_.55} parent=0 // pred_check_branch
    %11 = sbr.rel (0) target = $region9
  $region8: #{_lambda_.55} parent=0 // pred_region
    _
  $region9: #{_lambda_.55} parent=0 // pred_fallthru
    _
  // Predicated region
  $region10: #{_lambda_.55} parent=0 // pred_check
    _
  $region11: #{_lambda_.55} parent=0 // pred_check_branch
    %13 = sbr.rel (0) target = $region13
  $region12: #{_lambda_.55} parent=0 // pred_region
    _
  $region13: #{_lambda_.55} parent=0 // pred_fallthru
    _
  %v15 = vld [vmem:[%s0] sm:$0xf]
  %v16 = vld [vmem:[%s0 + $0x4] sm:$0xf]
  %v17 = vld [vmem:[%s1] sm:$0xf]
  %v18 = vld [vmem:[%s1 + $0x4] sm:$0xf]
  %v19 = vld [vmem:[%s1 + $0x8] sm:$0xf]
  %v20 = vld [vmem:[%s1 + $0xc] sm:$0xf]
  %v21 = vld [vmem:[%s1 + $0x10] sm:$0xf]
  %v22 = vld [vmem:[%s1 + $0x14] sm:$0xf]
  %v23 = vld [vmem:[%s1 + $0x18] sm:$0xf]
  %v24 = vld [vmem:[%s1 + $0x1c] sm:$0xf]
  %v25 = vld [vmem:[%s2] sm:$0xff]
  %v26 = vld [vmem:[%s2 + $0x8] sm:$0xff]
  %28 = vset.pattern.permute.xlu0 0
  %29 = vperm.xlu0 %28, %v25
  %v30 = vpop.permute.xlu0 %29
  %33 = vset.pattern.permute.xlu0 0
  %34 = vperm.xlu0 %33, %v26
  %v35 = vpop.permute.xlu0 %34
  %v39 = vunpack.c.l.b16 %v15
  %v40 = vunpack.c.l.b16 %v16
  %v41 = vpack.c.b16 %v40, %v39
  %v50 = vunpack.c.l.b16 %v17
  %v51 = vunpack.c.l.b16 %v18
  %v52 = vunpack.c.l.b16 %v19
  %v53 = vunpack.c.l.b16 %v20
  %v54 = vunpack.c.l.b16 %v21
  %v55 = vunpack.c.l.b16 %v22
  %v56 = vunpack.c.l.b16 %v23
  %v57 = vunpack.c.l.b16 %v24
  %v58 = vpack.c.b16 %v51, %v50
  %v59 = vpack.c.b16 %v53, %v52
  %v60 = vpack.c.b16 %v55, %v54
  %v61 = vpack.c.b16 %v57, %v56
  %vm66 = vcmask 523264
  %v68 = vsel %vm66, %v41, 0
  %70 = vmatprep.subr.bf16.mxu0 0
  %71 = vmatpush1.bf16.msra.mxu0 0
  %72 = vmatprep.subr.bf16.mxu0 0
  %73 = vmatpush1.bf16.msra.mxu0 0
  %74 = vmatprep.subr.bf16.mxu0 0
  %75 = vmatpush1.bf16.msra.mxu0 0
  %76 = vmatprep.subr.bf16.mxu0 0
  %77 = vmatpush1.bf16.msra.mxu0 0
  %78 = vmatprep.subr.bf16.mxu0 0
  %79 = vmatpush1.bf16.msra.mxu0 %v61
  %80 = vmatprep.subr.bf16.mxu0 0
  %81 = vmatpush1.bf16.msra.mxu0 %v60
  %82 = vmatprep.subr.bf16.mxu0 0
  %83 = vmatpush1.bf16.msra.mxu0 %v59
  %84 = vmatprep.subr.bf16.mxu0 0
  %85 = vmatpush1.bf16.msra.mxu0 %v58
  %86 = vmatprep.subr.bf16.mxu0 0
  %87 = vmatpush2.bf16.msra.mxu0 0
  %88 = vmatprep.subr.bf16.mxu0 0
  %89 = vmatpush2.bf16.msra.mxu0 0
  %90 = vmatprep.subr.bf16.mxu0 0
  %91 = vmatpush2.bf16.msra.mxu0 0
  %92 = vmatprep.subr.bf16.mxu0 0
  %93 = vmatpush2.bf16.msra.mxu0 0
  %94 = vmatprep.subr.bf16.mxu0 0
  %95 = vmatpush2.bf16.msra.mxu0 0
  %96 = vmatprep.subr.bf16.mxu0 0
  %97 = vmatpush2.bf16.msra.mxu0 0
  %98 = vmatprep.subr.bf16.mxu0 0
  %99 = vmatpush2.bf16.msra.mxu0 0
  %100 = vmatprep.subr.bf16.mxu0 0
  %101 = vmatpush2.bf16.msra.mxu0 0
  %102 = vmatprep.mubr.bf16.mxu0 0
  %103 = vmatmul.mubr.bf16.gmra.mxu0 %v68
  %v104 = vpop.f32.mrf.mxu0
  %v105 = vadd.f32 %v30, %v104
  %v106 = vpop.f32.mrf.mxu0
  %v107 = vpop.f32.mrf.mxu0
  %v108 = vadd.f32 %v35, %v107
  %v109 = vpop.f32.mrf.mxu0
  %110 = vdwg.mxu0
  %v111 = vmax.f32 %v105, 0.0
  %v112 = vmax.f32 %v108, 0.0
  %v113 = vpack.c.bf16 %v112, %v111
  %v115 = vunpack.c.l.b16 %v113
  %v116 = vunpack.c.h.b16 %v113
  %v117 = vpack.c.b16 %v115, %v115
  %v118 = vpack.c.b16 %v116, %v116
  %121 = vst [vmem:[%s3] sm:$0xf] %v117
  %122 = vst [vmem:[%s3 + $0x4] sm:$0xf] %v118
  // Predicated region
  $region14: #{_lambda_.55} parent=0 // pred_check
    _
  $region15: #{_lambda_.55} parent=0 // pred_check_branch
    %124 = sbr.rel (0) target = $region17
  $region16: #{_lambda_.55} parent=0 // pred_region
    _
  $region17: #{_lambda_.55} parent=0 // pred_fallthru
    _
  // Predicated region
  $region18: #{_lambda_.55} parent=0 // pred_check
    _
  $region19: #{_lambda_.55} parent=0 // pred_check_branch
    %126 = sbr.rel (0) target = $region21
  $region20: #{_lambda_.55} parent=0 // pred_region
    _
  $region21: #{_lambda_.55} parent=0 // pred_fallthru
    _

// kernel: _lambda_.41
$region0: #{_lambda_.41}
  #allocation0 [shape = 'u32[]', space=smem, size = 0x4, offset = 0x4, fixed_abs, tag = 'smem constant byte address 0x4 - core index']
  #allocation1 [shape = 'u32[144,128]{1,0:T(1,128)}', space=vmem, size = 0x12000, scoped, tag = 'internal scratch']
  %s0 = inlined_call_operand.vmem [shape: bf16[64,576], index: 0, kind: input, shape index: {}]
  %s1 = inlined_call_operand.vmem [shape: bf16[576,128], index: 1, kind: input, shape index: {}]
  %s2 = inlined_call_operand.vmem [shape: f32[64,1], index: 2, kind: input, shape index: {}]
  %s3 = inlined_call_operand.vmem [shape: bf16[64,128], index: 3, kind: output, shape index: {}]
  %s4 = sld [smem:[#allocation0]]
  $region22: #{_lambda_.41} parent=0
    _
  %s6 = ssub.s32 1, %s4
  %s7 = scalar_select 0, %s6, %s4
  // Predicated region
  $region2: #{_lambda_.41} parent=0 // pred_check
    _
  $region3: #{_lambda_.41} parent=0 // pred_check_branch
    %9 = sbr.rel (0) target = $region5
  $region4: #{_lambda_.41} parent=0 // pred_region
    _
  $region5: #{_lambda_.41} parent=0 // pred_fallthru
    _
  // Predicated region
  $region6: #{_lambda_.41} parent=0 // pred_check
    _
  $region7: #{_lambda_.41} parent=0 // pred_check_branch
    %11 = sbr.rel (0) target = $region9
  $region8: #{_lambda_.41} parent=0 // pred_region
    _
  $region9: #{_lambda_.41} parent=0 // pred_fallthru
    _
  // Predicated region
  $region10: #{_lambda_.41} parent=0 // pred_check
    _
  $region11: #{_lambda_.41} parent=0 // pred_check_branch
    %13 = sbr.rel (0) target = $region13
  $region12: #{_lambda_.41} parent=0 // pred_region
    _
  $region13: #{_lambda_.41} parent=0 // pred_fallthru
    _
  %v15 = vld [vmem:[%s0] sm:$0xff]
  %v16 = vld [vmem:[%s0 + $0x8] sm:$0xff]
  %v17 = vld [vmem:[%s0 + $0x10] sm:$0xf]
  %v18 = vld [vmem:[%s0 + $0x14] sm:$0xff]
  %v19 = vld [vmem:[%s0 + $0x1c] sm:$0xff]
  %v20 = vld [vmem:[%s0 + $0x24] sm:$0xf]
  %v21 = vld [vmem:[%s0 + $0x28] sm:$0xff]
  %v22 = vld [vmem:[%s0 + $0x30] sm:$0xff]
  %v23 = vld [vmem:[%s0 + $0x38] sm:$0xf]
  %v24 = vld [vmem:[%s0 + $0x3c] sm:$0xff]
  %v25 = vld [vmem:[%s0 + $0x44] sm:$0xff]
  %v26 = vld [vmem:[%s0 + $0x4c] sm:$0xf]
  %v27 = vld [vmem:[%s0 + $0x50] sm:$0xff]
  %v28 = vld [vmem:[%s0 + $0x58] sm:$0xff]
  %v29 = vld [vmem:[%s0 + $0x60] sm:$0xf]
  %v30 = vld [vmem:[%s0 + $0x64] sm:$0xff]
  %v31 = vld [vmem:[%s0 + $0x6c] sm:$0xff]
  %v32 = vld [vmem:[%s0 + $0x74] sm:$0xf]
  %v33 = vld [vmem:[%s0 + $0x78] sm:$0xff]
  %v34 = vld [vmem:[%s0 + $0x80] sm:$0xff]
  %v35 = vld [vmem:[%s0 + $0x88] sm:$0xf]
  %v36 = vld [vmem:[%s0 + $0x8c] sm:$0xff]
  %v37 = vld [vmem:[%s0 + $0x94] sm:$0xff]
  %v38 = vld [vmem:[%s0 + $0x9c] sm:$0xf]
  %v39 = vld [vmem:[%s1] sm:$0xf]
  %v40 = vld [vmem:[%s1 + $0x4] sm:$0xf]
  %v41 = vld [vmem:[%s1 + $0x8] sm:$0xf]
  %v42 = vld [vmem:[%s1 + $0xc] sm:$0xf]
  %v43 = vld [vmem:[%s1 + $0x10] sm:$0xf]
  %v44 = vld [vmem:[%s1 + $0x14] sm:$0xf]
  %v45 = vld [vmem:[%s1 + $0x18] sm:$0xf]
  %v46 = vld [vmem:[%s1 + $0x1c] sm:$0xf]
  %v47 = vld [vmem:[%s1 + $0x20] sm:$0xf]
  %v48 = vld [vmem:[%s1 + $0x24] sm:$0xf]
  %v49 = vld [vmem:[%s1 + $0x28] sm:$0xf]
  %v50 = vld [vmem:[%s1 + $0x2c] sm:$0xf]
  %v51 = vld [vmem:[%s1 + $0x30] sm:$0xf]
  %v52 = vld [vmem:[%s1 + $0x34] sm:$0xf]
  %v53 = vld [vmem:[%s1 + $0x38] sm:$0xf]
  %v54 = vld [vmem:[%s1 + $0x3c] sm:$0xf]
  %v55 = vld [vmem:[%s1 + $0x40] sm:$0xf]
  %v56 = vld [vmem:[%s1 + $0x44] sm:$0xf]
  %v57 = vld [vmem:[%s1 + $0x48] sm:$0xf]
  %v58 = vld [vmem:[%s1 + $0x4c] sm:$0xf]
  %v59 = vld [vmem:[%s1 + $0x50] sm:$0xf]
  %v60 = vld [vmem:[%s1 + $0x54] sm:$0xf]
  %v61 = vld [vmem:[%s1 + $0x58] sm:$0xf]
  %v62 = vld [vmem:[%s1 + $0x5c] sm:$0xf]
  %v63 = vld [vmem:[%s1 + $0x60] sm:$0xf]
  %v64 = vld [vmem:[%s1 + $0x64] sm:$0xf]
  %v65 = vld [vmem:[%s1 + $0x68] sm:$0xf]
  %v66 = vld [vmem:[%s1 + $0x6c] sm:$0xf]
  %v67 = vld [vmem:[%s1 + $0x70] sm:$0xf]
  %v68 = vld [vmem:[%s1 + $0x74] sm:$0xf]
  %v69 = vld [vmem:[%s1 + $0x78] sm:$0xf]
  %v70 = vld [vmem:[%s1 + $0x7c] sm:$0xf]
  %v71 = vld [vmem:[%s1 + $0x80] sm:$0xf]
  %v72 = vld [vmem:[%s1 + $0x84] sm:$0xf]
  %v73 = vld [vmem:[%s1 + $0x88] sm:$0xf]
  %v74 = vld [vmem:[%s1 + $0x8c] sm:$0xf]
  %v75 = vld [vmem:[%s1 + $0x90] sm:$0xf]
  %v76 = vld [vmem:[%s1 + $0x94] sm:$0xf]
  %v77 = vld [vmem:[%s1 + $0x98] sm:$0xf]
  %v78 = vld [vmem:[%s1 + $0x9c] sm:$0xf]
  %v79 = vld [vmem:[%s1 + $0xa0] sm:$0xf]
  %v80 = vld [vmem:[%s1 + $0xa4] sm:$0xf]
  %v81 = vld [vmem:[%s1 + $0xa8] sm:$0xf]
  %v82 = vld [vmem:[%s1 + $0xac] sm:$0xf]
  %v83 = vld [vmem:[%s1 + $0xb0] sm:$0xf]
  %v84 = vld [vmem:[%s1 + $0xb4] sm:$0xf]
  %v85 = vld [vmem:[%s1 + $0xb8] sm:$0xf]
  %v86 = vld [vmem:[%s1 + $0xbc] sm:$0xf]
  %v87 = vld [vmem:[%s1 + $0xc0] sm:$0xf]
  %v88 = vld [vmem:[%s1 + $0xc4] sm:$0xf]
  %v89 = vld [vmem:[%s1 + $0xc8] sm:$0xf]
  %v90 = vld [vmem:[%s1 + $0xcc] sm:$0xf]
  %v91 = vld [vmem:[%s1 + $0xd0] sm:$0xf]
  %v92 = vld [vmem:[%s1 + $0xd4] sm:$0xf]
  %v93 = vld [vmem:[%s1 + $0xd8] sm:$0xf]
  %v94 = vld [vmem:[%s1 + $0xdc] sm:$0xf]
  %v95 = vld [vmem:[%s1 + $0xe0] sm:$0xf]
  %v96 = vld [vmem:[%s1 + $0xe4] sm:$0xf]
  %v97 = vld [vmem:[%s1 + $0xe8] sm:$0xf]
  %v98 = vld [vmem:[%s1 + $0xec] sm:$0xf]
  %v99 = vld [vmem:[%s1 + $0xf0] sm:$0xf]
  %v100 = vld [vmem:[%s1 + $0xf4] sm:$0xf]
  %v101 = vld [vmem:[%s1 + $0xf8] sm:$0xf]
  %v102 = vld [vmem:[%s1 + $0xfc] sm:$0xf]
  %v103 = vld [vmem:[%s1 + $0x100] sm:$0xf]
  %v104 = vld [vmem:[%s1 + $0x104] sm:$0xf]
  %v105 = vld [vmem:[%s1 + $0x108] sm:$0xf]
  %v106 = vld [vmem:[%s1 + $0x10c] sm:$0xf]
  %v107 = vld [vmem:[%s1 + $0x110] sm:$0xf]
  %v108 = vld [vmem:[%s1 + $0x114] sm:$0xf]
  %v109 = vld [vmem:[%s1 + $0x118] sm:$0xf]
  %v110 = vld [vmem:[%s1 + $0x11c] sm:$0xf]
  %v111 = vld [vmem:[%s2] sm:$0xff]
  %v112 = vld [vmem:[%s2 + $0x8] sm:$0xff]
  %v113 = vld [vmem:[%s2 + $0x10] sm:$0xff]
  %v114 = vld [vmem:[%s2 + $0x18] sm:$0xff]
  %v115 = vld [vmem:[%s2 + $0x20] sm:$0xff]
  %v116 = vld [vmem:[%s2 + $0x28] sm:$0xff]
  %v117 = vld [vmem:[%s2 + $0x30] sm:$0xff]
  %v118 = vld [vmem:[%s2 + $0x38] sm:$0xff]
  %120 = vset.pattern.permute.xlu0 0
  %121 = vperm.xlu0 %120, %v111
  %v122 = vpop.permute.xlu0 %121
  %125 = vset.pattern.permute.xlu0 0
  %126 = vperm.xlu0 %125, %v112
  %v127 = vpop.permute.xlu0 %126
  %130 = vset.pattern.permute.xlu0 0
  %131 = vperm.xlu0 %130, %v113
  %v132 = vpop.permute.xlu0 %131
  %135 = vset.pattern.permute.xlu0 0
  %136 = vperm.xlu0 %135, %v114
  %v137 = vpop.permute.xlu0 %136
  %140 = vset.pattern.permute.xlu0 0
  %141 = vperm.xlu0 %140, %v115
  %v142 = vpop.permute.xlu0 %141
  %145 = vset.pattern.permute.xlu0 0
  %146 = vperm.xlu0 %145, %v116
  %v147 = vpop.permute.xlu0 %146
  %150 = vset.pattern.permute.xlu0 0
  %151 = vperm.xlu0 %150, %v117
  %v152 = vpop.permute.xlu0 %151
  %155 = vset.pattern.permute.xlu0 0
  %156 = vperm.xlu0 %155, %v118
  %v157 = vpop.permute.xlu0 %156
  %v183 = vunpack.c.l.b16 %v15
  %v184 = vunpack.c.h.b16 %v15
  %v185 = vunpack.c.l.b16 %v16
  %v186 = vunpack.c.h.b16 %v16
  %v187 = vunpack.c.l.b16 %v17
  %v188 = vunpack.c.l.b16 %v18
  %v189 = vunpack.c.h.b16 %v18
  %v190 = vunpack.c.l.b16 %v19
  %v191 = vunpack.c.h.b16 %v19
  %v192 = vunpack.c.l.b16 %v20
  %v193 = vunpack.c.l.b16 %v21
  %v194 = vunpack.c.h.b16 %v21
  %v195 = vunpack.c.l.b16 %v22
  %v196 = vunpack.c.h.b16 %v22
  %v197 = vunpack.c.l.b16 %v23
  %v198 = vunpack.c.l.b16 %v24
  %v199 = vunpack.c.h.b16 %v24
  %v200 = vunpack.c.l.b16 %v25
  %v201 = vunpack.c.h.b16 %v25
  %v202 = vunpack.c.l.b16 %v26
  %v203 = vunpack.c.l.b16 %v27
  %v204 = vunpack.c.h.b16 %v27
  %v205 = vunpack.c.l.b16 %v28
  %v206 = vunpack.c.h.b16 %v28
  %v207 = vunpack.c.l.b16 %v29
  %v208 = vunpack.c.l.b16 %v30
  %v209 = vunpack.c.h.b16 %v30
  %v210 = vunpack.c.l.b16 %v31
  %v211 = vunpack.c.h.b16 %v31
  %v212 = vunpack.c.l.b16 %v32
  %v213 = vunpack.c.l.b16 %v33
  %v214 = vunpack.c.h.b16 %v33
  %v215 = vunpack.c.l.b16 %v34
  %v216 = vunpack.c.h.b16 %v34
  %v217 = vunpack.c.l.b16 %v35
  %v218 = vunpack.c.l.b16 %v36
  %v219 = vunpack.c.h.b16 %v36
  %v220 = vunpack.c.l.b16 %v37
  %v221 = vunpack.c.h.b16 %v37
  %v222 = vunpack.c.l.b16 %v38
  %v223 = vpack.c.b16 %v188, %v183
  %v224 = vpack.c.b16 %v189, %v184
  %v225 = vpack.c.b16 %v190, %v185
  %v226 = vpack.c.b16 %v191, %v186
  %v227 = vpack.c.b16 %v192, %v187
  %v228 = vpack.c.b16 %v198, %v193
  %v229 = vpack.c.b16 %v199, %v194
  %v230 = vpack.c.b16 %v200, %v195
  %v231 = vpack.c.b16 %v201, %v196
  %v232 = vpack.c.b16 %v202, %v197
  %v233 = vpack.c.b16 %v208, %v203
  %v234 = vpack.c.b16 %v209, %v204
  %v235 = vpack.c.b16 %v210, %v205
  %v236 = vpack.c.b16 %v211, %v206
  %v237 = vpack.c.b16 %v212, %v207
  %v238 = vpack.c.b16 %v218, %v213
  %v239 = vpack.c.b16 %v219, %v214
  %v240 = vpack.c.b16 %v220, %v215
  %v241 = vpack.c.b16 %v221, %v216
  %v242 = vpack.c.b16 %v222, %v217
  %v331 = vunpack.c.l.b16 %v39
  %v332 = vunpack.c.l.b16 %v40
  %v333 = vunpack.c.l.b16 %v41
  %v334 = vunpack.c.l.b16 %v42
  %v335 = vunpack.c.l.b16 %v43
  %v336 = vunpack.c.l.b16 %v44
  %v337 = vunpack.c.l.b16 %v45
  %v338 = vunpack.c.l.b16 %v46
  %v339 = vunpack.c.l.b16 %v47
  %v340 = vunpack.c.l.b16 %v48
  %v341 = vunpack.c.l.b16 %v49
  %v342 = vunpack.c.l.b16 %v50
  %v343 = vunpack.c.l.b16 %v51
  %v344 = vunpack.c.l.b16 %v52
  %v345 = vunpack.c.l.b16 %v53
  %v346 = vunpack.c.l.b16 %v54
  %v347 = vunpack.c.l.b16 %v55
  %v348 = vunpack.c.l.b16 %v56
  %v349 = vunpack.c.l.b16 %v57
  %v350 = vunpack.c.l.b16 %v58
  %v351 = vunpack.c.l.b16 %v59
  %v352 = vunpack.c.l.b16 %v60
  %v353 = vunpack.c.l.b16 %v61
  %v354 = vunpack.c.l.b16 %v62
  %v355 = vunpack.c.l.b16 %v63
  %v356 = vunpack.c.l.b16 %v64
  %v357 = vunpack.c.l.b16 %v65
  %v358 = vunpack.c.l.b16 %v66
  %v359 = vunpack.c.l.b16 %v67
  %v360 = vunpack.c.l.b16 %v68
  %v361 = vunpack.c.l.b16 %v69
  %v362 = vunpack.c.l.b16 %v70
  %v363 = vunpack.c.l.b16 %v71
  %v364 = vunpack.c.l.b16 %v72
  %v365 = vunpack.c.l.b16 %v73
  %v366 = vunpack.c.l.b16 %v74
  %v367 = vunpack.c.l.b16 %v75
  %v368 = vunpack.c.l.b16 %v76
  %v369 = vunpack.c.l.b16 %v77
  %v370 = vunpack.c.l.b16 %v78
  %v371 = vunpack.c.l.b16 %v79
  %v372 = vunpack.c.l.b16 %v80
  %v373 = vunpack.c.l.b16 %v81
  %v374 = vunpack.c.l.b16 %v82
  %v375 = vunpack.c.l.b16 %v83
  %v376 = vunpack.c.l.b16 %v84
  %v377 = vunpack.c.l.b16 %v85
  %v378 = vunpack.c.l.b16 %v86
  %v379 = vunpack.c.l.b16 %v87
  %v380 = vunpack.c.l.b16 %v88
  %v381 = vunpack.c.l.b16 %v89
  %v382 = vunpack.c.l.b16 %v90
  %v383 = vunpack.c.l.b16 %v91
  %v384 = vunpack.c.l.b16 %v92
  %v385 = vunpack.c.l.b16 %v93
  %v386 = vunpack.c.l.b16 %v94
  %v387 = vunpack.c.l.b16 %v95
  %v388 = vunpack.c.l.b16 %v96
  %v389 = vunpack.c.l.b16 %v97
  %v390 = vunpack.c.l.b16 %v98
  %v391 = vunpack.c.l.b16 %v99
  %v392 = vunpack.c.l.b16 %v100
  %v393 = vunpack.c.l.b16 %v101
  %v394 = vunpack.c.l.b16 %v102
  %v395 = vunpack.c.l.b16 %v103
  %v396 = vunpack.c.l.b16 %v104
  %v397 = vunpack.c.l.b16 %v105
  %v398 = vunpack.c.l.b16 %v106
  %v399 = vunpack.c.l.b16 %v107
  %v400 = vunpack.c.l.b16 %v108
  %v401 = vunpack.c.l.b16 %v109
  %v402 = vunpack.c.l.b16 %v110
  %v403 = vpack.c.b16 %v332, %v331
  %v404 = vpack.c.b16 %v334, %v333
  %v405 = vpack.c.b16 %v336, %v335
  %v406 = vpack.c.b16 %v338, %v337
  %v407 = vpack.c.b16 %v340, %v339
  %v408 = vpack.c.b16 %v342, %v341
  %v409 = vpack.c.b16 %v344, %v343
  %v410 = vpack.c.b16 %v346, %v345
  %v411 = vpack.c.b16 %v348, %v347
  %v412 = vpack.c.b16 %v350, %v349
  %v413 = vpack.c.b16 %v352, %v351
  %v414 = vpack.c.b16 %v354, %v353
  %v415 = vpack.c.b16 %v356, %v355
  %v416 = vpack.c.b16 %v358, %v357
  %v417 = vpack.c.b16 %v360, %v359
  %v418 = vpack.c.b16 %v362, %v361
  %v419 = vpack.c.b16 %v364, %v363
  %v420 = vpack.c.b16 %v366, %v365
  %v421 = vpack.c.b16 %v368, %v367
  %v422 = vpack.c.b16 %v370, %v369
  %v423 = vpack.c.b16 %v372, %v371
  %v424 = vpack.c.b16 %v374, %v373
  %v425 = vpack.c.b16 %v376, %v375
  %v426 = vpack.c.b16 %v378, %v377
  %v427 = vpack.c.b16 %v380, %v379
  %v428 = vpack.c.b16 %v382, %v381
  %v429 = vpack.c.b16 %v384, %v383
  %v430 = vpack.c.b16 %v386, %v385
  %v431 = vpack.c.b16 %v388, %v387
  %v432 = vpack.c.b16 %v390, %v389
  %v433 = vpack.c.b16 %v392, %v391
  %v434 = vpack.c.b16 %v394, %v393
  %v435 = vpack.c.b16 %v396, %v395
  %v436 = vpack.c.b16 %v398, %v397
  %v437 = vpack.c.b16 %v400, %v399
  %v438 = vpack.c.b16 %v402, %v401
  %vm475 = vcmask 523264
  %v477 = vsel %vm475, %v227, 0
  %v480 = vsel %vm475, %v232, 0
  %v483 = vsel %vm475, %v237, 0
  %v486 = vsel %vm475, %v242, 0
  %488 = vmatprep.subr.bf16.mxu0 0
  %489 = vmatpush1.bf16.msra.mxu0 %v410
  %490 = vmatprep.subr.bf16.mxu0 0
  %491 = vmatpush1.bf16.msra.mxu0 %v409
  %492 = vmatprep.subr.bf16.mxu0 0
  %493 = vmatpush1.bf16.msra.mxu0 %v408
  %494 = vmatprep.subr.bf16.mxu0 0
  %495 = vmatpush1.bf16.msra.mxu0 %v407
  %496 = vmatprep.subr.bf16.mxu0 0
  %497 = vmatpush1.bf16.msra.mxu0 %v406
  %498 = vmatprep.subr.bf16.mxu0 0
  %499 = vmatpush1.bf16.msra.mxu0 %v405
  %500 = vmatprep.subr.bf16.mxu0 0
  %501 = vmatpush1.bf16.msra.mxu0 %v404
  %502 = vmatprep.subr.bf16.mxu0 0
  %503 = vmatpush1.bf16.msra.mxu0 %v403
  %504 = vmatprep.subr.bf16.mxu0 0
  %505 = vmatpush2.bf16.msra.mxu0 %v418
  %506 = vmatprep.subr.bf16.mxu0 0
  %507 = vmatpush2.bf16.msra.mxu0 %v417
  %508 = vmatprep.subr.bf16.mxu0 0
  %509 = vmatpush2.bf16.msra.mxu0 %v416
  %510 = vmatprep.subr.bf16.mxu0 0
  %511 = vmatpush2.bf16.msra.mxu0 %v415
  %512 = vmatprep.subr.bf16.mxu0 0
  %513 = vmatpush2.bf16.msra.mxu0 %v414
  %514 = vmatprep.subr.bf16.mxu0 0
  %515 = vmatpush2.bf16.msra.mxu0 %v413
  %516 = vmatprep.subr.bf16.mxu0 0
  %517 = vmatpush2.bf16.msra.mxu0 %v412
  %518 = vmatprep.subr.bf16.mxu0 0
  %519 = vmatpush2.bf16.msra.mxu0 %v411
  %520 = vmatprep.mubr.bf16.mxu0 %v224
  %521 = vmatmul.mubr.bf16.gmra.mxu0 %v223
  %v522 = vpop.f32.mrf.mxu0
  %v523 = vadd.f32 %v122, %v522
  %v524 = vpop.f32.mrf.mxu0
  %v525 = vpop.f32.mrf.mxu0
  %v526 = vadd.f32 %v127, %v525
  %v527 = vpop.f32.mrf.mxu0
  %528 = vmatprep.mubr.bf16.mxu0 %v229
  %529 = vmatmul.mubr.bf16.gmra.mxu0 %v228
  %v530 = vpop.f32.mrf.mxu0
  %v531 = vadd.f32 %v132, %v530
  %v532 = vpop.f32.mrf.mxu0
  %v533 = vpop.f32.mrf.mxu0
  %v534 = vadd.f32 %v137, %v533
  %v535 = vpop.f32.mrf.mxu0
  %536 = vmatprep.mubr.bf16.mxu0 %v234
  %537 = vmatmul.mubr.bf16.gmra.mxu0 %v233
  %v538 = vpop.f32.mrf.mxu0
  %v539 = vadd.f32 %v142, %v538
  %v540 = vpop.f32.mrf.mxu0
  %v541 = vpop.f32.mrf.mxu0
  %v542 = vadd.f32 %v147, %v541
  %v543 = vpop.f32.mrf.mxu0
  %544 = vmatprep.mubr.bf16.mxu0 %v239
  %545 = vmatmul.mubr.bf16.gmra.mxu0 %v238
  %v546 = vpop.f32.mrf.mxu0
  %v547 = vadd.f32 %v152, %v546
  %v548 = vpop.f32.mrf.mxu0
  %v549 = vpop.f32.mrf.mxu0
  %v550 = vadd.f32 %v157, %v549
  %v551 = vpop.f32.mrf.mxu0
  %552 = vdwg.mxu0
  %553 = vmatprep.subr.bf16.mxu0 0
  %554 = vmatpush1.bf16.msra.mxu0 %v426
  %555 = vmatprep.subr.bf16.mxu0 0
  %556 = vmatpush1.bf16.msra.mxu0 %v425
  %557 = vmatprep.subr.bf16.mxu0 0
  %558 = vmatpush1.bf16.msra.mxu0 %v424
  %559 = vmatprep.subr.bf16.mxu0 0
  %560 = vmatpush1.bf16.msra.mxu0 %v423
  %561 = vmatprep.subr.bf16.mxu0 0
  %562 = vmatpush1.bf16.msra.mxu0 %v422
  %563 = vmatprep.subr.bf16.mxu0 0
  %564 = vmatpush1.bf16.msra.mxu0 %v421
  %565 = vmatprep.subr.bf16.mxu0 0
  %566 = vmatpush1.bf16.msra.mxu0 %v420
  %567 = vmatprep.subr.bf16.mxu0 0
  %568 = vmatpush1.bf16.msra.mxu0 %v419
  %569 = vmatprep.subr.bf16.mxu0 0
  %570 = vmatpush2.bf16.msra.mxu0 %v434
  %571 = vmatprep.subr.bf16.mxu0 0
  %572 = vmatpush2.bf16.msra.mxu0 %v433
  %573 = vmatprep.subr.bf16.mxu0 0
  %574 = vmatpush2.bf16.msra.mxu0 %v432
  %575 = vmatprep.subr.bf16.mxu0 0
  %576 = vmatpush2.bf16.msra.mxu0 %v431
  %577 = vmatprep.subr.bf16.mxu0 0
  %578 = vmatpush2.bf16.msra.mxu0 %v430
  %579 = vmatprep.subr.bf16.mxu0 0
  %580 = vmatpush2.bf16.msra.mxu0 %v429
  %581 = vmatprep.subr.bf16.mxu0 0
  %582 = vmatpush2.bf16.msra.mxu0 %v428
  %583 = vmatprep.subr.bf16.mxu0 0
  %584 = vmatpush2.bf16.msra.mxu0 %v427
  %585 = vmatprep.mubr.bf16.mxu0 %v226
  %586 = vmatmul.mubr.bf16.gmra.mxu0 %v225
  %v587 = vpop.f32.mrf.mxu0
  %v588 = vadd.f32 %v523, %v587
  %v589 = vpop.f32.mrf.mxu0
  %v590 = vpop.f32.mrf.mxu0
  %v591 = vadd.f32 %v526, %v590
  %v592 = vpop.f32.mrf.mxu0
  %593 = vmatprep.mubr.bf16.mxu0 %v231
  %594 = vmatmul.mubr.bf16.gmra.mxu0 %v230
  %v595 = vpop.f32.mrf.mxu0
  %v596 = vadd.f32 %v531, %v595
  %v597 = vpop.f32.mrf.mxu0
  %v598 = vpop.f32.mrf.mxu0
  %v599 = vadd.f32 %v534, %v598
  %v600 = vpop.f32.mrf.mxu0
  %601 = vmatprep.mubr.bf16.mxu0 %v236
  %602 = vmatmul.mubr.bf16.gmra.mxu0 %v235
  %v603 = vpop.f32.mrf.mxu0
  %v604 = vadd.f32 %v539, %v603
  %v605 = vpop.f32.mrf.mxu0
  %v606 = vpop.f32.mrf.mxu0
  %v607 = vadd.f32 %v542, %v606
  %v608 = vpop.f32.mrf.mxu0
  %609 = vmatprep.mubr.bf16.mxu0 %v241
  %610 = vmatmul.mubr.bf16.gmra.mxu0 %v240
  %v611 = vpop.f32.mrf.mxu0
  %v612 = vadd.f32 %v547, %v611
  %v613 = vpop.f32.mrf.mxu0
  %v614 = vpop.f32.mrf.mxu0
  %v615 = vadd.f32 %v550, %v614
  %v616 = vpop.f32.mrf.mxu0
  %617 = vdwg.mxu0
  %618 = vmatprep.subr.bf16.mxu0 0
  %619 = vmatpush1.bf16.msra.mxu0 0
  %620 = vmatprep.subr.bf16.mxu0 0
  %621 = vmatpush1.bf16.msra.mxu0 0
  %622 = vmatprep.subr.bf16.mxu0 0
  %623 = vmatpush1.bf16.msra.mxu0 0
  %624 = vmatprep.subr.bf16.mxu0 0
  %625 = vmatpush1.bf16.msra.mxu0 0
  %626 = vmatprep.subr.bf16.mxu0 0
  %627 = vmatpush1.bf16.msra.mxu0 %v438
  %628 = vmatprep.subr.bf16.mxu0 0
  %629 = vmatpush1.bf16.msra.mxu0 %v437
  %630 = vmatprep.subr.bf16.mxu0 0
  %631 = vmatpush1.bf16.msra.mxu0 %v436
  %632 = vmatprep.subr.bf16.mxu0 0
  %633 = vmatpush1.bf16.msra.mxu0 %v435
  %634 = vmatprep.subr.bf16.mxu0 0
  %635 = vmatpush2.bf16.msra.mxu0 0
  %636 = vmatprep.subr.bf16.mxu0 0
  %637 = vmatpush2.bf16.msra.mxu0 0
  %638 = vmatprep.subr.bf16.mxu0 0
  %639 = vmatpush2.bf16.msra.mxu0 0
  %640 = vmatprep.subr.bf16.mxu0 0
  %641 = vmatpush2.bf16.msra.mxu0 0
  %642 = vmatprep.subr.bf16.mxu0 0
  %643 = vmatpush2.bf16.msra.mxu0 0
  %644 = vmatprep.subr.bf16.mxu0 0
  %645 = vmatpush2.bf16.msra.mxu0 0
  %646 = vmatprep.subr.bf16.mxu0 0
  %647 = vmatpush2.bf16.msra.mxu0 0
  %648 = vmatprep.subr.bf16.mxu0 0
  %649 = vmatpush2.bf16.msra.mxu0 0
  %650 = vmatprep.mubr.bf16.mxu0 0
  %651 = vmatmul.mubr.bf16.gmra.mxu0 %v477
  %v652 = vpop.f32.mrf.mxu0
  %v653 = vadd.f32 %v588, %v652
  %v654 = vpop.f32.mrf.mxu0
  %v655 = vpop.f32.mrf.mxu0
  %v656 = vadd.f32 %v591, %v655
  %v657 = vpop.f32.mrf.mxu0
  %658 = vmatprep.mubr.bf16.mxu0 0
  %659 = vmatmul.mubr.bf16.gmra.mxu0 %v480
  %v660 = vpop.f32.mrf.mxu0
  %v661 = vadd.f32 %v596, %v660
  %v662 = vpop.f32.mrf.mxu0
  %v663 = vpop.f32.mrf.mxu0
  %v664 = vadd.f32 %v599, %v663
  %v665 = vpop.f32.mrf.mxu0
  %666 = vmatprep.mubr.bf16.mxu0 0
  %667 = vmatmul.mubr.bf16.gmra.mxu0 %v483
  %v668 = vpop.f32.mrf.mxu0
  %v669 = vadd.f32 %v604, %v668
  %v670 = vpop.f32.mrf.mxu0
  %v671 = vpop.f32.mrf.mxu0
  %v672 = vadd.f32 %v607, %v671
  %v673 = vpop.f32.mrf.mxu0
  %674 = vmatprep.mubr.bf16.mxu0 0
  %675 = vmatmul.mubr.bf16.gmra.mxu0 %v486
  %v676 = vpop.f32.mrf.mxu0
  %v677 = vadd.f32 %v612, %v676
  %v678 = vpop.f32.mrf.mxu0
  %v679 = vpop.f32.mrf.mxu0
  %v680 = vadd.f32 %v615, %v679
  %v681 = vpop.f32.mrf.mxu0
  %682 = vdwg.mxu0
  %v683 = vmax.f32 %v653, 0.0
  %v684 = vmax.f32 %v656, 0.0
  %v685 = vmax.f32 %v661, 0.0
  %v686 = vmax.f32 %v664, 0.0
  %v687 = vmax.f32 %v669, 0.0
  %v688 = vmax.f32 %v672, 0.0
  %v689 = vmax.f32 %v677, 0.0
  %v690 = vmax.f32 %v680, 0.0
  %v691 = vpack.c.bf16 %v684, %v683
  %v692 = vpack.c.bf16 %v686, %v685
  %v693 = vpack.c.bf16 %v688, %v687
  %v694 = vpack.c.bf16 %v690, %v689
  %v699 = vunpack.c.l.b16 %v691
  %v700 = vunpack.c.h.b16 %v691
  %v701 = vunpack.c.l.b16 %v692
  %v702 = vunpack.c.h.b16 %v692
  %v703 = vunpack.c.l.b16 %v693
  %v704 = vunpack.c.h.b16 %v693
  %v705 = vunpack.c.l.b16 %v694
  %v706 = vunpack.c.h.b16 %v694
  %v707 = vpack.c.b16 %v699, %v699
  %v708 = vpack.c.b16 %v700, %v700
  %v709 = vpack.c.b16 %v701, %v701
  %v710 = vpack.c.b16 %v702, %v702
  %v711 = vpack.c.b16 %v703, %v703
  %v712 = vpack.c.b16 %v704, %v704
  %v713 = vpack.c.b16 %v705, %v705
  %v714 = vpack.c.b16 %v706, %v706
  %723 = vst [vmem:[%s3] sm:$0xf] %v707
  %724 = vst [vmem:[%s3 + $0x4] sm:$0xf] %v708
  %725 = vst [vmem:[%s3 + $0x8] sm:$0xf] %v709
  %726 = vst [vmem:[%s3 + $0xc] sm:$0xf] %v710
  %727 = vst [vmem:[%s3 + $0x10] sm:$0xf] %v711
  %728 = vst [vmem:[%s3 + $0x14] sm:$0xf] %v712
  %729 = vst [vmem:[%s3 + $0x18] sm:$0xf] %v713
  %730 = vst [vmem:[%s3 + $0x1c] sm:$0xf] %v714
  // Predicated region
  $region14: #{_lambda_.41} parent=0 // pred_check
    _
  $region15: #{_lambda_.41} parent=0 // pred_check_branch
    %732 = sbr.rel (0) target = $region17
  $region16: #{_lambda_.41} parent=0 // pred_region
    _
  $region17: #{_lambda_.41} parent=0 // pred_fallthru
    _
  // Predicated region
  $region18: #{_lambda_.41} parent=0 // pred_check
    _
  $region19: #{_lambda_.41} parent=0 // pred_check_branch
    %734 = sbr.rel (0) target = $region21
  $region20: #{_lambda_.41} parent=0 // pred_region
    _
  $region21: #{_lambda_.41} parent=0 // pred_fallthru
    _

// kernel: _lambda_.56
$region0: #{_lambda_.56}
  #allocation0 [shape = 'u32[]', space=smem, size = 0x4, offset = 0x4, fixed_abs, tag = 'smem constant byte address 0x4 - core index']
  #allocation1 [shape = 'u32[144,128]{1,0:T(1,128)}', space=vmem, size = 0x12000, scoped, tag = 'internal scratch']
  %s0 = inlined_call_operand.vmem [shape: bf16[32,16], index: 0, kind: input, shape index: {}]
  %s1 = inlined_call_operand.vmem [shape: bf16[16,128], index: 1, kind: input, shape index: {}]
  %s2 = inlined_call_operand.vmem [shape: f32[32,1], index: 2, kind: input, shape index: {}]
  %s3 = inlined_call_operand.vmem [shape: bf16[32,128], index: 3, kind: output, shape index: {}]
  %s4 = sld [smem:[#allocation0]]
  $region22: #{_lambda_.56} parent=0
    _
  %s6 = ssub.s32 1, %s4
  %s7 = scalar_select 0, %s6, %s4
  // Predicated region
  $region2: #{_lambda_.56} parent=0 // pred_check
    _
  $region3: #{_lambda_.56} parent=0 // pred_check_branch
    %9 = sbr.rel (0) target = $region5
  $region4: #{_lambda_.56} parent=0 // pred_region
    _
  $region5: #{_lambda_.56} parent=0 // pred_fallthru
    _
  // Predicated region
  $region6: #{_lambda_.56} parent=0 // pred_check
    _
  $region7: #{_lambda_.56} parent=0 // pred_check_branch
    %11 = sbr.rel (0) target = $region9
  $region8: #{_lambda_.56} parent=0 // pred_region
    _
  $region9: #{_lambda_.56} parent=0 // pred_fallthru
    _
  // Predicated region
  $region10: #{_lambda_.56} parent=0 // pred_check
    _
  $region11: #{_lambda_.56} parent=0 // pred_check_branch
    %13 = sbr.rel (0) target = $region13
  $region12: #{_lambda_.56} parent=0 // pred_region
    _
  $region13: #{_lambda_.56} parent=0 // pred_fallthru
    _
  %v15 = vld [vmem:[%s0] sm:$0xf]
  %v16 = vld [vmem:[%s0 + $0x4] sm:$0xf]
  %v17 = vld [vmem:[%s0 + $0x8] sm:$0xf]
  %v18 = vld [vmem:[%s0 + $0xc] sm:$0xf]
  %v19 = vld [vmem:[%s1] sm:$0xf]
  %v20 = vld [vmem:[%s1 + $0x4] sm:$0xf]
  %v21 = vld [vmem:[%s2] sm:$0xff]
  %v22 = vld [vmem:[%s2 + $0x8] sm:$0xff]
  %v23 = vld [vmem:[%s2 + $0x10] sm:$0xff]
  %v24 = vld [vmem:[%s2 + $0x18] sm:$0xff]
  %26 = vset.pattern.permute.xlu0 0
  %27 = vperm.xlu0 %26, %v21
  %v28 = vpop.permute.xlu0 %27
  %31 = vset.pattern.permute.xlu0 0
  %32 = vperm.xlu0 %31, %v22
  %v33 = vpop.permute.xlu0 %32
  %36 = vset.pattern.permute.xlu0 0
  %37 = vperm.xlu0 %36, %v23
  %v38 = vpop.permute.xlu0 %37
  %41 = vset.pattern.permute.xlu0 0
  %42 = vperm.xlu0 %41, %v24
  %v43 = vpop.permute.xlu0 %42
  %v49 = vunpack.c.l.b16 %v15
  %v50 = vunpack.c.l.b16 %v16
  %v51 = vunpack.c.l.b16 %v17
  %v52 = vunpack.c.l.b16 %v18
  %v53 = vpack.c.b16 %v50, %v49
  %v54 = vpack.c.b16 %v52, %v51
  %v57 = vunpack.c.l.b16 %v19
  %v58 = vunpack.c.l.b16 %v20
  %v59 = vpack.c.b16 %v58, %v57
  %vm61 = vcmask 130048
  %v63 = vsel %vm61, %v53, 0
  %v66 = vsel %vm61, %v54, 0
  %68 = vmatprep.subr.bf16.mxu0 0
  %69 = vmatpush1.bf16.msra.mxu0 0
  %70 = vmatprep.subr.bf16.mxu0 0
  %71 = vmatpush1.bf16.msra.mxu0 0
  %72 = vmatprep.subr.bf16.mxu0 0
  %73 = vmatpush1.bf16.msra.mxu0 0
  %74 = vmatprep.subr.bf16.mxu0 0
  %75 = vmatpush1.bf16.msra.mxu0 0
  %76 = vmatprep.subr.bf16.mxu0 0
  %77 = vmatpush1.bf16.msra.mxu0 0
  %78 = vmatprep.subr.bf16.mxu0 0
  %79 = vmatpush1.bf16.msra.mxu0 0
  %80 = vmatprep.subr.bf16.mxu0 0
  %81 = vmatpush1.bf16.msra.mxu0 0
  %82 = vmatprep.subr.bf16.mxu0 0
  %83 = vmatpush1.bf16.msra.mxu0 %v59
  %84 = vmatprep.subr.bf16.mxu0 0
  %85 = vmatpush2.bf16.msra.mxu0 0
  %86 = vmatprep.subr.bf16.mxu0 0
  %87 = vmatpush2.bf16.msra.mxu0 0
  %88 = vmatprep.subr.bf16.mxu0 0
  %89 = vmatpush2.bf16.msra.mxu0 0
  %90 = vmatprep.subr.bf16.mxu0 0
  %91 = vmatpush2.bf16.msra.mxu0 0
  %92 = vmatprep.subr.bf16.mxu0 0
  %93 = vmatpush2.bf16.msra.mxu0 0
  %94 = vmatprep.subr.bf16.mxu0 0
  %95 = vmatpush2.bf16.msra.mxu0 0
  %96 = vmatprep.subr.bf16.mxu0 0
  %97 = vmatpush2.bf16.msra.mxu0 0
  %98 = vmatprep.subr.bf16.mxu0 0
  %99 = vmatpush2.bf16.msra.mxu0 0
  %100 = vmatprep.mubr.bf16.mxu0 0
  %101 = vmatmul.mubr.bf16.gmra.mxu0 %v63
  %v102 = vpop.f32.mrf.mxu0
  %v103 = vadd.f32 %v28, %v102
  %v104 = vpop.f32.mrf.mxu0
  %v105 = vpop.f32.mrf.mxu0
  %v106 = vadd.f32 %v33, %v105
  %v107 = vpop.f32.mrf.mxu0
  %108 = vmatprep.mubr.bf16.mxu0 0
  %109 = vmatmul.mubr.bf16.gmra.mxu0 %v66
  %v110 = vpop.f32.mrf.mxu0
  %v111 = vadd.f32 %v38, %v110
  %v112 = vpop.f32.mrf.mxu0
  %v113 = vpop.f32.mrf.mxu0
  %v114 = vadd.f32 %v43, %v113
  %v115 = vpop.f32.mrf.mxu0
  %116 = vdwg.mxu0
  %v117 = vpack.c.bf16 %v106, %v103
  %v118 = vpack.c.bf16 %v114, %v111
  %v121 = vunpack.c.l.b16 %v117
  %v122 = vunpack.c.h.b16 %v117
  %v123 = vunpack.c.l.b16 %v118
  %v124 = vunpack.c.h.b16 %v118
  %v125 = vpack.c.b16 %v121, %v121
  %v126 = vpack.c.b16 %v122, %v122
  %v127 = vpack.c.b16 %v123, %v123
  %v128 = vpack.c.b16 %v124, %v124
  %133 = vst [vmem:[%s3] sm:$0xf] %v125
  %134 = vst [vmem:[%s3 + $0x4] sm:$0xf] %v126
  %135 = vst [vmem:[%s3 + $0x8] sm:$0xf] %v127
  %136 = vst [vmem:[%s3 + $0xc] sm:$0xf] %v128
  // Predicated region
  $region14: #{_lambda_.56} parent=0 // pred_check
    _
  $region15: #{_lambda_.56} parent=0 // pred_check_branch
    %138 = sbr.rel (0) target = $region17
  $region16: #{_lambda_.56} parent=0 // pred_region
    _
  $region17: #{_lambda_.56} parent=0 // pred_fallthru
    _
  // Predicated region
  $region18: #{_lambda_.56} parent=0 // pred_check
    _
  $region19: #{_lambda_.56} parent=0 // pred_check_branch
    %140 = sbr.rel (0) target = $region21
  $region20: #{_lambda_.56} parent=0 // pred_region
    _
  $region21: #{_lambda_.56} parent=0 // pred_fallthru
    _

// kernel: _lambda_.52
$region0: #{_lambda_.52}
  #allocation0 [shape = 'u32[]', space=smem, size = 0x4, offset = 0x4, fixed_abs, tag = 'smem constant byte address 0x4 - core index']
  #allocation1 [shape = 'u32[144,128]{1,0:T(1,128)}', space=vmem, size = 0x12000, scoped, tag = 'internal scratch']
  %s0 = inlined_call_operand.vmem [shape: bf16[16,32], index: 0, kind: input, shape index: {}]
  %s1 = inlined_call_operand.vmem [shape: bf16[32,128], index: 1, kind: input, shape index: {}]
  %s2 = inlined_call_operand.vmem [shape: f32[16,1], index: 2, kind: input, shape index: {}]
  %s3 = inlined_call_operand.vmem [shape: bf16[16,128], index: 3, kind: output, shape index: {}]
  %s4 = sld [smem:[#allocation0]]
  $region22: #{_lambda_.52} parent=0
    _
  %s6 = ssub.s32 1, %s4
  %s7 = scalar_select 0, %s6, %s4
  // Predicated region
  $region2: #{_lambda_.52} parent=0 // pred_check
    _
  $region3: #{_lambda_.52} parent=0 // pred_check_branch
    %9 = sbr.rel (0) target = $region5
  $region4: #{_lambda_.52} parent=0 // pred_region
    _
  $region5: #{_lambda_.52} parent=0 // pred_fallthru
    _
  // Predicated region
  $region6: #{_lambda_.52} parent=0 // pred_check
    _
  $region7: #{_lambda_.52} parent=0 // pred_check_branch
    %11 = sbr.rel (0) target = $region9
  $region8: #{_lambda_.52} parent=0 // pred_region
    _
  $region9: #{_lambda_.52} parent=0 // pred_fallthru
    _
  // Predicated region
  $region10: #{_lambda_.52} parent=0 // pred_check
    _
  $region11: #{_lambda_.52} parent=0 // pred_check_branch
    %13 = sbr.rel (0) target = $region13
  $region12: #{_lambda_.52} parent=0 // pred_region
    _
  $region13: #{_lambda_.52} parent=0 // pred_fallthru
    _
  %v15 = vld [vmem:[%s0] sm:$0xf]
  %v16 = vld [vmem:[%s0 + $0x4] sm:$0xf]
  %v17 = vld [vmem:[%s1] sm:$0xf]
  %v18 = vld [vmem:[%s1 + $0x4] sm:$0xf]
  %v19 = vld [vmem:[%s1 + $0x8] sm:$0xf]
  %v20 = vld [vmem:[%s1 + $0xc] sm:$0xf]
  %v21 = vld [vmem:[%s2] sm:$0xff]
  %v22 = vld [vmem:[%s2 + $0x8] sm:$0xff]
  %24 = vset.pattern.permute.xlu0 0
  %25 = vperm.xlu0 %24, %v21
  %v26 = vpop.permute.xlu0 %25
  %29 = vset.pattern.permute.xlu0 0
  %30 = vperm.xlu0 %29, %v22
  %v31 = vpop.permute.xlu0 %30
  %v35 = vunpack.c.l.b16 %v15
  %v36 = vunpack.c.l.b16 %v16
  %v37 = vpack.c.b16 %v36, %v35
  %v42 = vunpack.c.l.b16 %v17
  %v43 = vunpack.c.l.b16 %v18
  %v44 = vunpack.c.l.b16 %v19
  %v45 = vunpack.c.l.b16 %v20
  %v46 = vpack.c.b16 %v43, %v42
  %v47 = vpack.c.b16 %v45, %v44
  %vm50 = vcmask 261120
  %v52 = vsel %vm50, %v37, 0
  %54 = vmatprep.subr.bf16.mxu0 0
  %55 = vmatpush1.bf16.msra.mxu0 0
  %56 = vmatprep.subr.bf16.mxu0 0
  %57 = vmatpush1.bf16.msra.mxu0 0
  %58 = vmatprep.subr.bf16.mxu0 0
  %59 = vmatpush1.bf16.msra.mxu0 0
  %60 = vmatprep.subr.bf16.mxu0 0
  %61 = vmatpush1.bf16.msra.mxu0 0
  %62 = vmatprep.subr.bf16.mxu0 0
  %63 = vmatpush1.bf16.msra.mxu0 0
  %64 = vmatprep.subr.bf16.mxu0 0
  %65 = vmatpush1.bf16.msra.mxu0 0
  %66 = vmatprep.subr.bf16.mxu0 0
  %67 = vmatpush1.bf16.msra.mxu0 %v47
  %68 = vmatprep.subr.bf16.mxu0 0
  %69 = vmatpush1.bf16.msra.mxu0 %v46
  %70 = vmatprep.subr.bf16.mxu0 0
  %71 = vmatpush2.bf16.msra.mxu0 0
  %72 = vmatprep.subr.bf16.mxu0 0
  %73 = vmatpush2.bf16.msra.mxu0 0
  %74 = vmatprep.subr.bf16.mxu0 0
  %75 = vmatpush2.bf16.msra.mxu0 0
  %76 = vmatprep.subr.bf16.mxu0 0
  %77 = vmatpush2.bf16.msra.mxu0 0
  %78 = vmatprep.subr.bf16.mxu0 0
  %79 = vmatpush2.bf16.msra.mxu0 0
  %80 = vmatprep.subr.bf16.mxu0 0
  %81 = vmatpush2.bf16.msra.mxu0 0
  %82 = vmatprep.subr.bf16.mxu0 0
  %83 = vmatpush2.bf16.msra.mxu0 0
  %84 = vmatprep.subr.bf16.mxu0 0
  %85 = vmatpush2.bf16.msra.mxu0 0
  %86 = vmatprep.mubr.bf16.mxu0 0
  %87 = vmatmul.mubr.bf16.gmra.mxu0 %v52
  %v88 = vpop.f32.mrf.mxu0
  %v89 = vadd.f32 %v26, %v88
  %v90 = vpop.f32.mrf.mxu0
  %v91 = vpop.f32.mrf.mxu0
  %v92 = vadd.f32 %v31, %v91
  %v93 = vpop.f32.mrf.mxu0
  %94 = vdwg.mxu0
  %v95 = vmax.f32 %v89, 0.0
  %v96 = vmax.f32 %v92, 0.0
  %v97 = vpack.c.bf16 %v96, %v95
  %v99 = vunpack.c.l.b16 %v97
  %v100 = vunpack.c.h.b16 %v97
  %v101 = vpack.c.b16 %v99, %v99
  %v102 = vpack.c.b16 %v100, %v100
  %105 = vst [vmem:[%s3] sm:$0xf] %v101
  %106 = vst [vmem:[%s3 + $0x4] sm:$0xf] %v102
  // Predicated region
  $region14: #{_lambda_.52} parent=0 // pred_check
    _
  $region15: #{_lambda_.52} parent=0 // pred_check_branch
    %108 = sbr.rel (0) target = $region17
  $region16: #{_lambda_.52} parent=0 // pred_region
    _
  $region17: #{_lambda_.52} parent=0 // pred_fallthru
    _
  // Predicated region
  $region18: #{_lambda_.52} parent=0 // pred_check
    _
  $region19: #{_lambda_.52} parent=0 // pred_check_branch
    %110 = sbr.rel (0) target = $region21
  $region20: #{_lambda_.52} parent=0 // pred_region
    _
  $region21: #{_lambda_.52} parent=0 // pred_fallthru
    _

// kernel: _lambda_.57
$region0: #{_lambda_.57}
  #allocation0 [shape = 'u32[]', space=smem, size = 0x4, offset = 0x4, fixed_abs, tag = 'smem constant byte address 0x4 - core index']
  #allocation1 [shape = 'u32[144,128]{1,0:T(1,128)}', space=vmem, size = 0x12000, scoped, tag = 'internal scratch']
  %s0 = inlined_call_operand.vmem [shape: bf16[16,432], index: 0, kind: input, shape index: {}]
  %s1 = inlined_call_operand.vmem [shape: bf16[432,128], index: 1, kind: input, shape index: {}]
  %s2 = inlined_call_operand.vmem [shape: f32[16,1], index: 2, kind: input, shape index: {}]
  %s3 = inlined_call_operand.vmem [shape: bf16[16,128], index: 3, kind: output, shape index: {}]
  %s4 = sld [smem:[#allocation0]]
  $region22: #{_lambda_.57} parent=0
    _
  %s6 = ssub.s32 1, %s4
  %s7 = scalar_select 0, %s6, %s4
  // Predicated region
  $region2: #{_lambda_.57} parent=0 // pred_check
    _
  $region3: #{_lambda_.57} parent=0 // pred_check_branch
    %9 = sbr.rel (0) target = $region5
  $region4: #{_lambda_.57} parent=0 // pred_region
    _
  $region5: #{_lambda_.57} parent=0 // pred_fallthru
    _
  // Predicated region
  $region6: #{_lambda_.57} parent=0 // pred_check
    _
  $region7: #{_lambda_.57} parent=0 // pred_check_branch
    %11 = sbr.rel (0) target = $region9
  $region8: #{_lambda_.57} parent=0 // pred_region
    _
  $region9: #{_lambda_.57} parent=0 // pred_fallthru
    _
  // Predicated region
  $region10: #{_lambda_.57} parent=0 // pred_check
    _
  $region11: #{_lambda_.57} parent=0 // pred_check_branch
    %13 = sbr.rel (0) target = $region13
  $region12: #{_lambda_.57} parent=0 // pred_region
    _
  $region13: #{_lambda_.57} parent=0 // pred_fallthru
    _
  %v15 = vld [vmem:[%s0] sm:$0xff]
  %v16 = vld [vmem:[%s0 + $0x8] sm:$0xff]
  %v17 = vld [vmem:[%s0 + $0x10] sm:$0xff]
  %v18 = vld [vmem:[%s0 + $0x18] sm:$0xff]
  %v19 = vld [vmem:[%s1] sm:$0xf]
  %v20 = vld [vmem:[%s1 + $0x4] sm:$0xf]
  %v21 = vld [vmem:[%s1 + $0x8] sm:$0xf]
  %v22 = vld [vmem:[%s1 + $0xc] sm:$0xf]
  %v23 = vld [vmem:[%s1 + $0x10] sm:$0xf]
  %v24 = vld [vmem:[%s1 + $0x14] sm:$0xf]
  %v25 = vld [vmem:[%s1 + $0x18] sm:$0xf]
  %v26 = vld [vmem:[%s1 + $0x1c] sm:$0xf]
  %v27 = vld [vmem:[%s1 + $0x20] sm:$0xf]
  %v28 = vld [vmem:[%s1 + $0x24] sm:$0xf]
  %v29 = vld [vmem:[%s1 + $0x28] sm:$0xf]
  %v30 = vld [vmem:[%s1 + $0x2c] sm:$0xf]
  %v31 = vld [vmem:[%s1 + $0x30] sm:$0xf]
  %v32 = vld [vmem:[%s1 + $0x34] sm:$0xf]
  %v33 = vld [vmem:[%s1 + $0x38] sm:$0xf]
  %v34 = vld [vmem:[%s1 + $0x3c] sm:$0xf]
  %v35 = vld [vmem:[%s1 + $0x40] sm:$0xf]
  %v36 = vld [vmem:[%s1 + $0x44] sm:$0xf]
  %v37 = vld [vmem:[%s1 + $0x48] sm:$0xf]
  %v38 = vld [vmem:[%s1 + $0x4c] sm:$0xf]
  %v39 = vld [vmem:[%s1 + $0x50] sm:$0xf]
  %v40 = vld [vmem:[%s1 + $0x54] sm:$0xf]
  %v41 = vld [vmem:[%s1 + $0x58] sm:$0xf]
  %v42 = vld [vmem:[%s1 + $0x5c] sm:$0xf]
  %v43 = vld [vmem:[%s1 + $0x60] sm:$0xf]
  %v44 = vld [vmem:[%s1 + $0x64] sm:$0xf]
  %v45 = vld [vmem:[%s1 + $0x68] sm:$0xf]
  %v46 = vld [vmem:[%s1 + $0x6c] sm:$0xf]
  %v47 = vld [vmem:[%s1 + $0x70] sm:$0xf]
  %v48 = vld [vmem:[%s1 + $0x74] sm:$0xf]
  %v49 = vld [vmem:[%s1 + $0x78] sm:$0xf]
  %v50 = vld [vmem:[%s1 + $0x7c] sm:$0xf]
  %v51 = vld [vmem:[%s1 + $0x80] sm:$0xf]
  %v52 = vld [vmem:[%s1 + $0x84] sm:$0xf]
  %v53 = vld [vmem:[%s1 + $0x88] sm:$0xf]
  %v54 = vld [vmem:[%s1 + $0x8c] sm:$0xf]
  %v55 = vld [vmem:[%s1 + $0x90] sm:$0xf]
  %v56 = vld [vmem:[%s1 + $0x94] sm:$0xf]
  %v57 = vld [vmem:[%s1 + $0x98] sm:$0xf]
  %v58 = vld [vmem:[%s1 + $0x9c] sm:$0xf]
  %v59 = vld [vmem:[%s1 + $0xa0] sm:$0xf]
  %v60 = vld [vmem:[%s1 + $0xa4] sm:$0xf]
  %v61 = vld [vmem:[%s1 + $0xa8] sm:$0xf]
  %v62 = vld [vmem:[%s1 + $0xac] sm:$0xf]
  %v63 = vld [vmem:[%s1 + $0xb0] sm:$0xf]
  %v64 = vld [vmem:[%s1 + $0xb4] sm:$0xf]
  %v65 = vld [vmem:[%s1 + $0xb8] sm:$0xf]
  %v66 = vld [vmem:[%s1 + $0xbc] sm:$0xf]
  %v67 = vld [vmem:[%s1 + $0xc0] sm:$0xf]
  %v68 = vld [vmem:[%s1 + $0xc4] sm:$0xf]
  %v69 = vld [vmem:[%s1 + $0xc8] sm:$0xf]
  %v70 = vld [vmem:[%s1 + $0xcc] sm:$0xf]
  %v71 = vld [vmem:[%s1 + $0xd0] sm:$0xf]
  %v72 = vld [vmem:[%s1 + $0xd4] sm:$0xf]
  %v73 = vld [vmem:[%s2] sm:$0xff]
  %v74 = vld [vmem:[%s2 + $0x8] sm:$0xff]
  %76 = vset.pattern.permute.xlu0 0
  %77 = vperm.xlu0 %76, %v73
  %v78 = vpop.permute.xlu0 %77
  %81 = vset.pattern.permute.xlu0 0
  %82 = vperm.xlu0 %81, %v74
  %v83 = vpop.permute.xlu0 %82
  %v89 = vunpack.c.l.b16 %v15
  %v90 = vunpack.c.h.b16 %v15
  %v91 = vunpack.c.l.b16 %v16
  %v92 = vunpack.c.h.b16 %v16
  %v93 = vunpack.c.l.b16 %v17
  %v94 = vunpack.c.h.b16 %v17
  %v95 = vunpack.c.l.b16 %v18
  %v96 = vunpack.c.h.b16 %v18
  %v97 = vpack.c.b16 %v93, %v89
  %v98 = vpack.c.b16 %v94, %v90
  %v99 = vpack.c.b16 %v95, %v91
  %v100 = vpack.c.b16 %v96, %v92
  %v158 = vunpack.c.l.b16 %v19
  %v159 = vunpack.c.l.b16 %v20
  %v160 = vunpack.c.l.b16 %v21
  %v161 = vunpack.c.l.b16 %v22
  %v162 = vunpack.c.l.b16 %v23
  %v163 = vunpack.c.l.b16 %v24
  %v164 = vunpack.c.l.b16 %v25
  %v165 = vunpack.c.l.b16 %v26
  %v166 = vunpack.c.l.b16 %v27
  %v167 = vunpack.c.l.b16 %v28
  %v168 = vunpack.c.l.b16 %v29
  %v169 = vunpack.c.l.b16 %v30
  %v170 = vunpack.c.l.b16 %v31
  %v171 = vunpack.c.l.b16 %v32
  %v172 = vunpack.c.l.b16 %v33
  %v173 = vunpack.c.l.b16 %v34
  %v174 = vunpack.c.l.b16 %v35
  %v175 = vunpack.c.l.b16 %v36
  %v176 = vunpack.c.l.b16 %v37
  %v177 = vunpack.c.l.b16 %v38
  %v178 = vunpack.c.l.b16 %v39
  %v179 = vunpack.c.l.b16 %v40
  %v180 = vunpack.c.l.b16 %v41
  %v181 = vunpack.c.l.b16 %v42
  %v182 = vunpack.c.l.b16 %v43
  %v183 = vunpack.c.l.b16 %v44
  %v184 = vunpack.c.l.b16 %v45
  %v185 = vunpack.c.l.b16 %v46
  %v186 = vunpack.c.l.b16 %v47
  %v187 = vunpack.c.l.b16 %v48
  %v188 = vunpack.c.l.b16 %v49
  %v189 = vunpack.c.l.b16 %v50
  %v190 = vunpack.c.l.b16 %v51
  %v191 = vunpack.c.l.b16 %v52
  %v192 = vunpack.c.l.b16 %v53
  %v193 = vunpack.c.l.b16 %v54
  %v194 = vunpack.c.l.b16 %v55
  %v195 = vunpack.c.l.b16 %v56
  %v196 = vunpack.c.l.b16 %v57
  %v197 = vunpack.c.l.b16 %v58
  %v198 = vunpack.c.l.b16 %v59
  %v199 = vunpack.c.l.b16 %v60
  %v200 = vunpack.c.l.b16 %v61
  %v201 = vunpack.c.l.b16 %v62
  %v202 = vunpack.c.l.b16 %v63
  %v203 = vunpack.c.l.b16 %v64
  %v204 = vunpack.c.l.b16 %v65
  %v205 = vunpack.c.l.b16 %v66
  %v206 = vunpack.c.l.b16 %v67
  %v207 = vunpack.c.l.b16 %v68
  %v208 = vunpack.c.l.b16 %v69
  %v209 = vunpack.c.l.b16 %v70
  %v210 = vunpack.c.l.b16 %v71
  %v211 = vunpack.c.l.b16 %v72
  %v212 = vpack.c.b16 %v159, %v158
  %v213 = vpack.c.b16 %v161, %v160
  %v214 = vpack.c.b16 %v163, %v162
  %v215 = vpack.c.b16 %v165, %v164
  %v216 = vpack.c.b16 %v167, %v166
  %v217 = vpack.c.b16 %v169, %v168
  %v218 = vpack.c.b16 %v171, %v170
  %v219 = vpack.c.b16 %v173, %v172
  %v220 = vpack.c.b16 %v175, %v174
  %v221 = vpack.c.b16 %v177, %v176
  %v222 = vpack.c.b16 %v179, %v178
  %v223 = vpack.c.b16 %v181, %v180
  %v224 = vpack.c.b16 %v183, %v182
  %v225 = vpack.c.b16 %v185, %v184
  %v226 = vpack.c.b16 %v187, %v186
  %v227 = vpack.c.b16 %v189, %v188
  %v228 = vpack.c.b16 %v191, %v190
  %v229 = vpack.c.b16 %v193, %v192
  %v230 = vpack.c.b16 %v195, %v194
  %v231 = vpack.c.b16 %v197, %v196
  %v232 = vpack.c.b16 %v199, %v198
  %v233 = vpack.c.b16 %v201, %v200
  %v234 = vpack.c.b16 %v203, %v202
  %v235 = vpack.c.b16 %v205, %v204
  %v236 = vpack.c.b16 %v207, %v206
  %v237 = vpack.c.b16 %v209, %v208
  %v238 = vpack.c.b16 %v211, %v210
  %vm266 = vcmask 392192
  %v268 = vsel %vm266, %v100, 0
  %270 = vmatprep.subr.bf16.mxu0 0
  %271 = vmatpush1.bf16.msra.mxu0 %v219
  %272 = vmatprep.subr.bf16.mxu0 0
  %273 = vmatpush1.bf16.msra.mxu0 %v218
  %274 = vmatprep.subr.bf16.mxu0 0
  %275 = vmatpush1.bf16.msra.mxu0 %v217
  %276 = vmatprep.subr.bf16.mxu0 0
  %277 = vmatpush1.bf16.msra.mxu0 %v216
  %278 = vmatprep.subr.bf16.mxu0 0
  %279 = vmatpush1.bf16.msra.mxu0 %v215
  %280 = vmatprep.subr.bf16.mxu0 0
  %281 = vmatpush1.bf16.msra.mxu0 %v214
  %282 = vmatprep.subr.bf16.mxu0 0
  %283 = vmatpush1.bf16.msra.mxu0 %v213
  %284 = vmatprep.subr.bf16.mxu0 0
  %285 = vmatpush1.bf16.msra.mxu0 %v212
  %286 = vmatprep.subr.bf16.mxu0 0
  %287 = vmatpush2.bf16.msra.mxu0 %v227
  %288 = vmatprep.subr.bf16.mxu0 0
  %289 = vmatpush2.bf16.msra.mxu0 %v226
  %290 = vmatprep.subr.bf16.mxu0 0
  %291 = vmatpush2.bf16.msra.mxu0 %v225
  %292 = vmatprep.subr.bf16.mxu0 0
  %293 = vmatpush2.bf16.msra.mxu0 %v224
  %294 = vmatprep.subr.bf16.mxu0 0
  %295 = vmatpush2.bf16.msra.mxu0 %v223
  %296 = vmatprep.subr.bf16.mxu0 0
  %297 = vmatpush2.bf16.msra.mxu0 %v222
  %298 = vmatprep.subr.bf16.mxu0 0
  %299 = vmatpush2.bf16.msra.mxu0 %v221
  %300 = vmatprep.subr.bf16.mxu0 0
  %301 = vmatpush2.bf16.msra.mxu0 %v220
  %302 = vmatprep.mubr.bf16.mxu0 %v98
  %303 = vmatmul.mubr.bf16.gmra.mxu0 %v97
  %v304 = vpop.f32.mrf.mxu0
  %v305 = vadd.f32 %v78, %v304
  %v306 = vpop.f32.mrf.mxu0
  %v307 = vpop.f32.mrf.mxu0
  %v308 = vadd.f32 %v83, %v307
  %v309 = vpop.f32.mrf.mxu0
  %310 = vdwg.mxu0
  %311 = vmatprep.subr.bf16.mxu0 0
  %312 = vmatpush1.bf16.msra.mxu0 %v235
  %313 = vmatprep.subr.bf16.mxu0 0
  %314 = vmatpush1.bf16.msra.mxu0 %v234
  %315 = vmatprep.subr.bf16.mxu0 0
  %316 = vmatpush1.bf16.msra.mxu0 %v233
  %317 = vmatprep.subr.bf16.mxu0 0
  %318 = vmatpush1.bf16.msra.mxu0 %v232
  %319 = vmatprep.subr.bf16.mxu0 0
  %320 = vmatpush1.bf16.msra.mxu0 %v231
  %321 = vmatprep.subr.bf16.mxu0 0
  %322 = vmatpush1.bf16.msra.mxu0 %v230
  %323 = vmatprep.subr.bf16.mxu0 0
  %324 = vmatpush1.bf16.msra.mxu0 %v229
  %325 = vmatprep.subr.bf16.mxu0 0
  %326 = vmatpush1.bf16.msra.mxu0 %v228
  %327 = vmatprep.subr.bf16.mxu0 0
  %328 = vmatpush2.bf16.msra.mxu0 0
  %329 = vmatprep.subr.bf16.mxu0 0
  %330 = vmatpush2.bf16.msra.mxu0 0
  %331 = vmatprep.subr.bf16.mxu0 0
  %332 = vmatpush2.bf16.msra.mxu0 0
  %333 = vmatprep.subr.bf16.mxu0 0
  %334 = vmatpush2.bf16.msra.mxu0 0
  %335 = vmatprep.subr.bf16.mxu0 0
  %336 = vmatpush2.bf16.msra.mxu0 0
  %337 = vmatprep.subr.bf16.mxu0 0
  %338 = vmatpush2.bf16.msra.mxu0 %v238
  %339 = vmatprep.subr.bf16.mxu0 0
  %340 = vmatpush2.bf16.msra.mxu0 %v237
  %341 = vmatprep.subr.bf16.mxu0 0
  %342 = vmatpush2.bf16.msra.mxu0 %v236
  %343 = vmatprep.mubr.bf16.mxu0 %v268
  %344 = vmatmul.mubr.bf16.gmra.mxu0 %v99
  %v345 = vpop.f32.mrf.mxu0
  %v346 = vadd.f32 %v305, %v345
  %v347 = vpop.f32.mrf.mxu0
  %v348 = vpop.f32.mrf.mxu0
  %v349 = vadd.f32 %v308, %v348
  %v350 = vpop.f32.mrf.mxu0
  %351 = vdwg.mxu0
  %v352 = vmax.f32 %v346, 0.0
  %v353 = vmax.f32 %v349, 0.0
  %v354 = vpack.c.bf16 %v353, %v352
  %v356 = vunpack.c.l.b16 %v354
  %v357 = vunpack.c.h.b16 %v354
  %v358 = vpack.c.b16 %v356, %v356
  %v359 = vpack.c.b16 %v357, %v357
  %362 = vst [vmem:[%s3] sm:$0xf] %v358
  %363 = vst [vmem:[%s3 + $0x4] sm:$0xf] %v359
  // Predicated region
  $region14: #{_lambda_.57} parent=0 // pred_check
    _
  $region15: #{_lambda_.57} parent=0 // pred_check_branch
    %365 = sbr.rel (0) target = $region17
  $region16: #{_lambda_.57} parent=0 // pred_region
    _
  $region17: #{_lambda_.57} parent=0 // pred_fallthru
    _
  // Predicated region
  $region18: #{_lambda_.57} parent=0 // pred_check
    _
  $region19: #{_lambda_.57} parent=0 // pred_check_branch
    %367 = sbr.rel (0) target = $region21
  $region20: #{_lambda_.57} parent=0 // pred_region
    _
  $region21: #{_lambda_.57} parent=0 // pred_fallthru
    _

// kernel: _lambda_.58
$region0: #{_lambda_.58}
  #allocation0 [shape = 'u32[]', space=smem, size = 0x4, offset = 0x4, fixed_abs, tag = 'smem constant byte address 0x4 - core index']
  #allocation1 [shape = 'u32[144,128]{1,0:T(1,128)}', space=vmem, size = 0x12000, scoped, tag = 'internal scratch']
  %s0 = inlined_call_operand.vmem [shape: bf16[16,16], index: 0, kind: input, shape index: {}]
  %s1 = inlined_call_operand.vmem [shape: bf16[16,128], index: 1, kind: input, shape index: {}]
  %s2 = inlined_call_operand.vmem [shape: f32[16,1], index: 2, kind: input, shape index: {}]
  %s3 = inlined_call_operand.vmem [shape: bf16[16,128], index: 3, kind: output, shape index: {}]
  %s4 = sld [smem:[#allocation0]]
  $region22: #{_lambda_.58} parent=0
    _
  %s6 = ssub.s32 1, %s4
  %s7 = scalar_select 0, %s6, %s4
  // Predicated region
  $region2: #{_lambda_.58} parent=0 // pred_check
    _
  $region3: #{_lambda_.58} parent=0 // pred_check_branch
    %9 = sbr.rel (0) target = $region5
  $region4: #{_lambda_.58} parent=0 // pred_region
    _
  $region5: #{_lambda_.58} parent=0 // pred_fallthru
    _
  // Predicated region
  $region6: #{_lambda_.58} parent=0 // pred_check
    _
  $region7: #{_lambda_.58} parent=0 // pred_check_branch
    %11 = sbr.rel (0) target = $region9
  $region8: #{_lambda_.58} parent=0 // pred_region
    _
  $region9: #{_lambda_.58} parent=0 // pred_fallthru
    _
  // Predicated region
  $region10: #{_lambda_.58} parent=0 // pred_check
    _
  $region11: #{_lambda_.58} parent=0 // pred_check_branch
    %13 = sbr.rel (0) target = $region13
  $region12: #{_lambda_.58} parent=0 // pred_region
    _
  $region13: #{_lambda_.58} parent=0 // pred_fallthru
    _
  %v15 = vld [vmem:[%s0] sm:$0xf]
  %v16 = vld [vmem:[%s0 + $0x4] sm:$0xf]
  %v17 = vld [vmem:[%s1] sm:$0xf]
  %v18 = vld [vmem:[%s1 + $0x4] sm:$0xf]
  %v19 = vld [vmem:[%s2] sm:$0xff]
  %v20 = vld [vmem:[%s2 + $0x8] sm:$0xff]
  %22 = vset.pattern.permute.xlu0 0
  %23 = vperm.xlu0 %22, %v19
  %v24 = vpop.permute.xlu0 %23
  %27 = vset.pattern.permute.xlu0 0
  %28 = vperm.xlu0 %27, %v20
  %v29 = vpop.permute.xlu0 %28
  %v33 = vunpack.c.l.b16 %v15
  %v34 = vunpack.c.l.b16 %v16
  %v35 = vpack.c.b16 %v34, %v33
  %v38 = vunpack.c.l.b16 %v17
  %v39 = vunpack.c.l.b16 %v18
  %v40 = vpack.c.b16 %v39, %v38
  %vm42 = vcmask 130048
  %v44 = vsel %vm42, %v35, 0
  %46 = vmatprep.subr.bf16.mxu0 0
  %47 = vmatpush1.bf16.msra.mxu0 0
  %48 = vmatprep.subr.bf16.mxu0 0
  %49 = vmatpush1.bf16.msra.mxu0 0
  %50 = vmatprep.subr.bf16.mxu0 0
  %51 = vmatpush1.bf16.msra.mxu0 0
  %52 = vmatprep.subr.bf16.mxu0 0
  %53 = vmatpush1.bf16.msra.mxu0 0
  %54 = vmatprep.subr.bf16.mxu0 0
  %55 = vmatpush1.bf16.msra.mxu0 0
  %56 = vmatprep.subr.bf16.mxu0 0
  %57 = vmatpush1.bf16.msra.mxu0 0
  %58 = vmatprep.subr.bf16.mxu0 0
  %59 = vmatpush1.bf16.msra.mxu0 0
  %60 = vmatprep.subr.bf16.mxu0 0
  %61 = vmatpush1.bf16.msra.mxu0 %v40
  %62 = vmatprep.subr.bf16.mxu0 0
  %63 = vmatpush2.bf16.msra.mxu0 0
  %64 = vmatprep.subr.bf16.mxu0 0
  %65 = vmatpush2.bf16.msra.mxu0 0
  %66 = vmatprep.subr.bf16.mxu0 0
  %67 = vmatpush2.bf16.msra.mxu0 0
  %68 = vmatprep.subr.bf16.mxu0 0
  %69 = vmatpush2.bf16.msra.mxu0 0
  %70 = vmatprep.subr.bf16.mxu0 0
  %71 = vmatpush2.bf16.msra.mxu0 0
  %72 = vmatprep.subr.bf16.mxu0 0
  %73 = vmatpush2.bf16.msra.mxu0 0
  %74 = vmatprep.subr.bf16.mxu0 0
  %75 = vmatpush2.bf16.msra.mxu0 0
  %76 = vmatprep.subr.bf16.mxu0 0
  %77 = vmatpush2.bf16.msra.mxu0 0
  %78 = vmatprep.mubr.bf16.mxu0 0
  %79 = vmatmul.mubr.bf16.gmra.mxu0 %v44
  %v80 = vpop.f32.mrf.mxu0
  %v81 = vadd.f32 %v24, %v80
  %v82 = vpop.f32.mrf.mxu0
  %v83 = vpop.f32.mrf.mxu0
  %v84 = vadd.f32 %v29, %v83
  %v85 = vpop.f32.mrf.mxu0
  %86 = vdwg.mxu0
  %v87 = vpack.c.bf16 %v84, %v81
  %v89 = vunpack.c.l.b16 %v87
  %v90 = vunpack.c.h.b16 %v87
  %v91 = vpack.c.b16 %v89, %v89
  %v92 = vpack.c.b16 %v90, %v90
  %95 = vst [vmem:[%s3] sm:$0xf] %v91
  %96 = vst [vmem:[%s3 + $0x4] sm:$0xf] %v92
  // Predicated region
  $region14: #{_lambda_.58} parent=0 // pred_check
    _
  $region15: #{_lambda_.58} parent=0 // pred_check_branch
    %98 = sbr.rel (0) target = $region17
  $region16: #{_lambda_.58} parent=0 // pred_region
    _
  $region17: #{_lambda_.58} parent=0 // pred_fallthru
    _
  // Predicated region
  $region18: #{_lambda_.58} parent=0 // pred_check
    _
  $region19: #{_lambda_.58} parent=0 // pred_check_branch
    %100 = sbr.rel (0) target = $region21
  $region20: #{_lambda_.58} parent=0 // pred_region
    _
  $region21: #{_lambda_.58} parent=0 // pred_fallthru
    _

// kernel: _lambda_.59
$region0: #{_lambda_.59}
  #allocation0 [shape = 'u32[]', space=smem, size = 0x4, offset = 0x4, fixed_abs, tag = 'smem constant byte address 0x4 - core index']
  #allocation1 [shape = 'u32[144,128]{1,0:T(1,128)}', space=vmem, size = 0x12000, scoped, tag = 'internal scratch']
  %s0 = inlined_call_operand.vmem [shape: bf16[16,64], index: 0, kind: input, shape index: {}]
  %s1 = inlined_call_operand.vmem [shape: bf16[64,4096], index: 1, kind: input, shape index: {}]
  %s2 = inlined_call_operand.vmem [shape: f32[16,1], index: 2, kind: input, shape index: {}]
  %s3 = inlined_call_operand.vmem [shape: f32[16,4096], index: 3, kind: output, shape index: {}]
  %s4 = sld [smem:[#allocation0]]
  $region87: #{_lambda_.59} parent=0
    _
  %s6 = ssub.s32 1, %s4
  %s7 = scalar_select 0, %s6, %s4
  $region1: #{_lambda_.59} parent=0
    #allocation2 [shape = 'u8[131072]{0}', space=vmem, size = 0x20000, scoped, tag = 'input window, operand 1']
    #allocation3 [shape = 'u8[65536]{0}', space=vmem, size = 0x10000, scoped, tag = 'output window, operand 0']
    loop: start=0, step=1, limit=10
    $region2: #{_lambda_.59} parent=1 // loop_pre_header
      _
    $region3: #{_lambda_.59} parent=1 // loop_header
      %s9 = sphi 0, %s13
      %p10 = scmp.ge.s32.totalorder %s9, 10
      %s17 = sphi 0, %s17
      %s19 = sphi 0, %s17
      %s20 = sphi 0, %s19
      %s34 = sphi 0, %s20
      %s40 = sphi 0, %s42
      %s43 = sphi 0, %s40
      %s44 = sphi 0, %s43
      %s60 = sphi 0, %s44
      %s64 = sphi 0, %s64
      %s66 = sphi 0, %s64
      %s67 = sphi 0, %s66
      %s81 = sphi 0, %s67
      %s87 = sphi 0, %s89
      %s90 = sphi 0, %s87
      %s91 = sphi 0, %s90
      %s107 = sphi 0, %s91
    $region4: #{_lambda_.59} parent=1 // loop_header_branch
      %12 = sbr.rel (%p10) target = $region8
    $region5: #{_lambda_.59} parent=1 // loop_body
      %s14 = ssub.s32 %s9, 1
      %s15 = ssub.s32 %s9, 2
      %s16 = sadd.s32 %s9, 1
      %s18 = sadd.s32 %s17, 1
      %p21 = scmp.eq.s32.totalorder %s9, 7
      %p22 = scmp.ne.s32.totalorder %s17, %s19
      %p23 = scmp.eq.s32.totalorder %s9, 0
      %p24 = por %p22, %p23
      %p25 = scmp.ne.s32.totalorder %s17, %s19
      %p26 = scmp.eq.s32.totalorder %s14, 7
      %p27 = por %p25, %p26
      %p28 = scmp.ne.s32.totalorder %s19, %s20
      %p29 = scmp.eq.s32.totalorder %s14, 0
      %p30 = por %p28, %p29
      %p31 = scmp.ne.s32.totalorder %s19, %s20
      %p32 = scmp.eq.s32.totalorder %s15, 7
      %p33 = por %p31, %p32
      %p35 = scmp.ne.s32.totalorder %s20, %s34
      %p36 = scmp.eq.s32.totalorder %s15, 0
      %p37 = por %p35, %p36
      %s38 = ssub.s32 %s9, %s16
      %p39 = scmp.eq.s32.totalorder %s38, 0
      %s41 = sadd.s32 %s40, 1
      %s42 = scalar_select %p39, %s40, %s41
      %p45 = pneg %p39
      %p46 = scmp.eq.s32.totalorder %s9, 7
      %p47 = por %p45, %p46
      %p48 = scmp.ne.s32.totalorder %s40, %s43
      %p49 = scmp.eq.s32.totalorder %s9, 0
      %p50 = por %p48, %p49
      %p51 = scmp.ne.s32.totalorder %s40, %s43
      %p52 = scmp.eq.s32.totalorder %s14, 7
      %p53 = por %p51, %p52
      %p54 = scmp.ne.s32.totalorder %s43, %s44
      %p55 = scmp.eq.s32.totalorder %s14, 0
      %p56 = por %p54, %p55
      %p57 = scmp.ne.s32.totalorder %s43, %s44
      %p58 = scmp.eq.s32.totalorder %s15, 7
      %p59 = por %p57, %p58
      %p61 = scmp.ne.s32.totalorder %s44, %s60
      %p62 = scmp.eq.s32.totalorder %s15, 0
      %p63 = por %p61, %p62
      %s65 = sadd.s32 %s64, 1
      %p68 = scmp.eq.s32.totalorder %s9, 7
      %p69 = scmp.ne.s32.totalorder %s64, %s66
      %p70 = scmp.eq.s32.totalorder %s9, 0
      %p71 = por %p69, %p70
      %p72 = scmp.ne.s32.totalorder %s64, %s66
      %p73 = scmp.eq.s32.totalorder %s14, 7
      %p74 = por %p72, %p73
      %p75 = scmp.ne.s32.totalorder %s66, %s67
      %p76 = scmp.eq.s32.totalorder %s14, 0
      %p77 = por %p75, %p76
      %p78 = scmp.ne.s32.totalorder %s66, %s67
      %p79 = scmp.eq.s32.totalorder %s15, 7
      %p80 = por %p78, %p79
      %p82 = scmp.ne.s32.totalorder %s67, %s81
      %p83 = scmp.eq.s32.totalorder %s15, 0
      %p84 = por %p82, %p83
      %s85 = ssub.s32 %s9, %s16
      %p86 = scmp.eq.s32.totalorder %s85, 0
      %s88 = sadd.s32 %s87, 1
      %s89 = scalar_select %p86, %s87, %s88
      %p92 = pneg %p86
      %p93 = scmp.eq.s32.totalorder %s9, 7
      %p94 = por %p92, %p93
      %p95 = scmp.ne.s32.totalorder %s87, %s90
      %p96 = scmp.eq.s32.totalorder %s9, 0
      %p97 = por %p95, %p96
      %p98 = scmp.ne.s32.totalorder %s87, %s90
      %p99 = scmp.eq.s32.totalorder %s14, 7
      %p100 = por %p98, %p99
      %p101 = scmp.ne.s32.totalorder %s90, %s91
      %p102 = scmp.eq.s32.totalorder %s14, 0
      %p103 = por %p101, %p102
      %p104 = scmp.ne.s32.totalorder %s90, %s91
      %p105 = scmp.eq.s32.totalorder %s15, 7
      %p106 = por %p104, %p105
      %p108 = scmp.ne.s32.totalorder %s91, %s107
      %p109 = scmp.eq.s32.totalorder %s15, 0
      %p110 = por %p108, %p109
      %p111 = scmp.le.s32.totalorder 1, %s9
      %p112 = scmp.lt.s32.totalorder %s9, 9
      %p113 = pnand %p111, %p112
      %p114 = pneg %p113
      // Predicated region
      $region9: #{_lambda_.59} parent=5 // pred_check
        _
      $region10: #{_lambda_.59} parent=5 // pred_check_branch
        %116 = sbr.rel (%p113) target = $region12
      $region11: #{_lambda_.59} parent=5 // pred_region
        %s117 = ssub.s32 %s9, 1
        // Predicated region
        $region13: #{_lambda_.59} parent=11 // pred_check
          %p118 = pneg %p30
        $region14: #{_lambda_.59} parent=11 // pred_check_branch
          %120 = sbr.rel (%p118) target = $region16
        $region15: #{_lambda_.59} parent=11 // pred_region
          _
        $region16: #{_lambda_.59} parent=11 // pred_fallthru
          _
        // Predicated region
        $region17: #{_lambda_.59} parent=11 // pred_check
          %p121 = pneg %p77
        $region18: #{_lambda_.59} parent=11 // pred_check_branch
          %123 = sbr.rel (%p121) target = $region20
        $region19: #{_lambda_.59} parent=11 // pred_region
          _
        $region20: #{_lambda_.59} parent=11 // pred_fallthru
          _
      $region12: #{_lambda_.59} parent=5 // pred_fallthru
        _
      %p124 = scmp.lt.s32.totalorder %s9, 8
      // Predicated region
      $region21: #{_lambda_.59} parent=5 // pred_check
        %p125 = pneg %p124
      $region22: #{_lambda_.59} parent=5 // pred_check_branch
        %127 = sbr.rel (%p125) target = $region24
      $region23: #{_lambda_.59} parent=5 // pred_region
        // Predicated region
        $region25: #{_lambda_.59} parent=23 // pred_check
          %p128 = pneg %p50
        $region26: #{_lambda_.59} parent=23 // pred_check_branch
          %130 = sbr.rel (%p128) target = $region28
        $region27: #{_lambda_.59} parent=23 // pred_region
          %s131 = sand.u32 %s40, 1
          %s132 = sand.u32 %s40, 1
          %s133 = smul.addr %s132, 128
          %s134 = scalar_lea.vmem [#allocation2], %s133
          %s135 = smul.u32 4, %s9
          %s136 = smul.addr %s135, 4
          %s137 = scalar_lea.vmem %s1, %s136
          // Predicated region
          $region29: #{_lambda_.59} parent=27 // pred_check
            _
          $region30: #{_lambda_.59} parent=27 // pred_check_branch
            %139 = sbr.rel (0) target = $region32
          $region31: #{_lambda_.59} parent=27 // pred_region
            // Predicated region
            $region33: #{_lambda_.59} parent=31 // pred_check
              _
            $region34: #{_lambda_.59} parent=31 // pred_check_branch
              %141 = sbr.rel (0) target = $region36
            $region35: #{_lambda_.59} parent=31 // pred_region
              loop: start=0, step=1, limit=1
              $region37: #{_lambda_.59} parent=35 // loop_pre_header
                _
              $region38: #{_lambda_.59} parent=35 // loop_header
                %s143 = sphi 0, %s147
                %p144 = scmp.ge.s32.totalorder %s143, 1
                %s148 = sphi %s137, %s137
                %s149 = sphi %s134, %s134
              $region39: #{_lambda_.59} parent=35 // loop_header_branch
                %146 = sbr.rel (%p144) target = $region43
              $region40: #{_lambda_.59} parent=35 // loop_body
                %v150 = vld [vmem:[%s148] sm:$0xff]
                %151 = vst [vmem:[%s149] sm:$0xff] %v150
                %v152 = vld [vmem:[%s148 + $0x8] sm:$0xff]
                %153 = vst [vmem:[%s149 + $0x8] sm:$0xff] %v152
                %v154 = vld [vmem:[%s148 + $0x80] sm:$0xff]
                %155 = vst [vmem:[%s149 + $0x10] sm:$0xff] %v154
                %v156 = vld [vmem:[%s148 + $0x88] sm:$0xff]
                %157 = vst [vmem:[%s149 + $0x18] sm:$0xff] %v156
                %v158 = vld [vmem:[%s148 + $0x100] sm:$0xff]
                %159 = vst [vmem:[%s149 + $0x20] sm:$0xff] %v158
                %v160 = vld [vmem:[%s148 + $0x108] sm:$0xff]
                %161 = vst [vmem:[%s149 + $0x28] sm:$0xff] %v160
                %v162 = vld [vmem:[%s148 + $0x180] sm:$0xff]
                %163 = vst [vmem:[%s149 + $0x30] sm:$0xff] %v162
                %v164 = vld [vmem:[%s148 + $0x188] sm:$0xff]
                %165 = vst [vmem:[%s149 + $0x38] sm:$0xff] %v164
                %v166 = vld [vmem:[%s148 + $0x200] sm:$0xff]
                %167 = vst [vmem:[%s149 + $0x40] sm:$0xff] %v166
                %v168 = vld [vmem:[%s148 + $0x208] sm:$0xff]
                %169 = vst [vmem:[%s149 + $0x48] sm:$0xff] %v168
                %v170 = vld [vmem:[%s148 + $0x280] sm:$0xff]
                %171 = vst [vmem:[%s149 + $0x50] sm:$0xff] %v170
                %v172 = vld [vmem:[%s148 + $0x288] sm:$0xff]
                %173 = vst [vmem:[%s149 + $0x58] sm:$0xff] %v172
                %v174 = vld [vmem:[%s148 + $0x300] sm:$0xff]
                %175 = vst [vmem:[%s149 + $0x60] sm:$0xff] %v174
                %v176 = vld [vmem:[%s148 + $0x308] sm:$0xff]
                %177 = vst [vmem:[%s149 + $0x68] sm:$0xff] %v176
                %v178 = vld [vmem:[%s148 + $0x380] sm:$0xff]
                %179 = vst [vmem:[%s149 + $0x70] sm:$0xff] %v178
                %v180 = vld [vmem:[%s148 + $0x388] sm:$0xff]
                %181 = vst [vmem:[%s149 + $0x78] sm:$0xff] %v180
              $region41: #{_lambda_.59} parent=35 // loop_footer
                %s147 = sadd.s32 1, %s143
              $region42: #{_lambda_.59} parent=35 // loop_footer_branch
                %142 = sbr.rel target = $region38
              $region43: #{_lambda_.59} parent=35 // loop_exit
                _
            $region36: #{_lambda_.59} parent=31 // pred_fallthru
              _
            // Predicated region
            $region44: #{_lambda_.59} parent=31 // pred_check
              _
            $region45: #{_lambda_.59} parent=31 // pred_check_branch
              %183 = sbr.rel target = $region47
            $region46: #{_lambda_.59} parent=31 // pred_region
              _
            $region47: #{_lambda_.59} parent=31 // pred_fallthru
              _
          $region32: #{_lambda_.59} parent=27 // pred_fallthru
            _
          %184 = vnop
        $region28: #{_lambda_.59} parent=23 // pred_fallthru
          _
      $region24: #{_lambda_.59} parent=5 // pred_fallthru
        _
      %p185 = scmp.le.s32.totalorder 1, %s9
      %p186 = scmp.lt.s32.totalorder %s9, 9
      %p187 = pnand %p185, %p186
      %p188 = pneg %p187
      // Predicated region
      $region48: #{_lambda_.59} parent=5 // pred_check
        _
      $region49: #{_lambda_.59} parent=5 // pred_check_branch
        %190 = sbr.rel (%p187) target = $region51
      $region50: #{_lambda_.59} parent=5 // pred_region
        %s191 = ssub.s32 %s9, 1
        %s192 = sand.u32 %s43, 1
        %s193 = sand.u32 %s43, 1
        %s194 = smul.addr %s193, 128
        %s195 = scalar_lea.vmem [#allocation2], %s194
        // Predicated region
        $region52: #{_lambda_.59} parent=50 // pred_check
          %p196 = pneg %p56
        $region53: #{_lambda_.59} parent=50 // pred_check_branch
          %198 = sbr.rel (%p196) target = $region55
        $region54: #{_lambda_.59} parent=50 // pred_region
          _
        $region55: #{_lambda_.59} parent=50 // pred_fallthru
          _
        %p199 = pneg %p30
        %p200 = pneg %p27
        %s201 = sand.u32 %s43, 1
        %s202 = sand.u32 %s43, 1
        %s203 = smul.addr %s202, 128
        %s204 = scalar_lea.vmem [#allocation2], %s203
        %p205 = pneg %p56
        %p206 = pneg %p53
        %p207 = pneg %p77
        %p208 = pneg %p74
        %p209 = pneg %p103
        %p210 = pneg %p100
        %s211 = sand.u32 %s90, 1
        %s212 = sand.u32 %s90, 1
        %s213 = smul.addr %s212, 64
        %s214 = scalar_lea.vmem [#allocation3], %s213
        %s215 = smul.u32 4, %s14
        %s216 = smul.u32 4, %s14
        %v218 = vld [vmem:[%s0] sm:$0xf]
        %v219 = vld [vmem:[%s0 + $0x4] sm:$0xf]
        %v220 = vld [vmem:[%s195] sm:$0xff]
        %v221 = vld [vmem:[%s195 + $0x8] sm:$0xff]
        %v222 = vld [vmem:[%s195 + $0x10] sm:$0xff]
        %v223 = vld [vmem:[%s195 + $0x18] sm:$0xff]
        %v224 = vld [vmem:[%s195 + $0x20] sm:$0xff]
        %v225 = vld [vmem:[%s195 + $0x28] sm:$0xff]
        %v226 = vld [vmem:[%s195 + $0x30] sm:$0xff]
        %v227 = vld [vmem:[%s195 + $0x38] sm:$0xff]
        %v228 = vld [vmem:[%s195 + $0x40] sm:$0xff]
        %v229 = vld [vmem:[%s195 + $0x48] sm:$0xff]
        %v230 = vld [vmem:[%s195 + $0x50] sm:$0xff]
        %v231 = vld [vmem:[%s195 + $0x58] sm:$0xff]
        %v232 = vld [vmem:[%s195 + $0x60] sm:$0xff]
        %v233 = vld [vmem:[%s195 + $0x68] sm:$0xff]
        %v234 = vld [vmem:[%s195 + $0x70] sm:$0xff]
        %v235 = vld [vmem:[%s195 + $0x78] sm:$0xff]
        %v236 = vld [vmem:[%s2] sm:$0xff]
        %v237 = vld [vmem:[%s2 + $0x8] sm:$0xff]
        %239 = vset.pattern.permute.xlu0 0
        %240 = vperm.xlu0 %239, %v236
        %v241 = vpop.permute.xlu0 %240
        %244 = vset.pattern.permute.xlu0 0
        %245 = vperm.xlu0 %244, %v237
        %v246 = vpop.permute.xlu0 %245
        %v250 = vunpack.c.l.b16 %v218
        %v251 = vunpack.c.l.b16 %v219
        %v252 = vpack.c.b16 %v251, %v250
        %v269 = vunpack.c.l.b16 %v220
        %v270 = vunpack.c.h.b16 %v220
        %v271 = vunpack.c.l.b16 %v221
        %v272 = vunpack.c.h.b16 %v221
        %v273 = vunpack.c.l.b16 %v222
        %v274 = vunpack.c.h.b16 %v222
        %v275 = vunpack.c.l.b16 %v223
        %v276 = vunpack.c.h.b16 %v223
        %v277 = vunpack.c.l.b16 %v224
        %v278 = vunpack.c.h.b16 %v224
        %v279 = vunpack.c.l.b16 %v225
        %v280 = vunpack.c.h.b16 %v225
        %v281 = vunpack.c.l.b16 %v226
        %v282 = vunpack.c.h.b16 %v226
        %v283 = vunpack.c.l.b16 %v227
        %v284 = vunpack.c.h.b16 %v227
        %v285 = vunpack.c.l.b16 %v228
        %v286 = vunpack.c.h.b16 %v228
        %v287 = vunpack.c.l.b16 %v229
        %v288 = vunpack.c.h.b16 %v229
        %v289 = vunpack.c.l.b16 %v230
        %v290 = vunpack.c.h.b16 %v230
        %v291 = vunpack.c.l.b16 %v231
        %v292 = vunpack.c.h.b16 %v231
        %v293 = vunpack.c.l.b16 %v232
        %v294 = vunpack.c.h.b16 %v232
        %v295 = vunpack.c.l.b16 %v233
        %v296 = vunpack.c.h.b16 %v233
        %v297 = vunpack.c.l.b16 %v234
        %v298 = vunpack.c.h.b16 %v234
        %v299 = vunpack.c.l.b16 %v235
        %v300 = vunpack.c.h.b16 %v235
        %v301 = vpack.c.b16 %v273, %v269
        %v302 = vpack.c.b16 %v274, %v270
        %v303 = vpack.c.b16 %v275, %v271
        %v304 = vpack.c.b16 %v276, %v272
        %v305 = vpack.c.b16 %v281, %v277
        %v306 = vpack.c.b16 %v282, %v278
        %v307 = vpack.c.b16 %v283, %v279
        %v308 = vpack.c.b16 %v284, %v280
        %v309 = vpack.c.b16 %v289, %v285
        %v310 = vpack.c.b16 %v290, %v286
        %v311 = vpack.c.b16 %v291, %v287
        %v312 = vpack.c.b16 %v292, %v288
        %v313 = vpack.c.b16 %v297, %v293
        %v314 = vpack.c.b16 %v298, %v294
        %v315 = vpack.c.b16 %v299, %v295
        %v316 = vpack.c.b16 %v300, %v296
        %vm333 = vcmask 523264
        %v335 = vsel %vm333, %v252, 0
        %337 = vmatprep.subr.bf16.mxu0 0
        %338 = vmatpush1.bf16.msra.mxu0 0
        %339 = vmatprep.subr.bf16.mxu0 0
        %340 = vmatpush1.bf16.msra.mxu0 0
        %341 = vmatprep.subr.bf16.mxu0 0
        %342 = vmatpush1.bf16.msra.mxu0 0
        %343 = vmatprep.subr.bf16.mxu0 0
        %344 = vmatpush1.bf16.msra.mxu0 0
        %345 = vmatprep.subr.bf16.mxu0 %v314
        %346 = vmatpush1.bf16.msra.mxu0 %v313
        %347 = vmatprep.subr.bf16.mxu0 %v310
        %348 = vmatpush1.bf16.msra.mxu0 %v309
        %349 = vmatprep.subr.bf16.mxu0 %v306
        %350 = vmatpush1.bf16.msra.mxu0 %v305
        %351 = vmatprep.subr.bf16.mxu0 %v302
        %352 = vmatpush1.bf16.msra.mxu0 %v301
        %353 = vmatprep.subr.bf16.mxu0 0
        %354 = vmatpush2.bf16.msra.mxu0 0
        %355 = vmatprep.subr.bf16.mxu0 0
        %356 = vmatpush2.bf16.msra.mxu0 0
        %357 = vmatprep.subr.bf16.mxu0 0
        %358 = vmatpush2.bf16.msra.mxu0 0
        %359 = vmatprep.subr.bf16.mxu0 0
        %360 = vmatpush2.bf16.msra.mxu0 0
        %361 = vmatprep.subr.bf16.mxu0 0
        %362 = vmatpush2.bf16.msra.mxu0 0
        %363 = vmatprep.subr.bf16.mxu0 0
        %364 = vmatpush2.bf16.msra.mxu0 0
        %365 = vmatprep.subr.bf16.mxu0 0
        %366 = vmatpush2.bf16.msra.mxu0 0
        %367 = vmatprep.subr.bf16.mxu0 0
        %368 = vmatpush2.bf16.msra.mxu0 0
        %369 = vmatprep.mubr.bf16.mxu0 0
        %370 = vmatmul.mubr.bf16.gmra.mxu0 %v335
        %v371 = vpop.f32.mrf.mxu0
        %v372 = vadd.f32 %v241, %v371
        %v373 = vpop.f32.mrf.mxu0
        %v374 = vadd.f32 %v241, %v373
        %v375 = vpop.f32.mrf.mxu0
        %v376 = vadd.f32 %v246, %v375
        %v377 = vpop.f32.mrf.mxu0
        %v378 = vadd.f32 %v246, %v377
        %379 = vdwg.mxu0
        %380 = vmatprep.subr.bf16.mxu0 0
        %381 = vmatpush1.bf16.msra.mxu0 0
        %382 = vmatprep.subr.bf16.mxu0 0
        %383 = vmatpush1.bf16.msra.mxu0 0
        %384 = vmatprep.subr.bf16.mxu0 0
        %385 = vmatpush1.bf16.msra.mxu0 0
        %386 = vmatprep.subr.bf16.mxu0 0
        %387 = vmatpush1.bf16.msra.mxu0 0
        %388 = vmatprep.subr.bf16.mxu0 %v316
        %389 = vmatpush1.bf16.msra.mxu0 %v315
        %390 = vmatprep.subr.bf16.mxu0 %v312
        %391 = vmatpush1.bf16.msra.mxu0 %v311
        %392 = vmatprep.subr.bf16.mxu0 %v308
        %393 = vmatpush1.bf16.msra.mxu0 %v307
        %394 = vmatprep.subr.bf16.mxu0 %v304
        %395 = vmatpush1.bf16.msra.mxu0 %v303
        %396 = vmatprep.subr.bf16.mxu0 0
        %397 = vmatpush2.bf16.msra.mxu0 0
        %398 = vmatprep.subr.bf16.mxu0 0
        %399 = vmatpush2.bf16.msra.mxu0 0
        %400 = vmatprep.subr.bf16.mxu0 0
        %401 = vmatpush2.bf16.msra.mxu0 0
        %402 = vmatprep.subr.bf16.mxu0 0
        %403 = vmatpush2.bf16.msra.mxu0 0
        %404 = vmatprep.subr.bf16.mxu0 0
        %405 = vmatpush2.bf16.msra.mxu0 0
        %406 = vmatprep.subr.bf16.mxu0 0
        %407 = vmatpush2.bf16.msra.mxu0 0
        %408 = vmatprep.subr.bf16.mxu0 0
        %409 = vmatpush2.bf16.msra.mxu0 0
        %410 = vmatprep.subr.bf16.mxu0 0
        %411 = vmatpush2.bf16.msra.mxu0 0
        %412 = vmatprep.mubr.bf16.mxu0 0
        %413 = vmatmul.mubr.bf16.gmra.mxu0 %v335
        %v414 = vpop.f32.mrf.mxu0
        %v415 = vadd.f32 %v241, %v414
        %v416 = vpop.f32.mrf.mxu0
        %v417 = vadd.f32 %v241, %v416
        %v418 = vpop.f32.mrf.mxu0
        %v419 = vadd.f32 %v246, %v418
        %v420 = vpop.f32.mrf.mxu0
        %v421 = vadd.f32 %v246, %v420
        %422 = vdwg.mxu0
        %423 = vst [vmem:[%s214] sm:$0xff] %v372
        %424 = vst [vmem:[%s214 + $0x8] sm:$0xff] %v374
        %425 = vst [vmem:[%s214 + $0x10] sm:$0xff] %v415
        %426 = vst [vmem:[%s214 + $0x18] sm:$0xff] %v417
        %427 = vst [vmem:[%s214 + $0x20] sm:$0xff] %v376
        %428 = vst [vmem:[%s214 + $0x28] sm:$0xff] %v378
        %429 = vst [vmem:[%s214 + $0x30] sm:$0xff] %v419
        %430 = vst [vmem:[%s214 + $0x38] sm:$0xff] %v421
        %s431 = sand.u32 %s90, 1
        %s432 = sand.u32 %s90, 1
        %s433 = smul.addr %s432, 64
        %s434 = scalar_lea.vmem [#allocation3], %s433
        // Predicated region
        $region56: #{_lambda_.59} parent=50 // pred_check
          %p435 = pneg %p100
        $region57: #{_lambda_.59} parent=50 // pred_check_branch
          %437 = sbr.rel (%p435) target = $region59
        $region58: #{_lambda_.59} parent=50 // pred_region
          %s438 = smul.u32 4, %s14
          %s439 = smul.addr %s438, 8
          %s440 = scalar_lea.vmem %s3, %s439
          // Predicated region
          $region60: #{_lambda_.59} parent=58 // pred_check
            _
          $region61: #{_lambda_.59} parent=58 // pred_check_branch
            %442 = sbr.rel (0) target = $region63
          $region62: #{_lambda_.59} parent=58 // pred_region
            // Predicated region
            $region64: #{_lambda_.59} parent=62 // pred_check
              _
            $region65: #{_lambda_.59} parent=62 // pred_check_branch
              %444 = sbr.rel (0) target = $region67
            $region66: #{_lambda_.59} parent=62 // pred_region
              loop: start=0, step=1, limit=1
              $region68: #{_lambda_.59} parent=66 // loop_pre_header
                _
              $region69: #{_lambda_.59} parent=66 // loop_header
                %s446 = sphi 0, %s450
                %p447 = scmp.ge.s32.totalorder %s446, 1
                %s451 = sphi %s434, %s434
                %s452 = sphi %s440, %s440
              $region70: #{_lambda_.59} parent=66 // loop_header_branch
                %449 = sbr.rel (%p447) target = $region74
              $region71: #{_lambda_.59} parent=66 // loop_body
                %v453 = vld [vmem:[%s451] sm:$0xff]
                %454 = vst [vmem:[%s452] sm:$0xff] %v453
                %v455 = vld [vmem:[%s451 + $0x8] sm:$0xff]
                %456 = vst [vmem:[%s452 + $0x8] sm:$0xff] %v455
                %v457 = vld [vmem:[%s451 + $0x10] sm:$0xff]
                %458 = vst [vmem:[%s452 + $0x10] sm:$0xff] %v457
                %v459 = vld [vmem:[%s451 + $0x18] sm:$0xff]
                %460 = vst [vmem:[%s452 + $0x18] sm:$0xff] %v459
                %v461 = vld [vmem:[%s451 + $0x20] sm:$0xff]
                %462 = vst [vmem:[%s452 + $0x100] sm:$0xff] %v461
                %v463 = vld [vmem:[%s451 + $0x28] sm:$0xff]
                %464 = vst [vmem:[%s452 + $0x108] sm:$0xff] %v463
                %v465 = vld [vmem:[%s451 + $0x30] sm:$0xff]
                %466 = vst [vmem:[%s452 + $0x110] sm:$0xff] %v465
                %v467 = vld [vmem:[%s451 + $0x38] sm:$0xff]
                %468 = vst [vmem:[%s452 + $0x118] sm:$0xff] %v467
              $region72: #{_lambda_.59} parent=66 // loop_footer
                %s450 = sadd.s32 1, %s446
              $region73: #{_lambda_.59} parent=66 // loop_footer_branch
                %445 = sbr.rel target = $region69
              $region74: #{_lambda_.59} parent=66 // loop_exit
                _
            $region67: #{_lambda_.59} parent=62 // pred_fallthru
              _
            // Predicated region
            $region75: #{_lambda_.59} parent=62 // pred_check
              _
            $region76: #{_lambda_.59} parent=62 // pred_check_branch
              %470 = sbr.rel target = $region78
            $region77: #{_lambda_.59} parent=62 // pred_region
              _
            $region78: #{_lambda_.59} parent=62 // pred_fallthru
              _
          $region63: #{_lambda_.59} parent=58 // pred_fallthru
            _
          %471 = vnop
        $region59: #{_lambda_.59} parent=50 // pred_fallthru
          _
      $region51: #{_lambda_.59} parent=5 // pred_fallthru
        _
      %p472 = scmp.le.s32.totalorder 2, %s9
      // Predicated region
      $region79: #{_lambda_.59} parent=5 // pred_check
        %p473 = pneg %p472
      $region80: #{_lambda_.59} parent=5 // pred_check_branch
        %475 = sbr.rel (%p473) target = $region82
      $region81: #{_lambda_.59} parent=5 // pred_region
        %s476 = ssub.s32 %s9, 2
        // Predicated region
        $region83: #{_lambda_.59} parent=81 // pred_check
          %p477 = pneg %p106
        $region84: #{_lambda_.59} parent=81 // pred_check_branch
          %479 = sbr.rel (%p477) target = $region86
        $region85: #{_lambda_.59} parent=81 // pred_region
          %s480 = sand.u32 %s91, 1
          %s481 = sand.u32 %s91, 1
          %s482 = smul.addr %s481, 64
          %s483 = scalar_lea.vmem [#allocation3], %s482
        $region86: #{_lambda_.59} parent=81 // pred_fallthru
          _
      $region82: #{_lambda_.59} parent=5 // pred_fallthru
        _
    $region6: #{_lambda_.59} parent=1 // loop_footer
      %s13 = sadd.s32 1, %s9
    $region7: #{_lambda_.59} parent=1 // loop_footer_branch
      %8 = sbr.rel target = $region3
    $region8: #{_lambda_.59} parent=1 // loop_exit
      _

// kernel: _lambda_.45
$region0: #{_lambda_.45}
  #allocation0 [shape = 'u32[]', space=smem, size = 0x4, offset = 0x4, fixed_abs, tag = 'smem constant byte address 0x4 - core index']
  #allocation1 [shape = 'u32[144,128]{1,0:T(1,128)}', space=vmem, size = 0x12000, scoped, tag = 'internal scratch']
  %s0 = inlined_call_operand.vmem [shape: bf16[16,64], index: 0, kind: input, shape index: {}]
  %s1 = inlined_call_operand.vmem [shape: bf16[64,128], index: 1, kind: input, shape index: {}]
  %s2 = inlined_call_operand.vmem [shape: f32[16,1], index: 2, kind: input, shape index: {}]
  %s3 = inlined_call_operand.vmem [shape: bf16[16,128], index: 3, kind: output, shape index: {}]
  %s4 = sld [smem:[#allocation0]]
  $region22: #{_lambda_.45} parent=0
    _
  %s6 = ssub.s32 1, %s4
  %s7 = scalar_select 0, %s6, %s4
  // Predicated region
  $region2: #{_lambda_.45} parent=0 // pred_check
    _
  $region3: #{_lambda_.45} parent=0 // pred_check_branch
    %9 = sbr.rel (0) target = $region5
  $region4: #{_lambda_.45} parent=0 // pred_region
    _
  $region5: #{_lambda_.45} parent=0 // pred_fallthru
    _
  // Predicated region
  $region6: #{_lambda_.45} parent=0 // pred_check
    _
  $region7: #{_lambda_.45} parent=0 // pred_check_branch
    %11 = sbr.rel (0) target = $region9
  $region8: #{_lambda_.45} parent=0 // pred_region
    _
  $region9: #{_lambda_.45} parent=0 // pred_fallthru
    _
  // Predicated region
  $region10: #{_lambda_.45} parent=0 // pred_check
    _
  $region11: #{_lambda_.45} parent=0 // pred_check_branch
    %13 = sbr.rel (0) target = $region13
  $region12: #{_lambda_.45} parent=0 // pred_region
    _
  $region13: #{_lambda_.45} parent=0 // pred_fallthru
    _
  %v15 = vld [vmem:[%s0] sm:$0xf]
  %v16 = vld [vmem:[%s0 + $0x4] sm:$0xf]
  %v17 = vld [vmem:[%s1] sm:$0xf]
  %v18 = vld [vmem:[%s1 + $0x4] sm:$0xf]
  %v19 = vld [vmem:[%s1 + $0x8] sm:$0xf]
  %v20 = vld [vmem:[%s1 + $0xc] sm:$0xf]
  %v21 = vld [vmem:[%s1 + $0x10] sm:$0xf]
  %v22 = vld [vmem:[%s1 + $0x14] sm:$0xf]
  %v23 = vld [vmem:[%s1 + $0x18] sm:$0xf]
  %v24 = vld [vmem:[%s1 + $0x1c] sm:$0xf]
  %v25 = vld [vmem:[%s2] sm:$0xff]
  %v26 = vld [vmem:[%s2 + $0x8] sm:$0xff]
  %28 = vset.pattern.permute.xlu0 0
  %29 = vperm.xlu0 %28, %v25
  %v30 = vpop.permute.xlu0 %29
  %33 = vset.pattern.permute.xlu0 0
  %34 = vperm.xlu0 %33, %v26
  %v35 = vpop.permute.xlu0 %34
  %v39 = vunpack.c.l.b16 %v15
  %v40 = vunpack.c.l.b16 %v16
  %v41 = vpack.c.b16 %v40, %v39
  %v50 = vunpack.c.l.b16 %v17
  %v51 = vunpack.c.l.b16 %v18
  %v52 = vunpack.c.l.b16 %v19
  %v53 = vunpack.c.l.b16 %v20
  %v54 = vunpack.c.l.b16 %v21
  %v55 = vunpack.c.l.b16 %v22
  %v56 = vunpack.c.l.b16 %v23
  %v57 = vunpack.c.l.b16 %v24
  %v58 = vpack.c.b16 %v51, %v50
  %v59 = vpack.c.b16 %v53, %v52
  %v60 = vpack.c.b16 %v55, %v54
  %v61 = vpack.c.b16 %v57, %v56
  %vm66 = vcmask 523264
  %v68 = vsel %vm66, %v41, 0
  %70 = vmatprep.subr.bf16.mxu0 0
  %71 = vmatpush1.bf16.msra.mxu0 0
  %72 = vmatprep.subr.bf16.mxu0 0
  %73 = vmatpush1.bf16.msra.mxu0 0
  %74 = vmatprep.subr.bf16.mxu0 0
  %75 = vmatpush1.bf16.msra.mxu0 0
  %76 = vmatprep.subr.bf16.mxu0 0
  %77 = vmatpush1.bf16.msra.mxu0 0
  %78 = vmatprep.subr.bf16.mxu0 0
  %79 = vmatpush1.bf16.msra.mxu0 %v61
  %80 = vmatprep.subr.bf16.mxu0 0
  %81 = vmatpush1.bf16.msra.mxu0 %v60
  %82 = vmatprep.subr.bf16.mxu0 0
  %83 = vmatpush1.bf16.msra.mxu0 %v59
  %84 = vmatprep.subr.bf16.mxu0 0
  %85 = vmatpush1.bf16.msra.mxu0 %v58
  %86 = vmatprep.subr.bf16.mxu0 0
  %87 = vmatpush2.bf16.msra.mxu0 0
  %88 = vmatprep.subr.bf16.mxu0 0
  %89 = vmatpush2.bf16.msra.mxu0 0
  %90 = vmatprep.subr.bf16.mxu0 0
  %91 = vmatpush2.bf16.msra.mxu0 0
  %92 = vmatprep.subr.bf16.mxu0 0
  %93 = vmatpush2.bf16.msra.mxu0 0
  %94 = vmatprep.subr.bf16.mxu0 0
  %95 = vmatpush2.bf16.msra.mxu0 0
  %96 = vmatprep.subr.bf16.mxu0 0
  %97 = vmatpush2.bf16.msra.mxu0 0
  %98 = vmatprep.subr.bf16.mxu0 0
  %99 = vmatpush2.bf16.msra.mxu0 0
  %100 = vmatprep.subr.bf16.mxu0 0
  %101 = vmatpush2.bf16.msra.mxu0 0
  %102 = vmatprep.mubr.bf16.mxu0 0
  %103 = vmatmul.mubr.bf16.gmra.mxu0 %v68
  %v104 = vpop.f32.mrf.mxu0
  %v105 = vadd.f32 %v30, %v104
  %v106 = vpop.f32.mrf.mxu0
  %v107 = vpop.f32.mrf.mxu0
  %v108 = vadd.f32 %v35, %v107
  %v109 = vpop.f32.mrf.mxu0
  %110 = vdwg.mxu0
  %v111 = vpack.c.bf16 %v108, %v105
  %v113 = vunpack.c.l.b16 %v111
  %v114 = vunpack.c.h.b16 %v111
  %v115 = vpack.c.b16 %v113, %v113
  %v116 = vpack.c.b16 %v114, %v114
  %119 = vst [vmem:[%s3] sm:$0xf] %v115
  %120 = vst [vmem:[%s3 + $0x4] sm:$0xf] %v116
  // Predicated region
  $region14: #{_lambda_.45} parent=0 // pred_check
    _
  $region15: #{_lambda_.45} parent=0 // pred_check_branch
    %122 = sbr.rel (0) target = $region17
  $region16: #{_lambda_.45} parent=0 // pred_region
    _
  $region17: #{_lambda_.45} parent=0 // pred_fallthru
    _
  // Predicated region
  $region18: #{_lambda_.45} parent=0 // pred_check
    _
  $region19: #{_lambda_.45} parent=0 // pred_check_branch
    %124 = sbr.rel (0) target = $region21
  $region20: #{_lambda_.45} parent=0 // pred_region
    _
  $region21: #{_lambda_.45} parent=0 // pred_fallthru
    _

// kernel: _lambda_.46
$region0: #{_lambda_.46}
  #allocation0 [shape = 'u32[]', space=smem, size = 0x4, offset = 0x4, fixed_abs, tag = 'smem constant byte address 0x4 - core index']
  #allocation1 [shape = 'u32[144,128]{1,0:T(1,128)}', space=vmem, size = 0x12000, scoped, tag = 'internal scratch']
  %s0 = inlined_call_operand.vmem [shape: bf16[32,16], index: 0, kind: input, shape index: {}]
  %s1 = inlined_call_operand.vmem [shape: bf16[16,128], index: 1, kind: input, shape index: {}]
  %s2 = inlined_call_operand.vmem [shape: f32[32,1], index: 2, kind: input, shape index: {}]
  %s3 = inlined_call_operand.vmem [shape: bf16[32,128], index: 3, kind: input, shape index: {}]
  %s4 = inlined_call_operand.vmem [shape: bf16[32,128], index: 4, kind: output, shape index: {}]
  %s5 = sld [smem:[#allocation0]]
  $region26: #{_lambda_.46} parent=0
    _
  %s7 = ssub.s32 1, %s5
  %s8 = scalar_select 0, %s7, %s5
  // Predicated region
  $region2: #{_lambda_.46} parent=0 // pred_check
    _
  $region3: #{_lambda_.46} parent=0 // pred_check_branch
    %10 = sbr.rel (0) target = $region5
  $region4: #{_lambda_.46} parent=0 // pred_region
    _
  $region5: #{_lambda_.46} parent=0 // pred_fallthru
    _
  // Predicated region
  $region6: #{_lambda_.46} parent=0 // pred_check
    _
  $region7: #{_lambda_.46} parent=0 // pred_check_branch
    %12 = sbr.rel (0) target = $region9
  $region8: #{_lambda_.46} parent=0 // pred_region
    _
  $region9: #{_lambda_.46} parent=0 // pred_fallthru
    _
  // Predicated region
  $region10: #{_lambda_.46} parent=0 // pred_check
    _
  $region11: #{_lambda_.46} parent=0 // pred_check_branch
    %14 = sbr.rel (0) target = $region13
  $region12: #{_lambda_.46} parent=0 // pred_region
    _
  $region13: #{_lambda_.46} parent=0 // pred_fallthru
    _
  // Predicated region
  $region14: #{_lambda_.46} parent=0 // pred_check
    _
  $region15: #{_lambda_.46} parent=0 // pred_check_branch
    %16 = sbr.rel (0) target = $region17
  $region16: #{_lambda_.46} parent=0 // pred_region
    _
  $region17: #{_lambda_.46} parent=0 // pred_fallthru
    _
  %v18 = vld [vmem:[%s3] sm:$0xf]
  %v19 = vld [vmem:[%s3 + $0x4] sm:$0xf]
  %v20 = vld [vmem:[%s3 + $0x8] sm:$0xf]
  %v21 = vld [vmem:[%s3 + $0xc] sm:$0xf]
  %v22 = vunpack.c.l.bf16 %v18
  %v23 = vunpack.c.l.bf16 %v19
  %v24 = vunpack.c.l.bf16 %v20
  %v25 = vunpack.c.l.bf16 %v21
  %v26 = vld [vmem:[%s0] sm:$0xf]
  %v27 = vld [vmem:[%s0 + $0x4] sm:$0xf]
  %v28 = vld [vmem:[%s0 + $0x8] sm:$0xf]
  %v29 = vld [vmem:[%s0 + $0xc] sm:$0xf]
  %v30 = vld [vmem:[%s1] sm:$0xf]
  %v31 = vld [vmem:[%s1 + $0x4] sm:$0xf]
  %v32 = vld [vmem:[%s2] sm:$0xff]
  %v33 = vld [vmem:[%s2 + $0x8] sm:$0xff]
  %v34 = vld [vmem:[%s2 + $0x10] sm:$0xff]
  %v35 = vld [vmem:[%s2 + $0x18] sm:$0xff]
  %37 = vset.pattern.permute.xlu0 0
  %38 = vperm.xlu0 %37, %v32
  %v39 = vpop.permute.xlu0 %38
  %42 = vset.pattern.permute.xlu0 0
  %43 = vperm.xlu0 %42, %v33
  %v44 = vpop.permute.xlu0 %43
  %47 = vset.pattern.permute.xlu0 0
  %48 = vperm.xlu0 %47, %v34
  %v49 = vpop.permute.xlu0 %48
  %52 = vset.pattern.permute.xlu0 0
  %53 = vperm.xlu0 %52, %v35
  %v54 = vpop.permute.xlu0 %53
  %v60 = vunpack.c.l.b16 %v26
  %v61 = vunpack.c.l.b16 %v27
  %v62 = vunpack.c.l.b16 %v28
  %v63 = vunpack.c.l.b16 %v29
  %v64 = vpack.c.b16 %v61, %v60
  %v65 = vpack.c.b16 %v63, %v62
  %v68 = vunpack.c.l.b16 %v30
  %v69 = vunpack.c.l.b16 %v31
  %v70 = vpack.c.b16 %v69, %v68
  %vm72 = vcmask 130048
  %v74 = vsel %vm72, %v64, 0
  %v77 = vsel %vm72, %v65, 0
  %79 = vmatprep.subr.bf16.mxu0 0
  %80 = vmatpush1.bf16.msra.mxu0 0
  %81 = vmatprep.subr.bf16.mxu0 0
  %82 = vmatpush1.bf16.msra.mxu0 0
  %83 = vmatprep.subr.bf16.mxu0 0
  %84 = vmatpush1.bf16.msra.mxu0 0
  %85 = vmatprep.subr.bf16.mxu0 0
  %86 = vmatpush1.bf16.msra.mxu0 0
  %87 = vmatprep.subr.bf16.mxu0 0
  %88 = vmatpush1.bf16.msra.mxu0 0
  %89 = vmatprep.subr.bf16.mxu0 0
  %90 = vmatpush1.bf16.msra.mxu0 0
  %91 = vmatprep.subr.bf16.mxu0 0
  %92 = vmatpush1.bf16.msra.mxu0 0
  %93 = vmatprep.subr.bf16.mxu0 0
  %94 = vmatpush1.bf16.msra.mxu0 %v70
  %95 = vmatprep.subr.bf16.mxu0 0
  %96 = vmatpush2.bf16.msra.mxu0 0
  %97 = vmatprep.subr.bf16.mxu0 0
  %98 = vmatpush2.bf16.msra.mxu0 0
  %99 = vmatprep.subr.bf16.mxu0 0
  %100 = vmatpush2.bf16.msra.mxu0 0
  %101 = vmatprep.subr.bf16.mxu0 0
  %102 = vmatpush2.bf16.msra.mxu0 0
  %103 = vmatprep.subr.bf16.mxu0 0
  %104 = vmatpush2.bf16.msra.mxu0 0
  %105 = vmatprep.subr.bf16.mxu0 0
  %106 = vmatpush2.bf16.msra.mxu0 0
  %107 = vmatprep.subr.bf16.mxu0 0
  %108 = vmatpush2.bf16.msra.mxu0 0
  %109 = vmatprep.subr.bf16.mxu0 0
  %110 = vmatpush2.bf16.msra.mxu0 0
  %111 = vmatprep.mubr.bf16.mxu0 0
  %112 = vmatmul.mubr.bf16.gmra.mxu0 %v74
  %v113 = vpop.f32.mrf.mxu0
  %v114 = vadd.f32 %v39, %v113
  %v115 = vpop.f32.mrf.mxu0
  %v116 = vpop.f32.mrf.mxu0
  %v117 = vadd.f32 %v44, %v116
  %v118 = vpop.f32.mrf.mxu0
  %119 = vmatprep.mubr.bf16.mxu0 0
  %120 = vmatmul.mubr.bf16.gmra.mxu0 %v77
  %v121 = vpop.f32.mrf.mxu0
  %v122 = vadd.f32 %v49, %v121
  %v123 = vpop.f32.mrf.mxu0
  %v124 = vpop.f32.mrf.mxu0
  %v125 = vadd.f32 %v54, %v124
  %v126 = vpop.f32.mrf.mxu0
  %127 = vdwg.mxu0
  %v128 = vadd.f32 %v114, %v22
  %v129 = vadd.f32 %v117, %v23
  %v130 = vadd.f32 %v122, %v24
  %v131 = vadd.f32 %v125, %v25
  %v132 = vmax.f32 %v128, 0.0
  %v133 = vmax.f32 %v129, 0.0
  %v134 = vmax.f32 %v130, 0.0
  %v135 = vmax.f32 %v131, 0.0
  %v136 = vpack.c.bf16 %v133, %v132
  %v137 = vpack.c.bf16 %v135, %v134
  %v140 = vunpack.c.l.b16 %v136
  %v141 = vunpack.c.h.b16 %v136
  %v142 = vunpack.c.l.b16 %v137
  %v143 = vunpack.c.h.b16 %v137
  %v144 = vpack.c.b16 %v140, %v140
  %v145 = vpack.c.b16 %v141, %v141
  %v146 = vpack.c.b16 %v142, %v142
  %v147 = vpack.c.b16 %v143, %v143
  %152 = vst [vmem:[%s4] sm:$0xf] %v144
  %153 = vst [vmem:[%s4 + $0x4] sm:$0xf] %v145
  %154 = vst [vmem:[%s4 + $0x8] sm:$0xf] %v146
  %155 = vst [vmem:[%s4 + $0xc] sm:$0xf] %v147
  // Predicated region
  $region18: #{_lambda_.46} parent=0 // pred_check
    _
  $region19: #{_lambda_.46} parent=0 // pred_check_branch
    %157 = sbr.rel (0) target = $region21
  $region20: #{_lambda_.46} parent=0 // pred_region
    _
  $region21: #{_lambda_.46} parent=0 // pred_fallthru
    _
  // Predicated region
  $region22: #{_lambda_.46} parent=0 // pred_check
    _
  $region23: #{_lambda_.46} parent=0 // pred_check_branch
    %159 = sbr.rel (0) target = $region25
  $region24: #{_lambda_.46} parent=0 // pred_region
    _
  $region25: #{_lambda_.46} parent=0 // pred_fallthru
    _

// kernel: _lambda_.47
$region0: #{_lambda_.47}
  #allocation0 [shape = 'u32[]', space=smem, size = 0x4, offset = 0x4, fixed_abs, tag = 'smem constant byte address 0x4 - core index']
  #allocation1 [shape = 'u32[144,128]{1,0:T(1,128)}', space=vmem, size = 0x12000, scoped, tag = 'internal scratch']
  %s0 = inlined_call_operand.vmem [shape: bf16[16,144], index: 0, kind: input, shape index: {}]
  %s1 = inlined_call_operand.vmem [shape: bf16[144,128], index: 1, kind: input, shape index: {}]
  %s2 = inlined_call_operand.vmem [shape: f32[16,1], index: 2, kind: input, shape index: {}]
  %s3 = inlined_call_operand.vmem [shape: bf16[16,128], index: 3, kind: output, shape index: {}]
  %s4 = sld [smem:[#allocation0]]
  $region22: #{_lambda_.47} parent=0
    _
  %s6 = ssub.s32 1, %s4
  %s7 = scalar_select 0, %s6, %s4
  // Predicated region
  $region2: #{_lambda_.47} parent=0 // pred_check
    _
  $region3: #{_lambda_.47} parent=0 // pred_check_branch
    %9 = sbr.rel (0) target = $region5
  $region4: #{_lambda_.47} parent=0 // pred_region
    _
  $region5: #{_lambda_.47} parent=0 // pred_fallthru
    _
  // Predicated region
  $region6: #{_lambda_.47} parent=0 // pred_check
    _
  $region7: #{_lambda_.47} parent=0 // pred_check_branch
    %11 = sbr.rel (0) target = $region9
  $region8: #{_lambda_.47} parent=0 // pred_region
    _
  $region9: #{_lambda_.47} parent=0 // pred_fallthru
    _
  // Predicated region
  $region10: #{_lambda_.47} parent=0 // pred_check
    _
  $region11: #{_lambda_.47} parent=0 // pred_check_branch
    %13 = sbr.rel (0) target = $region13
  $region12: #{_lambda_.47} parent=0 // pred_region
    _
  $region13: #{_lambda_.47} parent=0 // pred_fallthru
    _
  %v15 = vld [vmem:[%s0] sm:$0xff]
  %v16 = vld [vmem:[%s0 + $0x8] sm:$0xff]
  %v17 = vld [vmem:[%s1] sm:$0xf]
  %v18 = vld [vmem:[%s1 + $0x4] sm:$0xf]
  %v19 = vld [vmem:[%s1 + $0x8] sm:$0xf]
  %v20 = vld [vmem:[%s1 + $0xc] sm:$0xf]
  %v21 = vld [vmem:[%s1 + $0x10] sm:$0xf]
  %v22 = vld [vmem:[%s1 + $0x14] sm:$0xf]
  %v23 = vld [vmem:[%s1 + $0x18] sm:$0xf]
  %v24 = vld [vmem:[%s1 + $0x1c] sm:$0xf]
  %v25 = vld [vmem:[%s1 + $0x20] sm:$0xf]
  %v26 = vld [vmem:[%s1 + $0x24] sm:$0xf]
  %v27 = vld [vmem:[%s1 + $0x28] sm:$0xf]
  %v28 = vld [vmem:[%s1 + $0x2c] sm:$0xf]
  %v29 = vld [vmem:[%s1 + $0x30] sm:$0xf]
  %v30 = vld [vmem:[%s1 + $0x34] sm:$0xf]
  %v31 = vld [vmem:[%s1 + $0x38] sm:$0xf]
  %v32 = vld [vmem:[%s1 + $0x3c] sm:$0xf]
  %v33 = vld [vmem:[%s1 + $0x40] sm:$0xf]
  %v34 = vld [vmem:[%s1 + $0x44] sm:$0xf]
  %v35 = vld [vmem:[%s2] sm:$0xff]
  %v36 = vld [vmem:[%s2 + $0x8] sm:$0xff]
  %38 = vset.pattern.permute.xlu0 0
  %39 = vperm.xlu0 %38, %v35
  %v40 = vpop.permute.xlu0 %39
  %43 = vset.pattern.permute.xlu0 0
  %44 = vperm.xlu0 %43, %v36
  %v45 = vpop.permute.xlu0 %44
  %v49 = vunpack.c.l.b16 %v15
  %v50 = vunpack.c.h.b16 %v15
  %v51 = vunpack.c.l.b16 %v16
  %v52 = vunpack.c.h.b16 %v16
  %v53 = vpack.c.b16 %v51, %v49
  %v54 = vpack.c.b16 %v52, %v50
  %v74 = vunpack.c.l.b16 %v17
  %v75 = vunpack.c.l.b16 %v18
  %v76 = vunpack.c.l.b16 %v19
  %v77 = vunpack.c.l.b16 %v20
  %v78 = vunpack.c.l.b16 %v21
  %v79 = vunpack.c.l.b16 %v22
  %v80 = vunpack.c.l.b16 %v23
  %v81 = vunpack.c.l.b16 %v24
  %v82 = vunpack.c.l.b16 %v25
  %v83 = vunpack.c.l.b16 %v26
  %v84 = vunpack.c.l.b16 %v27
  %v85 = vunpack.c.l.b16 %v28
  %v86 = vunpack.c.l.b16 %v29
  %v87 = vunpack.c.l.b16 %v30
  %v88 = vunpack.c.l.b16 %v31
  %v89 = vunpack.c.l.b16 %v32
  %v90 = vunpack.c.l.b16 %v33
  %v91 = vunpack.c.l.b16 %v34
  %v92 = vpack.c.b16 %v75, %v74
  %v93 = vpack.c.b16 %v77, %v76
  %v94 = vpack.c.b16 %v79, %v78
  %v95 = vpack.c.b16 %v81, %v80
  %v96 = vpack.c.b16 %v83, %v82
  %v97 = vpack.c.b16 %v85, %v84
  %v98 = vpack.c.b16 %v87, %v86
  %v99 = vpack.c.b16 %v89, %v88
  %v100 = vpack.c.b16 %v91, %v90
  %vm110 = vcmask 130048
  %v112 = vsel %vm110, %v54, 0
  %114 = vmatprep.subr.bf16.mxu0 0
  %115 = vmatpush1.bf16.msra.mxu0 %v99
  %116 = vmatprep.subr.bf16.mxu0 0
  %117 = vmatpush1.bf16.msra.mxu0 %v98
  %118 = vmatprep.subr.bf16.mxu0 0
  %119 = vmatpush1.bf16.msra.mxu0 %v97
  %120 = vmatprep.subr.bf16.mxu0 0
  %121 = vmatpush1.bf16.msra.mxu0 %v96
  %122 = vmatprep.subr.bf16.mxu0 0
  %123 = vmatpush1.bf16.msra.mxu0 %v95
  %124 = vmatprep.subr.bf16.mxu0 0
  %125 = vmatpush1.bf16.msra.mxu0 %v94
  %126 = vmatprep.subr.bf16.mxu0 0
  %127 = vmatpush1.bf16.msra.mxu0 %v93
  %128 = vmatprep.subr.bf16.mxu0 0
  %129 = vmatpush1.bf16.msra.mxu0 %v92
  %130 = vmatprep.subr.bf16.mxu0 0
  %131 = vmatpush2.bf16.msra.mxu0 0
  %132 = vmatprep.subr.bf16.mxu0 0
  %133 = vmatpush2.bf16.msra.mxu0 0
  %134 = vmatprep.subr.bf16.mxu0 0
  %135 = vmatpush2.bf16.msra.mxu0 0
  %136 = vmatprep.subr.bf16.mxu0 0
  %137 = vmatpush2.bf16.msra.mxu0 0
  %138 = vmatprep.subr.bf16.mxu0 0
  %139 = vmatpush2.bf16.msra.mxu0 0
  %140 = vmatprep.subr.bf16.mxu0 0
  %141 = vmatpush2.bf16.msra.mxu0 0
  %142 = vmatprep.subr.bf16.mxu0 0
  %143 = vmatpush2.bf16.msra.mxu0 0
  %144 = vmatprep.subr.bf16.mxu0 0
  %145 = vmatpush2.bf16.msra.mxu0 %v100
  %146 = vmatprep.mubr.bf16.mxu0 %v112
  %147 = vmatmul.mubr.bf16.gmra.mxu0 %v53
  %v148 = vpop.f32.mrf.mxu0
  %v149 = vadd.f32 %v40, %v148
  %v150 = vpop.f32.mrf.mxu0
  %v151 = vpop.f32.mrf.mxu0
  %v152 = vadd.f32 %v45, %v151
  %v153 = vpop.f32.mrf.mxu0
  %154 = vdwg.mxu0
  %v155 = vmax.f32 %v149, 0.0
  %v156 = vmax.f32 %v152, 0.0
  %v157 = vpack.c.bf16 %v156, %v155
  %v159 = vunpack.c.l.b16 %v157
  %v160 = vunpack.c.h.b16 %v157
  %v161 = vpack.c.b16 %v159, %v159
  %v162 = vpack.c.b16 %v160, %v160
  %165 = vst [vmem:[%s3] sm:$0xf] %v161
  %166 = vst [vmem:[%s3 + $0x4] sm:$0xf] %v162
  // Predicated region
  $region14: #{_lambda_.47} parent=0 // pred_check
    _
  $region15: #{_lambda_.47} parent=0 // pred_check_branch
    %168 = sbr.rel (0) target = $region17
  $region16: #{_lambda_.47} parent=0 // pred_region
    _
  $region17: #{_lambda_.47} parent=0 // pred_fallthru
    _
  // Predicated region
  $region18: #{_lambda_.47} parent=0 // pred_check
    _
  $region19: #{_lambda_.47} parent=0 // pred_check_branch
    %170 = sbr.rel (0) target = $region21
  $region20: #{_lambda_.47} parent=0 // pred_region
    _
  $region21: #{_lambda_.47} parent=0 // pred_fallthru
    _

// kernel: _lambda_.43
$region0: #{_lambda_.43}
  #allocation0 [shape = 'u32[]', space=smem, size = 0x4, offset = 0x4, fixed_abs, tag = 'smem constant byte address 0x4 - core index']
  #allocation1 [shape = 'u32[144,128]{1,0:T(1,128)}', space=vmem, size = 0x12000, scoped, tag = 'internal scratch']
  %s0 = inlined_call_operand.vmem [shape: bf16[16,32], index: 0, kind: input, shape index: {}]
  %s1 = inlined_call_operand.vmem [shape: bf16[32,128], index: 1, kind: input, shape index: {}]
  %s2 = inlined_call_operand.vmem [shape: f32[16,1], index: 2, kind: input, shape index: {}]
  %s3 = inlined_call_operand.vmem [shape: bf16[16,128], index: 3, kind: output, shape index: {}]
  %s4 = sld [smem:[#allocation0]]
  $region22: #{_lambda_.43} parent=0
    _
  %s6 = ssub.s32 1, %s4
  %s7 = scalar_select 0, %s6, %s4
  // Predicated region
  $region2: #{_lambda_.43} parent=0 // pred_check
    _
  $region3: #{_lambda_.43} parent=0 // pred_check_branch
    %9 = sbr.rel (0) target = $region5
  $region4: #{_lambda_.43} parent=0 // pred_region
    _
  $region5: #{_lambda_.43} parent=0 // pred_fallthru
    _
  // Predicated region
  $region6: #{_lambda_.43} parent=0 // pred_check
    _
  $region7: #{_lambda_.43} parent=0 // pred_check_branch
    %11 = sbr.rel (0) target = $region9
  $region8: #{_lambda_.43} parent=0 // pred_region
    _
  $region9: #{_lambda_.43} parent=0 // pred_fallthru
    _
  // Predicated region
  $region10: #{_lambda_.43} parent=0 // pred_check
    _
  $region11: #{_lambda_.43} parent=0 // pred_check_branch
    %13 = sbr.rel (0) target = $region13
  $region12: #{_lambda_.43} parent=0 // pred_region
    _
  $region13: #{_lambda_.43} parent=0 // pred_fallthru
    _
  %v15 = vld [vmem:[%s0] sm:$0xf]
  %v16 = vld [vmem:[%s0 + $0x4] sm:$0xf]
  %v17 = vld [vmem:[%s1] sm:$0xf]
  %v18 = vld [vmem:[%s1 + $0x4] sm:$0xf]
  %v19 = vld [vmem:[%s1 + $0x8] sm:$0xf]
  %v20 = vld [vmem:[%s1 + $0xc] sm:$0xf]
  %v21 = vld [vmem:[%s2] sm:$0xff]
  %v22 = vld [vmem:[%s2 + $0x8] sm:$0xff]
  %24 = vset.pattern.permute.xlu0 0
  %25 = vperm.xlu0 %24, %v21
  %v26 = vpop.permute.xlu0 %25
  %29 = vset.pattern.permute.xlu0 0
  %30 = vperm.xlu0 %29, %v22
  %v31 = vpop.permute.xlu0 %30
  %v35 = vunpack.c.l.b16 %v15
  %v36 = vunpack.c.l.b16 %v16
  %v37 = vpack.c.b16 %v36, %v35
  %v42 = vunpack.c.l.b16 %v17
  %v43 = vunpack.c.l.b16 %v18
  %v44 = vunpack.c.l.b16 %v19
  %v45 = vunpack.c.l.b16 %v20
  %v46 = vpack.c.b16 %v43, %v42
  %v47 = vpack.c.b16 %v45, %v44
  %vm50 = vcmask 261120
  %v52 = vsel %vm50, %v37, 0
  %54 = vmatprep.subr.bf16.mxu0 0
  %55 = vmatpush1.bf16.msra.mxu0 0
  %56 = vmatprep.subr.bf16.mxu0 0
  %57 = vmatpush1.bf16.msra.mxu0 0
  %58 = vmatprep.subr.bf16.mxu0 0
  %59 = vmatpush1.bf16.msra.mxu0 0
  %60 = vmatprep.subr.bf16.mxu0 0
  %61 = vmatpush1.bf16.msra.mxu0 0
  %62 = vmatprep.subr.bf16.mxu0 0
  %63 = vmatpush1.bf16.msra.mxu0 0
  %64 = vmatprep.subr.bf16.mxu0 0
  %65 = vmatpush1.bf16.msra.mxu0 0
  %66 = vmatprep.subr.bf16.mxu0 0
  %67 = vmatpush1.bf16.msra.mxu0 %v47
  %68 = vmatprep.subr.bf16.mxu0 0
  %69 = vmatpush1.bf16.msra.mxu0 %v46
  %70 = vmatprep.subr.bf16.mxu0 0
  %71 = vmatpush2.bf16.msra.mxu0 0
  %72 = vmatprep.subr.bf16.mxu0 0
  %73 = vmatpush2.bf16.msra.mxu0 0
  %74 = vmatprep.subr.bf16.mxu0 0
  %75 = vmatpush2.bf16.msra.mxu0 0
  %76 = vmatprep.subr.bf16.mxu0 0
  %77 = vmatpush2.bf16.msra.mxu0 0
  %78 = vmatprep.subr.bf16.mxu0 0
  %79 = vmatpush2.bf16.msra.mxu0 0
  %80 = vmatprep.subr.bf16.mxu0 0
  %81 = vmatpush2.bf16.msra.mxu0 0
  %82 = vmatprep.subr.bf16.mxu0 0
  %83 = vmatpush2.bf16.msra.mxu0 0
  %84 = vmatprep.subr.bf16.mxu0 0
  %85 = vmatpush2.bf16.msra.mxu0 0
  %86 = vmatprep.mubr.bf16.mxu0 0
  %87 = vmatmul.mubr.bf16.gmra.mxu0 %v52
  %v88 = vpop.f32.mrf.mxu0
  %v89 = vadd.f32 %v26, %v88
  %v90 = vpop.f32.mrf.mxu0
  %v91 = vpop.f32.mrf.mxu0
  %v92 = vadd.f32 %v31, %v91
  %v93 = vpop.f32.mrf.mxu0
  %94 = vdwg.mxu0
  %v95 = vpack.c.bf16 %v92, %v89
  %v97 = vunpack.c.l.b16 %v95
  %v98 = vunpack.c.h.b16 %v95
  %v99 = vpack.c.b16 %v97, %v97
  %v100 = vpack.c.b16 %v98, %v98
  %103 = vst [vmem:[%s3] sm:$0xf] %v99
  %104 = vst [vmem:[%s3 + $0x4] sm:$0xf] %v100
  // Predicated region
  $region14: #{_lambda_.43} parent=0 // pred_check
    _
  $region15: #{_lambda_.43} parent=0 // pred_check_branch
    %106 = sbr.rel (0) target = $region17
  $region16: #{_lambda_.43} parent=0 // pred_region
    _
  $region17: #{_lambda_.43} parent=0 // pred_fallthru
    _
  // Predicated region
  $region18: #{_lambda_.43} parent=0 // pred_check
    _
  $region19: #{_lambda_.43} parent=0 // pred_check_branch
    %108 = sbr.rel (0) target = $region21
  $region20: #{_lambda_.43} parent=0 // pred_region
    _
  $region21: #{_lambda_.43} parent=0 // pred_fallthru
    _

// kernel: _lambda_.42
$region0: #{_lambda_.42}
  #allocation0 [shape = 'u32[]', space=smem, size = 0x4, offset = 0x4, fixed_abs, tag = 'smem constant byte address 0x4 - core index']
  #allocation1 [shape = 'u32[144,128]{1,0:T(1,128)}', space=vmem, size = 0x12000, scoped, tag = 'internal scratch']
  %s0 = inlined_call_operand.vmem [shape: bf16[16,16], index: 0, kind: input, shape index: {}]
  %s1 = inlined_call_operand.vmem [shape: bf16[16,512], index: 1, kind: input, shape index: {}]
  %s2 = inlined_call_operand.vmem [shape: f32[16,1], index: 2, kind: input, shape index: {}]
  %s3 = inlined_call_operand.vmem [shape: bf16[16,512], index: 3, kind: output, shape index: {}]
  %s4 = sld [smem:[#allocation0]]
  $region22: #{_lambda_.42} parent=0
    _
  %s6 = ssub.s32 1, %s4
  %s7 = scalar_select 0, %s6, %s4
  // Predicated region
  $region2: #{_lambda_.42} parent=0 // pred_check
    _
  $region3: #{_lambda_.42} parent=0 // pred_check_branch
    %9 = sbr.rel (0) target = $region5
  $region4: #{_lambda_.42} parent=0 // pred_region
    _
  $region5: #{_lambda_.42} parent=0 // pred_fallthru
    _
  // Predicated region
  $region6: #{_lambda_.42} parent=0 // pred_check
    _
  $region7: #{_lambda_.42} parent=0 // pred_check_branch
    %11 = sbr.rel (0) target = $region9
  $region8: #{_lambda_.42} parent=0 // pred_region
    _
  $region9: #{_lambda_.42} parent=0 // pred_fallthru
    _
  // Predicated region
  $region10: #{_lambda_.42} parent=0 // pred_check
    _
  $region11: #{_lambda_.42} parent=0 // pred_check_branch
    %13 = sbr.rel (0) target = $region13
  $region12: #{_lambda_.42} parent=0 // pred_region
    _
  $region13: #{_lambda_.42} parent=0 // pred_fallthru
    _
  %v15 = vld [vmem:[%s0] sm:$0xf]
  %v16 = vld [vmem:[%s0 + $0x4] sm:$0xf]
  %v17 = vld [vmem:[%s1] sm:$0xff]
  %v18 = vld [vmem:[%s1 + $0x8] sm:$0xff]
  %v19 = vld [vmem:[%s1 + $0x10] sm:$0xff]
  %v20 = vld [vmem:[%s1 + $0x18] sm:$0xff]
  %v21 = vld [vmem:[%s2] sm:$0xff]
  %v22 = vld [vmem:[%s2 + $0x8] sm:$0xff]
  %24 = vset.pattern.permute.xlu0 0
  %25 = vperm.xlu0 %24, %v21
  %v26 = vpop.permute.xlu0 %25
  %29 = vset.pattern.permute.xlu0 0
  %30 = vperm.xlu0 %29, %v22
  %v31 = vpop.permute.xlu0 %30
  %v35 = vunpack.c.l.b16 %v15
  %v36 = vunpack.c.l.b16 %v16
  %v37 = vpack.c.b16 %v36, %v35
  %v42 = vunpack.c.l.b16 %v17
  %v43 = vunpack.c.h.b16 %v17
  %v44 = vunpack.c.l.b16 %v18
  %v45 = vunpack.c.h.b16 %v18
  %v46 = vunpack.c.l.b16 %v19
  %v47 = vunpack.c.h.b16 %v19
  %v48 = vunpack.c.l.b16 %v20
  %v49 = vunpack.c.h.b16 %v20
  %v50 = vpack.c.b16 %v46, %v42
  %v51 = vpack.c.b16 %v47, %v43
  %v52 = vpack.c.b16 %v48, %v44
  %v53 = vpack.c.b16 %v49, %v45
  %vm58 = vcmask 130048
  %v60 = vsel %vm58, %v37, 0
  %62 = vmatprep.subr.bf16.mxu0 0
  %63 = vmatpush1.bf16.msra.mxu0 0
  %64 = vmatprep.subr.bf16.mxu0 0
  %65 = vmatpush1.bf16.msra.mxu0 0
  %66 = vmatprep.subr.bf16.mxu0 0
  %67 = vmatpush1.bf16.msra.mxu0 0
  %68 = vmatprep.subr.bf16.mxu0 0
  %69 = vmatpush1.bf16.msra.mxu0 0
  %70 = vmatprep.subr.bf16.mxu0 0
  %71 = vmatpush1.bf16.msra.mxu0 0
  %72 = vmatprep.subr.bf16.mxu0 0
  %73 = vmatpush1.bf16.msra.mxu0 0
  %74 = vmatprep.subr.bf16.mxu0 0
  %75 = vmatpush1.bf16.msra.mxu0 0
  %76 = vmatprep.subr.bf16.mxu0 %v51
  %77 = vmatpush1.bf16.msra.mxu0 %v50
  %78 = vmatprep.subr.bf16.mxu0 0
  %79 = vmatpush2.bf16.msra.mxu0 0
  %80 = vmatprep.subr.bf16.mxu0 0
  %81 = vmatpush2.bf16.msra.mxu0 0
  %82 = vmatprep.subr.bf16.mxu0 0
  %83 = vmatpush2.bf16.msra.mxu0 0
  %84 = vmatprep.subr.bf16.mxu0 0
  %85 = vmatpush2.bf16.msra.mxu0 0
  %86 = vmatprep.subr.bf16.mxu0 0
  %87 = vmatpush2.bf16.msra.mxu0 0
  %88 = vmatprep.subr.bf16.mxu0 0
  %89 = vmatpush2.bf16.msra.mxu0 0
  %90 = vmatprep.subr.bf16.mxu0 0
  %91 = vmatpush2.bf16.msra.mxu0 0
  %92 = vmatprep.subr.bf16.mxu0 0
  %93 = vmatpush2.bf16.msra.mxu0 0
  %94 = vmatprep.mubr.bf16.mxu0 0
  %95 = vmatmul.mubr.bf16.gmra.mxu0 %v60
  %v96 = vpop.f32.mrf.mxu0
  %v97 = vadd.f32 %v26, %v96
  %v98 = vpop.f32.mrf.mxu0
  %v99 = vadd.f32 %v26, %v98
  %v100 = vpop.f32.mrf.mxu0
  %v101 = vadd.f32 %v31, %v100
  %v102 = vpop.f32.mrf.mxu0
  %v103 = vadd.f32 %v31, %v102
  %104 = vdwg.mxu0
  %105 = vmatprep.subr.bf16.mxu0 0
  %106 = vmatpush1.bf16.msra.mxu0 0
  %107 = vmatprep.subr.bf16.mxu0 0
  %108 = vmatpush1.bf16.msra.mxu0 0
  %109 = vmatprep.subr.bf16.mxu0 0
  %110 = vmatpush1.bf16.msra.mxu0 0
  %111 = vmatprep.subr.bf16.mxu0 0
  %112 = vmatpush1.bf16.msra.mxu0 0
  %113 = vmatprep.subr.bf16.mxu0 0
  %114 = vmatpush1.bf16.msra.mxu0 0
  %115 = vmatprep.subr.bf16.mxu0 0
  %116 = vmatpush1.bf16.msra.mxu0 0
  %117 = vmatprep.subr.bf16.mxu0 0
  %118 = vmatpush1.bf16.msra.mxu0 0
  %119 = vmatprep.subr.bf16.mxu0 %v53
  %120 = vmatpush1.bf16.msra.mxu0 %v52
  %121 = vmatprep.subr.bf16.mxu0 0
  %122 = vmatpush2.bf16.msra.mxu0 0
  %123 = vmatprep.subr.bf16.mxu0 0
  %124 = vmatpush2.bf16.msra.mxu0 0
  %125 = vmatprep.subr.bf16.mxu0 0
  %126 = vmatpush2.bf16.msra.mxu0 0
  %127 = vmatprep.subr.bf16.mxu0 0
  %128 = vmatpush2.bf16.msra.mxu0 0
  %129 = vmatprep.subr.bf16.mxu0 0
  %130 = vmatpush2.bf16.msra.mxu0 0
  %131 = vmatprep.subr.bf16.mxu0 0
  %132 = vmatpush2.bf16.msra.mxu0 0
  %133 = vmatprep.subr.bf16.mxu0 0
  %134 = vmatpush2.bf16.msra.mxu0 0
  %135 = vmatprep.subr.bf16.mxu0 0
  %136 = vmatpush2.bf16.msra.mxu0 0
  %137 = vmatprep.mubr.bf16.mxu0 0
  %138 = vmatmul.mubr.bf16.gmra.mxu0 %v60
  %v139 = vpop.f32.mrf.mxu0
  %v140 = vadd.f32 %v26, %v139
  %v141 = vpop.f32.mrf.mxu0
  %v142 = vadd.f32 %v26, %v141
  %v143 = vpop.f32.mrf.mxu0
  %v144 = vadd.f32 %v31, %v143
  %v145 = vpop.f32.mrf.mxu0
  %v146 = vadd.f32 %v31, %v145
  %147 = vdwg.mxu0
  %v148 = vpack.c.bf16 %v101, %v97
  %v149 = vpack.c.bf16 %v103, %v99
  %v150 = vpack.c.bf16 %v144, %v140
  %v151 = vpack.c.bf16 %v146, %v142
  %v156 = vunpack.c.l.b16 %v148
  %v157 = vunpack.c.l.b16 %v149
  %v158 = vunpack.c.l.b16 %v150
  %v159 = vunpack.c.l.b16 %v151
  %v160 = vunpack.c.h.b16 %v148
  %v161 = vunpack.c.h.b16 %v149
  %v162 = vunpack.c.h.b16 %v150
  %v163 = vunpack.c.h.b16 %v151
  %v164 = vpack.c.b16 %v157, %v156
  %v165 = vpack.c.b16 %v159, %v158
  %v166 = vpack.c.b16 %v161, %v160
  %v167 = vpack.c.b16 %v163, %v162
  %172 = vst [vmem:[%s3] sm:$0xff] %v164
  %173 = vst [vmem:[%s3 + $0x8] sm:$0xff] %v165
  %174 = vst [vmem:[%s3 + $0x10] sm:$0xff] %v166
  %175 = vst [vmem:[%s3 + $0x18] sm:$0xff] %v167
  // Predicated region
  $region14: #{_lambda_.42} parent=0 // pred_check
    _
  $region15: #{_lambda_.42} parent=0 // pred_check_branch
    %177 = sbr.rel (0) target = $region17
  $region16: #{_lambda_.42} parent=0 // pred_region
    _
  $region17: #{_lambda_.42} parent=0 // pred_fallthru
    _
  // Predicated region
  $region18: #{_lambda_.42} parent=0 // pred_check
    _
  $region19: #{_lambda_.42} parent=0 // pred_check_branch
    %179 = sbr.rel (0) target = $region21
  $region20: #{_lambda_.42} parent=0 // pred_region
    _
  $region21: #{_lambda_.42} parent=0 // pred_fallthru
    _

// kernel: _lambda_.50
$region0: #{_lambda_.50}
  #allocation0 [shape = 'u32[]', space=smem, size = 0x4, offset = 0x4, fixed_abs, tag = 'smem constant byte address 0x4 - core index']
  #allocation1 [shape = 'u32[144,128]{1,0:T(1,128)}', space=vmem, size = 0x12000, scoped, tag = 'internal scratch']
  %s0 = inlined_call_operand.vmem [shape: bf16[32,64], index: 0, kind: input, shape index: {}]
  %s1 = inlined_call_operand.vmem [shape: bf16[64,256], index: 1, kind: input, shape index: {}]
  %s2 = inlined_call_operand.vmem [shape: f32[32,1], index: 2, kind: input, shape index: {}]
  %s3 = inlined_call_operand.vmem [shape: bf16[32,256], index: 3, kind: input, shape index: {}]
  %s4 = inlined_call_operand.vmem [shape: bf16[32,256], index: 4, kind: output, shape index: {}]
  %s5 = sld [smem:[#allocation0]]
  $region26: #{_lambda_.50} parent=0
    _
  %s7 = ssub.s32 1, %s5
  %s8 = scalar_select 0, %s7, %s5
  // Predicated region
  $region2: #{_lambda_.50} parent=0 // pred_check
    _
  $region3: #{_lambda_.50} parent=0 // pred_check_branch
    %10 = sbr.rel (0) target = $region5
  $region4: #{_lambda_.50} parent=0 // pred_region
    _
  $region5: #{_lambda_.50} parent=0 // pred_fallthru
    _
  // Predicated region
  $region6: #{_lambda_.50} parent=0 // pred_check
    _
  $region7: #{_lambda_.50} parent=0 // pred_check_branch
    %12 = sbr.rel (0) target = $region9
  $region8: #{_lambda_.50} parent=0 // pred_region
    _
  $region9: #{_lambda_.50} parent=0 // pred_fallthru
    _
  // Predicated region
  $region10: #{_lambda_.50} parent=0 // pred_check
    _
  $region11: #{_lambda_.50} parent=0 // pred_check_branch
    %14 = sbr.rel (0) target = $region13
  $region12: #{_lambda_.50} parent=0 // pred_region
    _
  $region13: #{_lambda_.50} parent=0 // pred_fallthru
    _
  // Predicated region
  $region14: #{_lambda_.50} parent=0 // pred_check
    _
  $region15: #{_lambda_.50} parent=0 // pred_check_branch
    %16 = sbr.rel (0) target = $region17
  $region16: #{_lambda_.50} parent=0 // pred_region
    _
  $region17: #{_lambda_.50} parent=0 // pred_fallthru
    _
  %v18 = vld [vmem:[%s3] sm:$0xff]
  %v19 = vld [vmem:[%s3 + $0x8] sm:$0xff]
  %v20 = vld [vmem:[%s3 + $0x10] sm:$0xff]
  %v21 = vld [vmem:[%s3 + $0x18] sm:$0xff]
  %v22 = vunpack.c.l.bf16 %v18
  %v23 = vunpack.c.h.bf16 %v18
  %v24 = vunpack.c.l.bf16 %v19
  %v25 = vunpack.c.h.bf16 %v19
  %v26 = vunpack.c.l.bf16 %v20
  %v27 = vunpack.c.h.bf16 %v20
  %v28 = vunpack.c.l.bf16 %v21
  %v29 = vunpack.c.h.bf16 %v21
  %v30 = vld [vmem:[%s0] sm:$0xf]
  %v31 = vld [vmem:[%s0 + $0x4] sm:$0xf]
  %v32 = vld [vmem:[%s0 + $0x8] sm:$0xf]
  %v33 = vld [vmem:[%s0 + $0xc] sm:$0xf]
  %v34 = vld [vmem:[%s1] sm:$0xff]
  %v35 = vld [vmem:[%s1 + $0x8] sm:$0xff]
  %v36 = vld [vmem:[%s1 + $0x10] sm:$0xff]
  %v37 = vld [vmem:[%s1 + $0x18] sm:$0xff]
  %v38 = vld [vmem:[%s1 + $0x20] sm:$0xff]
  %v39 = vld [vmem:[%s1 + $0x28] sm:$0xff]
  %v40 = vld [vmem:[%s1 + $0x30] sm:$0xff]
  %v41 = vld [vmem:[%s1 + $0x38] sm:$0xff]
  %v42 = vld [vmem:[%s2] sm:$0xff]
  %v43 = vld [vmem:[%s2 + $0x8] sm:$0xff]
  %v44 = vld [vmem:[%s2 + $0x10] sm:$0xff]
  %v45 = vld [vmem:[%s2 + $0x18] sm:$0xff]
  %47 = vset.pattern.permute.xlu0 0
  %48 = vperm.xlu0 %47, %v42
  %v49 = vpop.permute.xlu0 %48
  %52 = vset.pattern.permute.xlu0 0
  %53 = vperm.xlu0 %52, %v43
  %v54 = vpop.permute.xlu0 %53
  %57 = vset.pattern.permute.xlu0 0
  %58 = vperm.xlu0 %57, %v44
  %v59 = vpop.permute.xlu0 %58
  %62 = vset.pattern.permute.xlu0 0
  %63 = vperm.xlu0 %62, %v45
  %v64 = vpop.permute.xlu0 %63
  %v70 = vunpack.c.l.b16 %v30
  %v71 = vunpack.c.l.b16 %v31
  %v72 = vunpack.c.l.b16 %v32
  %v73 = vunpack.c.l.b16 %v33
  %v74 = vpack.c.b16 %v71, %v70
  %v75 = vpack.c.b16 %v73, %v72
  %v84 = vunpack.c.l.b16 %v34
  %v85 = vunpack.c.h.b16 %v34
  %v86 = vunpack.c.l.b16 %v35
  %v87 = vunpack.c.h.b16 %v35
  %v88 = vunpack.c.l.b16 %v36
  %v89 = vunpack.c.h.b16 %v36
  %v90 = vunpack.c.l.b16 %v37
  %v91 = vunpack.c.h.b16 %v37
  %v92 = vunpack.c.l.b16 %v38
  %v93 = vunpack.c.h.b16 %v38
  %v94 = vunpack.c.l.b16 %v39
  %v95 = vunpack.c.h.b16 %v39
  %v96 = vunpack.c.l.b16 %v40
  %v97 = vunpack.c.h.b16 %v40
  %v98 = vunpack.c.l.b16 %v41
  %v99 = vunpack.c.h.b16 %v41
  %v100 = vpack.c.b16 %v86, %v84
  %v101 = vpack.c.b16 %v87, %v85
  %v102 = vpack.c.b16 %v90, %v88
  %v103 = vpack.c.b16 %v91, %v89
  %v104 = vpack.c.b16 %v94, %v92
  %v105 = vpack.c.b16 %v95, %v93
  %v106 = vpack.c.b16 %v98, %v96
  %v107 = vpack.c.b16 %v99, %v97
  %vm116 = vcmask 523264
  %v118 = vsel %vm116, %v74, 0
  %v121 = vsel %vm116, %v75, 0
  %123 = vmatprep.subr.bf16.mxu0 0
  %124 = vmatpush1.bf16.msra.mxu0 0
  %125 = vmatprep.subr.bf16.mxu0 0
  %126 = vmatpush1.bf16.msra.mxu0 0
  %127 = vmatprep.subr.bf16.mxu0 0
  %128 = vmatpush1.bf16.msra.mxu0 0
  %129 = vmatprep.subr.bf16.mxu0 0
  %130 = vmatpush1.bf16.msra.mxu0 0
  %131 = vmatprep.subr.bf16.mxu0 %v107
  %132 = vmatpush1.bf16.msra.mxu0 %v106
  %133 = vmatprep.subr.bf16.mxu0 %v105
  %134 = vmatpush1.bf16.msra.mxu0 %v104
  %135 = vmatprep.subr.bf16.mxu0 %v103
  %136 = vmatpush1.bf16.msra.mxu0 %v102
  %137 = vmatprep.subr.bf16.mxu0 %v101
  %138 = vmatpush1.bf16.msra.mxu0 %v100
  %139 = vmatprep.subr.bf16.mxu0 0
  %140 = vmatpush2.bf16.msra.mxu0 0
  %141 = vmatprep.subr.bf16.mxu0 0
  %142 = vmatpush2.bf16.msra.mxu0 0
  %143 = vmatprep.subr.bf16.mxu0 0
  %144 = vmatpush2.bf16.msra.mxu0 0
  %145 = vmatprep.subr.bf16.mxu0 0
  %146 = vmatpush2.bf16.msra.mxu0 0
  %147 = vmatprep.subr.bf16.mxu0 0
  %148 = vmatpush2.bf16.msra.mxu0 0
  %149 = vmatprep.subr.bf16.mxu0 0
  %150 = vmatpush2.bf16.msra.mxu0 0
  %151 = vmatprep.subr.bf16.mxu0 0
  %152 = vmatpush2.bf16.msra.mxu0 0
  %153 = vmatprep.subr.bf16.mxu0 0
  %154 = vmatpush2.bf16.msra.mxu0 0
  %155 = vmatprep.mubr.bf16.mxu0 0
  %156 = vmatmul.mubr.bf16.gmra.mxu0 %v118
  %v157 = vpop.f32.mrf.mxu0
  %v158 = vadd.f32 %v49, %v157
  %v159 = vpop.f32.mrf.mxu0
  %v160 = vadd.f32 %v49, %v159
  %v161 = vpop.f32.mrf.mxu0
  %v162 = vadd.f32 %v54, %v161
  %v163 = vpop.f32.mrf.mxu0
  %v164 = vadd.f32 %v54, %v163
  %165 = vmatprep.mubr.bf16.mxu0 0
  %166 = vmatmul.mubr.bf16.gmra.mxu0 %v121
  %v167 = vpop.f32.mrf.mxu0
  %v168 = vadd.f32 %v59, %v167
  %v169 = vpop.f32.mrf.mxu0
  %v170 = vadd.f32 %v59, %v169
  %v171 = vpop.f32.mrf.mxu0
  %v172 = vadd.f32 %v64, %v171
  %v173 = vpop.f32.mrf.mxu0
  %v174 = vadd.f32 %v64, %v173
  %175 = vdwg.mxu0
  %v176 = vadd.f32 %v158, %v22
  %v177 = vadd.f32 %v160, %v23
  %v178 = vadd.f32 %v162, %v24
  %v179 = vadd.f32 %v164, %v25
  %v180 = vadd.f32 %v168, %v26
  %v181 = vadd.f32 %v170, %v27
  %v182 = vadd.f32 %v172, %v28
  %v183 = vadd.f32 %v174, %v29
  %v184 = vmax.f32 %v176, 0.0
  %v185 = vmax.f32 %v177, 0.0
  %v186 = vmax.f32 %v178, 0.0
  %v187 = vmax.f32 %v179, 0.0
  %v188 = vmax.f32 %v180, 0.0
  %v189 = vmax.f32 %v181, 0.0
  %v190 = vmax.f32 %v182, 0.0
  %v191 = vmax.f32 %v183, 0.0
  %v192 = vpack.c.bf16 %v186, %v184
  %v193 = vpack.c.bf16 %v187, %v185
  %v194 = vpack.c.bf16 %v190, %v188
  %v195 = vpack.c.bf16 %v191, %v189
  %v200 = vunpack.c.l.b16 %v192
  %v201 = vunpack.c.l.b16 %v193
  %v202 = vunpack.c.h.b16 %v192
  %v203 = vunpack.c.h.b16 %v193
  %v204 = vunpack.c.l.b16 %v194
  %v205 = vunpack.c.l.b16 %v195
  %v206 = vunpack.c.h.b16 %v194
  %v207 = vunpack.c.h.b16 %v195
  %v208 = vpack.c.b16 %v201, %v200
  %v209 = vpack.c.b16 %v203, %v202
  %v210 = vpack.c.b16 %v205, %v204
  %v211 = vpack.c.b16 %v207, %v206
  %216 = vst [vmem:[%s4] sm:$0xff] %v208
  %217 = vst [vmem:[%s4 + $0x8] sm:$0xff] %v209
  %218 = vst [vmem:[%s4 + $0x10] sm:$0xff] %v210
  %219 = vst [vmem:[%s4 + $0x18] sm:$0xff] %v211
  // Predicated region
  $region18: #{_lambda_.50} parent=0 // pred_check
    _
  $region19: #{_lambda_.50} parent=0 // pred_check_branch
    %221 = sbr.rel (0) target = $region21
  $region20: #{_lambda_.50} parent=0 // pred_region
    _
  $region21: #{_lambda_.50} parent=0 // pred_fallthru
    _
  // Predicated region
  $region22: #{_lambda_.50} parent=0 // pred_check
    _
  $region23: #{_lambda_.50} parent=0 // pred_check_branch
    %223 = sbr.rel (0) target = $region25
  $region24: #{_lambda_.50} parent=0 // pred_region
    _
  $region25: #{_lambda_.50} parent=0 // pred_fallthru
    _

// kernel: _lambda_.61
$region0: #{_lambda_.61}
  #allocation0 [shape = 'u32[]', space=smem, size = 0x4, offset = 0x4, fixed_abs, tag = 'smem constant byte address 0x4 - core index']
  #allocation1 [shape = 'u32[144,128]{1,0:T(1,128)}', space=vmem, size = 0x12000, scoped, tag = 'internal scratch']
  %s0 = inlined_call_operand.vmem [shape: bf16[16,512], index: 0, kind: input, shape index: {}]
  %s1 = inlined_call_operand.vmem [shape: bf16[1,512], index: 1, kind: input, shape index: {}]
  %s2 = inlined_call_operand.vmem [shape: bf16[16,512], index: 2, kind: output, shape index: {}]
  %s3 = sld [smem:[#allocation0]]
  $region18: #{_lambda_.61} parent=0
    _
  %s5 = ssub.s32 1, %s3
  %s6 = scalar_select 0, %s5, %s3
  // Predicated region
  $region2: #{_lambda_.61} parent=0 // pred_check
    _
  $region3: #{_lambda_.61} parent=0 // pred_check_branch
    %8 = sbr.rel (0) target = $region5
  $region4: #{_lambda_.61} parent=0 // pred_region
    _
  $region5: #{_lambda_.61} parent=0 // pred_fallthru
    _
  // Predicated region
  $region6: #{_lambda_.61} parent=0 // pred_check
    _
  $region7: #{_lambda_.61} parent=0 // pred_check_branch
    %10 = sbr.rel (0) target = $region9
  $region8: #{_lambda_.61} parent=0 // pred_region
    _
  $region9: #{_lambda_.61} parent=0 // pred_fallthru
    _
  %v11 = vld [vmem:[%s0] sm:$0xff]
  %v12 = vld [vmem:[%s0 + $0x8] sm:$0xff]
  %v13 = vld [vmem:[%s0 + $0x10] sm:$0xff]
  %v14 = vld [vmem:[%s0 + $0x18] sm:$0xff]
  %v15 = vunpack.c.l.bf16 %v11
  %v16 = vunpack.c.h.bf16 %v11
  %v17 = vunpack.c.l.bf16 %v12
  %v18 = vunpack.c.h.bf16 %v12
  %v19 = vunpack.c.l.bf16 %v13
  %v20 = vunpack.c.h.bf16 %v13
  %v21 = vunpack.c.l.bf16 %v14
  %v22 = vunpack.c.h.bf16 %v14
  %v23 = vld [vmem:[%s1] sm:$0xf]
  %v24 = vunpack.c.l.bf16 %v23
  %v25 = vxor.u32 %v24, 2147483648
  %v26 = vmul.f32 %v25, 1.442695
  %v27 = vpow.pop %v26
  %v28 = vadd.f32 %v27, 1.0
  %v29 = vrcp.pop %v28
  %v30 = vmul.f32 1.0, %v29
  %v32 = vlaneseq
  %v33 = vshrl.u32 %v32, 7
  %v34 = vsub.s32 0, %v33
  %v35 = vrot.slane %v30, %v34
  %v36 = vlaneseq
  %v37 = vshrl.u32 %v36, 7
  %v38 = vsub.s32 2, %v37
  %v39 = vrot.slane %v30, %v38
  %v40 = vlaneseq
  %v41 = vshrl.u32 %v40, 7
  %v42 = vsub.s32 4, %v41
  %v43 = vrot.slane %v30, %v42
  %v44 = vlaneseq
  %v45 = vshrl.u32 %v44, 7
  %v46 = vsub.s32 6, %v45
  %v47 = vrot.slane %v30, %v46
  %v52 = vlaneseq
  %v53 = vshrl.u32 %v52, 7
  %v54 = vsub.s32 0, %v53
  %v55 = vrot.slane %v35, %v54
  %v56 = vlaneseq
  %v57 = vshrl.u32 %v56, 7
  %v58 = vsub.s32 0, %v57
  %v59 = vrot.slane %v39, %v58
  %v60 = vlaneseq
  %v61 = vshrl.u32 %v60, 7
  %v62 = vsub.s32 0, %v61
  %v63 = vrot.slane %v43, %v62
  %v64 = vlaneseq
  %v65 = vshrl.u32 %v64, 7
  %v66 = vsub.s32 0, %v65
  %v67 = vrot.slane %v47, %v66
  %v68 = vmul.f32 %v15, %v55
  %v69 = vmul.f32 %v16, %v59
  %v70 = vmul.f32 %v17, %v63
  %v71 = vmul.f32 %v18, %v67
  %v72 = vmul.f32 %v19, %v55
  %v73 = vmul.f32 %v20, %v59
  %v74 = vmul.f32 %v21, %v63
  %v75 = vmul.f32 %v22, %v67
  %v76 = vadd.f32 %v68, %v15
  %v77 = vadd.f32 %v69, %v16
  %v78 = vadd.f32 %v70, %v17
  %v79 = vadd.f32 %v71, %v18
  %v80 = vadd.f32 %v72, %v19
  %v81 = vadd.f32 %v73, %v20
  %v82 = vadd.f32 %v74, %v21
  %v83 = vadd.f32 %v75, %v22
  %v84 = vpack.c.bf16 %v80, %v76
  %v85 = vpack.c.bf16 %v81, %v77
  %v86 = vpack.c.bf16 %v82, %v78
  %v87 = vpack.c.bf16 %v83, %v79
  %v92 = vunpack.c.l.b16 %v84
  %v93 = vunpack.c.l.b16 %v85
  %v94 = vunpack.c.l.b16 %v86
  %v95 = vunpack.c.l.b16 %v87
  %v96 = vunpack.c.h.b16 %v84
  %v97 = vunpack.c.h.b16 %v85
  %v98 = vunpack.c.h.b16 %v86
  %v99 = vunpack.c.h.b16 %v87
  %v100 = vpack.c.b16 %v93, %v92
  %v101 = vpack.c.b16 %v95, %v94
  %v102 = vpack.c.b16 %v97, %v96
  %v103 = vpack.c.b16 %v99, %v98
  %108 = vst [vmem:[%s2] sm:$0xff] %v100
  %109 = vst [vmem:[%s2 + $0x8] sm:$0xff] %v101
  %110 = vst [vmem:[%s2 + $0x10] sm:$0xff] %v102
  %111 = vst [vmem:[%s2 + $0x18] sm:$0xff] %v103
  // Predicated region
  $region10: #{_lambda_.61} parent=0 // pred_check
    _
  $region11: #{_lambda_.61} parent=0 // pred_check_branch
    %113 = sbr.rel (0) target = $region13
  $region12: #{_lambda_.61} parent=0 // pred_region
    _
  $region13: #{_lambda_.61} parent=0 // pred_fallthru
    _
  // Predicated region
  $region14: #{_lambda_.61} parent=0 // pred_check
    _
  $region15: #{_lambda_.61} parent=0 // pred_check_branch
    %115 = sbr.rel (0) target = $region17
  $region16: #{_lambda_.61} parent=0 // pred_region
    _
  $region17: #{_lambda_.61} parent=0 // pred_fallthru
    _

// kernel: _lambda_.60
$region0: #{_lambda_.60}
  #allocation0 [shape = 'u32[]', space=smem, size = 0x4, offset = 0x4, fixed_abs, tag = 'smem constant byte address 0x4 - core index']
  #allocation1 [shape = 'u32[144,128]{1,0:T(1,128)}', space=vmem, size = 0x12000, scoped, tag = 'internal scratch']
  %s0 = inlined_call_operand.vmem [shape: bf16[16,64], index: 0, kind: input, shape index: {}]
  %s1 = inlined_call_operand.vmem [shape: bf16[64,256], index: 1, kind: input, shape index: {}]
  %s2 = inlined_call_operand.vmem [shape: f32[16,1], index: 2, kind: input, shape index: {}]
  %s3 = inlined_call_operand.vmem [shape: bf16[16,256], index: 3, kind: output, shape index: {}]
  %s4 = sld [smem:[#allocation0]]
  $region22: #{_lambda_.60} parent=0
    _
  %s6 = ssub.s32 1, %s4
  %s7 = scalar_select 0, %s6, %s4
  // Predicated region
  $region2: #{_lambda_.60} parent=0 // pred_check
    _
  $region3: #{_lambda_.60} parent=0 // pred_check_branch
    %9 = sbr.rel (0) target = $region5
  $region4: #{_lambda_.60} parent=0 // pred_region
    _
  $region5: #{_lambda_.60} parent=0 // pred_fallthru
    _
  // Predicated region
  $region6: #{_lambda_.60} parent=0 // pred_check
    _
  $region7: #{_lambda_.60} parent=0 // pred_check_branch
    %11 = sbr.rel (0) target = $region9
  $region8: #{_lambda_.60} parent=0 // pred_region
    _
  $region9: #{_lambda_.60} parent=0 // pred_fallthru
    _
  // Predicated region
  $region10: #{_lambda_.60} parent=0 // pred_check
    _
  $region11: #{_lambda_.60} parent=0 // pred_check_branch
    %13 = sbr.rel (0) target = $region13
  $region12: #{_lambda_.60} parent=0 // pred_region
    _
  $region13: #{_lambda_.60} parent=0 // pred_fallthru
    _
  %v15 = vld [vmem:[%s0] sm:$0xf]
  %v16 = vld [vmem:[%s0 + $0x4] sm:$0xf]
  %v17 = vld [vmem:[%s1] sm:$0xff]
  %v18 = vld [vmem:[%s1 + $0x8] sm:$0xff]
  %v19 = vld [vmem:[%s1 + $0x10] sm:$0xff]
  %v20 = vld [vmem:[%s1 + $0x18] sm:$0xff]
  %v21 = vld [vmem:[%s1 + $0x20] sm:$0xff]
  %v22 = vld [vmem:[%s1 + $0x28] sm:$0xff]
  %v23 = vld [vmem:[%s1 + $0x30] sm:$0xff]
  %v24 = vld [vmem:[%s1 + $0x38] sm:$0xff]
  %v25 = vld [vmem:[%s2] sm:$0xff]
  %v26 = vld [vmem:[%s2 + $0x8] sm:$0xff]
  %28 = vset.pattern.permute.xlu0 0
  %29 = vperm.xlu0 %28, %v25
  %v30 = vpop.permute.xlu0 %29
  %33 = vset.pattern.permute.xlu0 0
  %34 = vperm.xlu0 %33, %v26
  %v35 = vpop.permute.xlu0 %34
  %v39 = vunpack.c.l.b16 %v15
  %v40 = vunpack.c.l.b16 %v16
  %v41 = vpack.c.b16 %v40, %v39
  %v50 = vunpack.c.l.b16 %v17
  %v51 = vunpack.c.h.b16 %v17
  %v52 = vunpack.c.l.b16 %v18
  %v53 = vunpack.c.h.b16 %v18
  %v54 = vunpack.c.l.b16 %v19
  %v55 = vunpack.c.h.b16 %v19
  %v56 = vunpack.c.l.b16 %v20
  %v57 = vunpack.c.h.b16 %v20
  %v58 = vunpack.c.l.b16 %v21
  %v59 = vunpack.c.h.b16 %v21
  %v60 = vunpack.c.l.b16 %v22
  %v61 = vunpack.c.h.b16 %v22
  %v62 = vunpack.c.l.b16 %v23
  %v63 = vunpack.c.h.b16 %v23
  %v64 = vunpack.c.l.b16 %v24
  %v65 = vunpack.c.h.b16 %v24
  %v66 = vpack.c.b16 %v52, %v50
  %v67 = vpack.c.b16 %v53, %v51
  %v68 = vpack.c.b16 %v56, %v54
  %v69 = vpack.c.b16 %v57, %v55
  %v70 = vpack.c.b16 %v60, %v58
  %v71 = vpack.c.b16 %v61, %v59
  %v72 = vpack.c.b16 %v64, %v62
  %v73 = vpack.c.b16 %v65, %v63
  %vm82 = vcmask 523264
  %v84 = vsel %vm82, %v41, 0
  %86 = vmatprep.subr.bf16.mxu0 0
  %87 = vmatpush1.bf16.msra.mxu0 0
  %88 = vmatprep.subr.bf16.mxu0 0
  %89 = vmatpush1.bf16.msra.mxu0 0
  %90 = vmatprep.subr.bf16.mxu0 0
  %91 = vmatpush1.bf16.msra.mxu0 0
  %92 = vmatprep.subr.bf16.mxu0 0
  %93 = vmatpush1.bf16.msra.mxu0 0
  %94 = vmatprep.subr.bf16.mxu0 %v73
  %95 = vmatpush1.bf16.msra.mxu0 %v72
  %96 = vmatprep.subr.bf16.mxu0 %v71
  %97 = vmatpush1.bf16.msra.mxu0 %v70
  %98 = vmatprep.subr.bf16.mxu0 %v69
  %99 = vmatpush1.bf16.msra.mxu0 %v68
  %100 = vmatprep.subr.bf16.mxu0 %v67
  %101 = vmatpush1.bf16.msra.mxu0 %v66
  %102 = vmatprep.subr.bf16.mxu0 0
  %103 = vmatpush2.bf16.msra.mxu0 0
  %104 = vmatprep.subr.bf16.mxu0 0
  %105 = vmatpush2.bf16.msra.mxu0 0
  %106 = vmatprep.subr.bf16.mxu0 0
  %107 = vmatpush2.bf16.msra.mxu0 0
  %108 = vmatprep.subr.bf16.mxu0 0
  %109 = vmatpush2.bf16.msra.mxu0 0
  %110 = vmatprep.subr.bf16.mxu0 0
  %111 = vmatpush2.bf16.msra.mxu0 0
  %112 = vmatprep.subr.bf16.mxu0 0
  %113 = vmatpush2.bf16.msra.mxu0 0
  %114 = vmatprep.subr.bf16.mxu0 0
  %115 = vmatpush2.bf16.msra.mxu0 0
  %116 = vmatprep.subr.bf16.mxu0 0
  %117 = vmatpush2.bf16.msra.mxu0 0
  %118 = vmatprep.mubr.bf16.mxu0 0
  %119 = vmatmul.mubr.bf16.gmra.mxu0 %v84
  %v120 = vpop.f32.mrf.mxu0
  %v121 = vadd.f32 %v30, %v120
  %v122 = vpop.f32.mrf.mxu0
  %v123 = vadd.f32 %v30, %v122
  %v124 = vpop.f32.mrf.mxu0
  %v125 = vadd.f32 %v35, %v124
  %v126 = vpop.f32.mrf.mxu0
  %v127 = vadd.f32 %v35, %v126
  %128 = vdwg.mxu0
  %v129 = vpack.c.bf16 %v125, %v121
  %v130 = vpack.c.bf16 %v127, %v123
  %v133 = vunpack.c.l.b16 %v129
  %v134 = vunpack.c.l.b16 %v130
  %v135 = vunpack.c.h.b16 %v129
  %v136 = vunpack.c.h.b16 %v130
  %v137 = vpack.c.b16 %v134, %v133
  %v138 = vpack.c.b16 %v136, %v135
  %141 = vst [vmem:[%s3] sm:$0xff] %v137
  %142 = vst [vmem:[%s3 + $0x8] sm:$0xff] %v138
  // Predicated region
  $region14: #{_lambda_.60} parent=0 // pred_check
    _
  $region15: #{_lambda_.60} parent=0 // pred_check_branch
    %144 = sbr.rel (0) target = $region17
  $region16: #{_lambda_.60} parent=0 // pred_region
    _
  $region17: #{_lambda_.60} parent=0 // pred_fallthru
    _
  // Predicated region
  $region18: #{_lambda_.60} parent=0 // pred_check
    _
  $region19: #{_lambda_.60} parent=0 // pred_check_branch
    %146 = sbr.rel (0) target = $region21
  $region20: #{_lambda_.60} parent=0 // pred_region
    _
  $region21: #{_lambda_.60} parent=0 // pred_fallthru
    _

// kernel: _lambda_.51
$region0: #{_lambda_.51}
  #allocation0 [shape = 'u32[]', space=smem, size = 0x4, offset = 0x4, fixed_abs, tag = 'smem constant byte address 0x4 - core index']
  #allocation1 [shape = 'u32[144,128]{1,0:T(1,128)}', space=vmem, size = 0x12000, scoped, tag = 'internal scratch']
  %s0 = inlined_call_operand.vmem [shape: bf16[16,144], index: 0, kind: input, shape index: {}]
  %s1 = inlined_call_operand.vmem [shape: bf16[144,512], index: 1, kind: input, shape index: {}]
  %s2 = inlined_call_operand.vmem [shape: f32[16,1], index: 2, kind: input, shape index: {}]
  %s3 = inlined_call_operand.vmem [shape: bf16[16,512], index: 3, kind: output, shape index: {}]
  %s4 = sld [smem:[#allocation0]]
  $region22: #{_lambda_.51} parent=0
    _
  %s6 = ssub.s32 1, %s4
  %s7 = scalar_select 0, %s6, %s4
  // Predicated region
  $region2: #{_lambda_.51} parent=0 // pred_check
    _
  $region3: #{_lambda_.51} parent=0 // pred_check_branch
    %9 = sbr.rel (0) target = $region5
  $region4: #{_lambda_.51} parent=0 // pred_region
    _
  $region5: #{_lambda_.51} parent=0 // pred_fallthru
    _
  // Predicated region
  $region6: #{_lambda_.51} parent=0 // pred_check
    _
  $region7: #{_lambda_.51} parent=0 // pred_check_branch
    %11 = sbr.rel (0) target = $region9
  $region8: #{_lambda_.51} parent=0 // pred_region
    _
  $region9: #{_lambda_.51} parent=0 // pred_fallthru
    _
  // Predicated region
  $region10: #{_lambda_.51} parent=0 // pred_check
    _
  $region11: #{_lambda_.51} parent=0 // pred_check_branch
    %13 = sbr.rel (0) target = $region13
  $region12: #{_lambda_.51} parent=0 // pred_region
    _
  $region13: #{_lambda_.51} parent=0 // pred_fallthru
    _
  %v15 = vld [vmem:[%s0] sm:$0xff]
  %v16 = vld [vmem:[%s0 + $0x8] sm:$0xff]
  %v17 = vld [vmem:[%s1] sm:$0xff]
  %v18 = vld [vmem:[%s1 + $0x8] sm:$0xff]
  %v19 = vld [vmem:[%s1 + $0x10] sm:$0xff]
  %v20 = vld [vmem:[%s1 + $0x18] sm:$0xff]
  %v21 = vld [vmem:[%s1 + $0x20] sm:$0xff]
  %v22 = vld [vmem:[%s1 + $0x28] sm:$0xff]
  %v23 = vld [vmem:[%s1 + $0x30] sm:$0xff]
  %v24 = vld [vmem:[%s1 + $0x38] sm:$0xff]
  %v25 = vld [vmem:[%s1 + $0x40] sm:$0xff]
  %v26 = vld [vmem:[%s1 + $0x48] sm:$0xff]
  %v27 = vld [vmem:[%s1 + $0x50] sm:$0xff]
  %v28 = vld [vmem:[%s1 + $0x58] sm:$0xff]
  %v29 = vld [vmem:[%s1 + $0x60] sm:$0xff]
  %v30 = vld [vmem:[%s1 + $0x68] sm:$0xff]
  %v31 = vld [vmem:[%s1 + $0x70] sm:$0xff]
  %v32 = vld [vmem:[%s1 + $0x78] sm:$0xff]
  %v33 = vld [vmem:[%s1 + $0x80] sm:$0xff]
  %v34 = vld [vmem:[%s1 + $0x88] sm:$0xff]
  %v35 = vld [vmem:[%s1 + $0x90] sm:$0xff]
  %v36 = vld [vmem:[%s1 + $0x98] sm:$0xff]
  %v37 = vld [vmem:[%s1 + $0xa0] sm:$0xff]
  %v38 = vld [vmem:[%s1 + $0xa8] sm:$0xff]
  %v39 = vld [vmem:[%s1 + $0xb0] sm:$0xff]
  %v40 = vld [vmem:[%s1 + $0xb8] sm:$0xff]
  %v41 = vld [vmem:[%s1 + $0xc0] sm:$0xff]
  %v42 = vld [vmem:[%s1 + $0xc8] sm:$0xff]
  %v43 = vld [vmem:[%s1 + $0xd0] sm:$0xff]
  %v44 = vld [vmem:[%s1 + $0xd8] sm:$0xff]
  %v45 = vld [vmem:[%s1 + $0xe0] sm:$0xff]
  %v46 = vld [vmem:[%s1 + $0xe8] sm:$0xff]
  %v47 = vld [vmem:[%s1 + $0xf0] sm:$0xff]
  %v48 = vld [vmem:[%s1 + $0xf8] sm:$0xff]
  %v49 = vld [vmem:[%s1 + $0x100] sm:$0xff]
  %v50 = vld [vmem:[%s1 + $0x108] sm:$0xff]
  %v51 = vld [vmem:[%s1 + $0x110] sm:$0xff]
  %v52 = vld [vmem:[%s1 + $0x118] sm:$0xff]
  %v53 = vld [vmem:[%s2] sm:$0xff]
  %v54 = vld [vmem:[%s2 + $0x8] sm:$0xff]
  %56 = vset.pattern.permute.xlu0 0
  %57 = vperm.xlu0 %56, %v53
  %v58 = vpop.permute.xlu0 %57
  %61 = vset.pattern.permute.xlu0 0
  %62 = vperm.xlu0 %61, %v54
  %v63 = vpop.permute.xlu0 %62
  %v67 = vunpack.c.l.b16 %v15
  %v68 = vunpack.c.h.b16 %v15
  %v69 = vunpack.c.l.b16 %v16
  %v70 = vunpack.c.h.b16 %v16
  %v71 = vpack.c.b16 %v69, %v67
  %v72 = vpack.c.b16 %v70, %v68
  %v110 = vunpack.c.l.b16 %v17
  %v111 = vunpack.c.h.b16 %v17
  %v112 = vunpack.c.l.b16 %v18
  %v113 = vunpack.c.h.b16 %v18
  %v114 = vunpack.c.l.b16 %v19
  %v115 = vunpack.c.h.b16 %v19
  %v116 = vunpack.c.l.b16 %v20
  %v117 = vunpack.c.h.b16 %v20
  %v118 = vunpack.c.l.b16 %v21
  %v119 = vunpack.c.h.b16 %v21
  %v120 = vunpack.c.l.b16 %v22
  %v121 = vunpack.c.h.b16 %v22
  %v122 = vunpack.c.l.b16 %v23
  %v123 = vunpack.c.h.b16 %v23
  %v124 = vunpack.c.l.b16 %v24
  %v125 = vunpack.c.h.b16 %v24
  %v126 = vunpack.c.l.b16 %v25
  %v127 = vunpack.c.h.b16 %v25
  %v128 = vunpack.c.l.b16 %v26
  %v129 = vunpack.c.h.b16 %v26
  %v130 = vunpack.c.l.b16 %v27
  %v131 = vunpack.c.h.b16 %v27
  %v132 = vunpack.c.l.b16 %v28
  %v133 = vunpack.c.h.b16 %v28
  %v134 = vunpack.c.l.b16 %v29
  %v135 = vunpack.c.h.b16 %v29
  %v136 = vunpack.c.l.b16 %v30
  %v137 = vunpack.c.h.b16 %v30
  %v138 = vunpack.c.l.b16 %v31
  %v139 = vunpack.c.h.b16 %v31
  %v140 = vunpack.c.l.b16 %v32
  %v141 = vunpack.c.h.b16 %v32
  %v142 = vunpack.c.l.b16 %v33
  %v143 = vunpack.c.h.b16 %v33
  %v144 = vunpack.c.l.b16 %v34
  %v145 = vunpack.c.h.b16 %v34
  %v146 = vunpack.c.l.b16 %v35
  %v147 = vunpack.c.h.b16 %v35
  %v148 = vunpack.c.l.b16 %v36
  %v149 = vunpack.c.h.b16 %v36
  %v150 = vunpack.c.l.b16 %v37
  %v151 = vunpack.c.h.b16 %v37
  %v152 = vunpack.c.l.b16 %v38
  %v153 = vunpack.c.h.b16 %v38
  %v154 = vunpack.c.l.b16 %v39
  %v155 = vunpack.c.h.b16 %v39
  %v156 = vunpack.c.l.b16 %v40
  %v157 = vunpack.c.h.b16 %v40
  %v158 = vunpack.c.l.b16 %v41
  %v159 = vunpack.c.h.b16 %v41
  %v160 = vunpack.c.l.b16 %v42
  %v161 = vunpack.c.h.b16 %v42
  %v162 = vunpack.c.l.b16 %v43
  %v163 = vunpack.c.h.b16 %v43
  %v164 = vunpack.c.l.b16 %v44
  %v165 = vunpack.c.h.b16 %v44
  %v166 = vunpack.c.l.b16 %v45
  %v167 = vunpack.c.h.b16 %v45
  %v168 = vunpack.c.l.b16 %v46
  %v169 = vunpack.c.h.b16 %v46
  %v170 = vunpack.c.l.b16 %v47
  %v171 = vunpack.c.h.b16 %v47
  %v172 = vunpack.c.l.b16 %v48
  %v173 = vunpack.c.h.b16 %v48
  %v174 = vunpack.c.l.b16 %v49
  %v175 = vunpack.c.h.b16 %v49
  %v176 = vunpack.c.l.b16 %v50
  %v177 = vunpack.c.h.b16 %v50
  %v178 = vunpack.c.l.b16 %v51
  %v179 = vunpack.c.h.b16 %v51
  %v180 = vunpack.c.l.b16 %v52
  %v181 = vunpack.c.h.b16 %v52
  %v182 = vpack.c.b16 %v114, %v110
  %v183 = vpack.c.b16 %v115, %v111
  %v184 = vpack.c.b16 %v116, %v112
  %v185 = vpack.c.b16 %v117, %v113
  %v186 = vpack.c.b16 %v122, %v118
  %v187 = vpack.c.b16 %v123, %v119
  %v188 = vpack.c.b16 %v124, %v120
  %v189 = vpack.c.b16 %v125, %v121
  %v190 = vpack.c.b16 %v130, %v126
  %v191 = vpack.c.b16 %v131, %v127
  %v192 = vpack.c.b16 %v132, %v128
  %v193 = vpack.c.b16 %v133, %v129
  %v194 = vpack.c.b16 %v138, %v134
  %v195 = vpack.c.b16 %v139, %v135
  %v196 = vpack.c.b16 %v140, %v136
  %v197 = vpack.c.b16 %v141, %v137
  %v198 = vpack.c.b16 %v146, %v142
  %v199 = vpack.c.b16 %v147, %v143
  %v200 = vpack.c.b16 %v148, %v144
  %v201 = vpack.c.b16 %v149, %v145
  %v202 = vpack.c.b16 %v154, %v150
  %v203 = vpack.c.b16 %v155, %v151
  %v204 = vpack.c.b16 %v156, %v152
  %v205 = vpack.c.b16 %v157, %v153
  %v206 = vpack.c.b16 %v162, %v158
  %v207 = vpack.c.b16 %v163, %v159
  %v208 = vpack.c.b16 %v164, %v160
  %v209 = vpack.c.b16 %v165, %v161
  %v210 = vpack.c.b16 %v170, %v166
  %v211 = vpack.c.b16 %v171, %v167
  %v212 = vpack.c.b16 %v172, %v168
  %v213 = vpack.c.b16 %v173, %v169
  %v214 = vpack.c.b16 %v178, %v174
  %v215 = vpack.c.b16 %v179, %v175
  %v216 = vpack.c.b16 %v180, %v176
  %v217 = vpack.c.b16 %v181, %v177
  %vm254 = vcmask 130048
  %v256 = vsel %vm254, %v72, 0
  %258 = vmatprep.subr.bf16.mxu0 %v211
  %259 = vmatpush1.bf16.msra.mxu0 %v210
  %260 = vmatprep.subr.bf16.mxu0 %v207
  %261 = vmatpush1.bf16.msra.mxu0 %v206
  %262 = vmatprep.subr.bf16.mxu0 %v203
  %263 = vmatpush1.bf16.msra.mxu0 %v202
  %264 = vmatprep.subr.bf16.mxu0 %v199
  %265 = vmatpush1.bf16.msra.mxu0 %v198
  %266 = vmatprep.subr.bf16.mxu0 %v195
  %267 = vmatpush1.bf16.msra.mxu0 %v194
  %268 = vmatprep.subr.bf16.mxu0 %v191
  %269 = vmatpush1.bf16.msra.mxu0 %v190
  %270 = vmatprep.subr.bf16.mxu0 %v187
  %271 = vmatpush1.bf16.msra.mxu0 %v186
  %272 = vmatprep.subr.bf16.mxu0 %v183
  %273 = vmatpush1.bf16.msra.mxu0 %v182
  %274 = vmatprep.subr.bf16.mxu0 0
  %275 = vmatpush2.bf16.msra.mxu0 0
  %276 = vmatprep.subr.bf16.mxu0 0
  %277 = vmatpush2.bf16.msra.mxu0 0
  %278 = vmatprep.subr.bf16.mxu0 0
  %279 = vmatpush2.bf16.msra.mxu0 0
  %280 = vmatprep.subr.bf16.mxu0 0
  %281 = vmatpush2.bf16.msra.mxu0 0
  %282 = vmatprep.subr.bf16.mxu0 0
  %283 = vmatpush2.bf16.msra.mxu0 0
  %284 = vmatprep.subr.bf16.mxu0 0
  %285 = vmatpush2.bf16.msra.mxu0 0
  %286 = vmatprep.subr.bf16.mxu0 0
  %287 = vmatpush2.bf16.msra.mxu0 0
  %288 = vmatprep.subr.bf16.mxu0 %v215
  %289 = vmatpush2.bf16.msra.mxu0 %v214
  %290 = vmatprep.mubr.bf16.mxu0 %v256
  %291 = vmatmul.mubr.bf16.gmra.mxu0 %v71
  %v292 = vpop.f32.mrf.mxu0
  %v293 = vadd.f32 %v58, %v292
  %v294 = vpop.f32.mrf.mxu0
  %v295 = vadd.f32 %v58, %v294
  %v296 = vpop.f32.mrf.mxu0
  %v297 = vadd.f32 %v63, %v296
  %v298 = vpop.f32.mrf.mxu0
  %v299 = vadd.f32 %v63, %v298
  %300 = vdwg.mxu0
  %301 = vmatprep.subr.bf16.mxu0 %v213
  %302 = vmatpush1.bf16.msra.mxu0 %v212
  %303 = vmatprep.subr.bf16.mxu0 %v209
  %304 = vmatpush1.bf16.msra.mxu0 %v208
  %305 = vmatprep.subr.bf16.mxu0 %v205
  %306 = vmatpush1.bf16.msra.mxu0 %v204
  %307 = vmatprep.subr.bf16.mxu0 %v201
  %308 = vmatpush1.bf16.msra.mxu0 %v200
  %309 = vmatprep.subr.bf16.mxu0 %v197
  %310 = vmatpush1.bf16.msra.mxu0 %v196
  %311 = vmatprep.subr.bf16.mxu0 %v193
  %312 = vmatpush1.bf16.msra.mxu0 %v192
  %313 = vmatprep.subr.bf16.mxu0 %v189
  %314 = vmatpush1.bf16.msra.mxu0 %v188
  %315 = vmatprep.subr.bf16.mxu0 %v185
  %316 = vmatpush1.bf16.msra.mxu0 %v184
  %317 = vmatprep.subr.bf16.mxu0 0
  %318 = vmatpush2.bf16.msra.mxu0 0
  %319 = vmatprep.subr.bf16.mxu0 0
  %320 = vmatpush2.bf16.msra.mxu0 0
  %321 = vmatprep.subr.bf16.mxu0 0
  %322 = vmatpush2.bf16.msra.mxu0 0
  %323 = vmatprep.subr.bf16.mxu0 0
  %324 = vmatpush2.bf16.msra.mxu0 0
  %325 = vmatprep.subr.bf16.mxu0 0
  %326 = vmatpush2.bf16.msra.mxu0 0
  %327 = vmatprep.subr.bf16.mxu0 0
  %328 = vmatpush2.bf16.msra.mxu0 0
  %329 = vmatprep.subr.bf16.mxu0 0
  %330 = vmatpush2.bf16.msra.mxu0 0
  %331 = vmatprep.subr.bf16.mxu0 %v217
  %332 = vmatpush2.bf16.msra.mxu0 %v216
  %333 = vmatprep.mubr.bf16.mxu0 %v256
  %334 = vmatmul.mubr.bf16.gmra.mxu0 %v71
  %v335 = vpop.f32.mrf.mxu0
  %v336 = vadd.f32 %v58, %v335
  %v337 = vpop.f32.mrf.mxu0
  %v338 = vadd.f32 %v58, %v337
  %v339 = vpop.f32.mrf.mxu0
  %v340 = vadd.f32 %v63, %v339
  %v341 = vpop.f32.mrf.mxu0
  %v342 = vadd.f32 %v63, %v341
  %343 = vdwg.mxu0
  %v344 = vmax.f32 %v293, 0.0
  %v345 = vmax.f32 %v295, 0.0
  %v346 = vmax.f32 %v336, 0.0
  %v347 = vmax.f32 %v338, 0.0
  %v348 = vmax.f32 %v297, 0.0
  %v349 = vmax.f32 %v299, 0.0
  %v350 = vmax.f32 %v340, 0.0
  %v351 = vmax.f32 %v342, 0.0
  %v352 = vpack.c.bf16 %v348, %v344
  %v353 = vpack.c.bf16 %v349, %v345
  %v354 = vpack.c.bf16 %v350, %v346
  %v355 = vpack.c.bf16 %v351, %v347
  %v360 = vunpack.c.l.b16 %v352
  %v361 = vunpack.c.l.b16 %v353
  %v362 = vunpack.c.l.b16 %v354
  %v363 = vunpack.c.l.b16 %v355
  %v364 = vunpack.c.h.b16 %v352
  %v365 = vunpack.c.h.b16 %v353
  %v366 = vunpack.c.h.b16 %v354
  %v367 = vunpack.c.h.b16 %v355
  %v368 = vpack.c.b16 %v361, %v360
  %v369 = vpack.c.b16 %v363, %v362
  %v370 = vpack.c.b16 %v365, %v364
  %v371 = vpack.c.b16 %v367, %v366
  %376 = vst [vmem:[%s3] sm:$0xff] %v368
  %377 = vst [vmem:[%s3 + $0x8] sm:$0xff] %v369
  %378 = vst [vmem:[%s3 + $0x10] sm:$0xff] %v370
  %379 = vst [vmem:[%s3 + $0x18] sm:$0xff] %v371
  // Predicated region
  $region14: #{_lambda_.51} parent=0 // pred_check
    _
  $region15: #{_lambda_.51} parent=0 // pred_check_branch
    %381 = sbr.rel (0) target = $region17
  $region16: #{_lambda_.51} parent=0 // pred_region
    _
  $region17: #{_lambda_.51} parent=0 // pred_fallthru
    _
  // Predicated region
  $region18: #{_lambda_.51} parent=0 // pred_check
    _
  $region19: #{_lambda_.51} parent=0 // pred_check_branch
    %383 = sbr.rel (0) target = $region21
  $region20: #{_lambda_.51} parent=0 // pred_region
    _
  $region21: #{_lambda_.51} parent=0 // pred_fallthru
    _

// kernel: _lambda_.63
$region0: #{_lambda_.63}
  #allocation0 [shape = 'u32[]', space=smem, size = 0x4, offset = 0x4, fixed_abs, tag = 'smem constant byte address 0x4 - core index']
  #allocation1 [shape = 'u32[144,128]{1,0:T(1,128)}', space=vmem, size = 0x12000, scoped, tag = 'internal scratch']
  %s0 = inlined_call_operand.vmem [shape: bf16[16,16], index: 0, kind: input, shape index: {}]
  %s1 = inlined_call_operand.vmem [shape: bf16[16,512], index: 1, kind: input, shape index: {}]
  %s2 = inlined_call_operand.vmem [shape: f32[16,1], index: 2, kind: input, shape index: {}]
  %s3 = inlined_call_operand.vmem [shape: bf16[16,512], index: 3, kind: input, shape index: {}]
  %s4 = inlined_call_operand.vmem [shape: bf16[16,512], index: 4, kind: output, shape index: {}]
  %s5 = sld [smem:[#allocation0]]
  $region26: #{_lambda_.63} parent=0
    _
  %s7 = ssub.s32 1, %s5
  %s8 = scalar_select 0, %s7, %s5
  // Predicated region
  $region2: #{_lambda_.63} parent=0 // pred_check
    _
  $region3: #{_lambda_.63} parent=0 // pred_check_branch
    %10 = sbr.rel (0) target = $region5
  $region4: #{_lambda_.63} parent=0 // pred_region
    _
  $region5: #{_lambda_.63} parent=0 // pred_fallthru
    _
  // Predicated region
  $region6: #{_lambda_.63} parent=0 // pred_check
    _
  $region7: #{_lambda_.63} parent=0 // pred_check_branch
    %12 = sbr.rel (0) target = $region9
  $region8: #{_lambda_.63} parent=0 // pred_region
    _
  $region9: #{_lambda_.63} parent=0 // pred_fallthru
    _
  // Predicated region
  $region10: #{_lambda_.63} parent=0 // pred_check
    _
  $region11: #{_lambda_.63} parent=0 // pred_check_branch
    %14 = sbr.rel (0) target = $region13
  $region12: #{_lambda_.63} parent=0 // pred_region
    _
  $region13: #{_lambda_.63} parent=0 // pred_fallthru
    _
  // Predicated region
  $region14: #{_lambda_.63} parent=0 // pred_check
    _
  $region15: #{_lambda_.63} parent=0 // pred_check_branch
    %16 = sbr.rel (0) target = $region17
  $region16: #{_lambda_.63} parent=0 // pred_region
    _
  $region17: #{_lambda_.63} parent=0 // pred_fallthru
    _
  %v18 = vld [vmem:[%s3] sm:$0xff]
  %v19 = vld [vmem:[%s3 + $0x8] sm:$0xff]
  %v20 = vld [vmem:[%s3 + $0x10] sm:$0xff]
  %v21 = vld [vmem:[%s3 + $0x18] sm:$0xff]
  %v22 = vunpack.c.l.bf16 %v18
  %v23 = vunpack.c.h.bf16 %v18
  %v24 = vunpack.c.l.bf16 %v19
  %v25 = vunpack.c.h.bf16 %v19
  %v26 = vunpack.c.l.bf16 %v20
  %v27 = vunpack.c.h.bf16 %v20
  %v28 = vunpack.c.l.bf16 %v21
  %v29 = vunpack.c.h.bf16 %v21
  %v30 = vld [vmem:[%s0] sm:$0xf]
  %v31 = vld [vmem:[%s0 + $0x4] sm:$0xf]
  %v32 = vld [vmem:[%s1] sm:$0xff]
  %v33 = vld [vmem:[%s1 + $0x8] sm:$0xff]
  %v34 = vld [vmem:[%s1 + $0x10] sm:$0xff]
  %v35 = vld [vmem:[%s1 + $0x18] sm:$0xff]
  %v36 = vld [vmem:[%s2] sm:$0xff]
  %v37 = vld [vmem:[%s2 + $0x8] sm:$0xff]
  %39 = vset.pattern.permute.xlu0 0
  %40 = vperm.xlu0 %39, %v36
  %v41 = vpop.permute.xlu0 %40
  %44 = vset.pattern.permute.xlu0 0
  %45 = vperm.xlu0 %44, %v37
  %v46 = vpop.permute.xlu0 %45
  %v50 = vunpack.c.l.b16 %v30
  %v51 = vunpack.c.l.b16 %v31
  %v52 = vpack.c.b16 %v51, %v50
  %v57 = vunpack.c.l.b16 %v32
  %v58 = vunpack.c.h.b16 %v32
  %v59 = vunpack.c.l.b16 %v33
  %v60 = vunpack.c.h.b16 %v33
  %v61 = vunpack.c.l.b16 %v34
  %v62 = vunpack.c.h.b16 %v34
  %v63 = vunpack.c.l.b16 %v35
  %v64 = vunpack.c.h.b16 %v35
  %v65 = vpack.c.b16 %v61, %v57
  %v66 = vpack.c.b16 %v62, %v58
  %v67 = vpack.c.b16 %v63, %v59
  %v68 = vpack.c.b16 %v64, %v60
  %vm73 = vcmask 130048
  %v75 = vsel %vm73, %v52, 0
  %77 = vmatprep.subr.bf16.mxu0 0
  %78 = vmatpush1.bf16.msra.mxu0 0
  %79 = vmatprep.subr.bf16.mxu0 0
  %80 = vmatpush1.bf16.msra.mxu0 0
  %81 = vmatprep.subr.bf16.mxu0 0
  %82 = vmatpush1.bf16.msra.mxu0 0
  %83 = vmatprep.subr.bf16.mxu0 0
  %84 = vmatpush1.bf16.msra.mxu0 0
  %85 = vmatprep.subr.bf16.mxu0 0
  %86 = vmatpush1.bf16.msra.mxu0 0
  %87 = vmatprep.subr.bf16.mxu0 0
  %88 = vmatpush1.bf16.msra.mxu0 0
  %89 = vmatprep.subr.bf16.mxu0 0
  %90 = vmatpush1.bf16.msra.mxu0 0
  %91 = vmatprep.subr.bf16.mxu0 %v66
  %92 = vmatpush1.bf16.msra.mxu0 %v65
  %93 = vmatprep.subr.bf16.mxu0 0
  %94 = vmatpush2.bf16.msra.mxu0 0
  %95 = vmatprep.subr.bf16.mxu0 0
  %96 = vmatpush2.bf16.msra.mxu0 0
  %97 = vmatprep.subr.bf16.mxu0 0
  %98 = vmatpush2.bf16.msra.mxu0 0
  %99 = vmatprep.subr.bf16.mxu0 0
  %100 = vmatpush2.bf16.msra.mxu0 0
  %101 = vmatprep.subr.bf16.mxu0 0
  %102 = vmatpush2.bf16.msra.mxu0 0
  %103 = vmatprep.subr.bf16.mxu0 0
  %104 = vmatpush2.bf16.msra.mxu0 0
  %105 = vmatprep.subr.bf16.mxu0 0
  %106 = vmatpush2.bf16.msra.mxu0 0
  %107 = vmatprep.subr.bf16.mxu0 0
  %108 = vmatpush2.bf16.msra.mxu0 0
  %109 = vmatprep.mubr.bf16.mxu0 0
  %110 = vmatmul.mubr.bf16.gmra.mxu0 %v75
  %v111 = vpop.f32.mrf.mxu0
  %v112 = vadd.f32 %v41, %v111
  %v113 = vpop.f32.mrf.mxu0
  %v114 = vadd.f32 %v41, %v113
  %v115 = vpop.f32.mrf.mxu0
  %v116 = vadd.f32 %v46, %v115
  %v117 = vpop.f32.mrf.mxu0
  %v118 = vadd.f32 %v46, %v117
  %119 = vdwg.mxu0
  %120 = vmatprep.subr.bf16.mxu0 0
  %121 = vmatpush1.bf16.msra.mxu0 0
  %122 = vmatprep.subr.bf16.mxu0 0
  %123 = vmatpush1.bf16.msra.mxu0 0
  %124 = vmatprep.subr.bf16.mxu0 0
  %125 = vmatpush1.bf16.msra.mxu0 0
  %126 = vmatprep.subr.bf16.mxu0 0
  %127 = vmatpush1.bf16.msra.mxu0 0
  %128 = vmatprep.subr.bf16.mxu0 0
  %129 = vmatpush1.bf16.msra.mxu0 0
  %130 = vmatprep.subr.bf16.mxu0 0
  %131 = vmatpush1.bf16.msra.mxu0 0
  %132 = vmatprep.subr.bf16.mxu0 0
  %133 = vmatpush1.bf16.msra.mxu0 0
  %134 = vmatprep.subr.bf16.mxu0 %v68
  %135 = vmatpush1.bf16.msra.mxu0 %v67
  %136 = vmatprep.subr.bf16.mxu0 0
  %137 = vmatpush2.bf16.msra.mxu0 0
  %138 = vmatprep.subr.bf16.mxu0 0
  %139 = vmatpush2.bf16.msra.mxu0 0
  %140 = vmatprep.subr.bf16.mxu0 0
  %141 = vmatpush2.bf16.msra.mxu0 0
  %142 = vmatprep.subr.bf16.mxu0 0
  %143 = vmatpush2.bf16.msra.mxu0 0
  %144 = vmatprep.subr.bf16.mxu0 0
  %145 = vmatpush2.bf16.msra.mxu0 0
  %146 = vmatprep.subr.bf16.mxu0 0
  %147 = vmatpush2.bf16.msra.mxu0 0
  %148 = vmatprep.subr.bf16.mxu0 0
  %149 = vmatpush2.bf16.msra.mxu0 0
  %150 = vmatprep.subr.bf16.mxu0 0
  %151 = vmatpush2.bf16.msra.mxu0 0
  %152 = vmatprep.mubr.bf16.mxu0 0
  %153 = vmatmul.mubr.bf16.gmra.mxu0 %v75
  %v154 = vpop.f32.mrf.mxu0
  %v155 = vadd.f32 %v41, %v154
  %v156 = vpop.f32.mrf.mxu0
  %v157 = vadd.f32 %v41, %v156
  %v158 = vpop.f32.mrf.mxu0
  %v159 = vadd.f32 %v46, %v158
  %v160 = vpop.f32.mrf.mxu0
  %v161 = vadd.f32 %v46, %v160
  %162 = vdwg.mxu0
  %v163 = vadd.f32 %v112, %v22
  %v164 = vadd.f32 %v114, %v23
  %v165 = vadd.f32 %v155, %v24
  %v166 = vadd.f32 %v157, %v25
  %v167 = vadd.f32 %v116, %v26
  %v168 = vadd.f32 %v118, %v27
  %v169 = vadd.f32 %v159, %v28
  %v170 = vadd.f32 %v161, %v29
  %v171 = vpack.c.bf16 %v167, %v163
  %v172 = vpack.c.bf16 %v168, %v164
  %v173 = vpack.c.bf16 %v169, %v165
  %v174 = vpack.c.bf16 %v170, %v166
  %v179 = vunpack.c.l.b16 %v171
  %v180 = vunpack.c.l.b16 %v172
  %v181 = vunpack.c.l.b16 %v173
  %v182 = vunpack.c.l.b16 %v174
  %v183 = vunpack.c.h.b16 %v171
  %v184 = vunpack.c.h.b16 %v172
  %v185 = vunpack.c.h.b16 %v173
  %v186 = vunpack.c.h.b16 %v174
  %v187 = vpack.c.b16 %v180, %v179
  %v188 = vpack.c.b16 %v182, %v181
  %v189 = vpack.c.b16 %v184, %v183
  %v190 = vpack.c.b16 %v186, %v185
  %195 = vst [vmem:[%s4] sm:$0xff] %v187
  %196 = vst [vmem:[%s4 + $0x8] sm:$0xff] %v188
  %197 = vst [vmem:[%s4 + $0x10] sm:$0xff] %v189
  %198 = vst [vmem:[%s4 + $0x18] sm:$0xff] %v190
  // Predicated region
  $region18: #{_lambda_.63} parent=0 // pred_check
    _
  $region19: #{_lambda_.63} parent=0 // pred_check_branch
    %200 = sbr.rel (0) target = $region21
  $region20: #{_lambda_.63} parent=0 // pred_region
    _
  $region21: #{_lambda_.63} parent=0 // pred_fallthru
    _
  // Predicated region
  $region22: #{_lambda_.63} parent=0 // pred_check
    _
  $region23: #{_lambda_.63} parent=0 // pred_check_branch
    %202 = sbr.rel (0) target = $region25
  $region24: #{_lambda_.63} parent=0 // pred_region
    _
  $region25: #{_lambda_.63} parent=0 // pred_fallthru
    _

// kernel: _lambda_.65
$region0: #{_lambda_.65}
  #allocation0 [shape = 'u32[]', space=smem, size = 0x4, offset = 0x4, fixed_abs, tag = 'smem constant byte address 0x4 - core index']
  #allocation1 [shape = 'u32[144,128]{1,0:T(1,128)}', space=vmem, size = 0x12000, scoped, tag = 'internal scratch']
  %s0 = inlined_call_operand.vmem [shape: bf16[16,128], index: 0, kind: input, shape index: {}]
  %s1 = inlined_call_operand.vmem [shape: bf16[1,128], index: 1, kind: input, shape index: {}]
  %s2 = inlined_call_operand.vmem [shape: bf16[16,128], index: 2, kind: output, shape index: {}]
  %s3 = sld [smem:[#allocation0]]
  $region18: #{_lambda_.65} parent=0
    _
  %s5 = ssub.s32 1, %s3
  %s6 = scalar_select 0, %s5, %s3
  // Predicated region
  $region2: #{_lambda_.65} parent=0 // pred_check
    _
  $region3: #{_lambda_.65} parent=0 // pred_check_branch
    %8 = sbr.rel (0) target = $region5
  $region4: #{_lambda_.65} parent=0 // pred_region
    _
  $region5: #{_lambda_.65} parent=0 // pred_fallthru
    _
  // Predicated region
  $region6: #{_lambda_.65} parent=0 // pred_check
    _
  $region7: #{_lambda_.65} parent=0 // pred_check_branch
    %10 = sbr.rel (0) target = $region9
  $region8: #{_lambda_.65} parent=0 // pred_region
    _
  $region9: #{_lambda_.65} parent=0 // pred_fallthru
    _
  %v11 = vld [vmem:[%s0] sm:$0xf]
  %v12 = vld [vmem:[%s0 + $0x4] sm:$0xf]
  %v13 = vunpack.c.l.bf16 %v11
  %v14 = vunpack.c.l.bf16 %v12
  %v15 = vld [vmem:[%s1] sm:$0x1]
  %v16 = vunpack.c.l.bf16 %v15
  %v17 = vxor.u32 %v16, 2147483648
  %v18 = vmul.f32 %v17, 1.442695
  %v19 = vpow.pop %v18
  %v20 = vadd.f32 %v19, 1.0
  %v21 = vrcp.pop %v20
  %v22 = vmul.f32 1.0, %v21
  %v23 = vlaneseq
  %v24 = vshrl.u32 %v23, 7
  %v25 = vsub.s32 0, %v24
  %v26 = vrot.slane %v22, %v25
  %v27 = vmul.f32 %v13, %v26
  %v28 = vmul.f32 %v14, %v26
  %v29 = vadd.f32 %v27, %v13
  %v30 = vadd.f32 %v28, %v14
  %v31 = vpack.c.bf16 %v30, %v29
  %v33 = vunpack.c.l.b16 %v31
  %v34 = vunpack.c.h.b16 %v31
  %v35 = vpack.c.b16 %v33, %v33
  %v36 = vpack.c.b16 %v34, %v34
  %39 = vst [vmem:[%s2] sm:$0xf] %v35
  %40 = vst [vmem:[%s2 + $0x4] sm:$0xf] %v36
  // Predicated region
  $region10: #{_lambda_.65} parent=0 // pred_check
    _
  $region11: #{_lambda_.65} parent=0 // pred_check_branch
    %42 = sbr.rel (0) target = $region13
  $region12: #{_lambda_.65} parent=0 // pred_region
    _
  $region13: #{_lambda_.65} parent=0 // pred_fallthru
    _
  // Predicated region
  $region14: #{_lambda_.65} parent=0 // pred_check
    _
  $region15: #{_lambda_.65} parent=0 // pred_check_branch
    %44 = sbr.rel (0) target = $region17
  $region16: #{_lambda_.65} parent=0 // pred_region
    _
  $region17: #{_lambda_.65} parent=0 // pred_fallthru
    _

// kernel: _lambda_.64
$region0: #{_lambda_.64}
  #allocation0 [shape = 'u32[]', space=smem, size = 0x4, offset = 0x4, fixed_abs, tag = 'smem constant byte address 0x4 - core index']
  #allocation1 [shape = 'u32[144,128]{1,0:T(1,128)}', space=vmem, size = 0x12000, scoped, tag = 'internal scratch']
  %s0 = inlined_call_operand.vmem [shape: bf16[16,256], index: 0, kind: input, shape index: {}]
  %s1 = inlined_call_operand.vmem [shape: bf16[256,4096], index: 1, kind: input, shape index: {}]
  %s2 = inlined_call_operand.vmem [shape: f32[16,1], index: 2, kind: input, shape index: {}]
  %s3 = inlined_call_operand.vmem [shape: f32[16,4096], index: 3, kind: output, shape index: {}]
  %s4 = sld [smem:[#allocation0]]
  $region87: #{_lambda_.64} parent=0
    _
  %s6 = ssub.s32 1, %s4
  %s7 = scalar_select 0, %s6, %s4
  $region1: #{_lambda_.64} parent=0
    #allocation2 [shape = 'u8[524288]{0}', space=vmem, size = 0x80000, scoped, tag = 'input window, operand 1']
    #allocation3 [shape = 'u8[65536]{0}', space=vmem, size = 0x10000, scoped, tag = 'output window, operand 0']
    loop: start=0, step=1, limit=10
    $region2: #{_lambda_.64} parent=1 // loop_pre_header
      _
    $region3: #{_lambda_.64} parent=1 // loop_header
      %s9 = sphi 0, %s13
      %p10 = scmp.ge.s32.totalorder %s9, 10
      %s17 = sphi 0, %s17
      %s19 = sphi 0, %s17
      %s20 = sphi 0, %s19
      %s34 = sphi 0, %s20
      %s40 = sphi 0, %s42
      %s43 = sphi 0, %s40
      %s44 = sphi 0, %s43
      %s60 = sphi 0, %s44
      %s64 = sphi 0, %s64
      %s66 = sphi 0, %s64
      %s67 = sphi 0, %s66
      %s81 = sphi 0, %s67
      %s87 = sphi 0, %s89
      %s90 = sphi 0, %s87
      %s91 = sphi 0, %s90
      %s107 = sphi 0, %s91
    $region4: #{_lambda_.64} parent=1 // loop_header_branch
      %12 = sbr.rel (%p10) target = $region8
    $region5: #{_lambda_.64} parent=1 // loop_body
      %s14 = ssub.s32 %s9, 1
      %s15 = ssub.s32 %s9, 2
      %s16 = sadd.s32 %s9, 1
      %s18 = sadd.s32 %s17, 1
      %p21 = scmp.eq.s32.totalorder %s9, 7
      %p22 = scmp.ne.s32.totalorder %s17, %s19
      %p23 = scmp.eq.s32.totalorder %s9, 0
      %p24 = por %p22, %p23
      %p25 = scmp.ne.s32.totalorder %s17, %s19
      %p26 = scmp.eq.s32.totalorder %s14, 7
      %p27 = por %p25, %p26
      %p28 = scmp.ne.s32.totalorder %s19, %s20
      %p29 = scmp.eq.s32.totalorder %s14, 0
      %p30 = por %p28, %p29
      %p31 = scmp.ne.s32.totalorder %s19, %s20
      %p32 = scmp.eq.s32.totalorder %s15, 7
      %p33 = por %p31, %p32
      %p35 = scmp.ne.s32.totalorder %s20, %s34
      %p36 = scmp.eq.s32.totalorder %s15, 0
      %p37 = por %p35, %p36
      %s38 = ssub.s32 %s9, %s16
      %p39 = scmp.eq.s32.totalorder %s38, 0
      %s41 = sadd.s32 %s40, 1
      %s42 = scalar_select %p39, %s40, %s41
      %p45 = pneg %p39
      %p46 = scmp.eq.s32.totalorder %s9, 7
      %p47 = por %p45, %p46
      %p48 = scmp.ne.s32.totalorder %s40, %s43
      %p49 = scmp.eq.s32.totalorder %s9, 0
      %p50 = por %p48, %p49
      %p51 = scmp.ne.s32.totalorder %s40, %s43
      %p52 = scmp.eq.s32.totalorder %s14, 7
      %p53 = por %p51, %p52
      %p54 = scmp.ne.s32.totalorder %s43, %s44
      %p55 = scmp.eq.s32.totalorder %s14, 0
      %p56 = por %p54, %p55
      %p57 = scmp.ne.s32.totalorder %s43, %s44
      %p58 = scmp.eq.s32.totalorder %s15, 7
      %p59 = por %p57, %p58
      %p61 = scmp.ne.s32.totalorder %s44, %s60
      %p62 = scmp.eq.s32.totalorder %s15, 0
      %p63 = por %p61, %p62
      %s65 = sadd.s32 %s64, 1
      %p68 = scmp.eq.s32.totalorder %s9, 7
      %p69 = scmp.ne.s32.totalorder %s64, %s66
      %p70 = scmp.eq.s32.totalorder %s9, 0
      %p71 = por %p69, %p70
      %p72 = scmp.ne.s32.totalorder %s64, %s66
      %p73 = scmp.eq.s32.totalorder %s14, 7
      %p74 = por %p72, %p73
      %p75 = scmp.ne.s32.totalorder %s66, %s67
      %p76 = scmp.eq.s32.totalorder %s14, 0
      %p77 = por %p75, %p76
      %p78 = scmp.ne.s32.totalorder %s66, %s67
      %p79 = scmp.eq.s32.totalorder %s15, 7
      %p80 = por %p78, %p79
      %p82 = scmp.ne.s32.totalorder %s67, %s81
      %p83 = scmp.eq.s32.totalorder %s15, 0
      %p84 = por %p82, %p83
      %s85 = ssub.s32 %s9, %s16
      %p86 = scmp.eq.s32.totalorder %s85, 0
      %s88 = sadd.s32 %s87, 1
      %s89 = scalar_select %p86, %s87, %s88
      %p92 = pneg %p86
      %p93 = scmp.eq.s32.totalorder %s9, 7
      %p94 = por %p92, %p93
      %p95 = scmp.ne.s32.totalorder %s87, %s90
      %p96 = scmp.eq.s32.totalorder %s9, 0
      %p97 = por %p95, %p96
      %p98 = scmp.ne.s32.totalorder %s87, %s90
      %p99 = scmp.eq.s32.totalorder %s14, 7
      %p100 = por %p98, %p99
      %p101 = scmp.ne.s32.totalorder %s90, %s91
      %p102 = scmp.eq.s32.totalorder %s14, 0
      %p103 = por %p101, %p102
      %p104 = scmp.ne.s32.totalorder %s90, %s91
      %p105 = scmp.eq.s32.totalorder %s15, 7
      %p106 = por %p104, %p105
      %p108 = scmp.ne.s32.totalorder %s91, %s107
      %p109 = scmp.eq.s32.totalorder %s15, 0
      %p110 = por %p108, %p109
      %p111 = scmp.le.s32.totalorder 1, %s9
      %p112 = scmp.lt.s32.totalorder %s9, 9
      %p113 = pnand %p111, %p112
      %p114 = pneg %p113
      // Predicated region
      $region9: #{_lambda_.64} parent=5 // pred_check
        _
      $region10: #{_lambda_.64} parent=5 // pred_check_branch
        %116 = sbr.rel (%p113) target = $region12
      $region11: #{_lambda_.64} parent=5 // pred_region
        %s117 = ssub.s32 %s9, 1
        // Predicated region
        $region13: #{_lambda_.64} parent=11 // pred_check
          %p118 = pneg %p30
        $region14: #{_lambda_.64} parent=11 // pred_check_branch
          %120 = sbr.rel (%p118) target = $region16
        $region15: #{_lambda_.64} parent=11 // pred_region
          _
        $region16: #{_lambda_.64} parent=11 // pred_fallthru
          _
        // Predicated region
        $region17: #{_lambda_.64} parent=11 // pred_check
          %p121 = pneg %p77
        $region18: #{_lambda_.64} parent=11 // pred_check_branch
          %123 = sbr.rel (%p121) target = $region20
        $region19: #{_lambda_.64} parent=11 // pred_region
          _
        $region20: #{_lambda_.64} parent=11 // pred_fallthru
          _
      $region12: #{_lambda_.64} parent=5 // pred_fallthru
        _
      %p124 = scmp.lt.s32.totalorder %s9, 8
      // Predicated region
      $region21: #{_lambda_.64} parent=5 // pred_check
        %p125 = pneg %p124
      $region22: #{_lambda_.64} parent=5 // pred_check_branch
        %127 = sbr.rel (%p125) target = $region24
      $region23: #{_lambda_.64} parent=5 // pred_region
        // Predicated region
        $region25: #{_lambda_.64} parent=23 // pred_check
          %p128 = pneg %p50
        $region26: #{_lambda_.64} parent=23 // pred_check_branch
          %130 = sbr.rel (%p128) target = $region28
        $region27: #{_lambda_.64} parent=23 // pred_region
          %s131 = sand.u32 %s40, 1
          %s132 = sand.u32 %s40, 1
          %s133 = smul.addr %s132, 512
          %s134 = scalar_lea.vmem [#allocation2], %s133
          %s135 = smul.u32 4, %s9
          %s136 = smul.addr %s135, 4
          %s137 = scalar_lea.vmem %s1, %s136
          // Predicated region
          $region29: #{_lambda_.64} parent=27 // pred_check
            _
          $region30: #{_lambda_.64} parent=27 // pred_check_branch
            %139 = sbr.rel (0) target = $region32
          $region31: #{_lambda_.64} parent=27 // pred_region
            // Predicated region
            $region33: #{_lambda_.64} parent=31 // pred_check
              _
            $region34: #{_lambda_.64} parent=31 // pred_check_branch
              %141 = sbr.rel (0) target = $region36
            $region35: #{_lambda_.64} parent=31 // pred_region
              loop: start=0, step=1, limit=1
              $region37: #{_lambda_.64} parent=35 // loop_pre_header
                _
              $region38: #{_lambda_.64} parent=35 // loop_header
                %s143 = sphi 0, %s147
                %p144 = scmp.ge.s32.totalorder %s143, 1
                %s148 = sphi %s137, %s137
                %s149 = sphi %s134, %s134
              $region39: #{_lambda_.64} parent=35 // loop_header_branch
                %146 = sbr.rel (%p144) target = $region43
              $region40: #{_lambda_.64} parent=35 // loop_body
                %v150 = vld [vmem:[%s148] sm:$0xff]
                %151 = vst [vmem:[%s149] sm:$0xff] %v150
                %v152 = vld [vmem:[%s148 + $0x8] sm:$0xff]
                %153 = vst [vmem:[%s149 + $0x8] sm:$0xff] %v152
                %v154 = vld [vmem:[%s148 + $0x80] sm:$0xff]
                %155 = vst [vmem:[%s149 + $0x10] sm:$0xff] %v154
                %v156 = vld [vmem:[%s148 + $0x88] sm:$0xff]
                %157 = vst [vmem:[%s149 + $0x18] sm:$0xff] %v156
                %v158 = vld [vmem:[%s148 + $0x100] sm:$0xff]
                %159 = vst [vmem:[%s149 + $0x20] sm:$0xff] %v158
                %v160 = vld [vmem:[%s148 + $0x108] sm:$0xff]
                %161 = vst [vmem:[%s149 + $0x28] sm:$0xff] %v160
                %v162 = vld [vmem:[%s148 + $0x180] sm:$0xff]
                %163 = vst [vmem:[%s149 + $0x30] sm:$0xff] %v162
                %v164 = vld [vmem:[%s148 + $0x188] sm:$0xff]
                %165 = vst [vmem:[%s149 + $0x38] sm:$0xff] %v164
                %v166 = vld [vmem:[%s148 + $0x200] sm:$0xff]
                %167 = vst [vmem:[%s149 + $0x40] sm:$0xff] %v166
                %v168 = vld [vmem:[%s148 + $0x208] sm:$0xff]
                %169 = vst [vmem:[%s149 + $0x48] sm:$0xff] %v168
                %v170 = vld [vmem:[%s148 + $0x280] sm:$0xff]
                %171 = vst [vmem:[%s149 + $0x50] sm:$0xff] %v170
                %v172 = vld [vmem:[%s148 + $0x288] sm:$0xff]
                %173 = vst [vmem:[%s149 + $0x58] sm:$0xff] %v172
                %v174 = vld [vmem:[%s148 + $0x300] sm:$0xff]
                %175 = vst [vmem:[%s149 + $0x60] sm:$0xff] %v174
                %v176 = vld [vmem:[%s148 + $0x308] sm:$0xff]
                %177 = vst [vmem:[%s149 + $0x68] sm:$0xff] %v176
                %v178 = vld [vmem:[%s148 + $0x380] sm:$0xff]
                %179 = vst [vmem:[%s149 + $0x70] sm:$0xff] %v178
                %v180 = vld [vmem:[%s148 + $0x388] sm:$0xff]
                %181 = vst [vmem:[%s149 + $0x78] sm:$0xff] %v180
                %v182 = vld [vmem:[%s148 + $0x400] sm:$0xff]
                %183 = vst [vmem:[%s149 + $0x80] sm:$0xff] %v182
                %v184 = vld [vmem:[%s148 + $0x408] sm:$0xff]
                %185 = vst [vmem:[%s149 + $0x88] sm:$0xff] %v184
                %v186 = vld [vmem:[%s148 + $0x480] sm:$0xff]
                %187 = vst [vmem:[%s149 + $0x90] sm:$0xff] %v186
                %v188 = vld [vmem:[%s148 + $0x488] sm:$0xff]
                %189 = vst [vmem:[%s149 + $0x98] sm:$0xff] %v188
                %v190 = vld [vmem:[%s148 + $0x500] sm:$0xff]
                %191 = vst [vmem:[%s149 + $0xa0] sm:$0xff] %v190
                %v192 = vld [vmem:[%s148 + $0x508] sm:$0xff]
                %193 = vst [vmem:[%s149 + $0xa8] sm:$0xff] %v192
                %v194 = vld [vmem:[%s148 + $0x580] sm:$0xff]
                %195 = vst [vmem:[%s149 + $0xb0] sm:$0xff] %v194
                %v196 = vld [vmem:[%s148 + $0x588] sm:$0xff]
                %197 = vst [vmem:[%s149 + $0xb8] sm:$0xff] %v196
                %v198 = vld [vmem:[%s148 + $0x600] sm:$0xff]
                %199 = vst [vmem:[%s149 + $0xc0] sm:$0xff] %v198
                %v200 = vld [vmem:[%s148 + $0x608] sm:$0xff]
                %201 = vst [vmem:[%s149 + $0xc8] sm:$0xff] %v200
                %v202 = vld [vmem:[%s148 + $0x680] sm:$0xff]
                %203 = vst [vmem:[%s149 + $0xd0] sm:$0xff] %v202
                %v204 = vld [vmem:[%s148 + $0x688] sm:$0xff]
                %205 = vst [vmem:[%s149 + $0xd8] sm:$0xff] %v204
                %v206 = vld [vmem:[%s148 + $0x700] sm:$0xff]
                %207 = vst [vmem:[%s149 + $0xe0] sm:$0xff] %v206
                %v208 = vld [vmem:[%s148 + $0x708] sm:$0xff]
                %209 = vst [vmem:[%s149 + $0xe8] sm:$0xff] %v208
                %v210 = vld [vmem:[%s148 + $0x780] sm:$0xff]
                %211 = vst [vmem:[%s149 + $0xf0] sm:$0xff] %v210
                %v212 = vld [vmem:[%s148 + $0x788] sm:$0xff]
                %213 = vst [vmem:[%s149 + $0xf8] sm:$0xff] %v212
                %v214 = vld [vmem:[%s148 + $0x800] sm:$0xff]
                %215 = vst [vmem:[%s149 + $0x100] sm:$0xff] %v214
                %v216 = vld [vmem:[%s148 + $0x808] sm:$0xff]
                %217 = vst [vmem:[%s149 + $0x108] sm:$0xff] %v216
                %v218 = vld [vmem:[%s148 + $0x880] sm:$0xff]
                %219 = vst [vmem:[%s149 + $0x110] sm:$0xff] %v218
                %v220 = vld [vmem:[%s148 + $0x888] sm:$0xff]
                %221 = vst [vmem:[%s149 + $0x118] sm:$0xff] %v220
                %v222 = vld [vmem:[%s148 + $0x900] sm:$0xff]
                %223 = vst [vmem:[%s149 + $0x120] sm:$0xff] %v222
                %v224 = vld [vmem:[%s148 + $0x908] sm:$0xff]
                %225 = vst [vmem:[%s149 + $0x128] sm:$0xff] %v224
                %v226 = vld [vmem:[%s148 + $0x980] sm:$0xff]
                %227 = vst [vmem:[%s149 + $0x130] sm:$0xff] %v226
                %v228 = vld [vmem:[%s148 + $0x988] sm:$0xff]
                %229 = vst [vmem:[%s149 + $0x138] sm:$0xff] %v228
                %v230 = vld [vmem:[%s148 + $0xa00] sm:$0xff]
                %231 = vst [vmem:[%s149 + $0x140] sm:$0xff] %v230
                %v232 = vld [vmem:[%s148 + $0xa08] sm:$0xff]
                %233 = vst [vmem:[%s149 + $0x148] sm:$0xff] %v232
                %v234 = vld [vmem:[%s148 + $0xa80] sm:$0xff]
                %235 = vst [vmem:[%s149 + $0x150] sm:$0xff] %v234
                %v236 = vld [vmem:[%s148 + $0xa88] sm:$0xff]
                %237 = vst [vmem:[%s149 + $0x158] sm:$0xff] %v236
                %v238 = vld [vmem:[%s148 + $0xb00] sm:$0xff]
                %239 = vst [vmem:[%s149 + $0x160] sm:$0xff] %v238
                %v240 = vld [vmem:[%s148 + $0xb08] sm:$0xff]
                %241 = vst [vmem:[%s149 + $0x168] sm:$0xff] %v240
                %v242 = vld [vmem:[%s148 + $0xb80] sm:$0xff]
                %243 = vst [vmem:[%s149 + $0x170] sm:$0xff] %v242
                %v244 = vld [vmem:[%s148 + $0xb88] sm:$0xff]
                %245 = vst [vmem:[%s149 + $0x178] sm:$0xff] %v244
                %v246 = vld [vmem:[%s148 + $0xc00] sm:$0xff]
                %247 = vst [vmem:[%s149 + $0x180] sm:$0xff] %v246
                %v248 = vld [vmem:[%s148 + $0xc08] sm:$0xff]
                %249 = vst [vmem:[%s149 + $0x188] sm:$0xff] %v248
                %v250 = vld [vmem:[%s148 + $0xc80] sm:$0xff]
                %251 = vst [vmem:[%s149 + $0x190] sm:$0xff] %v250
                %v252 = vld [vmem:[%s148 + $0xc88] sm:$0xff]
                %253 = vst [vmem:[%s149 + $0x198] sm:$0xff] %v252
                %v254 = vld [vmem:[%s148 + $0xd00] sm:$0xff]
                %255 = vst [vmem:[%s149 + $0x1a0] sm:$0xff] %v254
                %v256 = vld [vmem:[%s148 + $0xd08] sm:$0xff]
                %257 = vst [vmem:[%s149 + $0x1a8] sm:$0xff] %v256
                %v258 = vld [vmem:[%s148 + $0xd80] sm:$0xff]
                %259 = vst [vmem:[%s149 + $0x1b0] sm:$0xff] %v258
                %v260 = vld [vmem:[%s148 + $0xd88] sm:$0xff]
                %261 = vst [vmem:[%s149 + $0x1b8] sm:$0xff] %v260
                %v262 = vld [vmem:[%s148 + $0xe00] sm:$0xff]
                %263 = vst [vmem:[%s149 + $0x1c0] sm:$0xff] %v262
                %v264 = vld [vmem:[%s148 + $0xe08] sm:$0xff]
                %265 = vst [vmem:[%s149 + $0x1c8] sm:$0xff] %v264
                %v266 = vld [vmem:[%s148 + $0xe80] sm:$0xff]
                %267 = vst [vmem:[%s149 + $0x1d0] sm:$0xff] %v266
                %v268 = vld [vmem:[%s148 + $0xe88] sm:$0xff]
                %269 = vst [vmem:[%s149 + $0x1d8] sm:$0xff] %v268
                %v270 = vld [vmem:[%s148 + $0xf00] sm:$0xff]
                %271 = vst [vmem:[%s149 + $0x1e0] sm:$0xff] %v270
                %v272 = vld [vmem:[%s148 + $0xf08] sm:$0xff]
                %273 = vst [vmem:[%s149 + $0x1e8] sm:$0xff] %v272
                %v274 = vld [vmem:[%s148 + $0xf80] sm:$0xff]
                %275 = vst [vmem:[%s149 + $0x1f0] sm:$0xff] %v274
                %v276 = vld [vmem:[%s148 + $0xf88] sm:$0xff]
                %277 = vst [vmem:[%s149 + $0x1f8] sm:$0xff] %v276
              $region41: #{_lambda_.64} parent=35 // loop_footer
                %s147 = sadd.s32 1, %s143
              $region42: #{_lambda_.64} parent=35 // loop_footer_branch
                %142 = sbr.rel target = $region38
              $region43: #{_lambda_.64} parent=35 // loop_exit
                _
            $region36: #{_lambda_.64} parent=31 // pred_fallthru
              _
            // Predicated region
            $region44: #{_lambda_.64} parent=31 // pred_check
              _
            $region45: #{_lambda_.64} parent=31 // pred_check_branch
              %279 = sbr.rel target = $region47
            $region46: #{_lambda_.64} parent=31 // pred_region
              _
            $region47: #{_lambda_.64} parent=31 // pred_fallthru
              _
          $region32: #{_lambda_.64} parent=27 // pred_fallthru
            _
          %280 = vnop
        $region28: #{_lambda_.64} parent=23 // pred_fallthru
          _
      $region24: #{_lambda_.64} parent=5 // pred_fallthru
        _
      %p281 = scmp.le.s32.totalorder 1, %s9
      %p282 = scmp.lt.s32.totalorder %s9, 9
      %p283 = pnand %p281, %p282
      %p284 = pneg %p283
      // Predicated region
      $region48: #{_lambda_.64} parent=5 // pred_check
        _
      $region49: #{_lambda_.64} parent=5 // pred_check_branch
        %286 = sbr.rel (%p283) target = $region51
      $region50: #{_lambda_.64} parent=5 // pred_region
        %s287 = ssub.s32 %s9, 1
        %s288 = sand.u32 %s43, 1
        %s289 = sand.u32 %s43, 1
        %s290 = smul.addr %s289, 512
        %s291 = scalar_lea.vmem [#allocation2], %s290
        // Predicated region
        $region52: #{_lambda_.64} parent=50 // pred_check
          %p292 = pneg %p56
        $region53: #{_lambda_.64} parent=50 // pred_check_branch
          %294 = sbr.rel (%p292) target = $region55
        $region54: #{_lambda_.64} parent=50 // pred_region
          _
        $region55: #{_lambda_.64} parent=50 // pred_fallthru
          _
        %p295 = pneg %p30
        %p296 = pneg %p27
        %s297 = sand.u32 %s43, 1
        %s298 = sand.u32 %s43, 1
        %s299 = smul.addr %s298, 512
        %s300 = scalar_lea.vmem [#allocation2], %s299
        %p301 = pneg %p56
        %p302 = pneg %p53
        %p303 = pneg %p77
        %p304 = pneg %p74
        %p305 = pneg %p103
        %p306 = pneg %p100
        %s307 = sand.u32 %s90, 1
        %s308 = sand.u32 %s90, 1
        %s309 = smul.addr %s308, 64
        %s310 = scalar_lea.vmem [#allocation3], %s309
        %s311 = smul.u32 4, %s14
        %s312 = smul.u32 4, %s14
        %v313 = vld [vmem:[%s0] sm:$0xff]
        %v314 = vld [vmem:[%s0 + $0x8] sm:$0xff]
        %v315 = vld [vmem:[%s291] sm:$0xff]
        %v316 = vld [vmem:[%s291 + $0x8] sm:$0xff]
        %v317 = vld [vmem:[%s291 + $0x10] sm:$0xff]
        %v318 = vld [vmem:[%s291 + $0x18] sm:$0xff]
        %v319 = vld [vmem:[%s291 + $0x20] sm:$0xff]
        %v320 = vld [vmem:[%s291 + $0x28] sm:$0xff]
        %v321 = vld [vmem:[%s291 + $0x30] sm:$0xff]
        %v322 = vld [vmem:[%s291 + $0x38] sm:$0xff]
        %v323 = vld [vmem:[%s291 + $0x40] sm:$0xff]
        %v324 = vld [vmem:[%s291 + $0x48] sm:$0xff]
        %v325 = vld [vmem:[%s291 + $0x50] sm:$0xff]
        %v326 = vld [vmem:[%s291 + $0x58] sm:$0xff]
        %v327 = vld [vmem:[%s291 + $0x60] sm:$0xff]
        %v328 = vld [vmem:[%s291 + $0x68] sm:$0xff]
        %v329 = vld [vmem:[%s291 + $0x70] sm:$0xff]
        %v330 = vld [vmem:[%s291 + $0x78] sm:$0xff]
        %v331 = vld [vmem:[%s291 + $0x80] sm:$0xff]
        %v332 = vld [vmem:[%s291 + $0x88] sm:$0xff]
        %v333 = vld [vmem:[%s291 + $0x90] sm:$0xff]
        %v334 = vld [vmem:[%s291 + $0x98] sm:$0xff]
        %v335 = vld [vmem:[%s291 + $0xa0] sm:$0xff]
        %v336 = vld [vmem:[%s291 + $0xa8] sm:$0xff]
        %v337 = vld [vmem:[%s291 + $0xb0] sm:$0xff]
        %v338 = vld [vmem:[%s291 + $0xb8] sm:$0xff]
        %v339 = vld [vmem:[%s291 + $0xc0] sm:$0xff]
        %v340 = vld [vmem:[%s291 + $0xc8] sm:$0xff]
        %v341 = vld [vmem:[%s291 + $0xd0] sm:$0xff]
        %v342 = vld [vmem:[%s291 + $0xd8] sm:$0xff]
        %v343 = vld [vmem:[%s291 + $0xe0] sm:$0xff]
        %v344 = vld [vmem:[%s291 + $0xe8] sm:$0xff]
        %v345 = vld [vmem:[%s291 + $0xf0] sm:$0xff]
        %v346 = vld [vmem:[%s291 + $0xf8] sm:$0xff]
        %v347 = vld [vmem:[%s291 + $0x100] sm:$0xff]
        %v348 = vld [vmem:[%s291 + $0x108] sm:$0xff]
        %v349 = vld [vmem:[%s291 + $0x110] sm:$0xff]
        %v350 = vld [vmem:[%s291 + $0x118] sm:$0xff]
        %v351 = vld [vmem:[%s291 + $0x120] sm:$0xff]
        %v352 = vld [vmem:[%s291 + $0x128] sm:$0xff]
        %v353 = vld [vmem:[%s291 + $0x130] sm:$0xff]
        %v354 = vld [vmem:[%s291 + $0x138] sm:$0xff]
        %v355 = vld [vmem:[%s291 + $0x140] sm:$0xff]
        %v356 = vld [vmem:[%s291 + $0x148] sm:$0xff]
        %v357 = vld [vmem:[%s291 + $0x150] sm:$0xff]
        %v358 = vld [vmem:[%s291 + $0x158] sm:$0xff]
        %v359 = vld [vmem:[%s291 + $0x160] sm:$0xff]
        %v360 = vld [vmem:[%s291 + $0x168] sm:$0xff]
        %v361 = vld [vmem:[%s291 + $0x170] sm:$0xff]
        %v362 = vld [vmem:[%s291 + $0x178] sm:$0xff]
        %v363 = vld [vmem:[%s291 + $0x180] sm:$0xff]
        %v364 = vld [vmem:[%s291 + $0x188] sm:$0xff]
        %v365 = vld [vmem:[%s291 + $0x190] sm:$0xff]
        %v366 = vld [vmem:[%s291 + $0x198] sm:$0xff]
        %v367 = vld [vmem:[%s291 + $0x1a0] sm:$0xff]
        %v368 = vld [vmem:[%s291 + $0x1a8] sm:$0xff]
        %v369 = vld [vmem:[%s291 + $0x1b0] sm:$0xff]
        %v370 = vld [vmem:[%s291 + $0x1b8] sm:$0xff]
        %v371 = vld [vmem:[%s291 + $0x1c0] sm:$0xff]
        %v372 = vld [vmem:[%s291 + $0x1c8] sm:$0xff]
        %v373 = vld [vmem:[%s291 + $0x1d0] sm:$0xff]
        %v374 = vld [vmem:[%s291 + $0x1d8] sm:$0xff]
        %v375 = vld [vmem:[%s291 + $0x1e0] sm:$0xff]
        %v376 = vld [vmem:[%s291 + $0x1e8] sm:$0xff]
        %v377 = vld [vmem:[%s291 + $0x1f0] sm:$0xff]
        %v378 = vld [vmem:[%s291 + $0x1f8] sm:$0xff]
        %v379 = vld [vmem:[%s2] sm:$0xff]
        %v380 = vld [vmem:[%s2 + $0x8] sm:$0xff]
        %382 = vset.pattern.permute.xlu0 0
        %383 = vperm.xlu0 %382, %v379
        %v384 = vpop.permute.xlu0 %383
        %387 = vset.pattern.permute.xlu0 0
        %388 = vperm.xlu0 %387, %v380
        %v389 = vpop.permute.xlu0 %388
        %v393 = vunpack.c.l.b16 %v313
        %v394 = vunpack.c.h.b16 %v313
        %v395 = vunpack.c.l.b16 %v314
        %v396 = vunpack.c.h.b16 %v314
        %v397 = vpack.c.b16 %v395, %v393
        %v398 = vpack.c.b16 %v396, %v394
        %v465 = vunpack.c.l.b16 %v315
        %v466 = vunpack.c.h.b16 %v315
        %v467 = vunpack.c.l.b16 %v316
        %v468 = vunpack.c.h.b16 %v316
        %v469 = vunpack.c.l.b16 %v317
        %v470 = vunpack.c.h.b16 %v317
        %v471 = vunpack.c.l.b16 %v318
        %v472 = vunpack.c.h.b16 %v318
        %v473 = vunpack.c.l.b16 %v319
        %v474 = vunpack.c.h.b16 %v319
        %v475 = vunpack.c.l.b16 %v320
        %v476 = vunpack.c.h.b16 %v320
        %v477 = vunpack.c.l.b16 %v321
        %v478 = vunpack.c.h.b16 %v321
        %v479 = vunpack.c.l.b16 %v322
        %v480 = vunpack.c.h.b16 %v322
        %v481 = vunpack.c.l.b16 %v323
        %v482 = vunpack.c.h.b16 %v323
        %v483 = vunpack.c.l.b16 %v324
        %v484 = vunpack.c.h.b16 %v324
        %v485 = vunpack.c.l.b16 %v325
        %v486 = vunpack.c.h.b16 %v325
        %v487 = vunpack.c.l.b16 %v326
        %v488 = vunpack.c.h.b16 %v326
        %v489 = vunpack.c.l.b16 %v327
        %v490 = vunpack.c.h.b16 %v327
        %v491 = vunpack.c.l.b16 %v328
        %v492 = vunpack.c.h.b16 %v328
        %v493 = vunpack.c.l.b16 %v329
        %v494 = vunpack.c.h.b16 %v329
        %v495 = vunpack.c.l.b16 %v330
        %v496 = vunpack.c.h.b16 %v330
        %v497 = vunpack.c.l.b16 %v331
        %v498 = vunpack.c.h.b16 %v331
        %v499 = vunpack.c.l.b16 %v332
        %v500 = vunpack.c.h.b16 %v332
        %v501 = vunpack.c.l.b16 %v333
        %v502 = vunpack.c.h.b16 %v333
        %v503 = vunpack.c.l.b16 %v334
        %v504 = vunpack.c.h.b16 %v334
        %v505 = vunpack.c.l.b16 %v335
        %v506 = vunpack.c.h.b16 %v335
        %v507 = vunpack.c.l.b16 %v336
        %v508 = vunpack.c.h.b16 %v336
        %v509 = vunpack.c.l.b16 %v337
        %v510 = vunpack.c.h.b16 %v337
        %v511 = vunpack.c.l.b16 %v338
        %v512 = vunpack.c.h.b16 %v338
        %v513 = vunpack.c.l.b16 %v339
        %v514 = vunpack.c.h.b16 %v339
        %v515 = vunpack.c.l.b16 %v340
        %v516 = vunpack.c.h.b16 %v340
        %v517 = vunpack.c.l.b16 %v341
        %v518 = vunpack.c.h.b16 %v341
        %v519 = vunpack.c.l.b16 %v342
        %v520 = vunpack.c.h.b16 %v342
        %v521 = vunpack.c.l.b16 %v343
        %v522 = vunpack.c.h.b16 %v343
        %v523 = vunpack.c.l.b16 %v344
        %v524 = vunpack.c.h.b16 %v344
        %v525 = vunpack.c.l.b16 %v345
        %v526 = vunpack.c.h.b16 %v345
        %v527 = vunpack.c.l.b16 %v346
        %v528 = vunpack.c.h.b16 %v346
        %v529 = vunpack.c.l.b16 %v347
        %v530 = vunpack.c.h.b16 %v347
        %v531 = vunpack.c.l.b16 %v348
        %v532 = vunpack.c.h.b16 %v348
        %v533 = vunpack.c.l.b16 %v349
        %v534 = vunpack.c.h.b16 %v349
        %v535 = vunpack.c.l.b16 %v350
        %v536 = vunpack.c.h.b16 %v350
        %v537 = vunpack.c.l.b16 %v351
        %v538 = vunpack.c.h.b16 %v351
        %v539 = vunpack.c.l.b16 %v352
        %v540 = vunpack.c.h.b16 %v352
        %v541 = vunpack.c.l.b16 %v353
        %v542 = vunpack.c.h.b16 %v353
        %v543 = vunpack.c.l.b16 %v354
        %v544 = vunpack.c.h.b16 %v354
        %v545 = vunpack.c.l.b16 %v355
        %v546 = vunpack.c.h.b16 %v355
        %v547 = vunpack.c.l.b16 %v356
        %v548 = vunpack.c.h.b16 %v356
        %v549 = vunpack.c.l.b16 %v357
        %v550 = vunpack.c.h.b16 %v357
        %v551 = vunpack.c.l.b16 %v358
        %v552 = vunpack.c.h.b16 %v358
        %v553 = vunpack.c.l.b16 %v359
        %v554 = vunpack.c.h.b16 %v359
        %v555 = vunpack.c.l.b16 %v360
        %v556 = vunpack.c.h.b16 %v360
        %v557 = vunpack.c.l.b16 %v361
        %v558 = vunpack.c.h.b16 %v361
        %v559 = vunpack.c.l.b16 %v362
        %v560 = vunpack.c.h.b16 %v362
        %v561 = vunpack.c.l.b16 %v363
        %v562 = vunpack.c.h.b16 %v363
        %v563 = vunpack.c.l.b16 %v364
        %v564 = vunpack.c.h.b16 %v364
        %v565 = vunpack.c.l.b16 %v365
        %v566 = vunpack.c.h.b16 %v365
        %v567 = vunpack.c.l.b16 %v366
        %v568 = vunpack.c.h.b16 %v366
        %v569 = vunpack.c.l.b16 %v367
        %v570 = vunpack.c.h.b16 %v367
        %v571 = vunpack.c.l.b16 %v368
        %v572 = vunpack.c.h.b16 %v368
        %v573 = vunpack.c.l.b16 %v369
        %v574 = vunpack.c.h.b16 %v369
        %v575 = vunpack.c.l.b16 %v370
        %v576 = vunpack.c.h.b16 %v370
        %v577 = vunpack.c.l.b16 %v371
        %v578 = vunpack.c.h.b16 %v371
        %v579 = vunpack.c.l.b16 %v372
        %v580 = vunpack.c.h.b16 %v372
        %v581 = vunpack.c.l.b16 %v373
        %v582 = vunpack.c.h.b16 %v373
        %v583 = vunpack.c.l.b16 %v374
        %v584 = vunpack.c.h.b16 %v374
        %v585 = vunpack.c.l.b16 %v375
        %v586 = vunpack.c.h.b16 %v375
        %v587 = vunpack.c.l.b16 %v376
        %v588 = vunpack.c.h.b16 %v376
        %v589 = vunpack.c.l.b16 %v377
        %v590 = vunpack.c.h.b16 %v377
        %v591 = vunpack.c.l.b16 %v378
        %v592 = vunpack.c.h.b16 %v378
        %v593 = vpack.c.b16 %v469, %v465
        %v594 = vpack.c.b16 %v470, %v466
        %v595 = vpack.c.b16 %v471, %v467
        %v596 = vpack.c.b16 %v472, %v468
        %v597 = vpack.c.b16 %v477, %v473
        %v598 = vpack.c.b16 %v478, %v474
        %v599 = vpack.c.b16 %v479, %v475
        %v600 = vpack.c.b16 %v480, %v476
        %v601 = vpack.c.b16 %v485, %v481
        %v602 = vpack.c.b16 %v486, %v482
        %v603 = vpack.c.b16 %v487, %v483
        %v604 = vpack.c.b16 %v488, %v484
        %v605 = vpack.c.b16 %v493, %v489
        %v606 = vpack.c.b16 %v494, %v490
        %v607 = vpack.c.b16 %v495, %v491
        %v608 = vpack.c.b16 %v496, %v492
        %v609 = vpack.c.b16 %v501, %v497
        %v610 = vpack.c.b16 %v502, %v498
        %v611 = vpack.c.b16 %v503, %v499
        %v612 = vpack.c.b16 %v504, %v500
        %v613 = vpack.c.b16 %v509, %v505
        %v614 = vpack.c.b16 %v510, %v506
        %v615 = vpack.c.b16 %v511, %v507
        %v616 = vpack.c.b16 %v512, %v508
        %v617 = vpack.c.b16 %v517, %v513
        %v618 = vpack.c.b16 %v518, %v514
        %v619 = vpack.c.b16 %v519, %v515
        %v620 = vpack.c.b16 %v520, %v516
        %v621 = vpack.c.b16 %v525, %v521
        %v622 = vpack.c.b16 %v526, %v522
        %v623 = vpack.c.b16 %v527, %v523
        %v624 = vpack.c.b16 %v528, %v524
        %v625 = vpack.c.b16 %v533, %v529
        %v626 = vpack.c.b16 %v534, %v530
        %v627 = vpack.c.b16 %v535, %v531
        %v628 = vpack.c.b16 %v536, %v532
        %v629 = vpack.c.b16 %v541, %v537
        %v630 = vpack.c.b16 %v542, %v538
        %v631 = vpack.c.b16 %v543, %v539
        %v632 = vpack.c.b16 %v544, %v540
        %v633 = vpack.c.b16 %v549, %v545
        %v634 = vpack.c.b16 %v550, %v546
        %v635 = vpack.c.b16 %v551, %v547
        %v636 = vpack.c.b16 %v552, %v548
        %v637 = vpack.c.b16 %v557, %v553
        %v638 = vpack.c.b16 %v558, %v554
        %v639 = vpack.c.b16 %v559, %v555
        %v640 = vpack.c.b16 %v560, %v556
        %v641 = vpack.c.b16 %v565, %v561
        %v642 = vpack.c.b16 %v566, %v562
        %v643 = vpack.c.b16 %v567, %v563
        %v644 = vpack.c.b16 %v568, %v564
        %v645 = vpack.c.b16 %v573, %v569
        %v646 = vpack.c.b16 %v574, %v570
        %v647 = vpack.c.b16 %v575, %v571
        %v648 = vpack.c.b16 %v576, %v572
        %v649 = vpack.c.b16 %v581, %v577
        %v650 = vpack.c.b16 %v582, %v578
        %v651 = vpack.c.b16 %v583, %v579
        %v652 = vpack.c.b16 %v584, %v580
        %v653 = vpack.c.b16 %v589, %v585
        %v654 = vpack.c.b16 %v590, %v586
        %v655 = vpack.c.b16 %v591, %v587
        %v656 = vpack.c.b16 %v592, %v588
        %721 = vmatprep.subr.bf16.mxu0 %v622
        %722 = vmatpush1.bf16.msra.mxu0 %v621
        %723 = vmatprep.subr.bf16.mxu0 %v618
        %724 = vmatpush1.bf16.msra.mxu0 %v617
        %725 = vmatprep.subr.bf16.mxu0 %v614
        %726 = vmatpush1.bf16.msra.mxu0 %v613
        %727 = vmatprep.subr.bf16.mxu0 %v610
        %728 = vmatpush1.bf16.msra.mxu0 %v609
        %729 = vmatprep.subr.bf16.mxu0 %v606
        %730 = vmatpush1.bf16.msra.mxu0 %v605
        %731 = vmatprep.subr.bf16.mxu0 %v602
        %732 = vmatpush1.bf16.msra.mxu0 %v601
        %733 = vmatprep.subr.bf16.mxu0 %v598
        %734 = vmatpush1.bf16.msra.mxu0 %v597
        %735 = vmatprep.subr.bf16.mxu0 %v594
        %736 = vmatpush1.bf16.msra.mxu0 %v593
        %737 = vmatprep.subr.bf16.mxu0 %v654
        %738 = vmatpush2.bf16.msra.mxu0 %v653
        %739 = vmatprep.subr.bf16.mxu0 %v650
        %740 = vmatpush2.bf16.msra.mxu0 %v649
        %741 = vmatprep.subr.bf16.mxu0 %v646
        %742 = vmatpush2.bf16.msra.mxu0 %v645
        %743 = vmatprep.subr.bf16.mxu0 %v642
        %744 = vmatpush2.bf16.msra.mxu0 %v641
        %745 = vmatprep.subr.bf16.mxu0 %v638
        %746 = vmatpush2.bf16.msra.mxu0 %v637
        %747 = vmatprep.subr.bf16.mxu0 %v634
        %748 = vmatpush2.bf16.msra.mxu0 %v633
        %749 = vmatprep.subr.bf16.mxu0 %v630
        %750 = vmatpush2.bf16.msra.mxu0 %v629
        %751 = vmatprep.subr.bf16.mxu0 %v626
        %752 = vmatpush2.bf16.msra.mxu0 %v625
        %753 = vmatprep.mubr.bf16.mxu0 %v398
        %754 = vmatmul.mubr.bf16.gmra.mxu0 %v397
        %v755 = vpop.f32.mrf.mxu0
        %v756 = vadd.f32 %v384, %v755
        %v757 = vpop.f32.mrf.mxu0
        %v758 = vadd.f32 %v384, %v757
        %v759 = vpop.f32.mrf.mxu0
        %v760 = vadd.f32 %v389, %v759
        %v761 = vpop.f32.mrf.mxu0
        %v762 = vadd.f32 %v389, %v761
        %763 = vdwg.mxu0
        %764 = vmatprep.subr.bf16.mxu0 %v624
        %765 = vmatpush1.bf16.msra.mxu0 %v623
        %766 = vmatprep.subr.bf16.mxu0 %v620
        %767 = vmatpush1.bf16.msra.mxu0 %v619
        %768 = vmatprep.subr.bf16.mxu0 %v616
        %769 = vmatpush1.bf16.msra.mxu0 %v615
        %770 = vmatprep.subr.bf16.mxu0 %v612
        %771 = vmatpush1.bf16.msra.mxu0 %v611
        %772 = vmatprep.subr.bf16.mxu0 %v608
        %773 = vmatpush1.bf16.msra.mxu0 %v607
        %774 = vmatprep.subr.bf16.mxu0 %v604
        %775 = vmatpush1.bf16.msra.mxu0 %v603
        %776 = vmatprep.subr.bf16.mxu0 %v600
        %777 = vmatpush1.bf16.msra.mxu0 %v599
        %778 = vmatprep.subr.bf16.mxu0 %v596
        %779 = vmatpush1.bf16.msra.mxu0 %v595
        %780 = vmatprep.subr.bf16.mxu0 %v656
        %781 = vmatpush2.bf16.msra.mxu0 %v655
        %782 = vmatprep.subr.bf16.mxu0 %v652
        %783 = vmatpush2.bf16.msra.mxu0 %v651
        %784 = vmatprep.subr.bf16.mxu0 %v648
        %785 = vmatpush2.bf16.msra.mxu0 %v647
        %786 = vmatprep.subr.bf16.mxu0 %v644
        %787 = vmatpush2.bf16.msra.mxu0 %v643
        %788 = vmatprep.subr.bf16.mxu0 %v640
        %789 = vmatpush2.bf16.msra.mxu0 %v639
        %790 = vmatprep.subr.bf16.mxu0 %v636
        %791 = vmatpush2.bf16.msra.mxu0 %v635
        %792 = vmatprep.subr.bf16.mxu0 %v632
        %793 = vmatpush2.bf16.msra.mxu0 %v631
        %794 = vmatprep.subr.bf16.mxu0 %v628
        %795 = vmatpush2.bf16.msra.mxu0 %v627
        %796 = vmatprep.mubr.bf16.mxu0 %v398
        %797 = vmatmul.mubr.bf16.gmra.mxu0 %v397
        %v798 = vpop.f32.mrf.mxu0
        %v799 = vadd.f32 %v384, %v798
        %v800 = vpop.f32.mrf.mxu0
        %v801 = vadd.f32 %v384, %v800
        %v802 = vpop.f32.mrf.mxu0
        %v803 = vadd.f32 %v389, %v802
        %v804 = vpop.f32.mrf.mxu0
        %v805 = vadd.f32 %v389, %v804
        %806 = vdwg.mxu0
        %807 = vst [vmem:[%s310] sm:$0xff] %v756
        %808 = vst [vmem:[%s310 + $0x8] sm:$0xff] %v758
        %809 = vst [vmem:[%s310 + $0x10] sm:$0xff] %v799
        %810 = vst [vmem:[%s310 + $0x18] sm:$0xff] %v801
        %811 = vst [vmem:[%s310 + $0x20] sm:$0xff] %v760
        %812 = vst [vmem:[%s310 + $0x28] sm:$0xff] %v762
        %813 = vst [vmem:[%s310 + $0x30] sm:$0xff] %v803
        %814 = vst [vmem:[%s310 + $0x38] sm:$0xff] %v805
        %s815 = sand.u32 %s90, 1
        %s816 = sand.u32 %s90, 1
        %s817 = smul.addr %s816, 64
        %s818 = scalar_lea.vmem [#allocation3], %s817
        // Predicated region
        $region56: #{_lambda_.64} parent=50 // pred_check
          %p819 = pneg %p100
        $region57: #{_lambda_.64} parent=50 // pred_check_branch
          %821 = sbr.rel (%p819) target = $region59
        $region58: #{_lambda_.64} parent=50 // pred_region
          %s822 = smul.u32 4, %s14
          %s823 = smul.addr %s822, 8
          %s824 = scalar_lea.vmem %s3, %s823
          // Predicated region
          $region60: #{_lambda_.64} parent=58 // pred_check
            _
          $region61: #{_lambda_.64} parent=58 // pred_check_branch
            %826 = sbr.rel (0) target = $region63
          $region62: #{_lambda_.64} parent=58 // pred_region
            // Predicated region
            $region64: #{_lambda_.64} parent=62 // pred_check
              _
            $region65: #{_lambda_.64} parent=62 // pred_check_branch
              %828 = sbr.rel (0) target = $region67
            $region66: #{_lambda_.64} parent=62 // pred_region
              loop: start=0, step=1, limit=1
              $region68: #{_lambda_.64} parent=66 // loop_pre_header
                _
              $region69: #{_lambda_.64} parent=66 // loop_header
                %s830 = sphi 0, %s834
                %p831 = scmp.ge.s32.totalorder %s830, 1
                %s835 = sphi %s818, %s818
                %s836 = sphi %s824, %s824
              $region70: #{_lambda_.64} parent=66 // loop_header_branch
                %833 = sbr.rel (%p831) target = $region74
              $region71: #{_lambda_.64} parent=66 // loop_body
                %v837 = vld [vmem:[%s835] sm:$0xff]
                %838 = vst [vmem:[%s836] sm:$0xff] %v837
                %v839 = vld [vmem:[%s835 + $0x8] sm:$0xff]
                %840 = vst [vmem:[%s836 + $0x8] sm:$0xff] %v839
                %v841 = vld [vmem:[%s835 + $0x10] sm:$0xff]
                %842 = vst [vmem:[%s836 + $0x10] sm:$0xff] %v841
                %v843 = vld [vmem:[%s835 + $0x18] sm:$0xff]
                %844 = vst [vmem:[%s836 + $0x18] sm:$0xff] %v843
                %v845 = vld [vmem:[%s835 + $0x20] sm:$0xff]
                %846 = vst [vmem:[%s836 + $0x100] sm:$0xff] %v845
                %v847 = vld [vmem:[%s835 + $0x28] sm:$0xff]
                %848 = vst [vmem:[%s836 + $0x108] sm:$0xff] %v847
                %v849 = vld [vmem:[%s835 + $0x30] sm:$0xff]
                %850 = vst [vmem:[%s836 + $0x110] sm:$0xff] %v849
                %v851 = vld [vmem:[%s835 + $0x38] sm:$0xff]
                %852 = vst [vmem:[%s836 + $0x118] sm:$0xff] %v851
              $region72: #{_lambda_.64} parent=66 // loop_footer
                %s834 = sadd.s32 1, %s830
              $region73: #{_lambda_.64} parent=66 // loop_footer_branch
                %829 = sbr.rel target = $region69
              $region74: #{_lambda_.64} parent=66 // loop_exit
                _
            $region67: #{_lambda_.64} parent=62 // pred_fallthru
              _
            // Predicated region
            $region75: #{_lambda_.64} parent=62 // pred_check
              _
            $region76: #{_lambda_.64} parent=62 // pred_check_branch
              %854 = sbr.rel target = $region78
            $region77: #{_lambda_.64} parent=62 // pred_region
              _
            $region78: #{_lambda_.64} parent=62 // pred_fallthru
              _
          $region63: #{_lambda_.64} parent=58 // pred_fallthru
            _
          %855 = vnop
        $region59: #{_lambda_.64} parent=50 // pred_fallthru
          _
      $region51: #{_lambda_.64} parent=5 // pred_fallthru
        _
      %p856 = scmp.le.s32.totalorder 2, %s9
      // Predicated region
      $region79: #{_lambda_.64} parent=5 // pred_check
        %p857 = pneg %p856
      $region80: #{_lambda_.64} parent=5 // pred_check_branch
        %859 = sbr.rel (%p857) target = $region82
      $region81: #{_lambda_.64} parent=5 // pred_region
        %s860 = ssub.s32 %s9, 2
        // Predicated region
        $region83: #{_lambda_.64} parent=81 // pred_check
          %p861 = pneg %p106
        $region84: #{_lambda_.64} parent=81 // pred_check_branch
          %863 = sbr.rel (%p861) target = $region86
        $region85: #{_lambda_.64} parent=81 // pred_region
          %s864 = sand.u32 %s91, 1
          %s865 = sand.u32 %s91, 1
          %s866 = smul.addr %s865, 64
          %s867 = scalar_lea.vmem [#allocation3], %s866
        $region86: #{_lambda_.64} parent=81 // pred_fallthru
          _
      $region82: #{_lambda_.64} parent=5 // pred_fallthru
        _
    $region6: #{_lambda_.64} parent=1 // loop_footer
      %s13 = sadd.s32 1, %s9
    $region7: #{_lambda_.64} parent=1 // loop_footer_branch
      %8 = sbr.rel target = $region3
    $region8: #{_lambda_.64} parent=1 // loop_exit
      _

// kernel: _lambda_.67
$region0: #{_lambda_.67}
  #allocation0 [shape = 'u32[]', space=smem, size = 0x4, offset = 0x4, fixed_abs, tag = 'smem constant byte address 0x4 - core index']
  #allocation1 [shape = 'u32[144,128]{1,0:T(1,128)}', space=vmem, size = 0x12000, scoped, tag = 'internal scratch']
  %s0 = inlined_call_operand.vmem [shape: bf16[16,16], index: 0, kind: input, shape index: {}]
  %s1 = inlined_call_operand.vmem [shape: bf16[16,128], index: 1, kind: input, shape index: {}]
  %s2 = inlined_call_operand.vmem [shape: f32[16,1], index: 2, kind: input, shape index: {}]
  %s3 = inlined_call_operand.vmem [shape: bf16[16,128], index: 3, kind: input, shape index: {}]
  %s4 = inlined_call_operand.vmem [shape: bf16[16,128], index: 4, kind: output, shape index: {}]
  %s5 = sld [smem:[#allocation0]]
  $region26: #{_lambda_.67} parent=0
    _
  %s7 = ssub.s32 1, %s5
  %s8 = scalar_select 0, %s7, %s5
  // Predicated region
  $region2: #{_lambda_.67} parent=0 // pred_check
    _
  $region3: #{_lambda_.67} parent=0 // pred_check_branch
    %10 = sbr.rel (0) target = $region5
  $region4: #{_lambda_.67} parent=0 // pred_region
    _
  $region5: #{_lambda_.67} parent=0 // pred_fallthru
    _
  // Predicated region
  $region6: #{_lambda_.67} parent=0 // pred_check
    _
  $region7: #{_lambda_.67} parent=0 // pred_check_branch
    %12 = sbr.rel (0) target = $region9
  $region8: #{_lambda_.67} parent=0 // pred_region
    _
  $region9: #{_lambda_.67} parent=0 // pred_fallthru
    _
  // Predicated region
  $region10: #{_lambda_.67} parent=0 // pred_check
    _
  $region11: #{_lambda_.67} parent=0 // pred_check_branch
    %14 = sbr.rel (0) target = $region13
  $region12: #{_lambda_.67} parent=0 // pred_region
    _
  $region13: #{_lambda_.67} parent=0 // pred_fallthru
    _
  // Predicated region
  $region14: #{_lambda_.67} parent=0 // pred_check
    _
  $region15: #{_lambda_.67} parent=0 // pred_check_branch
    %16 = sbr.rel (0) target = $region17
  $region16: #{_lambda_.67} parent=0 // pred_region
    _
  $region17: #{_lambda_.67} parent=0 // pred_fallthru
    _
  %v18 = vld [vmem:[%s3] sm:$0xf]
  %v19 = vld [vmem:[%s3 + $0x4] sm:$0xf]
  %v20 = vunpack.c.l.bf16 %v18
  %v21 = vunpack.c.l.bf16 %v19
  %v22 = vld [vmem:[%s0] sm:$0xf]
  %v23 = vld [vmem:[%s0 + $0x4] sm:$0xf]
  %v24 = vld [vmem:[%s1] sm:$0xf]
  %v25 = vld [vmem:[%s1 + $0x4] sm:$0xf]
  %v26 = vld [vmem:[%s2] sm:$0xff]
  %v27 = vld [vmem:[%s2 + $0x8] sm:$0xff]
  %29 = vset.pattern.permute.xlu0 0
  %30 = vperm.xlu0 %29, %v26
  %v31 = vpop.permute.xlu0 %30
  %34 = vset.pattern.permute.xlu0 0
  %35 = vperm.xlu0 %34, %v27
  %v36 = vpop.permute.xlu0 %35
  %v40 = vunpack.c.l.b16 %v22
  %v41 = vunpack.c.l.b16 %v23
  %v42 = vpack.c.b16 %v41, %v40
  %v45 = vunpack.c.l.b16 %v24
  %v46 = vunpack.c.l.b16 %v25
  %v47 = vpack.c.b16 %v46, %v45
  %vm49 = vcmask 130048
  %v51 = vsel %vm49, %v42, 0
  %53 = vmatprep.subr.bf16.mxu0 0
  %54 = vmatpush1.bf16.msra.mxu0 0
  %55 = vmatprep.subr.bf16.mxu0 0
  %56 = vmatpush1.bf16.msra.mxu0 0
  %57 = vmatprep.subr.bf16.mxu0 0
  %58 = vmatpush1.bf16.msra.mxu0 0
  %59 = vmatprep.subr.bf16.mxu0 0
  %60 = vmatpush1.bf16.msra.mxu0 0
  %61 = vmatprep.subr.bf16.mxu0 0
  %62 = vmatpush1.bf16.msra.mxu0 0
  %63 = vmatprep.subr.bf16.mxu0 0
  %64 = vmatpush1.bf16.msra.mxu0 0
  %65 = vmatprep.subr.bf16.mxu0 0
  %66 = vmatpush1.bf16.msra.mxu0 0
  %67 = vmatprep.subr.bf16.mxu0 0
  %68 = vmatpush1.bf16.msra.mxu0 %v47
  %69 = vmatprep.subr.bf16.mxu0 0
  %70 = vmatpush2.bf16.msra.mxu0 0
  %71 = vmatprep.subr.bf16.mxu0 0
  %72 = vmatpush2.bf16.msra.mxu0 0
  %73 = vmatprep.subr.bf16.mxu0 0
  %74 = vmatpush2.bf16.msra.mxu0 0
  %75 = vmatprep.subr.bf16.mxu0 0
  %76 = vmatpush2.bf16.msra.mxu0 0
  %77 = vmatprep.subr.bf16.mxu0 0
  %78 = vmatpush2.bf16.msra.mxu0 0
  %79 = vmatprep.subr.bf16.mxu0 0
  %80 = vmatpush2.bf16.msra.mxu0 0
  %81 = vmatprep.subr.bf16.mxu0 0
  %82 = vmatpush2.bf16.msra.mxu0 0
  %83 = vmatprep.subr.bf16.mxu0 0
  %84 = vmatpush2.bf16.msra.mxu0 0
  %85 = vmatprep.mubr.bf16.mxu0 0
  %86 = vmatmul.mubr.bf16.gmra.mxu0 %v51
  %v87 = vpop.f32.mrf.mxu0
  %v88 = vadd.f32 %v31, %v87
  %v89 = vpop.f32.mrf.mxu0
  %v90 = vpop.f32.mrf.mxu0
  %v91 = vadd.f32 %v36, %v90
  %v92 = vpop.f32.mrf.mxu0
  %93 = vdwg.mxu0
  %v94 = vadd.f32 %v88, %v20
  %v95 = vadd.f32 %v91, %v21
  %v96 = vpack.c.bf16 %v95, %v94
  %v98 = vunpack.c.l.b16 %v96
  %v99 = vunpack.c.h.b16 %v96
  %v100 = vpack.c.b16 %v98, %v98
  %v101 = vpack.c.b16 %v99, %v99
  %104 = vst [vmem:[%s4] sm:$0xf] %v100
  %105 = vst [vmem:[%s4 + $0x4] sm:$0xf] %v101
  // Predicated region
  $region18: #{_lambda_.67} parent=0 // pred_check
    _
  $region19: #{_lambda_.67} parent=0 // pred_check_branch
    %107 = sbr.rel (0) target = $region21
  $region20: #{_lambda_.67} parent=0 // pred_region
    _
  $region21: #{_lambda_.67} parent=0 // pred_fallthru
    _
  // Predicated region
  $region22: #{_lambda_.67} parent=0 // pred_check
    _
  $region23: #{_lambda_.67} parent=0 // pred_check_branch
    %109 = sbr.rel (0) target = $region25
  $region24: #{_lambda_.67} parent=0 // pred_region
    _
  $region25: #{_lambda_.67} parent=0 // pred_fallthru
    _

// kernel: _lambda_.73
$region0: #{_lambda_.73}
  #allocation0 [shape = 'u32[]', space=smem, size = 0x4, offset = 0x4, fixed_abs, tag = 'smem constant byte address 0x4 - core index']
  #allocation1 [shape = 'u32[144,128]{1,0:T(1,128)}', space=vmem, size = 0x12000, scoped, tag = 'internal scratch']
  %s0 = inlined_call_operand.vmem [shape: bf16[16,16], index: 0, kind: input, shape index: {}]
  %s1 = inlined_call_operand.vmem [shape: bf16[16,4096], index: 1, kind: input, shape index: {}]
  %s2 = inlined_call_operand.vmem [shape: f32[16,1], index: 2, kind: input, shape index: {}]
  %s3 = inlined_call_operand.vmem [shape: f32[16,4096], index: 3, kind: output, shape index: {}]
  %s4 = sld [smem:[#allocation0]]
  $region87: #{_lambda_.73} parent=0
    _
  %s6 = ssub.s32 1, %s4
  %s7 = scalar_select 0, %s6, %s4
  $region1: #{_lambda_.73} parent=0
    #allocation2 [shape = 'u8[32768]{0}', space=vmem, size = 0x8000, scoped, tag = 'input window, operand 1']
    #allocation3 [shape = 'u8[65536]{0}', space=vmem, size = 0x10000, scoped, tag = 'output window, operand 0']
    loop: start=0, step=1, limit=10
    $region2: #{_lambda_.73} parent=1 // loop_pre_header
      _
    $region3: #{_lambda_.73} parent=1 // loop_header
      %s9 = sphi 0, %s13
      %p10 = scmp.ge.s32.totalorder %s9, 10
      %s17 = sphi 0, %s17
      %s19 = sphi 0, %s17
      %s20 = sphi 0, %s19
      %s34 = sphi 0, %s20
      %s40 = sphi 0, %s42
      %s43 = sphi 0, %s40
      %s44 = sphi 0, %s43
      %s60 = sphi 0, %s44
      %s64 = sphi 0, %s64
      %s66 = sphi 0, %s64
      %s67 = sphi 0, %s66
      %s81 = sphi 0, %s67
      %s87 = sphi 0, %s89
      %s90 = sphi 0, %s87
      %s91 = sphi 0, %s90
      %s107 = sphi 0, %s91
    $region4: #{_lambda_.73} parent=1 // loop_header_branch
      %12 = sbr.rel (%p10) target = $region8
    $region5: #{_lambda_.73} parent=1 // loop_body
      %s14 = ssub.s32 %s9, 1
      %s15 = ssub.s32 %s9, 2
      %s16 = sadd.s32 %s9, 1
      %s18 = sadd.s32 %s17, 1
      %p21 = scmp.eq.s32.totalorder %s9, 7
      %p22 = scmp.ne.s32.totalorder %s17, %s19
      %p23 = scmp.eq.s32.totalorder %s9, 0
      %p24 = por %p22, %p23
      %p25 = scmp.ne.s32.totalorder %s17, %s19
      %p26 = scmp.eq.s32.totalorder %s14, 7
      %p27 = por %p25, %p26
      %p28 = scmp.ne.s32.totalorder %s19, %s20
      %p29 = scmp.eq.s32.totalorder %s14, 0
      %p30 = por %p28, %p29
      %p31 = scmp.ne.s32.totalorder %s19, %s20
      %p32 = scmp.eq.s32.totalorder %s15, 7
      %p33 = por %p31, %p32
      %p35 = scmp.ne.s32.totalorder %s20, %s34
      %p36 = scmp.eq.s32.totalorder %s15, 0
      %p37 = por %p35, %p36
      %s38 = ssub.s32 %s9, %s16
      %p39 = scmp.eq.s32.totalorder %s38, 0
      %s41 = sadd.s32 %s40, 1
      %s42 = scalar_select %p39, %s40, %s41
      %p45 = pneg %p39
      %p46 = scmp.eq.s32.totalorder %s9, 7
      %p47 = por %p45, %p46
      %p48 = scmp.ne.s32.totalorder %s40, %s43
      %p49 = scmp.eq.s32.totalorder %s9, 0
      %p50 = por %p48, %p49
      %p51 = scmp.ne.s32.totalorder %s40, %s43
      %p52 = scmp.eq.s32.totalorder %s14, 7
      %p53 = por %p51, %p52
      %p54 = scmp.ne.s32.totalorder %s43, %s44
      %p55 = scmp.eq.s32.totalorder %s14, 0
      %p56 = por %p54, %p55
      %p57 = scmp.ne.s32.totalorder %s43, %s44
      %p58 = scmp.eq.s32.totalorder %s15, 7
      %p59 = por %p57, %p58
      %p61 = scmp.ne.s32.totalorder %s44, %s60
      %p62 = scmp.eq.s32.totalorder %s15, 0
      %p63 = por %p61, %p62
      %s65 = sadd.s32 %s64, 1
      %p68 = scmp.eq.s32.totalorder %s9, 7
      %p69 = scmp.ne.s32.totalorder %s64, %s66
      %p70 = scmp.eq.s32.totalorder %s9, 0
      %p71 = por %p69, %p70
      %p72 = scmp.ne.s32.totalorder %s64, %s66
      %p73 = scmp.eq.s32.totalorder %s14, 7
      %p74 = por %p72, %p73
      %p75 = scmp.ne.s32.totalorder %s66, %s67
      %p76 = scmp.eq.s32.totalorder %s14, 0
      %p77 = por %p75, %p76
      %p78 = scmp.ne.s32.totalorder %s66, %s67
      %p79 = scmp.eq.s32.totalorder %s15, 7
      %p80 = por %p78, %p79
      %p82 = scmp.ne.s32.totalorder %s67, %s81
      %p83 = scmp.eq.s32.totalorder %s15, 0
      %p84 = por %p82, %p83
      %s85 = ssub.s32 %s9, %s16
      %p86 = scmp.eq.s32.totalorder %s85, 0
      %s88 = sadd.s32 %s87, 1
      %s89 = scalar_select %p86, %s87, %s88
      %p92 = pneg %p86
      %p93 = scmp.eq.s32.totalorder %s9, 7
      %p94 = por %p92, %p93
      %p95 = scmp.ne.s32.totalorder %s87, %s90
      %p96 = scmp.eq.s32.totalorder %s9, 0
      %p97 = por %p95, %p96
      %p98 = scmp.ne.s32.totalorder %s87, %s90
      %p99 = scmp.eq.s32.totalorder %s14, 7
      %p100 = por %p98, %p99
      %p101 = scmp.ne.s32.totalorder %s90, %s91
      %p102 = scmp.eq.s32.totalorder %s14, 0
      %p103 = por %p101, %p102
      %p104 = scmp.ne.s32.totalorder %s90, %s91
      %p105 = scmp.eq.s32.totalorder %s15, 7
      %p106 = por %p104, %p105
      %p108 = scmp.ne.s32.totalorder %s91, %s107
      %p109 = scmp.eq.s32.totalorder %s15, 0
      %p110 = por %p108, %p109
      %p111 = scmp.le.s32.totalorder 1, %s9
      %p112 = scmp.lt.s32.totalorder %s9, 9
      %p113 = pnand %p111, %p112
      %p114 = pneg %p113
      // Predicated region
      $region9: #{_lambda_.73} parent=5 // pred_check
        _
      $region10: #{_lambda_.73} parent=5 // pred_check_branch
        %116 = sbr.rel (%p113) target = $region12
      $region11: #{_lambda_.73} parent=5 // pred_region
        %s117 = ssub.s32 %s9, 1
        // Predicated region
        $region13: #{_lambda_.73} parent=11 // pred_check
          %p118 = pneg %p30
        $region14: #{_lambda_.73} parent=11 // pred_check_branch
          %120 = sbr.rel (%p118) target = $region16
        $region15: #{_lambda_.73} parent=11 // pred_region
          _
        $region16: #{_lambda_.73} parent=11 // pred_fallthru
          _
        // Predicated region
        $region17: #{_lambda_.73} parent=11 // pred_check
          %p121 = pneg %p77
        $region18: #{_lambda_.73} parent=11 // pred_check_branch
          %123 = sbr.rel (%p121) target = $region20
        $region19: #{_lambda_.73} parent=11 // pred_region
          _
        $region20: #{_lambda_.73} parent=11 // pred_fallthru
          _
      $region12: #{_lambda_.73} parent=5 // pred_fallthru
        _
      %p124 = scmp.lt.s32.totalorder %s9, 8
      // Predicated region
      $region21: #{_lambda_.73} parent=5 // pred_check
        %p125 = pneg %p124
      $region22: #{_lambda_.73} parent=5 // pred_check_branch
        %127 = sbr.rel (%p125) target = $region24
      $region23: #{_lambda_.73} parent=5 // pred_region
        // Predicated region
        $region25: #{_lambda_.73} parent=23 // pred_check
          %p128 = pneg %p50
        $region26: #{_lambda_.73} parent=23 // pred_check_branch
          %130 = sbr.rel (%p128) target = $region28
        $region27: #{_lambda_.73} parent=23 // pred_region
          %s131 = sand.u32 %s40, 1
          %s132 = sand.u32 %s40, 1
          %s133 = smul.addr %s132, 32
          %s134 = scalar_lea.vmem [#allocation2], %s133
          %s135 = smul.u32 4, %s9
          %s136 = smul.addr %s135, 4
          %s137 = scalar_lea.vmem %s1, %s136
          // Predicated region
          $region29: #{_lambda_.73} parent=27 // pred_check
            _
          $region30: #{_lambda_.73} parent=27 // pred_check_branch
            %139 = sbr.rel (0) target = $region32
          $region31: #{_lambda_.73} parent=27 // pred_region
            // Predicated region
            $region33: #{_lambda_.73} parent=31 // pred_check
              _
            $region34: #{_lambda_.73} parent=31 // pred_check_branch
              %141 = sbr.rel (0) target = $region36
            $region35: #{_lambda_.73} parent=31 // pred_region
              loop: start=0, step=1, limit=1
              $region37: #{_lambda_.73} parent=35 // loop_pre_header
                _
              $region38: #{_lambda_.73} parent=35 // loop_header
                %s143 = sphi 0, %s147
                %p144 = scmp.ge.s32.totalorder %s143, 1
                %s148 = sphi %s137, %s137
                %s149 = sphi %s134, %s134
              $region39: #{_lambda_.73} parent=35 // loop_header_branch
                %146 = sbr.rel (%p144) target = $region43
              $region40: #{_lambda_.73} parent=35 // loop_body
                %v150 = vld [vmem:[%s148] sm:$0xff]
                %151 = vst [vmem:[%s149] sm:$0xff] %v150
                %v152 = vld [vmem:[%s148 + $0x8] sm:$0xff]
                %153 = vst [vmem:[%s149 + $0x8] sm:$0xff] %v152
                %v154 = vld [vmem:[%s148 + $0x80] sm:$0xff]
                %155 = vst [vmem:[%s149 + $0x10] sm:$0xff] %v154
                %v156 = vld [vmem:[%s148 + $0x88] sm:$0xff]
                %157 = vst [vmem:[%s149 + $0x18] sm:$0xff] %v156
              $region41: #{_lambda_.73} parent=35 // loop_footer
                %s147 = sadd.s32 1, %s143
              $region42: #{_lambda_.73} parent=35 // loop_footer_branch
                %142 = sbr.rel target = $region38
              $region43: #{_lambda_.73} parent=35 // loop_exit
                _
            $region36: #{_lambda_.73} parent=31 // pred_fallthru
              _
            // Predicated region
            $region44: #{_lambda_.73} parent=31 // pred_check
              _
            $region45: #{_lambda_.73} parent=31 // pred_check_branch
              %159 = sbr.rel target = $region47
            $region46: #{_lambda_.73} parent=31 // pred_region
              _
            $region47: #{_lambda_.73} parent=31 // pred_fallthru
              _
          $region32: #{_lambda_.73} parent=27 // pred_fallthru
            _
          %160 = vnop
        $region28: #{_lambda_.73} parent=23 // pred_fallthru
          _
      $region24: #{_lambda_.73} parent=5 // pred_fallthru
        _
      %p161 = scmp.le.s32.totalorder 1, %s9
      %p162 = scmp.lt.s32.totalorder %s9, 9
      %p163 = pnand %p161, %p162
      %p164 = pneg %p163
      // Predicated region
      $region48: #{_lambda_.73} parent=5 // pred_check
        _
      $region49: #{_lambda_.73} parent=5 // pred_check_branch
        %166 = sbr.rel (%p163) target = $region51
      $region50: #{_lambda_.73} parent=5 // pred_region
        %s167 = ssub.s32 %s9, 1
        %s168 = sand.u32 %s43, 1
        %s169 = sand.u32 %s43, 1
        %s170 = smul.addr %s169, 32
        %s171 = scalar_lea.vmem [#allocation2], %s170
        // Predicated region
        $region52: #{_lambda_.73} parent=50 // pred_check
          %p172 = pneg %p56
        $region53: #{_lambda_.73} parent=50 // pred_check_branch
          %174 = sbr.rel (%p172) target = $region55
        $region54: #{_lambda_.73} parent=50 // pred_region
          _
        $region55: #{_lambda_.73} parent=50 // pred_fallthru
          _
        %p175 = pneg %p30
        %p176 = pneg %p27
        %s177 = sand.u32 %s43, 1
        %s178 = sand.u32 %s43, 1
        %s179 = smul.addr %s178, 32
        %s180 = scalar_lea.vmem [#allocation2], %s179
        %p181 = pneg %p56
        %p182 = pneg %p53
        %p183 = pneg %p77
        %p184 = pneg %p74
        %p185 = pneg %p103
        %p186 = pneg %p100
        %s187 = sand.u32 %s90, 1
        %s188 = sand.u32 %s90, 1
        %s189 = smul.addr %s188, 64
        %s190 = scalar_lea.vmem [#allocation3], %s189
        %s191 = smul.u32 4, %s14
        %s192 = smul.u32 4, %s14
        %v194 = vld [vmem:[%s0] sm:$0xf]
        %v195 = vld [vmem:[%s0 + $0x4] sm:$0xf]
        %v196 = vld [vmem:[%s171] sm:$0xff]
        %v197 = vld [vmem:[%s171 + $0x8] sm:$0xff]
        %v198 = vld [vmem:[%s171 + $0x10] sm:$0xff]
        %v199 = vld [vmem:[%s171 + $0x18] sm:$0xff]
        %v200 = vld [vmem:[%s2] sm:$0xff]
        %v201 = vld [vmem:[%s2 + $0x8] sm:$0xff]
        %203 = vset.pattern.permute.xlu0 0
        %204 = vperm.xlu0 %203, %v200
        %v205 = vpop.permute.xlu0 %204
        %208 = vset.pattern.permute.xlu0 0
        %209 = vperm.xlu0 %208, %v201
        %v210 = vpop.permute.xlu0 %209
        %v214 = vunpack.c.l.b16 %v194
        %v215 = vunpack.c.l.b16 %v195
        %v216 = vpack.c.b16 %v215, %v214
        %v221 = vunpack.c.l.b16 %v196
        %v222 = vunpack.c.h.b16 %v196
        %v223 = vunpack.c.l.b16 %v197
        %v224 = vunpack.c.h.b16 %v197
        %v225 = vunpack.c.l.b16 %v198
        %v226 = vunpack.c.h.b16 %v198
        %v227 = vunpack.c.l.b16 %v199
        %v228 = vunpack.c.h.b16 %v199
        %v229 = vpack.c.b16 %v225, %v221
        %v230 = vpack.c.b16 %v226, %v222
        %v231 = vpack.c.b16 %v227, %v223
        %v232 = vpack.c.b16 %v228, %v224
        %vm237 = vcmask 130048
        %v239 = vsel %vm237, %v216, 0
        %241 = vmatprep.subr.bf16.mxu0 0
        %242 = vmatpush1.bf16.msra.mxu0 0
        %243 = vmatprep.subr.bf16.mxu0 0
        %244 = vmatpush1.bf16.msra.mxu0 0
        %245 = vmatprep.subr.bf16.mxu0 0
        %246 = vmatpush1.bf16.msra.mxu0 0
        %247 = vmatprep.subr.bf16.mxu0 0
        %248 = vmatpush1.bf16.msra.mxu0 0
        %249 = vmatprep.subr.bf16.mxu0 0
        %250 = vmatpush1.bf16.msra.mxu0 0
        %251 = vmatprep.subr.bf16.mxu0 0
        %252 = vmatpush1.bf16.msra.mxu0 0
        %253 = vmatprep.subr.bf16.mxu0 0
        %254 = vmatpush1.bf16.msra.mxu0 0
        %255 = vmatprep.subr.bf16.mxu0 %v230
        %256 = vmatpush1.bf16.msra.mxu0 %v229
        %257 = vmatprep.subr.bf16.mxu0 0
        %258 = vmatpush2.bf16.msra.mxu0 0
        %259 = vmatprep.subr.bf16.mxu0 0
        %260 = vmatpush2.bf16.msra.mxu0 0
        %261 = vmatprep.subr.bf16.mxu0 0
        %262 = vmatpush2.bf16.msra.mxu0 0
        %263 = vmatprep.subr.bf16.mxu0 0
        %264 = vmatpush2.bf16.msra.mxu0 0
        %265 = vmatprep.subr.bf16.mxu0 0
        %266 = vmatpush2.bf16.msra.mxu0 0
        %267 = vmatprep.subr.bf16.mxu0 0
        %268 = vmatpush2.bf16.msra.mxu0 0
        %269 = vmatprep.subr.bf16.mxu0 0
        %270 = vmatpush2.bf16.msra.mxu0 0
        %271 = vmatprep.subr.bf16.mxu0 0
        %272 = vmatpush2.bf16.msra.mxu0 0
        %273 = vmatprep.mubr.bf16.mxu0 0
        %274 = vmatmul.mubr.bf16.gmra.mxu0 %v239
        %v275 = vpop.f32.mrf.mxu0
        %v276 = vadd.f32 %v205, %v275
        %v277 = vpop.f32.mrf.mxu0
        %v278 = vadd.f32 %v205, %v277
        %v279 = vpop.f32.mrf.mxu0
        %v280 = vadd.f32 %v210, %v279
        %v281 = vpop.f32.mrf.mxu0
        %v282 = vadd.f32 %v210, %v281
        %283 = vdwg.mxu0
        %284 = vmatprep.subr.bf16.mxu0 0
        %285 = vmatpush1.bf16.msra.mxu0 0
        %286 = vmatprep.subr.bf16.mxu0 0
        %287 = vmatpush1.bf16.msra.mxu0 0
        %288 = vmatprep.subr.bf16.mxu0 0
        %289 = vmatpush1.bf16.msra.mxu0 0
        %290 = vmatprep.subr.bf16.mxu0 0
        %291 = vmatpush1.bf16.msra.mxu0 0
        %292 = vmatprep.subr.bf16.mxu0 0
        %293 = vmatpush1.bf16.msra.mxu0 0
        %294 = vmatprep.subr.bf16.mxu0 0
        %295 = vmatpush1.bf16.msra.mxu0 0
        %296 = vmatprep.subr.bf16.mxu0 0
        %297 = vmatpush1.bf16.msra.mxu0 0
        %298 = vmatprep.subr.bf16.mxu0 %v232
        %299 = vmatpush1.bf16.msra.mxu0 %v231
        %300 = vmatprep.subr.bf16.mxu0 0
        %301 = vmatpush2.bf16.msra.mxu0 0
        %302 = vmatprep.subr.bf16.mxu0 0
        %303 = vmatpush2.bf16.msra.mxu0 0
        %304 = vmatprep.subr.bf16.mxu0 0
        %305 = vmatpush2.bf16.msra.mxu0 0
        %306 = vmatprep.subr.bf16.mxu0 0
        %307 = vmatpush2.bf16.msra.mxu0 0
        %308 = vmatprep.subr.bf16.mxu0 0
        %309 = vmatpush2.bf16.msra.mxu0 0
        %310 = vmatprep.subr.bf16.mxu0 0
        %311 = vmatpush2.bf16.msra.mxu0 0
        %312 = vmatprep.subr.bf16.mxu0 0
        %313 = vmatpush2.bf16.msra.mxu0 0
        %314 = vmatprep.subr.bf16.mxu0 0
        %315 = vmatpush2.bf16.msra.mxu0 0
        %316 = vmatprep.mubr.bf16.mxu0 0
        %317 = vmatmul.mubr.bf16.gmra.mxu0 %v239
        %v318 = vpop.f32.mrf.mxu0
        %v319 = vadd.f32 %v205, %v318
        %v320 = vpop.f32.mrf.mxu0
        %v321 = vadd.f32 %v205, %v320
        %v322 = vpop.f32.mrf.mxu0
        %v323 = vadd.f32 %v210, %v322
        %v324 = vpop.f32.mrf.mxu0
        %v325 = vadd.f32 %v210, %v324
        %326 = vdwg.mxu0
        %327 = vst [vmem:[%s190] sm:$0xff] %v276
        %328 = vst [vmem:[%s190 + $0x8] sm:$0xff] %v278
        %329 = vst [vmem:[%s190 + $0x10] sm:$0xff] %v319
        %330 = vst [vmem:[%s190 + $0x18] sm:$0xff] %v321
        %331 = vst [vmem:[%s190 + $0x20] sm:$0xff] %v280
        %332 = vst [vmem:[%s190 + $0x28] sm:$0xff] %v282
        %333 = vst [vmem:[%s190 + $0x30] sm:$0xff] %v323
        %334 = vst [vmem:[%s190 + $0x38] sm:$0xff] %v325
        %s335 = sand.u32 %s90, 1
        %s336 = sand.u32 %s90, 1
        %s337 = smul.addr %s336, 64
        %s338 = scalar_lea.vmem [#allocation3], %s337
        // Predicated region
        $region56: #{_lambda_.73} parent=50 // pred_check
          %p339 = pneg %p100
        $region57: #{_lambda_.73} parent=50 // pred_check_branch
          %341 = sbr.rel (%p339) target = $region59
        $region58: #{_lambda_.73} parent=50 // pred_region
          %s342 = smul.u32 4, %s14
          %s343 = smul.addr %s342, 8
          %s344 = scalar_lea.vmem %s3, %s343
          // Predicated region
          $region60: #{_lambda_.73} parent=58 // pred_check
            _
          $region61: #{_lambda_.73} parent=58 // pred_check_branch
            %346 = sbr.rel (0) target = $region63
          $region62: #{_lambda_.73} parent=58 // pred_region
            // Predicated region
            $region64: #{_lambda_.73} parent=62 // pred_check
              _
            $region65: #{_lambda_.73} parent=62 // pred_check_branch
              %348 = sbr.rel (0) target = $region67
            $region66: #{_lambda_.73} parent=62 // pred_region
              loop: start=0, step=1, limit=1
              $region68: #{_lambda_.73} parent=66 // loop_pre_header
                _
              $region69: #{_lambda_.73} parent=66 // loop_header
                %s350 = sphi 0, %s354
                %p351 = scmp.ge.s32.totalorder %s350, 1
                %s355 = sphi %s338, %s338
                %s356 = sphi %s344, %s344
              $region70: #{_lambda_.73} parent=66 // loop_header_branch
                %353 = sbr.rel (%p351) target = $region74
              $region71: #{_lambda_.73} parent=66 // loop_body
                %v357 = vld [vmem:[%s355] sm:$0xff]
                %358 = vst [vmem:[%s356] sm:$0xff] %v357
                %v359 = vld [vmem:[%s355 + $0x8] sm:$0xff]
                %360 = vst [vmem:[%s356 + $0x8] sm:$0xff] %v359
                %v361 = vld [vmem:[%s355 + $0x10] sm:$0xff]
                %362 = vst [vmem:[%s356 + $0x10] sm:$0xff] %v361
                %v363 = vld [vmem:[%s355 + $0x18] sm:$0xff]
                %364 = vst [vmem:[%s356 + $0x18] sm:$0xff] %v363
                %v365 = vld [vmem:[%s355 + $0x20] sm:$0xff]
                %366 = vst [vmem:[%s356 + $0x100] sm:$0xff] %v365
                %v367 = vld [vmem:[%s355 + $0x28] sm:$0xff]
                %368 = vst [vmem:[%s356 + $0x108] sm:$0xff] %v367
                %v369 = vld [vmem:[%s355 + $0x30] sm:$0xff]
                %370 = vst [vmem:[%s356 + $0x110] sm:$0xff] %v369
                %v371 = vld [vmem:[%s355 + $0x38] sm:$0xff]
                %372 = vst [vmem:[%s356 + $0x118] sm:$0xff] %v371
              $region72: #{_lambda_.73} parent=66 // loop_footer
                %s354 = sadd.s32 1, %s350
              $region73: #{_lambda_.73} parent=66 // loop_footer_branch
                %349 = sbr.rel target = $region69
              $region74: #{_lambda_.73} parent=66 // loop_exit
                _
            $region67: #{_lambda_.73} parent=62 // pred_fallthru
              _
            // Predicated region
            $region75: #{_lambda_.73} parent=62 // pred_check
              _
            $region76: #{_lambda_.73} parent=62 // pred_check_branch
              %374 = sbr.rel target = $region78
            $region77: #{_lambda_.73} parent=62 // pred_region
              _
            $region78: #{_lambda_.73} parent=62 // pred_fallthru
              _
          $region63: #{_lambda_.73} parent=58 // pred_fallthru
            _
          %375 = vnop
        $region59: #{_lambda_.73} parent=50 // pred_fallthru
          _
      $region51: #{_lambda_.73} parent=5 // pred_fallthru
        _
      %p376 = scmp.le.s32.totalorder 2, %s9
      // Predicated region
      $region79: #{_lambda_.73} parent=5 // pred_check
        %p377 = pneg %p376
      $region80: #{_lambda_.73} parent=5 // pred_check_branch
        %379 = sbr.rel (%p377) target = $region82
      $region81: #{_lambda_.73} parent=5 // pred_region
        %s380 = ssub.s32 %s9, 2
        // Predicated region
        $region83: #{_lambda_.73} parent=81 // pred_check
          %p381 = pneg %p106
        $region84: #{_lambda_.73} parent=81 // pred_check_branch
          %383 = sbr.rel (%p381) target = $region86
        $region85: #{_lambda_.73} parent=81 // pred_region
          %s384 = sand.u32 %s91, 1
          %s385 = sand.u32 %s91, 1
          %s386 = smul.addr %s385, 64
          %s387 = scalar_lea.vmem [#allocation3], %s386
        $region86: #{_lambda_.73} parent=81 // pred_fallthru
          _
      $region82: #{_lambda_.73} parent=5 // pred_fallthru
        _
    $region6: #{_lambda_.73} parent=1 // loop_footer
      %s13 = sadd.s32 1, %s9
    $region7: #{_lambda_.73} parent=1 // loop_footer_branch
      %8 = sbr.rel target = $region3
    $region8: #{_lambda_.73} parent=1 // loop_exit
      _

</llo_original>
